<compile_context>
chip_gen: v7x
topology: tpu7x:2x2x1
jax: 0.10.0
libtpu: 0.0.40
codegen_flags: <defaults>
</compile_context>

<pallas_src>
import functools
import math

import jax
import jax.numpy as jnp
from jax import lax
from jax.experimental import pallas as pl
from jax.experimental.pallas import tpu as pltpu

EPS = 1e-5          # BatchNorm2d eps used by the module
LANE = 128          # pad channel / K dims to multiples of the TPU lane width
# Rows per tile for the 1x1-conv matmuls.  256 keeps 2x double-buffered
# (tile_M*K + tile_M*C + weights) well under v7x's 64 MiB VMEM; v6e/v5e (128 MiB)
# could use 512-1024.  TODO(synk): per-generation tile sweep.
DEFAULT_TM = 256
VMEM_LIMIT = 48 * 1024 * 1024   # explicit scoped-VMEM limit (safe on v5e/v6e/v7x)


# ---------------------------------------------------------------------------
# small helpers
# ---------------------------------------------------------------------------
def _round_up(a, b):
    return (a + b - 1) // b * b


def _cpad(c):
    return _round_up(c, LANE)


def _pick_tm(m):
    return min(DEFAULT_TM, _round_up(m, 8))


def _pad2d(a, rows, cols):
    return jnp.pad(a, ((0, rows - a.shape[0]), (0, cols - a.shape[1])))


def _pad_vec(v, cols):
    return jnp.pad(v.astype(jnp.float32), (0, cols - v.shape[0])).reshape(1, cols)


def _cparams(semantics):
    return pltpu.CompilerParams(dimension_semantics=semantics,
                                vmem_limit_bytes=VMEM_LIMIT)


def _same_pad(i, k, s, d=1):
    return max((math.ceil(i / s) - 1) * s + (k - 1) * d + 1 - i, 0)


# ---------------------------------------------------------------------------
# Pallas kernels
# ---------------------------------------------------------------------------
def _bn_scale_shift(sum_ref, sq_ref, g_ref, b_ref, m_true):
    # per-channel scale/shift from accumulated sum / sum-of-squares (single pass,
    # var = E[y^2] - mean^2;  y accumulated in f32).
    inv_m = 1.0 / float(m_true)
    mean = sum_ref[...] * inv_m
    var = sq_ref[...] * inv_m - mean * mean
    scale = g_ref[...] * lax.rsqrt(var + EPS)
    shift = b_ref[...] - mean * scale
    return scale, shift


def _mm_stats_kernel(x_ref, w_ref, g_ref, b_ref, scale_ref, shift_ref,
                     acc_s, acc_q, *, m_true):
    i = pl.program_id(0)

    @pl.when(i == 0)
    def _():
        acc_s[...] = jnp.zeros_like(acc_s)
        acc_q[...] = jnp.zeros_like(acc_q)

    y = jnp.dot(x_ref[...], w_ref[...], preferred_element_type=jnp.float32)
    acc_s[...] += jnp.sum(y, axis=0, keepdims=True)
    acc_q[...] += jnp.sum(y * y, axis=0, keepdims=True)

    @pl.when(i == pl.num_programs(0) - 1)
    def _():
        scale, shift = _bn_scale_shift(acc_s, acc_q, g_ref, b_ref, m_true)
        scale_ref[...] = scale
        shift_ref[...] = shift


def _mm_apply_kernel(x_ref, w_ref, scale_ref, shift_ref, o_ref, *, relu):
    y = jnp.dot(x_ref[...], w_ref[...], preferred_element_type=jnp.float32)
    out = y * scale_ref[...] + shift_ref[...]
    if relu:
        out = jnp.maximum(out, 0.0)
    o_ref[...] = out.astype(o_ref.dtype)


def _mm_dual_apply_kernel(x_ref, w_ref, scale_ref, shift_ref,
                          xs_ref, wds_ref, scale_ds_ref, shift_ds_ref, o_ref):
    # fused: BN3(conv3(x)) + BN_ds(conv_ds(xs)) -> add -> ReLU   (one HBM write)
    y = jnp.dot(x_ref[...], w_ref[...], preferred_element_type=jnp.float32)
    yd = jnp.dot(xs_ref[...], wds_ref[...], preferred_element_type=jnp.float32)
    out = (y * scale_ref[...] + shift_ref[...]
           + yd * scale_ds_ref[...] + shift_ds_ref[...])
    o_ref[...] = jnp.maximum(out, 0.0).astype(o_ref.dtype)


def _mm_res_apply_kernel(x_ref, w_ref, scale_ref, shift_ref, res_ref, o_ref):
    # fused: BN3(conv3(x)) + identity residual -> ReLU
    y = jnp.dot(x_ref[...], w_ref[...], preferred_element_type=jnp.float32)
    out = y * scale_ref[...] + shift_ref[...] + res_ref[...].astype(jnp.float32)
    o_ref[...] = jnp.maximum(out, 0.0).astype(o_ref.dtype)


def _conv2_accum(xd_ref, w_ref, *, ho, wo, k, s):
    # 3x3 direct conv on a phase-decomposed per-image block:
    #   xd_ref[(kh%s)*s + kw%s, kh//s + oh, kw//s + ow, :] == padded_x[kh + s*oh, kw + s*ow, :]
    # -> 9 shifted (unstrided) matmuls accumulated in f32.
    cp = w_ref.shape[-1]
    acc = jnp.zeros((ho * wo, cp), jnp.float32)
    t = 0
    for kh in range(k):
        for kw in range(k):
            p = (kh % s) * s + (kw % s)
            r0, c0 = kh // s, kw // s
            tap = xd_ref[p, r0:r0 + ho, c0:c0 + wo, :]
            acc = acc + jnp.dot(tap.reshape(ho * wo, tap.shape[-1]), w_ref[t],
                                preferred_element_type=jnp.float32)
            t += 1
    return acc


def _conv2_stats_kernel(xd_ref, w_ref, g_ref, b_ref, scale_ref, shift_ref,
                        acc_s, acc_q, *, ho, wo, k, s, m_true):
    i = pl.program_id(0)

    @pl.when(i == 0)
    def _():
        acc_s[...] = jnp.zeros_like(acc_s)
        acc_q[...] = jnp.zeros_like(acc_q)

    y = _conv2_accum(xd_ref, w_ref, ho=ho, wo=wo, k=k, s=s)
    acc_s[...] += jnp.sum(y, axis=0, keepdims=True)
    acc_q[...] += jnp.sum(y * y, axis=0, keepdims=True)

    @pl.when(i == pl.num_programs(0) - 1)
    def _():
        scale, shift = _bn_scale_shift(acc_s, acc_q, g_ref, b_ref, m_true)
        scale_ref[...] = scale
        shift_ref[...] = shift


def _conv2_apply_kernel(xd_ref, w_ref, scale_ref, shift_ref, o_ref, *, ho, wo, k, s):
    y = _conv2_accum(xd_ref, w_ref, ho=ho, wo=wo, k=k, s=s)
    out = jnp.maximum(y * scale_ref[...] + shift_ref[...], 0.0)
    o_ref[...] = out[None].astype(o_ref.dtype)


# ---------------------------------------------------------------------------
# pallas_call wrappers
# ---------------------------------------------------------------------------
def matmul_bn_stats(x2d, w, gamma, beta, m_true, *, tm):
    mp, kp = x2d.shape
    cp = w.shape[1]
    vec = pl.BlockSpec((1, cp), lambda i: (0, 0))
    return pl.pallas_call(
        functools.partial(_mm_stats_kernel, m_true=m_true),
        out_shape=(jax.ShapeDtypeStruct((1, cp), jnp.float32),
                   jax.ShapeDtypeStruct((1, cp), jnp.float32)),
        grid=(mp // tm,),
        in_specs=[pl.BlockSpec((tm, kp), lambda i: (i, 0)),
                  pl.BlockSpec((kp, cp), lambda i: (0, 0)),
                  vec, vec],
        out_specs=(vec, vec),
        scratch_shapes=[pltpu.VMEM((1, cp), jnp.float32),
                        pltpu.VMEM((1, cp), jnp.float32)],
        compiler_params=_cparams(("arbitrary",)),
    )(x2d, w, gamma, beta)


def matmul_bn_apply(x2d, w, scale, shift, *, relu, tm, out_dtype):
    mp, kp = x2d.shape
    cp = w.shape[1]
    vec = pl.BlockSpec((1, cp), lambda i: (0, 0))
    return pl.pallas_call(
        functools.partial(_mm_apply_kernel, relu=relu),
        out_shape=jax.ShapeDtypeStruct((mp, cp), out_dtype),
        grid=(mp // tm,),
        in_specs=[pl.BlockSpec((tm, kp), lambda i: (i, 0)),
                  pl.BlockSpec((kp, cp), lambda i: (0, 0)),
                  vec, vec],
        out_specs=pl.BlockSpec((tm, cp), lambda i: (i, 0)),
        compiler_params=_cparams(("parallel",)),
    )(x2d, w, scale, shift)


def matmul_bn_dual_apply(x2d, w, scale, shift, xs2d, wds, scale_ds, shift_ds, *, tm):
    mp, kp = x2d.shape
    cp = w.shape[1]
    kp2 = xs2d.shape[1]
    vec = pl.BlockSpec((1, cp), lambda i: (0, 0))
    return pl.pallas_call(
        _mm_dual_apply_kernel,
        out_shape=jax.ShapeDtypeStruct((mp, cp), jnp.float32),
        grid=(mp // tm,),
        in_specs=[pl.BlockSpec((tm, kp), lambda i: (i, 0)),
                  pl.BlockSpec((kp, cp), lambda i: (0, 0)),
                  vec, vec,
                  pl.BlockSpec((tm, kp2), lambda i: (i, 0)),
                  pl.BlockSpec((kp2, cp), lambda i: (0, 0)),
                  vec, vec],
        out_specs=pl.BlockSpec((tm, cp), lambda i: (i, 0)),
        compiler_params=_cparams(("parallel",)),
    )(x2d, w, scale, shift, xs2d, wds, scale_ds, shift_ds)


def matmul_bn_res_apply(x2d, w, scale, shift, res2d, *, tm):
    mp, kp = x2d.shape
    cp = w.shape[1]
    vec = pl.BlockSpec((1, cp), lambda i: (0, 0))
    return pl.pallas_call(
        _mm_res_apply_kernel,
        out_shape=jax.ShapeDtypeStruct((mp, cp), jnp.float32),
        grid=(mp // tm,),
        in_specs=[pl.BlockSpec((tm, kp), lambda i: (i, 0)),
                  pl.BlockSpec((kp, cp), lambda i: (0, 0)),
                  vec, vec,
                  pl.BlockSpec((tm, cp), lambda i: (i, 0))],
        out_specs=pl.BlockSpec((tm, cp), lambda i: (i, 0)),
        compiler_params=_cparams(("parallel",)),
    )(x2d, w, scale, shift, res2d)


def conv2_bn_stats(xd, w_taps, gamma, beta, m_true, *, n, ho, wo, k, s):
    _, hd, wd, cin_p = xd.shape
    cp = w_taps.shape[-1]
    vec = pl.BlockSpec((1, cp), lambda i: (0, 0))
    return pl.pallas_call(
        functools.partial(_conv2_stats_kernel, ho=ho, wo=wo, k=k, s=s, m_true=m_true),
        out_shape=(jax.ShapeDtypeStruct((1, cp), jnp.float32),
                   jax.ShapeDtypeStruct((1, cp), jnp.float32)),
        grid=(n,),
        in_specs=[pl.BlockSpec((s * s, hd, wd, cin_p), lambda i: (i, 0, 0, 0)),
                  pl.BlockSpec((k * k, cin_p, cp), lambda i: (0, 0, 0)),
                  vec, vec],
        out_specs=(vec, vec),
        scratch_shapes=[pltpu.VMEM((1, cp), jnp.float32),
                        pltpu.VMEM((1, cp), jnp.float32)],
        compiler_params=_cparams(("arbitrary",)),
    )(xd, w_taps, gamma, beta)


def conv2_bn_apply(xd, w_taps, scale, shift, *, n, ho, wo, k, s, out_dtype):
    _, hd, wd, cin_p = xd.shape
    cp = w_taps.shape[-1]
    vec = pl.BlockSpec((1, cp), lambda i: (0, 0))
    return pl.pallas_call(
        functools.partial(_conv2_apply_kernel, ho=ho, wo=wo, k=k, s=s),
        out_shape=jax.ShapeDtypeStruct((n, ho * wo, cp), out_dtype),
        grid=(n,),
        in_specs=[pl.BlockSpec((s * s, hd, wd, cin_p), lambda i: (i, 0, 0, 0)),
                  pl.BlockSpec((k * k, cin_p, cp), lambda i: (0, 0, 0)),
                  vec, vec],
        out_specs=pl.BlockSpec((1, ho * wo, cp), lambda i: (i, 0, 0)),
        compiler_params=_cparams(("parallel",)),
    )(xd, w_taps, scale, shift)


# ---------------------------------------------------------------------------
# Bottleneck forward (Pallas)
# ---------------------------------------------------------------------------
# TODO(synk): the dilate=True (dilation=2) branch of conv3x3 is not implemented;
#             this exercises the module's default dilate=False path.
def bottleneck_forward(x_nchw, params, *, stride):
    x = jnp.transpose(x_nchw, (0, 2, 3, 1)).astype(jnp.float32)  # NCHW -> NHWC
    n, h, w_sz, cin = x.shape
    w1, w2, w3 = params["w1"], params["w2"], params["w3"]
    cmid = w1.shape[0]
    cout = 4 * cmid
    cin_p, cmid_p, cout_p = _cpad(cin), _cpad(cmid), _cpad(cout)

    # -------------------- conv1 (1x1, s=1) + BN1 + ReLU --------------------
    m1 = n * h * w_sz
    tm1 = _pick_tm(m1)
    m1p = _round_up(m1, tm1)
    x1 = _pad2d(x.reshape(m1, cin), m1p, cin_p).astype(jnp.bfloat16)
    w1m = _pad2d(w1.reshape(cmid, cin).T, cin_p, cmid_p).astype(jnp.bfloat16)
    g1, b1 = _pad_vec(params["g1"], cmid_p), _pad_vec(params["b1"], cmid_p)
    s1, h1 = matmul_bn_stats(x1, w1m, g1, b1, m1, tm=tm1)
    out1 = matmul_bn_apply(x1, w1m, s1, h1, relu=True, tm=tm1,
                           out_dtype=jnp.bfloat16)[:m1]

    # ------------- conv2 (3x3, stride, TF-"same" pad) + BN2 + ReLU ---------
    s = stride
    ph, pw = _same_pad(h, 3, s), _same_pad(w_sz, 3, s)
    hp, wp = h + ph, w_sz + pw
    ho, wo = (hp - 3) // s + 1, (wp - 3) // s + 1
    hd, wd = -(-hp // s), -(-wp // s)
    o1 = out1.reshape(n, h, w_sz, cmid_p)
    o1p = jnp.pad(o1, ((0, 0),
                       (ph // 2, ph - ph // 2 + (s * hd - hp)),
                       (pw // 2, pw - pw // 2 + (s * wd - wp)),
                       (0, 0)))
    # phase ("space-to-batch") decomposition: kernel taps become unstrided slices.
    xd = o1p.reshape(n, hd, s, wd, s, cmid_p).transpose(0, 2, 4, 1, 3, 5)
    xd = xd.reshape(n * s * s, hd, wd, cmid_p)
    w2t = jnp.transpose(w2, (2, 3, 1, 0)).reshape(9, cmid, cmid)
    w2t = jnp.pad(w2t, ((0, 0), (0, cmid_p - cmid), (0, cmid_p - cmid))).astype(jnp.bfloat16)
    g2, b2 = _pad_vec(params["g2"], cmid_p), _pad_vec(params["b2"], cmid_p)
    m2 = n * ho * wo
    s2, h2 = conv2_bn_stats(xd, w2t, g2, b2, m2, n=n, ho=ho, wo=wo, k=3, s=s)
    out2 = conv2_bn_apply(xd, w2t, s2, h2, n=n, ho=ho, wo=wo, k=3, s=s,
                          out_dtype=jnp.bfloat16)
    x2 = out2.reshape(m2, cmid_p)

    # ------- conv3 (1x1) + BN3  fused with downsample / residual + ReLU ----
    tm2 = _pick_tm(m2)
    m2p = _round_up(m2, tm2)
    x2 = _pad2d(x2, m2p, cmid_p)
    w3m = _pad2d(w3.reshape(cout, cmid).T, cmid_p, cout_p).astype(jnp.bfloat16)
    g3, b3 = _pad_vec(params["g3"], cout_p), _pad_vec(params["b3"], cout_p)
    s3, h3 = matmul_bn_stats(x2, w3m, g3, b3, m2, tm=tm2)

    if params.get("wds") is not None:
        # TODO(synk): the stride-s decimation of x is a wrapper-side XLA slice
        #             (strided reads are not expressible in a BlockSpec index_map).
        xs = x[:, ::s, ::s, :][:, :ho, :wo, :]
        xs2d = _pad2d(xs.reshape(m2, cin), m2p, cin_p).astype(jnp.bfloat16)
        wdsm = _pad2d(params["wds"].reshape(cout, cin).T, cin_p, cout_p).astype(jnp.bfloat16)
        gds, bds = _pad_vec(params["gds"], cout_p), _pad_vec(params["bds"], cout_p)
        sds, hds = matmul_bn_stats(xs2d, wdsm, gds, bds, m2, tm=tm2)
        out = matmul_bn_dual_apply(x2, w3m, s3, h3, xs2d, wdsm, sds, hds, tm=tm2)
    else:
        # identity shortcut only exists when stride == 1 and cin == 4*cmid
        assert s == 1 and cin == cout, "identity shortcut requires stride=1, cin=4*out_channels"
        res = _pad2d(x.reshape(m1, cin), m2p, cout_p)
        out = matmul_bn_res_apply(x2, w3m, s3, h3, res, tm=tm2)

    out = out[:m2, :cout].reshape(n, ho, wo, cout)
    return jnp.transpose(out, (0, 3, 1, 2))  # NHWC -> NCHW


# ---------------------------------------------------------------------------
# Pure-JAX reference (for correctness check)
# ---------------------------------------------------------------------------
def _conv_same_ref(x, w, stride, compute_dtype):
    k = w.shape[2]
    _, hh, ww, _ = x.shape
    ph, pw = _same_pad(hh, k, stride), _same_pad(ww, k, stride)
    return lax.conv_general_dilated(
        x.astype(compute_dtype), jnp.transpose(w, (2, 3, 1, 0)).astype(compute_dtype),
        window_strides=(stride, stride),
        padding=((ph // 2, ph - ph // 2), (pw // 2, pw - pw // 2)),
        dimension_numbers=("NHWC", "HWIO", "NHWC"),
        preferred_element_type=jnp.float32)


def _bn_ref(y, g, b):
    mean = jnp.mean(y, axis=(0, 1, 2), keepdims=True)
    var = jnp.mean(jnp.square(y - mean), axis=(0, 1, 2), keepdims=True)
    return (y - mean) * lax.rsqrt(var + EPS) * g + b


def bottleneck_ref(x_nchw, params, *, stride, compute_dtype):
    x = jnp.transpose(x_nchw, (0, 2, 3, 1)).astype(jnp.float32)
    out = jax.nn.relu(_bn_ref(_conv_same_ref(x, params["w1"], 1, compute_dtype),
                              params["g1"], params["b1"]))
    out = jax.nn.relu(_bn_ref(_conv_same_ref(out, params["w2"], stride, compute_dtype),
                              params["g2"], params["b2"]))
    out = _bn_ref(_conv_same_ref(out, params["w3"], 1, compute_dtype),
                  params["g3"], params["b3"])
    if params.get("wds") is not None:
        ds = _bn_ref(_conv_same_ref(x, params["wds"], stride, compute_dtype),
                     params["gds"], params["bds"])
    else:
        ds = x
    return jnp.transpose(jax.nn.relu(out + ds), (0, 3, 1, 2))


# ---------------------------------------------------------------------------
if __name__ == "__main__":
    N, Cin, H, W = 2, 16, 16, 16
    Cmid = 8            # out_channels
    stride = 2          # exercises the conv-downsample path
    Cout = 4 * Cmid

    key = jax.random.PRNGKey(0)
    kx, k1, k2, k3, k4 = jax.random.split(key, 5)
    x = jax.random.normal(kx, (N, Cin, H, W), jnp.float32)

    params = {
        "w1": jax.random.normal(k1, (Cmid, Cin, 1, 1), jnp.float32) / math.sqrt(Cin),
        "w2": jax.random.normal(k2, (Cmid, Cmid, 3, 3), jnp.float32) / math.sqrt(9 * Cmid),
        "w3": jax.random.normal(k3, (Cout, Cmid, 1, 1), jnp.float32) / math.sqrt(Cmid),
        "g1": jnp.ones((Cmid,), jnp.float32), "b1": jnp.zeros((Cmid,), jnp.float32),
        "g2": jnp.ones((Cmid,), jnp.float32), "b2": jnp.zeros((Cmid,), jnp.float32),
        "g3": jnp.ones((Cout,), jnp.float32), "b3": jnp.zeros((Cout,), jnp.float32),
    }
    if stride != 1 or Cin != Cout:
        params["wds"] = jax.random.normal(k4, (Cout, Cin, 1, 1), jnp.float32) / math.sqrt(Cin)
        params["gds"] = jnp.ones((Cout,), jnp.float32)
        params["bds"] = jnp.zeros((Cout,), jnp.float32)
    else:
        params["wds"] = None

    fwd = jax.jit(functools.partial(bottleneck_forward, stride=stride))
    ref_bf16 = jax.jit(functools.partial(bottleneck_ref, stride=stride,
                                         compute_dtype=jnp.bfloat16))
    ref_f32 = jax.jit(functools.partial(bottleneck_ref, stride=stride,
                                        compute_dtype=jnp.float32))

    out = jax.block_until_ready(fwd(x, params))
    r16 = jax.block_until_ready(ref_bf16(x, params))
    r32 = jax.block_until_ready(ref_f32(x, params))

    assert out.shape == r32.shape == (N, Cout, math.ceil(H / stride), math.ceil(W / stride))
    err_matched = float(jnp.max(jnp.abs(out - r16)))   # vs reference at matched (bf16) precision
    err_f32 = float(jnp.max(jnp.abs(out - r32)))       # vs full-f32 reference (bf16 storage noise)
    assert err_matched < 3e-2, f"mismatch vs bf16-matched reference: {err_matched}"
    assert err_f32 < 2.5e-1, f"mismatch vs f32 reference: {err_f32}"
    print("KERNEL_OK")
</pallas_src>

<mosaic_0001>
module attributes {stable_mosaic.version = 11 : i64} {
  func.func @_mm_stats_kernel(%arg0: i32, %arg1: memref<256x128xbf16, #tpu.memory_space<vmem>>, %arg2: memref<128x128xbf16, #tpu.memory_space<vmem>>, %arg3: memref<1x128xf32, #tpu.memory_space<vmem>>, %arg4: memref<1x128xf32, #tpu.memory_space<vmem>>, %arg5: memref<1x128xf32, #tpu.memory_space<vmem>>, %arg6: memref<1x128xf32, #tpu.memory_space<vmem>>, %arg7: memref<1x128xf32, #tpu.memory_space<vmem>>, %arg8: memref<1x128xf32, #tpu.memory_space<vmem>>) attributes {dimension_semantics = [#tpu.dimension_semantics<arbitrary>], iteration_bounds = array<i64: 2>, scalar_prefetch = 0 : i64, scratch_operands = 2 : i64, tpu.core_type = #tpu.core_type<tc>, window_params = [{transform_indices = @transform_0, window_bounds = array<i64: 256, 128>}, {pipeline_mode = #tpu.pipeline_mode<synchronous>, transform_indices = @transform_1, window_bounds = array<i64: 128, 128>}, {pipeline_mode = #tpu.pipeline_mode<synchronous>, transform_indices = @transform_2, window_bounds = array<i64: 1, 128>}, {pipeline_mode = #tpu.pipeline_mode<synchronous>, transform_indices = @transform_3, window_bounds = array<i64: 1, 128>}, {pipeline_mode = #tpu.pipeline_mode<synchronous>, transform_indices = @transform_4, window_bounds = array<i64: 1, 128>}, {pipeline_mode = #tpu.pipeline_mode<synchronous>, transform_indices = @transform_5, window_bounds = array<i64: 1, 128>}]} {
    %c0_i32 = arith.constant 0 : i32
    %0 = arith.cmpi eq, %arg0, %c0_i32 : i32
    %1 = arith.extui %0 : i1 to i32
    %c0_i32_0 = arith.constant 0 : i32
    %2 = arith.cmpi ne, %1, %c0_i32_0 : i32
    scf.if %2 {
      %cst_15 = arith.constant 0.000000e+00 : f32
      %20 = vector.broadcast %cst_15 : f32 to vector<1x128xf32>
      %c0_16 = arith.constant 0 : index
      %c0_17 = arith.constant 0 : index
      %21 = vector.load %arg7[%c0_16, %c0_17] : memref<1x128xf32, #tpu.memory_space<vmem>>, vector<1x128xf32>
      tpu.vector_store %arg7[%c0_16, %c0_17], %20 {strides = array<i32>} : memref<1x128xf32, #tpu.memory_space<vmem>>, vector<1x128xf32>,
      %cst_18 = arith.constant 0.000000e+00 : f32
      %22 = vector.broadcast %cst_18 : f32 to vector<1x128xf32>
      %c0_19 = arith.constant 0 : index
      %c0_20 = arith.constant 0 : index
      %23 = vector.load %arg8[%c0_19, %c0_20] : memref<1x128xf32, #tpu.memory_space<vmem>>, vector<1x128xf32>
      tpu.vector_store %arg8[%c0_19, %c0_20], %22 {strides = array<i32>} : memref<1x128xf32, #tpu.memory_space<vmem>>, vector<1x128xf32>,
    } else {
    }
    %c0 = arith.constant 0 : index
    %c0_1 = arith.constant 0 : index
    %3 = vector.load %arg1[%c0, %c0_1] : memref<256x128xbf16, #tpu.memory_space<vmem>>, vector<256x128xbf16>
    %c0_2 = arith.constant 0 : index
    %c0_3 = arith.constant 0 : index
    %4 = vector.load %arg2[%c0_2, %c0_3] : memref<128x128xbf16, #tpu.memory_space<vmem>>, vector<128x128xbf16>
    %cst = arith.constant dense<0.000000e+00> : vector<256x128xf32>
    %5 = tpu.matmul %3, %4, %cst {dimension_numbers = #tpu.dot_dimension_numbers<[1], [0], [0], [1], [0, 0, 1, 1], [], []>} : vector<256x128xbf16>, vector<128x128xbf16>, vector<256x128xf32> -> vector<256x128xf32>
    %c0_4 = arith.constant 0 : index
    %c0_5 = arith.constant 0 : index
    %6 = vector.load %arg7[%c0_4, %c0_5] : memref<1x128xf32, #tpu.memory_space<vmem>>, vector<1x128xf32>
    %cst_6 = arith.constant dense<0.000000e+00> : vector<128xf32>
    %7 = vector.multi_reduction <add>, %5, %cst_6 [0] : vector<256x128xf32> to vector<128xf32>
    %8 = vector.shape_cast %7 : vector<128xf32> to vector<1x128xf32>
    %9 = arith.addf %6, %8 : vector<1x128xf32>
    %c0_7 = arith.constant 0 : index
    %c0_8 = arith.constant 0 : index
    %10 = vector.load %arg7[%c0_7, %c0_8] : memref<1x128xf32, #tpu.memory_space<vmem>>, vector<1x128xf32>
    tpu.vector_store %arg7[%c0_7, %c0_8], %9 {strides = array<i32>} : memref<1x128xf32, #tpu.memory_space<vmem>>, vector<1x128xf32>,
    %c0_9 = arith.constant 0 : index
    %c0_10 = arith.constant 0 : index
    %11 = vector.load %arg8[%c0_9, %c0_10] : memref<1x128xf32, #tpu.memory_space<vmem>>, vector<1x128xf32>
    %12 = arith.mulf %5, %5 : vector<256x128xf32>
    %cst_11 = arith.constant dense<0.000000e+00> : vector<128xf32>
    %13 = vector.multi_reduction <add>, %12, %cst_11 [0] : vector<256x128xf32> to vector<128xf32>
    %14 = vector.shape_cast %13 : vector<128xf32> to vector<1x128xf32>
    %15 = arith.addf %11, %14 : vector<1x128xf32>
    %c0_12 = arith.constant 0 : index
    %c0_13 = arith.constant 0 : index
    %16 = vector.load %arg8[%c0_12, %c0_13] : memref<1x128xf32, #tpu.memory_space<vmem>>, vector<1x128xf32>
    tpu.vector_store %arg8[%c0_12, %c0_13], %15 {strides = array<i32>} : memref<1x128xf32, #tpu.memory_space<vmem>>, vector<1x128xf32>,
    %c1_i32 = arith.constant 1 : i32
    %17 = arith.cmpi eq, %arg0, %c1_i32 : i32
    %18 = arith.extui %17 : i1 to i32
    %c0_i32_14 = arith.constant 0 : i32
    %19 = arith.cmpi ne, %18, %c0_i32_14 : i32
    scf.if %19 {
      %c0_15 = arith.constant 0 : index
      %c0_16 = arith.constant 0 : index
      %20 = vector.load %arg7[%c0_15, %c0_16] : memref<1x128xf32, #tpu.memory_space<vmem>>, vector<1x128xf32>
      %cst_17 = arith.constant 0.001953125 : f32
      %21 = vector.broadcast %cst_17 : f32 to vector<1x128xf32>
      %22 = arith.mulf %20, %21 : vector<1x128xf32>
      %c0_18 = arith.constant 0 : index
      %c0_19 = arith.constant 0 : index
      %23 = vector.load %arg8[%c0_18, %c0_19] : memref<1x128xf32, #tpu.memory_space<vmem>>, vector<1x128xf32>
      %cst_20 = arith.constant 0.001953125 : f32
      %24 = vector.broadcast %cst_20 : f32 to vector<1x128xf32>
      %25 = arith.mulf %23, %24 : vector<1x128xf32>
      %26 = arith.mulf %22, %22 : vector<1x128xf32>
      %27 = arith.subf %25, %26 : vector<1x128xf32>
      %c0_21 = arith.constant 0 : index
      %c0_22 = arith.constant 0 : index
      %28 = vector.load %arg3[%c0_21, %c0_22] : memref<1x128xf32, #tpu.memory_space<vmem>>, vector<1x128xf32>
      %cst_23 = arith.constant 9.99999974E-6 : f32
      %29 = vector.broadcast %cst_23 : f32 to vector<1x128xf32>
      %30 = arith.addf %27, %29 : vector<1x128xf32>
      %31 = math.rsqrt %30 : vector<1x128xf32>
      %32 = arith.mulf %28, %31 : vector<1x128xf32>
      %c0_24 = arith.constant 0 : index
      %c0_25 = arith.constant 0 : index
      %33 = vector.load %arg4[%c0_24, %c0_25] : memref<1x128xf32, #tpu.memory_space<vmem>>, vector<1x128xf32>
      %34 = arith.mulf %22, %32 : vector<1x128xf32>
      %35 = arith.subf %33, %34 : vector<1x128xf32>
      %c0_26 = arith.constant 0 : index
      %c0_27 = arith.constant 0 : index
      %36 = vector.load %arg5[%c0_26, %c0_27] : memref<1x128xf32, #tpu.memory_space<vmem>>, vector<1x128xf32>
      tpu.vector_store %arg5[%c0_26, %c0_27], %32 {strides = array<i32>} : memref<1x128xf32, #tpu.memory_space<vmem>>, vector<1x128xf32>,
      %c0_28 = arith.constant 0 : index
      %c0_29 = arith.constant 0 : index
      %37 = vector.load %arg6[%c0_28, %c0_29] : memref<1x128xf32, #tpu.memory_space<vmem>>, vector<1x128xf32>
      tpu.vector_store %arg6[%c0_28, %c0_29], %35 {strides = array<i32>} : memref<1x128xf32, #tpu.memory_space<vmem>>, vector<1x128xf32>,
    } else {
    }
    return
  }
  func.func @transform_0(%arg0: i32) -> (i32, i32) {
    %c0_i32 = arith.constant 0 : i32
    %c0_i32_0 = arith.constant 0 : i32
    return %arg0, %c0_i32 : i32, i32
  }
  func.func @transform_1(%arg0: i32) -> (i32, i32) {
    %c0_i32 = arith.constant 0 : i32
    %c0_i32_0 = arith.constant 0 : i32
    %c0_i32_1 = arith.constant 0 : i32
    return %c0_i32, %c0_i32_0 : i32, i32
  }
  func.func @transform_2(%arg0: i32) -> (i32, i32) {
    %c0_i32 = arith.constant 0 : i32
    %c0_i32_0 = arith.constant 0 : i32
    %c0_i32_1 = arith.constant 0 : i32
    return %c0_i32, %c0_i32_0 : i32, i32
  }
  func.func @transform_3(%arg0: i32) -> (i32, i32) {
    %c0_i32 = arith.constant 0 : i32
    %c0_i32_0 = arith.constant 0 : i32
    %c0_i32_1 = arith.constant 0 : i32
    return %c0_i32, %c0_i32_0 : i32, i32
  }
  func.func @transform_4(%arg0: i32) -> (i32, i32) {
    %c0_i32 = arith.constant 0 : i32
    %c0_i32_0 = arith.constant 0 : i32
    %c0_i32_1 = arith.constant 0 : i32
    return %c0_i32, %c0_i32_0 : i32, i32
  }
  func.func @transform_5(%arg0: i32) -> (i32, i32) {
    %c0_i32 = arith.constant 0 : i32
    %c0_i32_0 = arith.constant 0 : i32
    %c0_i32_1 = arith.constant 0 : i32
    return %c0_i32, %c0_i32_0 : i32, i32
  }
}

module attributes {stable_mosaic.version = 11 : i64} {
  func.func @_mm_apply_kernel(%arg0: i32, %arg1: memref<256x128xbf16, #tpu.memory_space<vmem>>, %arg2: memref<128x128xbf16, #tpu.memory_space<vmem>>, %arg3: memref<1x128xf32, #tpu.memory_space<vmem>>, %arg4: memref<1x128xf32, #tpu.memory_space<vmem>>, %arg5: memref<256x128xbf16, #tpu.memory_space<vmem>>) attributes {dimension_semantics = [#tpu.dimension_semantics<parallel>], iteration_bounds = array<i64: 2>, scalar_prefetch = 0 : i64, scratch_operands = 0 : i64, tpu.core_type = #tpu.core_type<tc>, window_params = [{transform_indices = @transform_0, window_bounds = array<i64: 256, 128>}, {pipeline_mode = #tpu.pipeline_mode<synchronous>, transform_indices = @transform_1, window_bounds = array<i64: 128, 128>}, {pipeline_mode = #tpu.pipeline_mode<synchronous>, transform_indices = @transform_2, window_bounds = array<i64: 1, 128>}, {pipeline_mode = #tpu.pipeline_mode<synchronous>, transform_indices = @transform_3, window_bounds = array<i64: 1, 128>}, {transform_indices = @transform_4, window_bounds = array<i64: 256, 128>}]} {
    %c0 = arith.constant 0 : index
    %c0_0 = arith.constant 0 : index
    %0 = vector.load %arg1[%c0, %c0_0] : memref<256x128xbf16, #tpu.memory_space<vmem>>, vector<256x128xbf16>
    %c0_1 = arith.constant 0 : index
    %c0_2 = arith.constant 0 : index
    %1 = vector.load %arg2[%c0_1, %c0_2] : memref<128x128xbf16, #tpu.memory_space<vmem>>, vector<128x128xbf16>
    %cst = arith.constant dense<0.000000e+00> : vector<256x128xf32>
    %2 = tpu.matmul %0, %1, %cst {dimension_numbers = #tpu.dot_dimension_numbers<[1], [0], [0], [1], [0, 0, 1, 1], [], []>} : vector<256x128xbf16>, vector<128x128xbf16>, vector<256x128xf32> -> vector<256x128xf32>
    %c0_3 = arith.constant 0 : index
    %c0_4 = arith.constant 0 : index
    %3 = vector.load %arg3[%c0_3, %c0_4] : memref<1x128xf32, #tpu.memory_space<vmem>>, vector<1x128xf32>
    %4 = vector.broadcast %3 : vector<1x128xf32> to vector<256x128xf32>
    %5 = arith.mulf %2, %4 : vector<256x128xf32>
    %c0_5 = arith.constant 0 : index
    %c0_6 = arith.constant 0 : index
    %6 = vector.load %arg4[%c0_5, %c0_6] : memref<1x128xf32, #tpu.memory_space<vmem>>, vector<1x128xf32>
    %7 = vector.broadcast %6 : vector<1x128xf32> to vector<256x128xf32>
    %8 = arith.addf %5, %7 : vector<256x128xf32>
    %cst_7 = arith.constant 0.000000e+00 : f32
    %9 = vector.broadcast %cst_7 : f32 to vector<256x128xf32>
    %10 = arith.maximumf %8, %9 : vector<256x128xf32>
    %11 = arith.truncf %10 : vector<256x128xf32> to vector<256x128xbf16>
    %c0_8 = arith.constant 0 : index
    %c0_9 = arith.constant 0 : index
    %12 = vector.load %arg5[%c0_8, %c0_9] : memref<256x128xbf16, #tpu.memory_space<vmem>>, vector<256x128xbf16>
    tpu.vector_store %arg5[%c0_8, %c0_9], %11 {strides = array<i32>} : memref<256x128xbf16, #tpu.memory_space<vmem>>, vector<256x128xbf16>,
    return
  }
  func.func @transform_0(%arg0: i32) -> (i32, i32) {
    %c0_i32 = arith.constant 0 : i32
    %c0_i32_0 = arith.constant 0 : i32
    return %arg0, %c0_i32 : i32, i32
  }
  func.func @transform_1(%arg0: i32) -> (i32, i32) {
    %c0_i32 = arith.constant 0 : i32
    %c0_i32_0 = arith.constant 0 : i32
    %c0_i32_1 = arith.constant 0 : i32
    return %c0_i32, %c0_i32_0 : i32, i32
  }
  func.func @transform_2(%arg0: i32) -> (i32, i32) {
    %c0_i32 = arith.constant 0 : i32
    %c0_i32_0 = arith.constant 0 : i32
    %c0_i32_1 = arith.constant 0 : i32
    return %c0_i32, %c0_i32_0 : i32, i32
  }
  func.func @transform_3(%arg0: i32) -> (i32, i32) {
    %c0_i32 = arith.constant 0 : i32
    %c0_i32_0 = arith.constant 0 : i32
    %c0_i32_1 = arith.constant 0 : i32
    return %c0_i32, %c0_i32_0 : i32, i32
  }
  func.func @transform_4(%arg0: i32) -> (i32, i32) {
    %c0_i32 = arith.constant 0 : i32
    %c0_i32_0 = arith.constant 0 : i32
    return %arg0, %c0_i32 : i32, i32
  }
}

module attributes {stable_mosaic.version = 11 : i64} {
  func.func @_mm_stats_kernel(%arg0: i32, %arg1: memref<128x128xbf16, #tpu.memory_space<vmem>>, %arg2: memref<128x128xbf16, #tpu.memory_space<vmem>>, %arg3: memref<1x128xf32, #tpu.memory_space<vmem>>, %arg4: memref<1x128xf32, #tpu.memory_space<vmem>>, %arg5: memref<1x128xf32, #tpu.memory_space<vmem>>, %arg6: memref<1x128xf32, #tpu.memory_space<vmem>>, %arg7: memref<1x128xf32, #tpu.memory_space<vmem>>, %arg8: memref<1x128xf32, #tpu.memory_space<vmem>>) attributes {dimension_semantics = [#tpu.dimension_semantics<arbitrary>], iteration_bounds = array<i64: 1>, scalar_prefetch = 0 : i64, scratch_operands = 2 : i64, tpu.core_type = #tpu.core_type<tc>, window_params = [{transform_indices = @transform_0, window_bounds = array<i64: 128, 128>}, {pipeline_mode = #tpu.pipeline_mode<synchronous>, transform_indices = @transform_1, window_bounds = array<i64: 128, 128>}, {pipeline_mode = #tpu.pipeline_mode<synchronous>, transform_indices = @transform_2, window_bounds = array<i64: 1, 128>}, {pipeline_mode = #tpu.pipeline_mode<synchronous>, transform_indices = @transform_3, window_bounds = array<i64: 1, 128>}, {pipeline_mode = #tpu.pipeline_mode<synchronous>, transform_indices = @transform_4, window_bounds = array<i64: 1, 128>}, {pipeline_mode = #tpu.pipeline_mode<synchronous>, transform_indices = @transform_5, window_bounds = array<i64: 1, 128>}]} {
    %c0_i32 = arith.constant 0 : i32
    %0 = arith.cmpi eq, %arg0, %c0_i32 : i32
    %1 = arith.extui %0 : i1 to i32
    %c0_i32_0 = arith.constant 0 : i32
    %2 = arith.cmpi ne, %1, %c0_i32_0 : i32
    scf.if %2 {
      %cst_16 = arith.constant 0.000000e+00 : f32
      %20 = vector.broadcast %cst_16 : f32 to vector<1x128xf32>
      %c0_17 = arith.constant 0 : index
      %c0_18 = arith.constant 0 : index
      %21 = vector.load %arg7[%c0_17, %c0_18] : memref<1x128xf32, #tpu.memory_space<vmem>>, vector<1x128xf32>
      tpu.vector_store %arg7[%c0_17, %c0_18], %20 {strides = array<i32>} : memref<1x128xf32, #tpu.memory_space<vmem>>, vector<1x128xf32>,
      %cst_19 = arith.constant 0.000000e+00 : f32
      %22 = vector.broadcast %cst_19 : f32 to vector<1x128xf32>
      %c0_20 = arith.constant 0 : index
      %c0_21 = arith.constant 0 : index
      %23 = vector.load %arg8[%c0_20, %c0_21] : memref<1x128xf32, #tpu.memory_space<vmem>>, vector<1x128xf32>
      tpu.vector_store %arg8[%c0_20, %c0_21], %22 {strides = array<i32>} : memref<1x128xf32, #tpu.memory_space<vmem>>, vector<1x128xf32>,
    } else {
    }
    %c0 = arith.constant 0 : index
    %c0_1 = arith.constant 0 : index
    %3 = vector.load %arg1[%c0, %c0_1] : memref<128x128xbf16, #tpu.memory_space<vmem>>, vector<128x128xbf16>
    %c0_2 = arith.constant 0 : index
    %c0_3 = arith.constant 0 : index
    %4 = vector.load %arg2[%c0_2, %c0_3] : memref<128x128xbf16, #tpu.memory_space<vmem>>, vector<128x128xbf16>
    %cst = arith.constant dense<0.000000e+00> : vector<128x128xf32>
    %5 = tpu.matmul %3, %4, %cst {dimension_numbers = #tpu.dot_dimension_numbers<[1], [0], [0], [1], [0, 0, 1, 1], [], []>} : vector<128x128xbf16>, vector<128x128xbf16>, vector<128x128xf32> -> vector<128x128xf32>
    %c0_4 = arith.constant 0 : index
    %c0_5 = arith.constant 0 : index
    %6 = vector.load %arg7[%c0_4, %c0_5] : memref<1x128xf32, #tpu.memory_space<vmem>>, vector<1x128xf32>
    %cst_6 = arith.constant dense<0.000000e+00> : vector<128xf32>
    %7 = vector.multi_reduction <add>, %5, %cst_6 [0] : vector<128x128xf32> to vector<128xf32>
    %8 = vector.shape_cast %7 : vector<128xf32> to vector<1x128xf32>
    %9 = arith.addf %6, %8 : vector<1x128xf32>
    %c0_7 = arith.constant 0 : index
    %c0_8 = arith.constant 0 : index
    %10 = vector.load %arg7[%c0_7, %c0_8] : memref<1x128xf32, #tpu.memory_space<vmem>>, vector<1x128xf32>
    tpu.vector_store %arg7[%c0_7, %c0_8], %9 {strides = array<i32>} : memref<1x128xf32, #tpu.memory_space<vmem>>, vector<1x128xf32>,
    %c0_9 = arith.constant 0 : index
    %c0_10 = arith.constant 0 : index
    %11 = vector.load %arg8[%c0_9, %c0_10] : memref<1x128xf32, #tpu.memory_space<vmem>>, vector<1x128xf32>
    %12 = arith.mulf %5, %5 : vector<128x128xf32>
    %cst_11 = arith.constant dense<0.000000e+00> : vector<128xf32>
    %13 = vector.multi_reduction <add>, %12, %cst_11 [0] : vector<128x128xf32> to vector<128xf32>
    %14 = vector.shape_cast %13 : vector<128xf32> to vector<1x128xf32>
    %15 = arith.addf %11, %14 : vector<1x128xf32>
    %c0_12 = arith.constant 0 : index
    %c0_13 = arith.constant 0 : index
    %16 = vector.load %arg8[%c0_12, %c0_13] : memref<1x128xf32, #tpu.memory_space<vmem>>, vector<1x128xf32>
    tpu.vector_store %arg8[%c0_12, %c0_13], %15 {strides = array<i32>} : memref<1x128xf32, #tpu.memory_space<vmem>>, vector<1x128xf32>,
    %c0_i32_14 = arith.constant 0 : i32
    %17 = arith.cmpi eq, %arg0, %c0_i32_14 : i32
    %18 = arith.extui %17 : i1 to i32
    %c0_i32_15 = arith.constant 0 : i32
    %19 = arith.cmpi ne, %18, %c0_i32_15 : i32
    scf.if %19 {
      %c0_16 = arith.constant 0 : index
      %c0_17 = arith.constant 0 : index
      %20 = vector.load %arg7[%c0_16, %c0_17] : memref<1x128xf32, #tpu.memory_space<vmem>>, vector<1x128xf32>
      %cst_18 = arith.constant 7.812500e-03 : f32
      %21 = vector.broadcast %cst_18 : f32 to vector<1x128xf32>
      %22 = arith.mulf %20, %21 : vector<1x128xf32>
      %c0_19 = arith.constant 0 : index
      %c0_20 = arith.constant 0 : index
      %23 = vector.load %arg8[%c0_19, %c0_20] : memref<1x128xf32, #tpu.memory_space<vmem>>, vector<1x128xf32>
      %cst_21 = arith.constant 7.812500e-03 : f32
      %24 = vector.broadcast %cst_21 : f32 to vector<1x128xf32>
      %25 = arith.mulf %23, %24 : vector<1x128xf32>
      %26 = arith.mulf %22, %22 : vector<1x128xf32>
      %27 = arith.subf %25, %26 : vector<1x128xf32>
      %c0_22 = arith.constant 0 : index
      %c0_23 = arith.constant 0 : index
      %28 = vector.load %arg3[%c0_22, %c0_23] : memref<1x128xf32, #tpu.memory_space<vmem>>, vector<1x128xf32>
      %cst_24 = arith.constant 9.99999974E-6 : f32
      %29 = vector.broadcast %cst_24 : f32 to vector<1x128xf32>
      %30 = arith.addf %27, %29 : vector<1x128xf32>
      %31 = math.rsqrt %30 : vector<1x128xf32>
      %32 = arith.mulf %28, %31 : vector<1x128xf32>
      %c0_25 = arith.constant 0 : index
      %c0_26 = arith.constant 0 : index
      %33 = vector.load %arg4[%c0_25, %c0_26] : memref<1x128xf32, #tpu.memory_space<vmem>>, vector<1x128xf32>
      %34 = arith.mulf %22, %32 : vector<1x128xf32>
      %35 = arith.subf %33, %34 : vector<1x128xf32>
      %c0_27 = arith.constant 0 : index
      %c0_28 = arith.constant 0 : index
      %36 = vector.load %arg5[%c0_27, %c0_28] : memref<1x128xf32, #tpu.memory_space<vmem>>, vector<1x128xf32>
      tpu.vector_store %arg5[%c0_27, %c0_28], %32 {strides = array<i32>} : memref<1x128xf32, #tpu.memory_space<vmem>>, vector<1x128xf32>,
      %c0_29 = arith.constant 0 : index
      %c0_30 = arith.constant 0 : index
      %37 = vector.load %arg6[%c0_29, %c0_30] : memref<1x128xf32, #tpu.memory_space<vmem>>, vector<1x128xf32>
      tpu.vector_store %arg6[%c0_29, %c0_30], %35 {strides = array<i32>} : memref<1x128xf32, #tpu.memory_space<vmem>>, vector<1x128xf32>,
    } else {
    }
    return
  }
  func.func @transform_0(%arg0: i32) -> (i32, i32) {
    %c0_i32 = arith.constant 0 : i32
    %c0_i32_0 = arith.constant 0 : i32
    return %arg0, %c0_i32 : i32, i32
  }
  func.func @transform_1(%arg0: i32) -> (i32, i32) {
    %c0_i32 = arith.constant 0 : i32
    %c0_i32_0 = arith.constant 0 : i32
    %c0_i32_1 = arith.constant 0 : i32
    return %c0_i32, %c0_i32_0 : i32, i32
  }
  func.func @transform_2(%arg0: i32) -> (i32, i32) {
    %c0_i32 = arith.constant 0 : i32
    %c0_i32_0 = arith.constant 0 : i32
    %c0_i32_1 = arith.constant 0 : i32
    return %c0_i32, %c0_i32_0 : i32, i32
  }
  func.func @transform_3(%arg0: i32) -> (i32, i32) {
    %c0_i32 = arith.constant 0 : i32
    %c0_i32_0 = arith.constant 0 : i32
    %c0_i32_1 = arith.constant 0 : i32
    return %c0_i32, %c0_i32_0 : i32, i32
  }
  func.func @transform_4(%arg0: i32) -> (i32, i32) {
    %c0_i32 = arith.constant 0 : i32
    %c0_i32_0 = arith.constant 0 : i32
    %c0_i32_1 = arith.constant 0 : i32
    return %c0_i32, %c0_i32_0 : i32, i32
  }
  func.func @transform_5(%arg0: i32) -> (i32, i32) {
    %c0_i32 = arith.constant 0 : i32
    %c0_i32_0 = arith.constant 0 : i32
    %c0_i32_1 = arith.constant 0 : i32
    return %c0_i32, %c0_i32_0 : i32, i32
  }
}

module attributes {stable_mosaic.version = 11 : i64} {
  func.func @_conv2_stats_kernel(%arg0: i32, %arg1: memref<4x9x9x128xbf16, #tpu.memory_space<vmem>>, %arg2: memref<9x128x128xbf16, #tpu.memory_space<vmem>>, %arg3: memref<1x128xf32, #tpu.memory_space<vmem>>, %arg4: memref<1x128xf32, #tpu.memory_space<vmem>>, %arg5: memref<1x128xf32, #tpu.memory_space<vmem>>, %arg6: memref<1x128xf32, #tpu.memory_space<vmem>>, %arg7: memref<1x128xf32, #tpu.memory_space<vmem>>, %arg8: memref<1x128xf32, #tpu.memory_space<vmem>>) attributes {dimension_semantics = [#tpu.dimension_semantics<arbitrary>], iteration_bounds = array<i64: 2>, scalar_prefetch = 0 : i64, scratch_operands = 2 : i64, tpu.core_type = #tpu.core_type<tc>, window_params = [{transform_indices = @transform_0, window_bounds = array<i64: 4, 9, 9, 128>}, {pipeline_mode = #tpu.pipeline_mode<synchronous>, transform_indices = @transform_1, window_bounds = array<i64: 9, 128, 128>}, {pipeline_mode = #tpu.pipeline_mode<synchronous>, transform_indices = @transform_2, window_bounds = array<i64: 1, 128>}, {pipeline_mode = #tpu.pipeline_mode<synchronous>, transform_indices = @transform_3, window_bounds = array<i64: 1, 128>}, {pipeline_mode = #tpu.pipeline_mode<synchronous>, transform_indices = @transform_4, window_bounds = array<i64: 1, 128>}, {pipeline_mode = #tpu.pipeline_mode<synchronous>, transform_indices = @transform_5, window_bounds = array<i64: 1, 128>}]} {
    %c0_i32 = arith.constant 0 : i32
    %0 = arith.cmpi eq, %arg0, %c0_i32 : i32
    %1 = arith.extui %0 : i1 to i32
    %c0_i32_0 = arith.constant 0 : i32
    %2 = arith.cmpi ne, %1, %c0_i32_0 : i32
    scf.if %2 {
      %cst_75 = arith.constant 0.000000e+00 : f32
      %81 = vector.broadcast %cst_75 : f32 to vector<1x128xf32>
      %c0_76 = arith.constant 0 : index
      %c0_77 = arith.constant 0 : index
      %82 = vector.load %arg7[%c0_76, %c0_77] : memref<1x128xf32, #tpu.memory_space<vmem>>, vector<1x128xf32>
      tpu.vector_store %arg7[%c0_76, %c0_77], %81 {strides = array<i32>} : memref<1x128xf32, #tpu.memory_space<vmem>>, vector<1x128xf32>,
      %cst_78 = arith.constant 0.000000e+00 : f32
      %83 = vector.broadcast %cst_78 : f32 to vector<1x128xf32>
      %c0_79 = arith.constant 0 : index
      %c0_80 = arith.constant 0 : index
      %84 = vector.load %arg8[%c0_79, %c0_80] : memref<1x128xf32, #tpu.memory_space<vmem>>, vector<1x128xf32>
      tpu.vector_store %arg8[%c0_79, %c0_80], %83 {strides = array<i32>} : memref<1x128xf32, #tpu.memory_space<vmem>>, vector<1x128xf32>,
    } else {
    }
    %cst = arith.constant 0.000000e+00 : f32
    %3 = vector.broadcast %cst : f32 to vector<64x128xf32>
    %c0 = arith.constant 0 : index
    %c0_1 = arith.constant 0 : index
    %c0_2 = arith.constant 0 : index
    %c0_3 = arith.constant 0 : index
    %4 = vector.load %arg1[%c0, %c0_1, %c0_2, %c0_3] : memref<4x9x9x128xbf16, #tpu.memory_space<vmem>>, vector<1x8x8x128xbf16>
    %5 = vector.shape_cast %4 : vector<1x8x8x128xbf16> to vector<8x8x128xbf16>
    %6 = vector.shape_cast %5 : vector<8x8x128xbf16> to vector<64x128xbf16>
    %c0_4 = arith.constant 0 : index
    %c0_5 = arith.constant 0 : index
    %c0_6 = arith.constant 0 : index
    %7 = vector.load %arg2[%c0_4, %c0_5, %c0_6] : memref<9x128x128xbf16, #tpu.memory_space<vmem>>, vector<1x128x128xbf16>
    %8 = vector.shape_cast %7 : vector<1x128x128xbf16> to vector<128x128xbf16>
    %cst_7 = arith.constant dense<0.000000e+00> : vector<64x128xf32>
    %9 = tpu.matmul %6, %8, %cst_7 {dimension_numbers = #tpu.dot_dimension_numbers<[1], [0], [0], [1], [0, 0, 1, 1], [], []>} : vector<64x128xbf16>, vector<128x128xbf16>, vector<64x128xf32> -> vector<64x128xf32>
    %10 = arith.addf %3, %9 : vector<64x128xf32>
    %c1 = arith.constant 1 : index
    %c0_8 = arith.constant 0 : index
    %c0_9 = arith.constant 0 : index
    %c0_10 = arith.constant 0 : index
    %11 = vector.load %arg1[%c1, %c0_8, %c0_9, %c0_10] : memref<4x9x9x128xbf16, #tpu.memory_space<vmem>>, vector<1x8x8x128xbf16>
    %12 = vector.shape_cast %11 : vector<1x8x8x128xbf16> to vector<8x8x128xbf16>
    %13 = vector.shape_cast %12 : vector<8x8x128xbf16> to vector<64x128xbf16>
    %c1_11 = arith.constant 1 : index
    %c0_12 = arith.constant 0 : index
    %c0_13 = arith.constant 0 : index
    %14 = vector.load %arg2[%c1_11, %c0_12, %c0_13] : memref<9x128x128xbf16, #tpu.memory_space<vmem>>, vector<1x128x128xbf16>
    %15 = vector.shape_cast %14 : vector<1x128x128xbf16> to vector<128x128xbf16>
    %cst_14 = arith.constant dense<0.000000e+00> : vector<64x128xf32>
    %16 = tpu.matmul %13, %15, %cst_14 {dimension_numbers = #tpu.dot_dimension_numbers<[1], [0], [0], [1], [0, 0, 1, 1], [], []>} : vector<64x128xbf16>, vector<128x128xbf16>, vector<64x128xf32> -> vector<64x128xf32>
    %17 = arith.addf %10, %16 : vector<64x128xf32>
    %c0_15 = arith.constant 0 : index
    %c0_16 = arith.constant 0 : index
    %c1_17 = arith.constant 1 : index
    %c0_18 = arith.constant 0 : index
    %18 = vector.load %arg1[%c0_15, %c0_16, %c1_17, %c0_18] : memref<4x9x9x128xbf16, #tpu.memory_space<vmem>>, vector<1x8x8x128xbf16>
    %19 = vector.shape_cast %18 : vector<1x8x8x128xbf16> to vector<8x8x128xbf16>
    %20 = vector.shape_cast %19 : vector<8x8x128xbf16> to vector<64x128xbf16>
    %c2 = arith.constant 2 : index
    %c0_19 = arith.constant 0 : index
    %c0_20 = arith.constant 0 : index
    %21 = vector.load %arg2[%c2, %c0_19, %c0_20] : memref<9x128x128xbf16, #tpu.memory_space<vmem>>, vector<1x128x128xbf16>
    %22 = vector.shape_cast %21 : vector<1x128x128xbf16> to vector<128x128xbf16>
    %cst_21 = arith.constant dense<0.000000e+00> : vector<64x128xf32>
    %23 = tpu.matmul %20, %22, %cst_21 {dimension_numbers = #tpu.dot_dimension_numbers<[1], [0], [0], [1], [0, 0, 1, 1], [], []>} : vector<64x128xbf16>, vector<128x128xbf16>, vector<64x128xf32> -> vector<64x128xf32>
    %24 = arith.addf %17, %23 : vector<64x128xf32>
    %c2_22 = arith.constant 2 : index
    %c0_23 = arith.constant 0 : index
    %c0_24 = arith.constant 0 : index
    %c0_25 = arith.constant 0 : index
    %25 = vector.load %arg1[%c2_22, %c0_23, %c0_24, %c0_25] : memref<4x9x9x128xbf16, #tpu.memory_space<vmem>>, vector<1x8x8x128xbf16>
    %26 = vector.shape_cast %25 : vector<1x8x8x128xbf16> to vector<8x8x128xbf16>
    %27 = vector.shape_cast %26 : vector<8x8x128xbf16> to vector<64x128xbf16>
    %c3 = arith.constant 3 : index
    %c0_26 = arith.constant 0 : index
    %c0_27 = arith.constant 0 : index
    %28 = vector.load %arg2[%c3, %c0_26, %c0_27] : memref<9x128x128xbf16, #tpu.memory_space<vmem>>, vector<1x128x128xbf16>
    %29 = vector.shape_cast %28 : vector<1x128x128xbf16> to vector<128x128xbf16>
    %cst_28 = arith.constant dense<0.000000e+00> : vector<64x128xf32>
    %30 = tpu.matmul %27, %29, %cst_28 {dimension_numbers = #tpu.dot_dimension_numbers<[1], [0], [0], [1], [0, 0, 1, 1], [], []>} : vector<64x128xbf16>, vector<128x128xbf16>, vector<64x128xf32> -> vector<64x128xf32>
    %31 = arith.addf %24, %30 : vector<64x128xf32>
    %c3_29 = arith.constant 3 : index
    %c0_30 = arith.constant 0 : index
    %c0_31 = arith.constant 0 : index
    %c0_32 = arith.constant 0 : index
    %32 = vector.load %arg1[%c3_29, %c0_30, %c0_31, %c0_32] : memref<4x9x9x128xbf16, #tpu.memory_space<vmem>>, vector<1x8x8x128xbf16>
    %33 = vector.shape_cast %32 : vector<1x8x8x128xbf16> to vector<8x8x128xbf16>
    %34 = vector.shape_cast %33 : vector<8x8x128xbf16> to vector<64x128xbf16>
    %c4 = arith.constant 4 : index
    %c0_33 = arith.constant 0 : index
    %c0_34 = arith.constant 0 : index
    %35 = vector.load %arg2[%c4, %c0_33, %c0_34] : memref<9x128x128xbf16, #tpu.memory_space<vmem>>, vector<1x128x128xbf16>
    %36 = vector.shape_cast %35 : vector<1x128x128xbf16> to vector<128x128xbf16>
    %cst_35 = arith.constant dense<0.000000e+00> : vector<64x128xf32>
    %37 = tpu.matmul %34, %36, %cst_35 {dimension_numbers = #tpu.dot_dimension_numbers<[1], [0], [0], [1], [0, 0, 1, 1], [], []>} : vector<64x128xbf16>, vector<128x128xbf16>, vector<64x128xf32> -> vector<64x128xf32>
    %38 = arith.addf %31, %37 : vector<64x128xf32>
    %c2_36 = arith.constant 2 : index
    %c0_37 = arith.constant 0 : index
    %c1_38 = arith.constant 1 : index
    %c0_39 = arith.constant 0 : index
    %39 = vector.load %arg1[%c2_36, %c0_37, %c1_38, %c0_39] : memref<4x9x9x128xbf16, #tpu.memory_space<vmem>>, vector<1x8x8x128xbf16>
    %40 = vector.shape_cast %39 : vector<1x8x8x128xbf16> to vector<8x8x128xbf16>
    %41 = vector.shape_cast %40 : vector<8x8x128xbf16> to vector<64x128xbf16>
    %c5 = arith.constant 5 : index
    %c0_40 = arith.constant 0 : index
    %c0_41 = arith.constant 0 : index
    %42 = vector.load %arg2[%c5, %c0_40, %c0_41] : memref<9x128x128xbf16, #tpu.memory_space<vmem>>, vector<1x128x128xbf16>
    %43 = vector.shape_cast %42 : vector<1x128x128xbf16> to vector<128x128xbf16>
    %cst_42 = arith.constant dense<0.000000e+00> : vector<64x128xf32>
    %44 = tpu.matmul %41, %43, %cst_42 {dimension_numbers = #tpu.dot_dimension_numbers<[1], [0], [0], [1], [0, 0, 1, 1], [], []>} : vector<64x128xbf16>, vector<128x128xbf16>, vector<64x128xf32> -> vector<64x128xf32>
    %45 = arith.addf %38, %44 : vector<64x128xf32>
    %c0_43 = arith.constant 0 : index
    %c1_44 = arith.constant 1 : index
    %c0_45 = arith.constant 0 : index
    %c0_46 = arith.constant 0 : index
    %46 = vector.load %arg1[%c0_43, %c1_44, %c0_45, %c0_46] : memref<4x9x9x128xbf16, #tpu.memory_space<vmem>>, vector<1x8x8x128xbf16>
    %47 = vector.shape_cast %46 : vector<1x8x8x128xbf16> to vector<8x8x128xbf16>
    %48 = vector.shape_cast %47 : vector<8x8x128xbf16> to vector<64x128xbf16>
    %c6 = arith.constant 6 : index
    %c0_47 = arith.constant 0 : index
    %c0_48 = arith.constant 0 : index
    %49 = vector.load %arg2[%c6, %c0_47, %c0_48] : memref<9x128x128xbf16, #tpu.memory_space<vmem>>, vector<1x128x128xbf16>
    %50 = vector.shape_cast %49 : vector<1x128x128xbf16> to vector<128x128xbf16>
    %cst_49 = arith.constant dense<0.000000e+00> : vector<64x128xf32>
    %51 = tpu.matmul %48, %50, %cst_49 {dimension_numbers = #tpu.dot_dimension_numbers<[1], [0], [0], [1], [0, 0, 1, 1], [], []>} : vector<64x128xbf16>, vector<128x128xbf16>, vector<64x128xf32> -> vector<64x128xf32>
    %52 = arith.addf %45, %51 : vector<64x128xf32>
    %c1_50 = arith.constant 1 : index
    %c1_51 = arith.constant 1 : index
    %c0_52 = arith.constant 0 : index
    %c0_53 = arith.constant 0 : index
    %53 = vector.load %arg1[%c1_50, %c1_51, %c0_52, %c0_53] : memref<4x9x9x128xbf16, #tpu.memory_space<vmem>>, vector<1x8x8x128xbf16>
    %54 = vector.shape_cast %53 : vector<1x8x8x128xbf16> to vector<8x8x128xbf16>
    %55 = vector.shape_cast %54 : vector<8x8x128xbf16> to vector<64x128xbf16>
    %c7 = arith.constant 7 : index
    %c0_54 = arith.constant 0 : index
    %c0_55 = arith.constant 0 : index
    %56 = vector.load %arg2[%c7, %c0_54, %c0_55] : memref<9x128x128xbf16, #tpu.memory_space<vmem>>, vector<1x128x128xbf16>
    %57 = vector.shape_cast %56 : vector<1x128x128xbf16> to vector<128x128xbf16>
    %cst_56 = arith.constant dense<0.000000e+00> : vector<64x128xf32>
    %58 = tpu.matmul %55, %57, %cst_56 {dimension_numbers = #tpu.dot_dimension_numbers<[1], [0], [0], [1], [0, 0, 1, 1], [], []>} : vector<64x128xbf16>, vector<128x128xbf16>, vector<64x128xf32> -> vector<64x128xf32>
    %59 = arith.addf %52, %58 : vector<64x128xf32>
    %c0_57 = arith.constant 0 : index
    %c1_58 = arith.constant 1 : index
    %c1_59 = arith.constant 1 : index
    %c0_60 = arith.constant 0 : index
    %60 = vector.load %arg1[%c0_57, %c1_58, %c1_59, %c0_60] : memref<4x9x9x128xbf16, #tpu.memory_space<vmem>>, vector<1x8x8x128xbf16>
    %61 = vector.shape_cast %60 : vector<1x8x8x128xbf16> to vector<8x8x128xbf16>
    %62 = vector.shape_cast %61 : vector<8x8x128xbf16> to vector<64x128xbf16>
    %c8 = arith.constant 8 : index
    %c0_61 = arith.constant 0 : index
    %c0_62 = arith.constant 0 : index
    %63 = vector.load %arg2[%c8, %c0_61, %c0_62] : memref<9x128x128xbf16, #tpu.memory_space<vmem>>, vector<1x128x128xbf16>
    %64 = vector.shape_cast %63 : vector<1x128x128xbf16> to vector<128x128xbf16>
    %cst_63 = arith.constant dense<0.000000e+00> : vector<64x128xf32>
    %65 = tpu.matmul %62, %64, %cst_63 {dimension_numbers = #tpu.dot_dimension_numbers<[1], [0], [0], [1], [0, 0, 1, 1], [], []>} : vector<64x128xbf16>, vector<128x128xbf16>, vector<64x128xf32> -> vector<64x128xf32>
    %66 = arith.addf %59, %65 : vector<64x128xf32>
    %c0_64 = arith.constant 0 : index
    %c0_65 = arith.constant 0 : index
    %67 = vector.load %arg7[%c0_64, %c0_65] : memref<1x128xf32, #tpu.memory_space<vmem>>, vector<1x128xf32>
    %cst_66 = arith.constant dense<0.000000e+00> : vector<128xf32>
    %68 = vector.multi_reduction <add>, %66, %cst_66 [0] : vector<64x128xf32> to vector<128xf32>
    %69 = vector.shape_cast %68 : vector<128xf32> to vector<1x128xf32>
    %70 = arith.addf %67, %69 : vector<1x128xf32>
    %c0_67 = arith.constant 0 : index
    %c0_68 = arith.constant 0 : index
    %71 = vector.load %arg7[%c0_67, %c0_68] : memref<1x128xf32, #tpu.memory_space<vmem>>, vector<1x128xf32>
    tpu.vector_store %arg7[%c0_67, %c0_68], %70 {strides = array<i32>} : memref<1x128xf32, #tpu.memory_space<vmem>>, vector<1x128xf32>,
    %c0_69 = arith.constant 0 : index
    %c0_70 = arith.constant 0 : index
    %72 = vector.load %arg8[%c0_69, %c0_70] : memref<1x128xf32, #tpu.memory_space<vmem>>, vector<1x128xf32>
    %73 = arith.mulf %66, %66 : vector<64x128xf32>
    %cst_71 = arith.constant dense<0.000000e+00> : vector<128xf32>
    %74 = vector.multi_reduction <add>, %73, %cst_71 [0] : vector<64x128xf32> to vector<128xf32>
    %75 = vector.shape_cast %74 : vector<128xf32> to vector<1x128xf32>
    %76 = arith.addf %72, %75 : vector<1x128xf32>
    %c0_72 = arith.constant 0 : index
    %c0_73 = arith.constant 0 : index
    %77 = vector.load %arg8[%c0_72, %c0_73] : memref<1x128xf32, #tpu.memory_space<vmem>>, vector<1x128xf32>
    tpu.vector_store %arg8[%c0_72, %c0_73], %76 {strides = array<i32>} : memref<1x128xf32, #tpu.memory_space<vmem>>, vector<1x128xf32>,
    %c1_i32 = arith.constant 1 : i32
    %78 = arith.cmpi eq, %arg0, %c1_i32 : i32
    %79 = arith.extui %78 : i1 to i32
    %c0_i32_74 = arith.constant 0 : i32
    %80 = arith.cmpi ne, %79, %c0_i32_74 : i32
    scf.if %80 {
      %c0_75 = arith.constant 0 : index
      %c0_76 = arith.constant 0 : index
      %81 = vector.load %arg7[%c0_75, %c0_76] : memref<1x128xf32, #tpu.memory_space<vmem>>, vector<1x128xf32>
      %cst_77 = arith.constant 7.812500e-03 : f32
      %82 = vector.broadcast %cst_77 : f32 to vector<1x128xf32>
      %83 = arith.mulf %81, %82 : vector<1x128xf32>
      %c0_78 = arith.constant 0 : index
      %c0_79 = arith.constant 0 : index
      %84 = vector.load %arg8[%c0_78, %c0_79] : memref<1x128xf32, #tpu.memory_space<vmem>>, vector<1x128xf32>
      %cst_80 = arith.constant 7.812500e-03 : f32
      %85 = vector.broadcast %cst_80 : f32 to vector<1x128xf32>
      %86 = arith.mulf %84, %85 : vector<1x128xf32>
      %87 = arith.mulf %83, %83 : vector<1x128xf32>
      %88 = arith.subf %86, %87 : vector<1x128xf32>
      %c0_81 = arith.constant 0 : index
      %c0_82 = arith.constant 0 : index
      %89 = vector.load %arg3[%c0_81, %c0_82] : memref<1x128xf32, #tpu.memory_space<vmem>>, vector<1x128xf32>
      %cst_83 = arith.constant 9.99999974E-6 : f32
      %90 = vector.broadcast %cst_83 : f32 to vector<1x128xf32>
      %91 = arith.addf %88, %90 : vector<1x128xf32>
      %92 = math.rsqrt %91 : vector<1x128xf32>
      %93 = arith.mulf %89, %92 : vector<1x128xf32>
      %c0_84 = arith.constant 0 : index
      %c0_85 = arith.constant 0 : index
      %94 = vector.load %arg4[%c0_84, %c0_85] : memref<1x128xf32, #tpu.memory_space<vmem>>, vector<1x128xf32>
      %95 = arith.mulf %83, %93 : vector<1x128xf32>
      %96 = arith.subf %94, %95 : vector<1x128xf32>
      %c0_86 = arith.constant 0 : index
      %c0_87 = arith.constant 0 : index
      %97 = vector.load %arg5[%c0_86, %c0_87] : memref<1x128xf32, #tpu.memory_space<vmem>>, vector<1x128xf32>
      tpu.vector_store %arg5[%c0_86, %c0_87], %93 {strides = array<i32>} : memref<1x128xf32, #tpu.memory_space<vmem>>, vector<1x128xf32>,
      %c0_88 = arith.constant 0 : index
      %c0_89 = arith.constant 0 : index
      %98 = vector.load %arg6[%c0_88, %c0_89] : memref<1x128xf32, #tpu.memory_space<vmem>>, vector<1x128xf32>
      tpu.vector_store %arg6[%c0_88, %c0_89], %96 {strides = array<i32>} : memref<1x128xf32, #tpu.memory_space<vmem>>, vector<1x128xf32>,
    } else {
    }
    return
  }
  func.func @transform_0(%arg0: i32) -> (i32, i32, i32, i32) {
    %c0_i32 = arith.constant 0 : i32
    %c0_i32_0 = arith.constant 0 : i32
    %c0_i32_1 = arith.constant 0 : i32
    %c0_i32_2 = arith.constant 0 : i32
    return %arg0, %c0_i32, %c0_i32_0, %c0_i32_1 : i32, i32, i32, i32
  }
  func.func @transform_1(%arg0: i32) -> (i32, i32, i32) {
    %c0_i32 = arith.constant 0 : i32
    %c0_i32_0 = arith.constant 0 : i32
    %c0_i32_1 = arith.constant 0 : i32
    %c0_i32_2 = arith.constant 0 : i32
    return %c0_i32, %c0_i32_0, %c0_i32_1 : i32, i32, i32
  }
  func.func @transform_2(%arg0: i32) -> (i32, i32) {
    %c0_i32 = arith.constant 0 : i32
    %c0_i32_0 = arith.constant 0 : i32
    %c0_i32_1 = arith.constant 0 : i32
    return %c0_i32, %c0_i32_0 : i32, i32
  }
  func.func @transform_3(%arg0: i32) -> (i32, i32) {
    %c0_i32 = arith.constant 0 : i32
    %c0_i32_0 = arith.constant 0 : i32
    %c0_i32_1 = arith.constant 0 : i32
    return %c0_i32, %c0_i32_0 : i32, i32
  }
  func.func @transform_4(%arg0: i32) -> (i32, i32) {
    %c0_i32 = arith.constant 0 : i32
    %c0_i32_0 = arith.constant 0 : i32
    %c0_i32_1 = arith.constant 0 : i32
    return %c0_i32, %c0_i32_0 : i32, i32
  }
  func.func @transform_5(%arg0: i32) -> (i32, i32) {
    %c0_i32 = arith.constant 0 : i32
    %c0_i32_0 = arith.constant 0 : i32
    %c0_i32_1 = arith.constant 0 : i32
    return %c0_i32, %c0_i32_0 : i32, i32
  }
}

module attributes {stable_mosaic.version = 11 : i64} {
  func.func @_conv2_apply_kernel(%arg0: i32, %arg1: memref<4x9x9x128xbf16, #tpu.memory_space<vmem>>, %arg2: memref<9x128x128xbf16, #tpu.memory_space<vmem>>, %arg3: memref<1x128xf32, #tpu.memory_space<vmem>>, %arg4: memref<1x128xf32, #tpu.memory_space<vmem>>, %arg5: memref<1x64x128xbf16, #tpu.memory_space<vmem>>) attributes {dimension_semantics = [#tpu.dimension_semantics<parallel>], iteration_bounds = array<i64: 2>, scalar_prefetch = 0 : i64, scratch_operands = 0 : i64, tpu.core_type = #tpu.core_type<tc>, window_params = [{transform_indices = @transform_0, window_bounds = array<i64: 4, 9, 9, 128>}, {pipeline_mode = #tpu.pipeline_mode<synchronous>, transform_indices = @transform_1, window_bounds = array<i64: 9, 128, 128>}, {pipeline_mode = #tpu.pipeline_mode<synchronous>, transform_indices = @transform_2, window_bounds = array<i64: 1, 128>}, {pipeline_mode = #tpu.pipeline_mode<synchronous>, transform_indices = @transform_3, window_bounds = array<i64: 1, 128>}, {transform_indices = @transform_4, window_bounds = array<i64: 1, 64, 128>}]} {
    %cst = arith.constant 0.000000e+00 : f32
    %0 = vector.broadcast %cst : f32 to vector<64x128xf32>
    %c0 = arith.constant 0 : index
    %c0_0 = arith.constant 0 : index
    %c0_1 = arith.constant 0 : index
    %c0_2 = arith.constant 0 : index
    %1 = vector.load %arg1[%c0, %c0_0, %c0_1, %c0_2] : memref<4x9x9x128xbf16, #tpu.memory_space<vmem>>, vector<1x8x8x128xbf16>
    %2 = vector.shape_cast %1 : vector<1x8x8x128xbf16> to vector<8x8x128xbf16>
    %3 = vector.shape_cast %2 : vector<8x8x128xbf16> to vector<64x128xbf16>
    %c0_3 = arith.constant 0 : index
    %c0_4 = arith.constant 0 : index
    %c0_5 = arith.constant 0 : index
    %4 = vector.load %arg2[%c0_3, %c0_4, %c0_5] : memref<9x128x128xbf16, #tpu.memory_space<vmem>>, vector<1x128x128xbf16>
    %5 = vector.shape_cast %4 : vector<1x128x128xbf16> to vector<128x128xbf16>
    %cst_6 = arith.constant dense<0.000000e+00> : vector<64x128xf32>
    %6 = tpu.matmul %3, %5, %cst_6 {dimension_numbers = #tpu.dot_dimension_numbers<[1], [0], [0], [1], [0, 0, 1, 1], [], []>} : vector<64x128xbf16>, vector<128x128xbf16>, vector<64x128xf32> -> vector<64x128xf32>
    %7 = arith.addf %0, %6 : vector<64x128xf32>
    %c1 = arith.constant 1 : index
    %c0_7 = arith.constant 0 : index
    %c0_8 = arith.constant 0 : index
    %c0_9 = arith.constant 0 : index
    %8 = vector.load %arg1[%c1, %c0_7, %c0_8, %c0_9] : memref<4x9x9x128xbf16, #tpu.memory_space<vmem>>, vector<1x8x8x128xbf16>
    %9 = vector.shape_cast %8 : vector<1x8x8x128xbf16> to vector<8x8x128xbf16>
    %10 = vector.shape_cast %9 : vector<8x8x128xbf16> to vector<64x128xbf16>
    %c1_10 = arith.constant 1 : index
    %c0_11 = arith.constant 0 : index
    %c0_12 = arith.constant 0 : index
    %11 = vector.load %arg2[%c1_10, %c0_11, %c0_12] : memref<9x128x128xbf16, #tpu.memory_space<vmem>>, vector<1x128x128xbf16>
    %12 = vector.shape_cast %11 : vector<1x128x128xbf16> to vector<128x128xbf16>
    %cst_13 = arith.constant dense<0.000000e+00> : vector<64x128xf32>
    %13 = tpu.matmul %10, %12, %cst_13 {dimension_numbers = #tpu.dot_dimension_numbers<[1], [0], [0], [1], [0, 0, 1, 1], [], []>} : vector<64x128xbf16>, vector<128x128xbf16>, vector<64x128xf32> -> vector<64x128xf32>
    %14 = arith.addf %7, %13 : vector<64x128xf32>
    %c0_14 = arith.constant 0 : index
    %c0_15 = arith.constant 0 : index
    %c1_16 = arith.constant 1 : index
    %c0_17 = arith.constant 0 : index
    %15 = vector.load %arg1[%c0_14, %c0_15, %c1_16, %c0_17] : memref<4x9x9x128xbf16, #tpu.memory_space<vmem>>, vector<1x8x8x128xbf16>
    %16 = vector.shape_cast %15 : vector<1x8x8x128xbf16> to vector<8x8x128xbf16>
    %17 = vector.shape_cast %16 : vector<8x8x128xbf16> to vector<64x128xbf16>
    %c2 = arith.constant 2 : index
    %c0_18 = arith.constant 0 : index
    %c0_19 = arith.constant 0 : index
    %18 = vector.load %arg2[%c2, %c0_18, %c0_19] : memref<9x128x128xbf16, #tpu.memory_space<vmem>>, vector<1x128x128xbf16>
    %19 = vector.shape_cast %18 : vector<1x128x128xbf16> to vector<128x128xbf16>
    %cst_20 = arith.constant dense<0.000000e+00> : vector<64x128xf32>
    %20 = tpu.matmul %17, %19, %cst_20 {dimension_numbers = #tpu.dot_dimension_numbers<[1], [0], [0], [1], [0, 0, 1, 1], [], []>} : vector<64x128xbf16>, vector<128x128xbf16>, vector<64x128xf32> -> vector<64x128xf32>
    %21 = arith.addf %14, %20 : vector<64x128xf32>
    %c2_21 = arith.constant 2 : index
    %c0_22 = arith.constant 0 : index
    %c0_23 = arith.constant 0 : index
    %c0_24 = arith.constant 0 : index
    %22 = vector.load %arg1[%c2_21, %c0_22, %c0_23, %c0_24] : memref<4x9x9x128xbf16, #tpu.memory_space<vmem>>, vector<1x8x8x128xbf16>
    %23 = vector.shape_cast %22 : vector<1x8x8x128xbf16> to vector<8x8x128xbf16>
    %24 = vector.shape_cast %23 : vector<8x8x128xbf16> to vector<64x128xbf16>
    %c3 = arith.constant 3 : index
    %c0_25 = arith.constant 0 : index
    %c0_26 = arith.constant 0 : index
    %25 = vector.load %arg2[%c3, %c0_25, %c0_26] : memref<9x128x128xbf16, #tpu.memory_space<vmem>>, vector<1x128x128xbf16>
    %26 = vector.shape_cast %25 : vector<1x128x128xbf16> to vector<128x128xbf16>
    %cst_27 = arith.constant dense<0.000000e+00> : vector<64x128xf32>
    %27 = tpu.matmul %24, %26, %cst_27 {dimension_numbers = #tpu.dot_dimension_numbers<[1], [0], [0], [1], [0, 0, 1, 1], [], []>} : vector<64x128xbf16>, vector<128x128xbf16>, vector<64x128xf32> -> vector<64x128xf32>
    %28 = arith.addf %21, %27 : vector<64x128xf32>
    %c3_28 = arith.constant 3 : index
    %c0_29 = arith.constant 0 : index
    %c0_30 = arith.constant 0 : index
    %c0_31 = arith.constant 0 : index
    %29 = vector.load %arg1[%c3_28, %c0_29, %c0_30, %c0_31] : memref<4x9x9x128xbf16, #tpu.memory_space<vmem>>, vector<1x8x8x128xbf16>
    %30 = vector.shape_cast %29 : vector<1x8x8x128xbf16> to vector<8x8x128xbf16>
    %31 = vector.shape_cast %30 : vector<8x8x128xbf16> to vector<64x128xbf16>
    %c4 = arith.constant 4 : index
    %c0_32 = arith.constant 0 : index
    %c0_33 = arith.constant 0 : index
    %32 = vector.load %arg2[%c4, %c0_32, %c0_33] : memref<9x128x128xbf16, #tpu.memory_space<vmem>>, vector<1x128x128xbf16>
    %33 = vector.shape_cast %32 : vector<1x128x128xbf16> to vector<128x128xbf16>
    %cst_34 = arith.constant dense<0.000000e+00> : vector<64x128xf32>
    %34 = tpu.matmul %31, %33, %cst_34 {dimension_numbers = #tpu.dot_dimension_numbers<[1], [0], [0], [1], [0, 0, 1, 1], [], []>} : vector<64x128xbf16>, vector<128x128xbf16>, vector<64x128xf32> -> vector<64x128xf32>
    %35 = arith.addf %28, %34 : vector<64x128xf32>
    %c2_35 = arith.constant 2 : index
    %c0_36 = arith.constant 0 : index
    %c1_37 = arith.constant 1 : index
    %c0_38 = arith.constant 0 : index
    %36 = vector.load %arg1[%c2_35, %c0_36, %c1_37, %c0_38] : memref<4x9x9x128xbf16, #tpu.memory_space<vmem>>, vector<1x8x8x128xbf16>
    %37 = vector.shape_cast %36 : vector<1x8x8x128xbf16> to vector<8x8x128xbf16>
    %38 = vector.shape_cast %37 : vector<8x8x128xbf16> to vector<64x128xbf16>
    %c5 = arith.constant 5 : index
    %c0_39 = arith.constant 0 : index
    %c0_40 = arith.constant 0 : index
    %39 = vector.load %arg2[%c5, %c0_39, %c0_40] : memref<9x128x128xbf16, #tpu.memory_space<vmem>>, vector<1x128x128xbf16>
    %40 = vector.shape_cast %39 : vector<1x128x128xbf16> to vector<128x128xbf16>
    %cst_41 = arith.constant dense<0.000000e+00> : vector<64x128xf32>
    %41 = tpu.matmul %38, %40, %cst_41 {dimension_numbers = #tpu.dot_dimension_numbers<[1], [0], [0], [1], [0, 0, 1, 1], [], []>} : vector<64x128xbf16>, vector<128x128xbf16>, vector<64x128xf32> -> vector<64x128xf32>
    %42 = arith.addf %35, %41 : vector<64x128xf32>
    %c0_42 = arith.constant 0 : index
    %c1_43 = arith.constant 1 : index
    %c0_44 = arith.constant 0 : index
    %c0_45 = arith.constant 0 : index
    %43 = vector.load %arg1[%c0_42, %c1_43, %c0_44, %c0_45] : memref<4x9x9x128xbf16, #tpu.memory_space<vmem>>, vector<1x8x8x128xbf16>
    %44 = vector.shape_cast %43 : vector<1x8x8x128xbf16> to vector<8x8x128xbf16>
    %45 = vector.shape_cast %44 : vector<8x8x128xbf16> to vector<64x128xbf16>
    %c6 = arith.constant 6 : index
    %c0_46 = arith.constant 0 : index
    %c0_47 = arith.constant 0 : index
    %46 = vector.load %arg2[%c6, %c0_46, %c0_47] : memref<9x128x128xbf16, #tpu.memory_space<vmem>>, vector<1x128x128xbf16>
    %47 = vector.shape_cast %46 : vector<1x128x128xbf16> to vector<128x128xbf16>
    %cst_48 = arith.constant dense<0.000000e+00> : vector<64x128xf32>
    %48 = tpu.matmul %45, %47, %cst_48 {dimension_numbers = #tpu.dot_dimension_numbers<[1], [0], [0], [1], [0, 0, 1, 1], [], []>} : vector<64x128xbf16>, vector<128x128xbf16>, vector<64x128xf32> -> vector<64x128xf32>
    %49 = arith.addf %42, %48 : vector<64x128xf32>
    %c1_49 = arith.constant 1 : index
    %c1_50 = arith.constant 1 : index
    %c0_51 = arith.constant 0 : index
    %c0_52 = arith.constant 0 : index
    %50 = vector.load %arg1[%c1_49, %c1_50, %c0_51, %c0_52] : memref<4x9x9x128xbf16, #tpu.memory_space<vmem>>, vector<1x8x8x128xbf16>
    %51 = vector.shape_cast %50 : vector<1x8x8x128xbf16> to vector<8x8x128xbf16>
    %52 = vector.shape_cast %51 : vector<8x8x128xbf16> to vector<64x128xbf16>
    %c7 = arith.constant 7 : index
    %c0_53 = arith.constant 0 : index
    %c0_54 = arith.constant 0 : index
    %53 = vector.load %arg2[%c7, %c0_53, %c0_54] : memref<9x128x128xbf16, #tpu.memory_space<vmem>>, vector<1x128x128xbf16>
    %54 = vector.shape_cast %53 : vector<1x128x128xbf16> to vector<128x128xbf16>
    %cst_55 = arith.constant dense<0.000000e+00> : vector<64x128xf32>
    %55 = tpu.matmul %52, %54, %cst_55 {dimension_numbers = #tpu.dot_dimension_numbers<[1], [0], [0], [1], [0, 0, 1, 1], [], []>} : vector<64x128xbf16>, vector<128x128xbf16>, vector<64x128xf32> -> vector<64x128xf32>
    %56 = arith.addf %49, %55 : vector<64x128xf32>
    %c0_56 = arith.constant 0 : index
    %c1_57 = arith.constant 1 : index
    %c1_58 = arith.constant 1 : index
    %c0_59 = arith.constant 0 : index
    %57 = vector.load %arg1[%c0_56, %c1_57, %c1_58, %c0_59] : memref<4x9x9x128xbf16, #tpu.memory_space<vmem>>, vector<1x8x8x128xbf16>
    %58 = vector.shape_cast %57 : vector<1x8x8x128xbf16> to vector<8x8x128xbf16>
    %59 = vector.shape_cast %58 : vector<8x8x128xbf16> to vector<64x128xbf16>
    %c8 = arith.constant 8 : index
    %c0_60 = arith.constant 0 : index
    %c0_61 = arith.constant 0 : index
    %60 = vector.load %arg2[%c8, %c0_60, %c0_61] : memref<9x128x128xbf16, #tpu.memory_space<vmem>>, vector<1x128x128xbf16>
    %61 = vector.shape_cast %60 : vector<1x128x128xbf16> to vector<128x128xbf16>
    %cst_62 = arith.constant dense<0.000000e+00> : vector<64x128xf32>
    %62 = tpu.matmul %59, %61, %cst_62 {dimension_numbers = #tpu.dot_dimension_numbers<[1], [0], [0], [1], [0, 0, 1, 1], [], []>} : vector<64x128xbf16>, vector<128x128xbf16>, vector<64x128xf32> -> vector<64x128xf32>
    %63 = arith.addf %56, %62 : vector<64x128xf32>
    %c0_63 = arith.constant 0 : index
    %c0_64 = arith.constant 0 : index
    %64 = vector.load %arg3[%c0_63, %c0_64] : memref<1x128xf32, #tpu.memory_space<vmem>>, vector<1x128xf32>
    %65 = vector.broadcast %64 : vector<1x128xf32> to vector<64x128xf32>
    %66 = arith.mulf %63, %65 : vector<64x128xf32>
    %c0_65 = arith.constant 0 : index
    %c0_66 = arith.constant 0 : index
    %67 = vector.load %arg4[%c0_65, %c0_66] : memref<1x128xf32, #tpu.memory_space<vmem>>, vector<1x128xf32>
    %68 = vector.broadcast %67 : vector<1x128xf32> to vector<64x128xf32>
    %69 = arith.addf %66, %68 : vector<64x128xf32>
    %cst_67 = arith.constant 0.000000e+00 : f32
    %70 = vector.broadcast %cst_67 : f32 to vector<64x128xf32>
    %71 = arith.maximumf %69, %70 : vector<64x128xf32>
    %72 = vector.shape_cast %71 : vector<64x128xf32> to vector<1x64x128xf32>
    %73 = arith.truncf %72 : vector<1x64x128xf32> to vector<1x64x128xbf16>
    %c0_68 = arith.constant 0 : index
    %c0_69 = arith.constant 0 : index
    %c0_70 = arith.constant 0 : index
    %74 = vector.load %arg5[%c0_68, %c0_69, %c0_70] : memref<1x64x128xbf16, #tpu.memory_space<vmem>>, vector<1x64x128xbf16>
    tpu.vector_store %arg5[%c0_68, %c0_69, %c0_70], %73 {strides = array<i32>} : memref<1x64x128xbf16, #tpu.memory_space<vmem>>, vector<1x64x128xbf16>,
    return
  }
  func.func @transform_0(%arg0: i32) -> (i32, i32, i32, i32) {
    %c0_i32 = arith.constant 0 : i32
    %c0_i32_0 = arith.constant 0 : i32
    %c0_i32_1 = arith.constant 0 : i32
    %c0_i32_2 = arith.constant 0 : i32
    return %arg0, %c0_i32, %c0_i32_0, %c0_i32_1 : i32, i32, i32, i32
  }
  func.func @transform_1(%arg0: i32) -> (i32, i32, i32) {
    %c0_i32 = arith.constant 0 : i32
    %c0_i32_0 = arith.constant 0 : i32
    %c0_i32_1 = arith.constant 0 : i32
    %c0_i32_2 = arith.constant 0 : i32
    return %c0_i32, %c0_i32_0, %c0_i32_1 : i32, i32, i32
  }
  func.func @transform_2(%arg0: i32) -> (i32, i32) {
    %c0_i32 = arith.constant 0 : i32
    %c0_i32_0 = arith.constant 0 : i32
    %c0_i32_1 = arith.constant 0 : i32
    return %c0_i32, %c0_i32_0 : i32, i32
  }
  func.func @transform_3(%arg0: i32) -> (i32, i32) {
    %c0_i32 = arith.constant 0 : i32
    %c0_i32_0 = arith.constant 0 : i32
    %c0_i32_1 = arith.constant 0 : i32
    return %c0_i32, %c0_i32_0 : i32, i32
  }
  func.func @transform_4(%arg0: i32) -> (i32, i32, i32) {
    %c0_i32 = arith.constant 0 : i32
    %c0_i32_0 = arith.constant 0 : i32
    %c0_i32_1 = arith.constant 0 : i32
    return %arg0, %c0_i32, %c0_i32_0 : i32, i32, i32
  }
}

module attributes {stable_mosaic.version = 11 : i64} {
  func.func @_mm_dual_apply_kernel(%arg0: i32, %arg1: memref<128x128xbf16, #tpu.memory_space<vmem>>, %arg2: memref<128x128xbf16, #tpu.memory_space<vmem>>, %arg3: memref<1x128xf32, #tpu.memory_space<vmem>>, %arg4: memref<1x128xf32, #tpu.memory_space<vmem>>, %arg5: memref<128x128xbf16, #tpu.memory_space<vmem>>, %arg6: memref<128x128xbf16, #tpu.memory_space<vmem>>, %arg7: memref<1x128xf32, #tpu.memory_space<vmem>>, %arg8: memref<1x128xf32, #tpu.memory_space<vmem>>, %arg9: memref<128x128xf32, #tpu.memory_space<vmem>>) attributes {dimension_semantics = [#tpu.dimension_semantics<parallel>], iteration_bounds = array<i64: 1>, scalar_prefetch = 0 : i64, scratch_operands = 0 : i64, tpu.core_type = #tpu.core_type<tc>, window_params = [{transform_indices = @transform_0, window_bounds = array<i64: 128, 128>}, {pipeline_mode = #tpu.pipeline_mode<synchronous>, transform_indices = @transform_1, window_bounds = array<i64: 128, 128>}, {pipeline_mode = #tpu.pipeline_mode<synchronous>, transform_indices = @transform_2, window_bounds = array<i64: 1, 128>}, {pipeline_mode = #tpu.pipeline_mode<synchronous>, transform_indices = @transform_3, window_bounds = array<i64: 1, 128>}, {transform_indices = @transform_4, window_bounds = array<i64: 128, 128>}, {pipeline_mode = #tpu.pipeline_mode<synchronous>, transform_indices = @transform_5, window_bounds = array<i64: 128, 128>}, {pipeline_mode = #tpu.pipeline_mode<synchronous>, transform_indices = @transform_6, window_bounds = array<i64: 1, 128>}, {pipeline_mode = #tpu.pipeline_mode<synchronous>, transform_indices = @transform_7, window_bounds = array<i64: 1, 128>}, {transform_indices = @transform_8, window_bounds = array<i64: 128, 128>}]} {
    %c0 = arith.constant 0 : index
    %c0_0 = arith.constant 0 : index
    %0 = vector.load %arg1[%c0, %c0_0] : memref<128x128xbf16, #tpu.memory_space<vmem>>, vector<128x128xbf16>
    %c0_1 = arith.constant 0 : index
    %c0_2 = arith.constant 0 : index
    %1 = vector.load %arg2[%c0_1, %c0_2] : memref<128x128xbf16, #tpu.memory_space<vmem>>, vector<128x128xbf16>
    %cst = arith.constant dense<0.000000e+00> : vector<128x128xf32>
    %2 = tpu.matmul %0, %1, %cst {dimension_numbers = #tpu.dot_dimension_numbers<[1], [0], [0], [1], [0, 0, 1, 1], [], []>} : vector<128x128xbf16>, vector<128x128xbf16>, vector<128x128xf32> -> vector<128x128xf32>
    %c0_3 = arith.constant 0 : index
    %c0_4 = arith.constant 0 : index
    %3 = vector.load %arg5[%c0_3, %c0_4] : memref<128x128xbf16, #tpu.memory_space<vmem>>, vector<128x128xbf16>
    %c0_5 = arith.constant 0 : index
    %c0_6 = arith.constant 0 : index
    %4 = vector.load %arg6[%c0_5, %c0_6] : memref<128x128xbf16, #tpu.memory_space<vmem>>, vector<128x128xbf16>
    %cst_7 = arith.constant dense<0.000000e+00> : vector<128x128xf32>
    %5 = tpu.matmul %3, %4, %cst_7 {dimension_numbers = #tpu.dot_dimension_numbers<[1], [0], [0], [1], [0, 0, 1, 1], [], []>} : vector<128x128xbf16>, vector<128x128xbf16>, vector<128x128xf32> -> vector<128x128xf32>
    %c0_8 = arith.constant 0 : index
    %c0_9 = arith.constant 0 : index
    %6 = vector.load %arg3[%c0_8, %c0_9] : memref<1x128xf32, #tpu.memory_space<vmem>>, vector<1x128xf32>
    %7 = vector.broadcast %6 : vector<1x128xf32> to vector<128x128xf32>
    %8 = arith.mulf %2, %7 : vector<128x128xf32>
    %c0_10 = arith.constant 0 : index
    %c0_11 = arith.constant 0 : index
    %9 = vector.load %arg4[%c0_10, %c0_11] : memref<1x128xf32, #tpu.memory_space<vmem>>, vector<1x128xf32>
    %10 = vector.broadcast %9 : vector<1x128xf32> to vector<128x128xf32>
    %11 = arith.addf %8, %10 : vector<128x128xf32>
    %c0_12 = arith.constant 0 : index
    %c0_13 = arith.constant 0 : index
    %12 = vector.load %arg7[%c0_12, %c0_13] : memref<1x128xf32, #tpu.memory_space<vmem>>, vector<1x128xf32>
    %13 = vector.broadcast %12 : vector<1x128xf32> to vector<128x128xf32>
    %14 = arith.mulf %5, %13 : vector<128x128xf32>
    %15 = arith.addf %11, %14 : vector<128x128xf32>
    %c0_14 = arith.constant 0 : index
    %c0_15 = arith.constant 0 : index
    %16 = vector.load %arg8[%c0_14, %c0_15] : memref<1x128xf32, #tpu.memory_space<vmem>>, vector<1x128xf32>
    %17 = vector.broadcast %16 : vector<1x128xf32> to vector<128x128xf32>
    %18 = arith.addf %15, %17 : vector<128x128xf32>
    %cst_16 = arith.constant 0.000000e+00 : f32
    %19 = vector.broadcast %cst_16 : f32 to vector<128x128xf32>
    %20 = arith.maximumf %18, %19 : vector<128x128xf32>
    %c0_17 = arith.constant 0 : index
    %c0_18 = arith.constant 0 : index
    %21 = vector.load %arg9[%c0_17, %c0_18] : memref<128x128xf32, #tpu.memory_space<vmem>>, vector<128x128xf32>
    tpu.vector_store %arg9[%c0_17, %c0_18], %20 {strides = array<i32>} : memref<128x128xf32, #tpu.memory_space<vmem>>, vector<128x128xf32>,
    return
  }
  func.func @transform_0(%arg0: i32) -> (i32, i32) {
    %c0_i32 = arith.constant 0 : i32
    %c0_i32_0 = arith.constant 0 : i32
    return %arg0, %c0_i32 : i32, i32
  }
  func.func @transform_1(%arg0: i32) -> (i32, i32) {
    %c0_i32 = arith.constant 0 : i32
    %c0_i32_0 = arith.constant 0 : i32
    %c0_i32_1 = arith.constant 0 : i32
    return %c0_i32, %c0_i32_0 : i32, i32
  }
  func.func @transform_2(%arg0: i32) -> (i32, i32) {
    %c0_i32 = arith.constant 0 : i32
    %c0_i32_0 = arith.constant 0 : i32
    %c0_i32_1 = arith.constant 0 : i32
    return %c0_i32, %c0_i32_0 : i32, i32
  }
  func.func @transform_3(%arg0: i32) -> (i32, i32) {
    %c0_i32 = arith.constant 0 : i32
    %c0_i32_0 = arith.constant 0 : i32
    %c0_i32_1 = arith.constant 0 : i32
    return %c0_i32, %c0_i32_0 : i32, i32
  }
  func.func @transform_4(%arg0: i32) -> (i32, i32) {
    %c0_i32 = arith.constant 0 : i32
    %c0_i32_0 = arith.constant 0 : i32
    return %arg0, %c0_i32 : i32, i32
  }
  func.func @transform_5(%arg0: i32) -> (i32, i32) {
    %c0_i32 = arith.constant 0 : i32
    %c0_i32_0 = arith.constant 0 : i32
    %c0_i32_1 = arith.constant 0 : i32
    return %c0_i32, %c0_i32_0 : i32, i32
  }
  func.func @transform_6(%arg0: i32) -> (i32, i32) {
    %c0_i32 = arith.constant 0 : i32
    %c0_i32_0 = arith.constant 0 : i32
    %c0_i32_1 = arith.constant 0 : i32
    return %c0_i32, %c0_i32_0 : i32, i32
  }
  func.func @transform_7(%arg0: i32) -> (i32, i32) {
    %c0_i32 = arith.constant 0 : i32
    %c0_i32_0 = arith.constant 0 : i32
    %c0_i32_1 = arith.constant 0 : i32
    return %c0_i32, %c0_i32_0 : i32, i32
  }
  func.func @transform_8(%arg0: i32) -> (i32, i32) {
    %c0_i32 = arith.constant 0 : i32
    %c0_i32_0 = arith.constant 0 : i32
    return %arg0, %c0_i32 : i32, i32
  }
}

</mosaic_0001>

<llo_original>
// kernel: bottleneck_forward.8
$region0: #{bottleneck_forward.8}
  #allocation0 [shape = 'u32[]', space=smem, size = 0x4, offset = 0x4, fixed_abs, tag = 'smem constant byte address 0x4 - core index']
  #allocation1 [shape = 'u32[144,128]{1,0:T(1,128)}', space=vmem, size = 0x12000, scoped, tag = 'internal scratch']
  %s0 = inlined_call_operand.vmem [shape: bf16[512,128], index: 0, kind: input, shape index: {}]
  %s1 = inlined_call_operand.vmem [shape: bf16[128,128], index: 1, kind: input, shape index: {}]
  %s2 = inlined_call_operand.vmem [shape: f32[1,128], index: 2, kind: input, shape index: {}]
  %s3 = inlined_call_operand.vmem [shape: f32[1,128], index: 3, kind: input, shape index: {}]
  %s4 = inlined_call_operand.vmem [shape: bf16[512,128], index: 4, kind: output, shape index: {}]
  %s5 = sld [smem:[#allocation0]]
  $region49: #{bottleneck_forward.8} parent=0
    _
  %s7 = ssub.s32 1, %s5
  %s8 = scalar_select 0, %s7, %s5
  loop: start=0, step=1, limit=4
  $region2: #{bottleneck_forward.8} parent=0 // loop_pre_header
    _
  $region3: #{bottleneck_forward.8} parent=0 // loop_header
    %s10 = sphi 0, %s14
    %p11 = scmp.ge.s32.totalorder %s10, 4
    %s20 = sphi 0, %s22
    %s23 = sphi 0, %s20
    %s24 = sphi 0, %s23
    %s40 = sphi 0, %s24
    %s44 = sphi 0, %s44
    %s46 = sphi 0, %s44
    %s47 = sphi 0, %s46
    %s61 = sphi 0, %s47
    %s65 = sphi 0, %s65
    %s67 = sphi 0, %s65
    %s68 = sphi 0, %s67
    %s82 = sphi 0, %s68
    %s86 = sphi 0, %s86
    %s88 = sphi 0, %s86
    %s89 = sphi 0, %s88
    %s103 = sphi 0, %s89
    %s109 = sphi 0, %s111
    %s112 = sphi 0, %s109
    %s113 = sphi 0, %s112
    %s129 = sphi 0, %s113
  $region4: #{bottleneck_forward.8} parent=0 // loop_header_branch
    %13 = sbr.rel (%p11) target = $region8
  $region5: #{bottleneck_forward.8} parent=0 // loop_body
    %s15 = ssub.s32 %s10, 1
    %s16 = ssub.s32 %s10, 2
    %s17 = sadd.s32 %s10, 1
    %s18 = ssub.s32 %s10, %s17
    %p19 = scmp.eq.s32.totalorder %s18, 0
    %s21 = sadd.s32 %s20, 1
    %s22 = scalar_select %p19, %s20, %s21
    %p25 = pneg %p19
    %p26 = scmp.eq.s32.totalorder %s10, 1
    %p27 = por %p25, %p26
    %p28 = scmp.ne.s32.totalorder %s20, %s23
    %p29 = scmp.eq.s32.totalorder %s10, 0
    %p30 = por %p28, %p29
    %p31 = scmp.ne.s32.totalorder %s20, %s23
    %p32 = scmp.eq.s32.totalorder %s15, 1
    %p33 = por %p31, %p32
    %p34 = scmp.ne.s32.totalorder %s23, %s24
    %p35 = scmp.eq.s32.totalorder %s15, 0
    %p36 = por %p34, %p35
    %p37 = scmp.ne.s32.totalorder %s23, %s24
    %p38 = scmp.eq.s32.totalorder %s16, 1
    %p39 = por %p37, %p38
    %p41 = scmp.ne.s32.totalorder %s24, %s40
    %p42 = scmp.eq.s32.totalorder %s16, 0
    %p43 = por %p41, %p42
    %s45 = sadd.s32 %s44, 1
    %p48 = scmp.eq.s32.totalorder %s10, 1
    %p49 = scmp.ne.s32.totalorder %s44, %s46
    %p50 = scmp.eq.s32.totalorder %s10, 0
    %p51 = por %p49, %p50
    %p52 = scmp.ne.s32.totalorder %s44, %s46
    %p53 = scmp.eq.s32.totalorder %s15, 1
    %p54 = por %p52, %p53
    %p55 = scmp.ne.s32.totalorder %s46, %s47
    %p56 = scmp.eq.s32.totalorder %s15, 0
    %p57 = por %p55, %p56
    %p58 = scmp.ne.s32.totalorder %s46, %s47
    %p59 = scmp.eq.s32.totalorder %s16, 1
    %p60 = por %p58, %p59
    %p62 = scmp.ne.s32.totalorder %s47, %s61
    %p63 = scmp.eq.s32.totalorder %s16, 0
    %p64 = por %p62, %p63
    %s66 = sadd.s32 %s65, 1
    %p69 = scmp.eq.s32.totalorder %s10, 1
    %p70 = scmp.ne.s32.totalorder %s65, %s67
    %p71 = scmp.eq.s32.totalorder %s10, 0
    %p72 = por %p70, %p71
    %p73 = scmp.ne.s32.totalorder %s65, %s67
    %p74 = scmp.eq.s32.totalorder %s15, 1
    %p75 = por %p73, %p74
    %p76 = scmp.ne.s32.totalorder %s67, %s68
    %p77 = scmp.eq.s32.totalorder %s15, 0
    %p78 = por %p76, %p77
    %p79 = scmp.ne.s32.totalorder %s67, %s68
    %p80 = scmp.eq.s32.totalorder %s16, 1
    %p81 = por %p79, %p80
    %p83 = scmp.ne.s32.totalorder %s68, %s82
    %p84 = scmp.eq.s32.totalorder %s16, 0
    %p85 = por %p83, %p84
    %s87 = sadd.s32 %s86, 1
    %p90 = scmp.eq.s32.totalorder %s10, 1
    %p91 = scmp.ne.s32.totalorder %s86, %s88
    %p92 = scmp.eq.s32.totalorder %s10, 0
    %p93 = por %p91, %p92
    %p94 = scmp.ne.s32.totalorder %s86, %s88
    %p95 = scmp.eq.s32.totalorder %s15, 1
    %p96 = por %p94, %p95
    %p97 = scmp.ne.s32.totalorder %s88, %s89
    %p98 = scmp.eq.s32.totalorder %s15, 0
    %p99 = por %p97, %p98
    %p100 = scmp.ne.s32.totalorder %s88, %s89
    %p101 = scmp.eq.s32.totalorder %s16, 1
    %p102 = por %p100, %p101
    %p104 = scmp.ne.s32.totalorder %s89, %s103
    %p105 = scmp.eq.s32.totalorder %s16, 0
    %p106 = por %p104, %p105
    %s107 = ssub.s32 %s10, %s17
    %p108 = scmp.eq.s32.totalorder %s107, 0
    %s110 = sadd.s32 %s109, 1
    %s111 = scalar_select %p108, %s109, %s110
    %p114 = pneg %p108
    %p115 = scmp.eq.s32.totalorder %s10, 1
    %p116 = por %p114, %p115
    %p117 = scmp.ne.s32.totalorder %s109, %s112
    %p118 = scmp.eq.s32.totalorder %s10, 0
    %p119 = por %p117, %p118
    %p120 = scmp.ne.s32.totalorder %s109, %s112
    %p121 = scmp.eq.s32.totalorder %s15, 1
    %p122 = por %p120, %p121
    %p123 = scmp.ne.s32.totalorder %s112, %s113
    %p124 = scmp.eq.s32.totalorder %s15, 0
    %p125 = por %p123, %p124
    %p126 = scmp.ne.s32.totalorder %s112, %s113
    %p127 = scmp.eq.s32.totalorder %s16, 1
    %p128 = por %p126, %p127
    %p130 = scmp.ne.s32.totalorder %s113, %s129
    %p131 = scmp.eq.s32.totalorder %s16, 0
    %p132 = por %p130, %p131
    %p133 = scmp.le.s32.totalorder 1, %s10
    %p134 = scmp.lt.s32.totalorder %s10, 3
    %p135 = pnand %p133, %p134
    %p136 = pneg %p135
    // Predicated region
    $region9: #{bottleneck_forward.8} parent=5 // pred_check
      _
    $region10: #{bottleneck_forward.8} parent=5 // pred_check_branch
      %138 = sbr.rel (%p135) target = $region12
    $region11: #{bottleneck_forward.8} parent=5 // pred_region
      %s139 = ssub.s32 %s10, 1
      // Predicated region
      $region13: #{bottleneck_forward.8} parent=11 // pred_check
        %p140 = pneg %p57
      $region14: #{bottleneck_forward.8} parent=11 // pred_check_branch
        %142 = sbr.rel (%p140) target = $region16
      $region15: #{bottleneck_forward.8} parent=11 // pred_region
        _
      $region16: #{bottleneck_forward.8} parent=11 // pred_fallthru
        _
      // Predicated region
      $region17: #{bottleneck_forward.8} parent=11 // pred_check
        %p143 = pneg %p78
      $region18: #{bottleneck_forward.8} parent=11 // pred_check_branch
        %145 = sbr.rel (%p143) target = $region20
      $region19: #{bottleneck_forward.8} parent=11 // pred_region
        _
      $region20: #{bottleneck_forward.8} parent=11 // pred_fallthru
        _
      // Predicated region
      $region21: #{bottleneck_forward.8} parent=11 // pred_check
        %p146 = pneg %p99
      $region22: #{bottleneck_forward.8} parent=11 // pred_check_branch
        %148 = sbr.rel (%p146) target = $region24
      $region23: #{bottleneck_forward.8} parent=11 // pred_region
        _
      $region24: #{bottleneck_forward.8} parent=11 // pred_fallthru
        _
    $region12: #{bottleneck_forward.8} parent=5 // pred_fallthru
      _
    %p149 = scmp.lt.s32.totalorder %s10, 2
    // Predicated region
    $region25: #{bottleneck_forward.8} parent=5 // pred_check
      %p150 = pneg %p149
    $region26: #{bottleneck_forward.8} parent=5 // pred_check_branch
      %152 = sbr.rel (%p150) target = $region28
    $region27: #{bottleneck_forward.8} parent=5 // pred_region
      // Predicated region
      $region29: #{bottleneck_forward.8} parent=27 // pred_check
        %p153 = pneg %p30
      $region30: #{bottleneck_forward.8} parent=27 // pred_check_branch
        %155 = sbr.rel (%p153) target = $region32
      $region31: #{bottleneck_forward.8} parent=27 // pred_region
        %s156 = smul.u32 32, %s10
        %p157 = scmp.lt.s32.totalorder %s156, 63
        %s158 = scalar_select %p157, %s156, 63
        %s159 = smul.addr %s158, 4
        %s160 = scalar_lea.vmem %s0, %s159
        %s161 = smul.u32 32, %s10
      $region32: #{bottleneck_forward.8} parent=27 // pred_fallthru
        _
    $region28: #{bottleneck_forward.8} parent=5 // pred_fallthru
      _
    %p162 = scmp.le.s32.totalorder 1, %s10
    %p163 = scmp.lt.s32.totalorder %s10, 3
    %p164 = pnand %p162, %p163
    %p165 = pneg %p164
    // Predicated region
    $region33: #{bottleneck_forward.8} parent=5 // pred_check
      _
    $region34: #{bottleneck_forward.8} parent=5 // pred_check_branch
      %167 = sbr.rel (%p164) target = $region36
    $region35: #{bottleneck_forward.8} parent=5 // pred_region
      %s168 = ssub.s32 %s10, 1
      %s169 = smul.u32 32, %s15
      %p170 = scmp.lt.s32.totalorder %s169, 63
      %s171 = scalar_select %p170, %s169, 63
      %s172 = smul.addr %s171, 4
      %s173 = scalar_lea.vmem %s0, %s172
      %p174 = pneg %p36
      %p175 = pneg %p33
      %p176 = pneg %p57
      %p177 = pneg %p54
      %p178 = pneg %p78
      %p179 = pneg %p75
      %p180 = pneg %p99
      %p181 = pneg %p96
      %p182 = pneg %p125
      %p183 = pneg %p122
      %s184 = smul.u32 32, %s15
      %p185 = scmp.lt.s32.totalorder %s184, 63
      %s186 = scalar_select %p185, %s184, 63
      %s187 = smul.addr %s186, 4
      %s188 = scalar_lea.vmem %s4, %s187
      %s189 = smul.u32 32, %s15
      %p190 = scmp.lt.s32.totalorder %s189, 63
      %s191 = scalar_select %p190, %s189, 63
      %s192 = smul.addr %s191, 4
      %s193 = scalar_lea.vmem %s0, %s192
      %s194 = smul.u32 32, %s15
      %s195 = smul.u32 32, %s15
      %p196 = scmp.lt.s32.totalorder %s195, 63
      %s197 = scalar_select %p196, %s195, 63
      %s198 = smul.addr %s197, 4
      %s199 = scalar_lea.vmem %s4, %s198
      %s200 = smul.u32 32, %s15
      %v202 = vld [vmem:[%s193] sm:$0xf]
      %v203 = vld [vmem:[%s193 + $0x4] sm:$0xf]
      %v204 = vld [vmem:[%s193 + $0x8] sm:$0xf]
      %v205 = vld [vmem:[%s193 + $0xc] sm:$0xf]
      %v206 = vld [vmem:[%s193 + $0x10] sm:$0xf]
      %v207 = vld [vmem:[%s193 + $0x14] sm:$0xf]
      %v208 = vld [vmem:[%s193 + $0x18] sm:$0xf]
      %v209 = vld [vmem:[%s193 + $0x1c] sm:$0xf]
      %v210 = vld [vmem:[%s193 + $0x20] sm:$0xf]
      %v211 = vld [vmem:[%s193 + $0x24] sm:$0xf]
      %v212 = vld [vmem:[%s193 + $0x28] sm:$0xf]
      %v213 = vld [vmem:[%s193 + $0x2c] sm:$0xf]
      %v214 = vld [vmem:[%s193 + $0x30] sm:$0xf]
      %v215 = vld [vmem:[%s193 + $0x34] sm:$0xf]
      %v216 = vld [vmem:[%s193 + $0x38] sm:$0xf]
      %v217 = vld [vmem:[%s193 + $0x3c] sm:$0xf]
      %v218 = vld [vmem:[%s193 + $0x40] sm:$0xf]
      %v219 = vld [vmem:[%s193 + $0x44] sm:$0xf]
      %v220 = vld [vmem:[%s193 + $0x48] sm:$0xf]
      %v221 = vld [vmem:[%s193 + $0x4c] sm:$0xf]
      %v222 = vld [vmem:[%s193 + $0x50] sm:$0xf]
      %v223 = vld [vmem:[%s193 + $0x54] sm:$0xf]
      %v224 = vld [vmem:[%s193 + $0x58] sm:$0xf]
      %v225 = vld [vmem:[%s193 + $0x5c] sm:$0xf]
      %v226 = vld [vmem:[%s193 + $0x60] sm:$0xf]
      %v227 = vld [vmem:[%s193 + $0x64] sm:$0xf]
      %v228 = vld [vmem:[%s193 + $0x68] sm:$0xf]
      %v229 = vld [vmem:[%s193 + $0x6c] sm:$0xf]
      %v230 = vld [vmem:[%s193 + $0x70] sm:$0xf]
      %v231 = vld [vmem:[%s193 + $0x74] sm:$0xf]
      %v232 = vld [vmem:[%s193 + $0x78] sm:$0xf]
      %v233 = vld [vmem:[%s193 + $0x7c] sm:$0xf]
      %v234 = vld [vmem:[%s1] sm:$0xf]
      %v235 = vld [vmem:[%s1 + $0x4] sm:$0xf]
      %v236 = vld [vmem:[%s1 + $0x8] sm:$0xf]
      %v237 = vld [vmem:[%s1 + $0xc] sm:$0xf]
      %v238 = vld [vmem:[%s1 + $0x10] sm:$0xf]
      %v239 = vld [vmem:[%s1 + $0x14] sm:$0xf]
      %v240 = vld [vmem:[%s1 + $0x18] sm:$0xf]
      %v241 = vld [vmem:[%s1 + $0x1c] sm:$0xf]
      %v242 = vld [vmem:[%s1 + $0x20] sm:$0xf]
      %v243 = vld [vmem:[%s1 + $0x24] sm:$0xf]
      %v244 = vld [vmem:[%s1 + $0x28] sm:$0xf]
      %v245 = vld [vmem:[%s1 + $0x2c] sm:$0xf]
      %v246 = vld [vmem:[%s1 + $0x30] sm:$0xf]
      %v247 = vld [vmem:[%s1 + $0x34] sm:$0xf]
      %v248 = vld [vmem:[%s1 + $0x38] sm:$0xf]
      %v249 = vld [vmem:[%s1 + $0x3c] sm:$0xf]
      %v282 = vunpack.c.l.b16 %v202
      %v283 = vunpack.c.l.b16 %v203
      %v284 = vunpack.c.l.b16 %v204
      %v285 = vunpack.c.l.b16 %v205
      %v286 = vunpack.c.l.b16 %v206
      %v287 = vunpack.c.l.b16 %v207
      %v288 = vunpack.c.l.b16 %v208
      %v289 = vunpack.c.l.b16 %v209
      %v290 = vunpack.c.l.b16 %v210
      %v291 = vunpack.c.l.b16 %v211
      %v292 = vunpack.c.l.b16 %v212
      %v293 = vunpack.c.l.b16 %v213
      %v294 = vunpack.c.l.b16 %v214
      %v295 = vunpack.c.l.b16 %v215
      %v296 = vunpack.c.l.b16 %v216
      %v297 = vunpack.c.l.b16 %v217
      %v298 = vunpack.c.l.b16 %v218
      %v299 = vunpack.c.l.b16 %v219
      %v300 = vunpack.c.l.b16 %v220
      %v301 = vunpack.c.l.b16 %v221
      %v302 = vunpack.c.l.b16 %v222
      %v303 = vunpack.c.l.b16 %v223
      %v304 = vunpack.c.l.b16 %v224
      %v305 = vunpack.c.l.b16 %v225
      %v306 = vunpack.c.l.b16 %v226
      %v307 = vunpack.c.l.b16 %v227
      %v308 = vunpack.c.l.b16 %v228
      %v309 = vunpack.c.l.b16 %v229
      %v310 = vunpack.c.l.b16 %v230
      %v311 = vunpack.c.l.b16 %v231
      %v312 = vunpack.c.l.b16 %v232
      %v313 = vunpack.c.l.b16 %v233
      %v314 = vpack.c.b16 %v283, %v282
      %v315 = vpack.c.b16 %v285, %v284
      %v316 = vpack.c.b16 %v287, %v286
      %v317 = vpack.c.b16 %v289, %v288
      %v318 = vpack.c.b16 %v291, %v290
      %v319 = vpack.c.b16 %v293, %v292
      %v320 = vpack.c.b16 %v295, %v294
      %v321 = vpack.c.b16 %v297, %v296
      %v322 = vpack.c.b16 %v299, %v298
      %v323 = vpack.c.b16 %v301, %v300
      %v324 = vpack.c.b16 %v303, %v302
      %v325 = vpack.c.b16 %v305, %v304
      %v326 = vpack.c.b16 %v307, %v306
      %v327 = vpack.c.b16 %v309, %v308
      %v328 = vpack.c.b16 %v311, %v310
      %v329 = vpack.c.b16 %v313, %v312
      %v362 = vunpack.c.l.b16 %v234
      %v363 = vunpack.c.l.b16 %v235
      %v364 = vunpack.c.l.b16 %v236
      %v365 = vunpack.c.l.b16 %v237
      %v366 = vunpack.c.l.b16 %v238
      %v367 = vunpack.c.l.b16 %v239
      %v368 = vunpack.c.l.b16 %v240
      %v369 = vunpack.c.l.b16 %v241
      %v370 = vunpack.c.l.b16 %v242
      %v371 = vunpack.c.l.b16 %v243
      %v372 = vunpack.c.l.b16 %v244
      %v373 = vunpack.c.l.b16 %v245
      %v374 = vunpack.c.l.b16 %v246
      %v375 = vunpack.c.l.b16 %v247
      %v376 = vunpack.c.l.b16 %v248
      %v377 = vunpack.c.l.b16 %v249
      %v378 = vpack.c.b16 %v363, %v362
      %v379 = vpack.c.b16 %v365, %v364
      %v380 = vpack.c.b16 %v367, %v366
      %v381 = vpack.c.b16 %v369, %v368
      %v382 = vpack.c.b16 %v371, %v370
      %v383 = vpack.c.b16 %v373, %v372
      %v384 = vpack.c.b16 %v375, %v374
      %v385 = vpack.c.b16 %v377, %v376
      %394 = vmatprep.subr.bf16.mxu0 0
      %395 = vmatpush1.bf16.msra.mxu0 %v378
      %396 = vmatprep.subr.bf16.mxu0 0
      %397 = vmatpush1.bf16.msra.mxu0 %v379
      %398 = vmatprep.subr.bf16.mxu0 0
      %399 = vmatpush1.bf16.msra.mxu0 %v380
      %400 = vmatprep.subr.bf16.mxu0 0
      %401 = vmatpush1.bf16.msra.mxu0 %v381
      %402 = vmatprep.subr.bf16.mxu0 0
      %403 = vmatpush1.bf16.msra.mxu0 %v382
      %404 = vmatprep.subr.bf16.mxu0 0
      %405 = vmatpush1.bf16.msra.mxu0 %v383
      %406 = vmatprep.subr.bf16.mxu0 0
      %407 = vmatpush1.bf16.msra.mxu0 %v384
      %408 = vmatprep.subr.bf16.mxu0 0
      %409 = vmatpush1.bf16.msra.mxu0 %v385
      %410 = vmatprep.subr.bf16.mxu0 0
      %411 = vmatpush1.bf16.msra.mxu0 0
      %412 = vmatprep.subr.bf16.mxu0 0
      %413 = vmatpush1.bf16.msra.mxu0 0
      %414 = vmatprep.subr.bf16.mxu0 0
      %415 = vmatpush1.bf16.msra.mxu0 0
      %416 = vmatprep.subr.bf16.mxu0 0
      %417 = vmatpush1.bf16.msra.mxu0 0
      %418 = vmatprep.subr.bf16.mxu0 0
      %419 = vmatpush1.bf16.msra.mxu0 0
      %420 = vmatprep.subr.bf16.mxu0 0
      %421 = vmatpush1.bf16.msra.mxu0 0
      %422 = vmatprep.subr.bf16.mxu0 0
      %423 = vmatpush1.bf16.msra.mxu0 0
      %424 = vmatprep.subr.bf16.mxu0 0
      %425 = vmatpush1.bf16.msra.mxu0 0
      %426 = vmatprep.mubr.bf16.mxu0 0
      %427 = vmatmul.mubr.bf16.gmra.mrb[0].mxu0 %v314
      %v428 = vpop.f32.mrb[0].mxu0
      %v429 = vadd.f32 0.0, %v428
      %v430 = vpop.f32.mrb[0].mxu0
      %v431 = vpop.f32.mrb[0].mxu0
      %v432 = vadd.f32 0.0, %v431
      %v433 = vpop.f32.mrb[0].mxu0
      %434 = vmatprep.mubr.bf16.mxu0 0
      %435 = vmatmul.mubr.bf16.gmra.mrb[0].mxu0 %v315
      %v436 = vpop.f32.mrb[0].mxu0
      %v437 = vadd.f32 0.0, %v436
      %v438 = vpop.f32.mrb[0].mxu0
      %v439 = vpop.f32.mrb[0].mxu0
      %v440 = vadd.f32 0.0, %v439
      %v441 = vpop.f32.mrb[0].mxu0
      %442 = vmatprep.mubr.bf16.mxu0 0
      %443 = vmatmul.mubr.bf16.gmra.mrb[0].mxu0 %v316
      %v444 = vpop.f32.mrb[0].mxu0
      %v445 = vadd.f32 0.0, %v444
      %v446 = vpop.f32.mrb[0].mxu0
      %v447 = vpop.f32.mrb[0].mxu0
      %v448 = vadd.f32 0.0, %v447
      %v449 = vpop.f32.mrb[0].mxu0
      %450 = vmatprep.mubr.bf16.mxu0 0
      %451 = vmatmul.mubr.bf16.gmra.mrb[0].mxu0 %v317
      %v452 = vpop.f32.mrb[0].mxu0
      %v453 = vadd.f32 0.0, %v452
      %v454 = vpop.f32.mrb[0].mxu0
      %v455 = vpop.f32.mrb[0].mxu0
      %v456 = vadd.f32 0.0, %v455
      %v457 = vpop.f32.mrb[0].mxu0
      %458 = vmatprep.mubr.bf16.mxu0 0
      %459 = vmatmul.mubr.bf16.gmra.mrb[0].mxu0 %v318
      %v460 = vpop.f32.mrb[0].mxu0
      %v461 = vadd.f32 0.0, %v460
      %v462 = vpop.f32.mrb[0].mxu0
      %v463 = vpop.f32.mrb[0].mxu0
      %v464 = vadd.f32 0.0, %v463
      %v465 = vpop.f32.mrb[0].mxu0
      %466 = vmatprep.mubr.bf16.mxu0 0
      %467 = vmatmul.mubr.bf16.gmra.mrb[0].mxu0 %v319
      %v468 = vpop.f32.mrb[0].mxu0
      %v469 = vadd.f32 0.0, %v468
      %v470 = vpop.f32.mrb[0].mxu0
      %v471 = vpop.f32.mrb[0].mxu0
      %v472 = vadd.f32 0.0, %v471
      %v473 = vpop.f32.mrb[0].mxu0
      %474 = vmatprep.mubr.bf16.mxu0 0
      %475 = vmatmul.mubr.bf16.gmra.mrb[0].mxu0 %v320
      %v476 = vpop.f32.mrb[0].mxu0
      %v477 = vadd.f32 0.0, %v476
      %v478 = vpop.f32.mrb[0].mxu0
      %v479 = vpop.f32.mrb[0].mxu0
      %v480 = vadd.f32 0.0, %v479
      %v481 = vpop.f32.mrb[0].mxu0
      %482 = vmatprep.mubr.bf16.mxu0 0
      %483 = vmatmul.mubr.bf16.gmra.mrb[0].mxu0 %v321
      %v484 = vpop.f32.mrb[0].mxu0
      %v485 = vadd.f32 0.0, %v484
      %v486 = vpop.f32.mrb[0].mxu0
      %v487 = vpop.f32.mrb[0].mxu0
      %v488 = vadd.f32 0.0, %v487
      %v489 = vpop.f32.mrb[0].mxu0
      %490 = vmatprep.mubr.bf16.mxu0 0
      %491 = vmatmul.mubr.bf16.gmra.mrb[0].mxu0 %v322
      %v492 = vpop.f32.mrb[0].mxu0
      %v493 = vadd.f32 0.0, %v492
      %v494 = vpop.f32.mrb[0].mxu0
      %v495 = vpop.f32.mrb[0].mxu0
      %v496 = vadd.f32 0.0, %v495
      %v497 = vpop.f32.mrb[0].mxu0
      %498 = vmatprep.mubr.bf16.mxu0 0
      %499 = vmatmul.mubr.bf16.gmra.mrb[0].mxu0 %v323
      %v500 = vpop.f32.mrb[0].mxu0
      %v501 = vadd.f32 0.0, %v500
      %v502 = vpop.f32.mrb[0].mxu0
      %v503 = vpop.f32.mrb[0].mxu0
      %v504 = vadd.f32 0.0, %v503
      %v505 = vpop.f32.mrb[0].mxu0
      %506 = vmatprep.mubr.bf16.mxu0 0
      %507 = vmatmul.mubr.bf16.gmra.mrb[0].mxu0 %v324
      %v508 = vpop.f32.mrb[0].mxu0
      %v509 = vadd.f32 0.0, %v508
      %v510 = vpop.f32.mrb[0].mxu0
      %v511 = vpop.f32.mrb[0].mxu0
      %v512 = vadd.f32 0.0, %v511
      %v513 = vpop.f32.mrb[0].mxu0
      %514 = vmatprep.mubr.bf16.mxu0 0
      %515 = vmatmul.mubr.bf16.gmra.mrb[0].mxu0 %v325
      %v516 = vpop.f32.mrb[0].mxu0
      %v517 = vadd.f32 0.0, %v516
      %v518 = vpop.f32.mrb[0].mxu0
      %v519 = vpop.f32.mrb[0].mxu0
      %v520 = vadd.f32 0.0, %v519
      %v521 = vpop.f32.mrb[0].mxu0
      %522 = vmatprep.mubr.bf16.mxu0 0
      %523 = vmatmul.mubr.bf16.gmra.mrb[0].mxu0 %v326
      %v524 = vpop.f32.mrb[0].mxu0
      %v525 = vadd.f32 0.0, %v524
      %v526 = vpop.f32.mrb[0].mxu0
      %v527 = vpop.f32.mrb[0].mxu0
      %v528 = vadd.f32 0.0, %v527
      %v529 = vpop.f32.mrb[0].mxu0
      %530 = vmatprep.mubr.bf16.mxu0 0
      %531 = vmatmul.mubr.bf16.gmra.mrb[0].mxu0 %v327
      %v532 = vpop.f32.mrb[0].mxu0
      %v533 = vadd.f32 0.0, %v532
      %v534 = vpop.f32.mrb[0].mxu0
      %v535 = vpop.f32.mrb[0].mxu0
      %v536 = vadd.f32 0.0, %v535
      %v537 = vpop.f32.mrb[0].mxu0
      %538 = vmatprep.mubr.bf16.mxu0 0
      %539 = vmatmul.mubr.bf16.gmra.mrb[0].mxu0 %v328
      %v540 = vpop.f32.mrb[0].mxu0
      %v541 = vadd.f32 0.0, %v540
      %v542 = vpop.f32.mrb[0].mxu0
      %v543 = vpop.f32.mrb[0].mxu0
      %v544 = vadd.f32 0.0, %v543
      %v545 = vpop.f32.mrb[0].mxu0
      %546 = vmatprep.mubr.bf16.mxu0 0
      %547 = vmatmul.mubr.bf16.gmra.mrb[0].mxu0 %v329
      %v548 = vpop.f32.mrb[0].mxu0
      %v549 = vadd.f32 0.0, %v548
      %v550 = vpop.f32.mrb[0].mxu0
      %v551 = vpop.f32.mrb[0].mxu0
      %v552 = vadd.f32 0.0, %v551
      %v553 = vpop.f32.mrb[0].mxu0
      %554 = vdwg.mxu0
      %v555 = vld [vmem:[%s2] sm:$0x1]
      %v557 = vlaneseq
      %v558 = vshrl.u32 %v557, 7
      %v559 = vsub.s32 0, %v558
      %v560 = vrot.slane %v555, %v559
      %v562 = vmul.f32 %v429, %v560
      %v563 = vmul.f32 %v432, %v560
      %v564 = vmul.f32 %v437, %v560
      %v565 = vmul.f32 %v440, %v560
      %v566 = vmul.f32 %v445, %v560
      %v567 = vmul.f32 %v448, %v560
      %v568 = vmul.f32 %v453, %v560
      %v569 = vmul.f32 %v456, %v560
      %v570 = vmul.f32 %v461, %v560
      %v571 = vmul.f32 %v464, %v560
      %v572 = vmul.f32 %v469, %v560
      %v573 = vmul.f32 %v472, %v560
      %v574 = vmul.f32 %v477, %v560
      %v575 = vmul.f32 %v480, %v560
      %v576 = vmul.f32 %v485, %v560
      %v577 = vmul.f32 %v488, %v560
      %v578 = vmul.f32 %v493, %v560
      %v579 = vmul.f32 %v496, %v560
      %v580 = vmul.f32 %v501, %v560
      %v581 = vmul.f32 %v504, %v560
      %v582 = vmul.f32 %v509, %v560
      %v583 = vmul.f32 %v512, %v560
      %v584 = vmul.f32 %v517, %v560
      %v585 = vmul.f32 %v520, %v560
      %v586 = vmul.f32 %v525, %v560
      %v587 = vmul.f32 %v528, %v560
      %v588 = vmul.f32 %v533, %v560
      %v589 = vmul.f32 %v536, %v560
      %v590 = vmul.f32 %v541, %v560
      %v591 = vmul.f32 %v544, %v560
      %v592 = vmul.f32 %v549, %v560
      %v593 = vmul.f32 %v552, %v560
      %v594 = vld [vmem:[%s3] sm:$0x1]
      %v596 = vlaneseq
      %v597 = vshrl.u32 %v596, 7
      %v598 = vsub.s32 0, %v597
      %v599 = vrot.slane %v594, %v598
      %v601 = vadd.f32 %v562, %v599
      %v602 = vadd.f32 %v563, %v599
      %v603 = vadd.f32 %v564, %v599
      %v604 = vadd.f32 %v565, %v599
      %v605 = vadd.f32 %v566, %v599
      %v606 = vadd.f32 %v567, %v599
      %v607 = vadd.f32 %v568, %v599
      %v608 = vadd.f32 %v569, %v599
      %v609 = vadd.f32 %v570, %v599
      %v610 = vadd.f32 %v571, %v599
      %v611 = vadd.f32 %v572, %v599
      %v612 = vadd.f32 %v573, %v599
      %v613 = vadd.f32 %v574, %v599
      %v614 = vadd.f32 %v575, %v599
      %v615 = vadd.f32 %v576, %v599
      %v616 = vadd.f32 %v577, %v599
      %v617 = vadd.f32 %v578, %v599
      %v618 = vadd.f32 %v579, %v599
      %v619 = vadd.f32 %v580, %v599
      %v620 = vadd.f32 %v581, %v599
      %v621 = vadd.f32 %v582, %v599
      %v622 = vadd.f32 %v583, %v599
      %v623 = vadd.f32 %v584, %v599
      %v624 = vadd.f32 %v585, %v599
      %v625 = vadd.f32 %v586, %v599
      %v626 = vadd.f32 %v587, %v599
      %v627 = vadd.f32 %v588, %v599
      %v628 = vadd.f32 %v589, %v599
      %v629 = vadd.f32 %v590, %v599
      %v630 = vadd.f32 %v591, %v599
      %v631 = vadd.f32 %v592, %v599
      %v632 = vadd.f32 %v593, %v599
      %v633 = vmax.f32 %v601, 0.0
      %v634 = vmax.f32 %v602, 0.0
      %v635 = vmax.f32 %v603, 0.0
      %v636 = vmax.f32 %v604, 0.0
      %v637 = vmax.f32 %v605, 0.0
      %v638 = vmax.f32 %v606, 0.0
      %v639 = vmax.f32 %v607, 0.0
      %v640 = vmax.f32 %v608, 0.0
      %v641 = vmax.f32 %v609, 0.0
      %v642 = vmax.f32 %v610, 0.0
      %v643 = vmax.f32 %v611, 0.0
      %v644 = vmax.f32 %v612, 0.0
      %v645 = vmax.f32 %v613, 0.0
      %v646 = vmax.f32 %v614, 0.0
      %v647 = vmax.f32 %v615, 0.0
      %v648 = vmax.f32 %v616, 0.0
      %v649 = vmax.f32 %v617, 0.0
      %v650 = vmax.f32 %v618, 0.0
      %v651 = vmax.f32 %v619, 0.0
      %v652 = vmax.f32 %v620, 0.0
      %v653 = vmax.f32 %v621, 0.0
      %v654 = vmax.f32 %v622, 0.0
      %v655 = vmax.f32 %v623, 0.0
      %v656 = vmax.f32 %v624, 0.0
      %v657 = vmax.f32 %v625, 0.0
      %v658 = vmax.f32 %v626, 0.0
      %v659 = vmax.f32 %v627, 0.0
      %v660 = vmax.f32 %v628, 0.0
      %v661 = vmax.f32 %v629, 0.0
      %v662 = vmax.f32 %v630, 0.0
      %v663 = vmax.f32 %v631, 0.0
      %v664 = vmax.f32 %v632, 0.0
      %v665 = vpack.c.bf16 %v634, %v633
      %v666 = vpack.c.bf16 %v636, %v635
      %v667 = vpack.c.bf16 %v638, %v637
      %v668 = vpack.c.bf16 %v640, %v639
      %v669 = vpack.c.bf16 %v642, %v641
      %v670 = vpack.c.bf16 %v644, %v643
      %v671 = vpack.c.bf16 %v646, %v645
      %v672 = vpack.c.bf16 %v648, %v647
      %v673 = vpack.c.bf16 %v650, %v649
      %v674 = vpack.c.bf16 %v652, %v651
      %v675 = vpack.c.bf16 %v654, %v653
      %v676 = vpack.c.bf16 %v656, %v655
      %v677 = vpack.c.bf16 %v658, %v657
      %v678 = vpack.c.bf16 %v660, %v659
      %v679 = vpack.c.bf16 %v662, %v661
      %v680 = vpack.c.bf16 %v664, %v663
      %v697 = vunpack.c.l.b16 %v665
      %v698 = vunpack.c.h.b16 %v665
      %v699 = vunpack.c.l.b16 %v666
      %v700 = vunpack.c.h.b16 %v666
      %v701 = vunpack.c.l.b16 %v667
      %v702 = vunpack.c.h.b16 %v667
      %v703 = vunpack.c.l.b16 %v668
      %v704 = vunpack.c.h.b16 %v668
      %v705 = vunpack.c.l.b16 %v669
      %v706 = vunpack.c.h.b16 %v669
      %v707 = vunpack.c.l.b16 %v670
      %v708 = vunpack.c.h.b16 %v670
      %v709 = vunpack.c.l.b16 %v671
      %v710 = vunpack.c.h.b16 %v671
      %v711 = vunpack.c.l.b16 %v672
      %v712 = vunpack.c.h.b16 %v672
      %v713 = vunpack.c.l.b16 %v673
      %v714 = vunpack.c.h.b16 %v673
      %v715 = vunpack.c.l.b16 %v674
      %v716 = vunpack.c.h.b16 %v674
      %v717 = vunpack.c.l.b16 %v675
      %v718 = vunpack.c.h.b16 %v675
      %v719 = vunpack.c.l.b16 %v676
      %v720 = vunpack.c.h.b16 %v676
      %v721 = vunpack.c.l.b16 %v677
      %v722 = vunpack.c.h.b16 %v677
      %v723 = vunpack.c.l.b16 %v678
      %v724 = vunpack.c.h.b16 %v678
      %v725 = vunpack.c.l.b16 %v679
      %v726 = vunpack.c.h.b16 %v679
      %v727 = vunpack.c.l.b16 %v680
      %v728 = vunpack.c.h.b16 %v680
      %v729 = vpack.c.b16 %v697, %v697
      %v730 = vpack.c.b16 %v698, %v698
      %v731 = vpack.c.b16 %v699, %v699
      %v732 = vpack.c.b16 %v700, %v700
      %v733 = vpack.c.b16 %v701, %v701
      %v734 = vpack.c.b16 %v702, %v702
      %v735 = vpack.c.b16 %v703, %v703
      %v736 = vpack.c.b16 %v704, %v704
      %v737 = vpack.c.b16 %v705, %v705
      %v738 = vpack.c.b16 %v706, %v706
      %v739 = vpack.c.b16 %v707, %v707
      %v740 = vpack.c.b16 %v708, %v708
      %v741 = vpack.c.b16 %v709, %v709
      %v742 = vpack.c.b16 %v710, %v710
      %v743 = vpack.c.b16 %v711, %v711
      %v744 = vpack.c.b16 %v712, %v712
      %v745 = vpack.c.b16 %v713, %v713
      %v746 = vpack.c.b16 %v714, %v714
      %v747 = vpack.c.b16 %v715, %v715
      %v748 = vpack.c.b16 %v716, %v716
      %v749 = vpack.c.b16 %v717, %v717
      %v750 = vpack.c.b16 %v718, %v718
      %v751 = vpack.c.b16 %v719, %v719
      %v752 = vpack.c.b16 %v720, %v720
      %v753 = vpack.c.b16 %v721, %v721
      %v754 = vpack.c.b16 %v722, %v722
      %v755 = vpack.c.b16 %v723, %v723
      %v756 = vpack.c.b16 %v724, %v724
      %v757 = vpack.c.b16 %v725, %v725
      %v758 = vpack.c.b16 %v726, %v726
      %v759 = vpack.c.b16 %v727, %v727
      %v760 = vpack.c.b16 %v728, %v728
      %793 = vst [vmem:[%s199] sm:$0xf] %v729
      %794 = vst [vmem:[%s199 + $0x4] sm:$0xf] %v730
      %795 = vst [vmem:[%s199 + $0x8] sm:$0xf] %v731
      %796 = vst [vmem:[%s199 + $0xc] sm:$0xf] %v732
      %797 = vst [vmem:[%s199 + $0x10] sm:$0xf] %v733
      %798 = vst [vmem:[%s199 + $0x14] sm:$0xf] %v734
      %799 = vst [vmem:[%s199 + $0x18] sm:$0xf] %v735
      %800 = vst [vmem:[%s199 + $0x1c] sm:$0xf] %v736
      %801 = vst [vmem:[%s199 + $0x20] sm:$0xf] %v737
      %802 = vst [vmem:[%s199 + $0x24] sm:$0xf] %v738
      %803 = vst [vmem:[%s199 + $0x28] sm:$0xf] %v739
      %804 = vst [vmem:[%s199 + $0x2c] sm:$0xf] %v740
      %805 = vst [vmem:[%s199 + $0x30] sm:$0xf] %v741
      %806 = vst [vmem:[%s199 + $0x34] sm:$0xf] %v742
      %807 = vst [vmem:[%s199 + $0x38] sm:$0xf] %v743
      %808 = vst [vmem:[%s199 + $0x3c] sm:$0xf] %v744
      %809 = vst [vmem:[%s199 + $0x40] sm:$0xf] %v745
      %810 = vst [vmem:[%s199 + $0x44] sm:$0xf] %v746
      %811 = vst [vmem:[%s199 + $0x48] sm:$0xf] %v747
      %812 = vst [vmem:[%s199 + $0x4c] sm:$0xf] %v748
      %813 = vst [vmem:[%s199 + $0x50] sm:$0xf] %v749
      %814 = vst [vmem:[%s199 + $0x54] sm:$0xf] %v750
      %815 = vst [vmem:[%s199 + $0x58] sm:$0xf] %v751
      %816 = vst [vmem:[%s199 + $0x5c] sm:$0xf] %v752
      %817 = vst [vmem:[%s199 + $0x60] sm:$0xf] %v753
      %818 = vst [vmem:[%s199 + $0x64] sm:$0xf] %v754
      %819 = vst [vmem:[%s199 + $0x68] sm:$0xf] %v755
      %820 = vst [vmem:[%s199 + $0x6c] sm:$0xf] %v756
      %821 = vst [vmem:[%s199 + $0x70] sm:$0xf] %v757
      %822 = vst [vmem:[%s199 + $0x74] sm:$0xf] %v758
      %823 = vst [vmem:[%s199 + $0x78] sm:$0xf] %v759
      %824 = vst [vmem:[%s199 + $0x7c] sm:$0xf] %v760
      %s825 = smul.u32 32, %s15
      %p826 = scmp.lt.s32.totalorder %s825, 63
      %s827 = scalar_select %p826, %s825, 63
      %s828 = smul.addr %s827, 4
      %s829 = scalar_lea.vmem %s4, %s828
      // Predicated region
      $region37: #{bottleneck_forward.8} parent=35 // pred_check
        %p830 = pneg %p122
      $region38: #{bottleneck_forward.8} parent=35 // pred_check_branch
        %832 = sbr.rel (%p830) target = $region40
      $region39: #{bottleneck_forward.8} parent=35 // pred_region
        %s833 = smul.u32 32, %s15
      $region40: #{bottleneck_forward.8} parent=35 // pred_fallthru
        _
    $region36: #{bottleneck_forward.8} parent=5 // pred_fallthru
      _
    %p834 = scmp.le.s32.totalorder 2, %s10
    // Predicated region
    $region41: #{bottleneck_forward.8} parent=5 // pred_check
      %p835 = pneg %p834
    $region42: #{bottleneck_forward.8} parent=5 // pred_check_branch
      %837 = sbr.rel (%p835) target = $region44
    $region43: #{bottleneck_forward.8} parent=5 // pred_region
      %s838 = ssub.s32 %s10, 2
      // Predicated region
      $region45: #{bottleneck_forward.8} parent=43 // pred_check
        %p839 = pneg %p128
      $region46: #{bottleneck_forward.8} parent=43 // pred_check_branch
        %841 = sbr.rel (%p839) target = $region48
      $region47: #{bottleneck_forward.8} parent=43 // pred_region
        %s842 = smul.u32 32, %s16
        %p843 = scmp.lt.s32.totalorder %s842, 63
        %s844 = scalar_select %p843, %s842, 63
        %s845 = smul.addr %s844, 4
        %s846 = scalar_lea.vmem %s4, %s845
      $region48: #{bottleneck_forward.8} parent=43 // pred_fallthru
        _
    $region44: #{bottleneck_forward.8} parent=5 // pred_fallthru
      _
  $region6: #{bottleneck_forward.8} parent=0 // loop_footer
    %s14 = sadd.s32 1, %s10
  $region7: #{bottleneck_forward.8} parent=0 // loop_footer_branch
    %9 = sbr.rel target = $region3
  $region8: #{bottleneck_forward.8} parent=0 // loop_exit
    _

// kernel: bottleneck_forward.7
$region0: #{bottleneck_forward.7}
  #allocation0 [shape = 'u32[]', space=smem, size = 0x4, offset = 0x4, fixed_abs, tag = 'smem constant byte address 0x4 - core index']
  #allocation1 [shape = 'u32[144,128]{1,0:T(1,128)}', space=vmem, size = 0x12000, scoped, tag = 'internal scratch']
  #allocation2 [shape = 'f32[1,128]{1,0:T(1,128)}', space=vmem, size = 0x200, scoped, tag = 'scratch operand']
  #allocation3 [shape = 'f32[1,128]{1,0:T(1,128)}', space=vmem, size = 0x200, scoped, tag = 'scratch operand']
  %s0 = inlined_call_operand.vmem [shape: bf16[512,128], index: 0, kind: input, shape index: {}]
  %s1 = inlined_call_operand.vmem [shape: bf16[128,128], index: 1, kind: input, shape index: {}]
  %s2 = inlined_call_operand.vmem [shape: f32[1,128], index: 2, kind: input, shape index: {}]
  %s3 = inlined_call_operand.vmem [shape: f32[1,128], index: 3, kind: input, shape index: {}]
  %s4 = inlined_call_operand.vmem [shape: f32[1,128], index: 4, kind: output, shape index: {0}]
  %s5 = inlined_call_operand.vmem [shape: f32[1,128], index: 5, kind: output, shape index: {1}]
  %6 = xla_tuple %s4, %s5
  %s7 = sld [smem:[#allocation0]]
  $region65: #{bottleneck_forward.7} parent=0
    _
  %s9 = ssub.s32 1, %s7
  %s10 = scalar_select 0, %s9, %s7
  loop: start=0, step=1, limit=4
  $region2: #{bottleneck_forward.7} parent=0 // loop_pre_header
    _
  $region3: #{bottleneck_forward.7} parent=0 // loop_header
    %s12 = sphi 0, %s16
    %p13 = scmp.ge.s32.totalorder %s12, 4
    %s22 = sphi 0, %s24
    %s25 = sphi 0, %s22
    %s26 = sphi 0, %s25
    %s42 = sphi 0, %s26
    %s46 = sphi 0, %s46
    %s48 = sphi 0, %s46
    %s49 = sphi 0, %s48
    %s63 = sphi 0, %s49
    %s67 = sphi 0, %s67
    %s69 = sphi 0, %s67
    %s70 = sphi 0, %s69
    %s84 = sphi 0, %s70
    %s88 = sphi 0, %s88
    %s90 = sphi 0, %s88
    %s91 = sphi 0, %s90
    %s105 = sphi 0, %s91
    %s109 = sphi 0, %s109
    %s111 = sphi 0, %s109
    %s112 = sphi 0, %s111
    %s126 = sphi 0, %s112
    %s130 = sphi 0, %s130
    %s132 = sphi 0, %s130
    %s133 = sphi 0, %s132
    %s147 = sphi 0, %s133
  $region4: #{bottleneck_forward.7} parent=0 // loop_header_branch
    %15 = sbr.rel (%p13) target = $region8
  $region5: #{bottleneck_forward.7} parent=0 // loop_body
    %s17 = ssub.s32 %s12, 1
    %s18 = ssub.s32 %s12, 2
    %s19 = sadd.s32 %s12, 1
    %s20 = ssub.s32 %s12, %s19
    %p21 = scmp.eq.s32.totalorder %s20, 0
    %s23 = sadd.s32 %s22, 1
    %s24 = scalar_select %p21, %s22, %s23
    %p27 = pneg %p21
    %p28 = scmp.eq.s32.totalorder %s12, 1
    %p29 = por %p27, %p28
    %p30 = scmp.ne.s32.totalorder %s22, %s25
    %p31 = scmp.eq.s32.totalorder %s12, 0
    %p32 = por %p30, %p31
    %p33 = scmp.ne.s32.totalorder %s22, %s25
    %p34 = scmp.eq.s32.totalorder %s17, 1
    %p35 = por %p33, %p34
    %p36 = scmp.ne.s32.totalorder %s25, %s26
    %p37 = scmp.eq.s32.totalorder %s17, 0
    %p38 = por %p36, %p37
    %p39 = scmp.ne.s32.totalorder %s25, %s26
    %p40 = scmp.eq.s32.totalorder %s18, 1
    %p41 = por %p39, %p40
    %p43 = scmp.ne.s32.totalorder %s26, %s42
    %p44 = scmp.eq.s32.totalorder %s18, 0
    %p45 = por %p43, %p44
    %s47 = sadd.s32 %s46, 1
    %p50 = scmp.eq.s32.totalorder %s12, 1
    %p51 = scmp.ne.s32.totalorder %s46, %s48
    %p52 = scmp.eq.s32.totalorder %s12, 0
    %p53 = por %p51, %p52
    %p54 = scmp.ne.s32.totalorder %s46, %s48
    %p55 = scmp.eq.s32.totalorder %s17, 1
    %p56 = por %p54, %p55
    %p57 = scmp.ne.s32.totalorder %s48, %s49
    %p58 = scmp.eq.s32.totalorder %s17, 0
    %p59 = por %p57, %p58
    %p60 = scmp.ne.s32.totalorder %s48, %s49
    %p61 = scmp.eq.s32.totalorder %s18, 1
    %p62 = por %p60, %p61
    %p64 = scmp.ne.s32.totalorder %s49, %s63
    %p65 = scmp.eq.s32.totalorder %s18, 0
    %p66 = por %p64, %p65
    %s68 = sadd.s32 %s67, 1
    %p71 = scmp.eq.s32.totalorder %s12, 1
    %p72 = scmp.ne.s32.totalorder %s67, %s69
    %p73 = scmp.eq.s32.totalorder %s12, 0
    %p74 = por %p72, %p73
    %p75 = scmp.ne.s32.totalorder %s67, %s69
    %p76 = scmp.eq.s32.totalorder %s17, 1
    %p77 = por %p75, %p76
    %p78 = scmp.ne.s32.totalorder %s69, %s70
    %p79 = scmp.eq.s32.totalorder %s17, 0
    %p80 = por %p78, %p79
    %p81 = scmp.ne.s32.totalorder %s69, %s70
    %p82 = scmp.eq.s32.totalorder %s18, 1
    %p83 = por %p81, %p82
    %p85 = scmp.ne.s32.totalorder %s70, %s84
    %p86 = scmp.eq.s32.totalorder %s18, 0
    %p87 = por %p85, %p86
    %s89 = sadd.s32 %s88, 1
    %p92 = scmp.eq.s32.totalorder %s12, 1
    %p93 = scmp.ne.s32.totalorder %s88, %s90
    %p94 = scmp.eq.s32.totalorder %s12, 0
    %p95 = por %p93, %p94
    %p96 = scmp.ne.s32.totalorder %s88, %s90
    %p97 = scmp.eq.s32.totalorder %s17, 1
    %p98 = por %p96, %p97
    %p99 = scmp.ne.s32.totalorder %s90, %s91
    %p100 = scmp.eq.s32.totalorder %s17, 0
    %p101 = por %p99, %p100
    %p102 = scmp.ne.s32.totalorder %s90, %s91
    %p103 = scmp.eq.s32.totalorder %s18, 1
    %p104 = por %p102, %p103
    %p106 = scmp.ne.s32.totalorder %s91, %s105
    %p107 = scmp.eq.s32.totalorder %s18, 0
    %p108 = por %p106, %p107
    %s110 = sadd.s32 %s109, 1
    %p113 = scmp.eq.s32.totalorder %s12, 1
    %p114 = scmp.ne.s32.totalorder %s109, %s111
    %p115 = scmp.eq.s32.totalorder %s12, 0
    %p116 = por %p114, %p115
    %p117 = scmp.ne.s32.totalorder %s109, %s111
    %p118 = scmp.eq.s32.totalorder %s17, 1
    %p119 = por %p117, %p118
    %p120 = scmp.ne.s32.totalorder %s111, %s112
    %p121 = scmp.eq.s32.totalorder %s17, 0
    %p122 = por %p120, %p121
    %p123 = scmp.ne.s32.totalorder %s111, %s112
    %p124 = scmp.eq.s32.totalorder %s18, 1
    %p125 = por %p123, %p124
    %p127 = scmp.ne.s32.totalorder %s112, %s126
    %p128 = scmp.eq.s32.totalorder %s18, 0
    %p129 = por %p127, %p128
    %s131 = sadd.s32 %s130, 1
    %p134 = scmp.eq.s32.totalorder %s12, 1
    %p135 = scmp.ne.s32.totalorder %s130, %s132
    %p136 = scmp.eq.s32.totalorder %s12, 0
    %p137 = por %p135, %p136
    %p138 = scmp.ne.s32.totalorder %s130, %s132
    %p139 = scmp.eq.s32.totalorder %s17, 1
    %p140 = por %p138, %p139
    %p141 = scmp.ne.s32.totalorder %s132, %s133
    %p142 = scmp.eq.s32.totalorder %s17, 0
    %p143 = por %p141, %p142
    %p144 = scmp.ne.s32.totalorder %s132, %s133
    %p145 = scmp.eq.s32.totalorder %s18, 1
    %p146 = por %p144, %p145
    %p148 = scmp.ne.s32.totalorder %s133, %s147
    %p149 = scmp.eq.s32.totalorder %s18, 0
    %p150 = por %p148, %p149
    %p151 = scmp.le.s32.totalorder 1, %s12
    %p152 = scmp.lt.s32.totalorder %s12, 3
    %p153 = pnand %p151, %p152
    %p154 = pneg %p153
    // Predicated region
    $region9: #{bottleneck_forward.7} parent=5 // pred_check
      _
    $region10: #{bottleneck_forward.7} parent=5 // pred_check_branch
      %156 = sbr.rel (%p153) target = $region12
    $region11: #{bottleneck_forward.7} parent=5 // pred_region
      %s157 = ssub.s32 %s12, 1
      // Predicated region
      $region13: #{bottleneck_forward.7} parent=11 // pred_check
        %p158 = pneg %p59
      $region14: #{bottleneck_forward.7} parent=11 // pred_check_branch
        %160 = sbr.rel (%p158) target = $region16
      $region15: #{bottleneck_forward.7} parent=11 // pred_region
        _
      $region16: #{bottleneck_forward.7} parent=11 // pred_fallthru
        _
      // Predicated region
      $region17: #{bottleneck_forward.7} parent=11 // pred_check
        %p161 = pneg %p80
      $region18: #{bottleneck_forward.7} parent=11 // pred_check_branch
        %163 = sbr.rel (%p161) target = $region20
      $region19: #{bottleneck_forward.7} parent=11 // pred_region
        _
      $region20: #{bottleneck_forward.7} parent=11 // pred_fallthru
        _
      // Predicated region
      $region21: #{bottleneck_forward.7} parent=11 // pred_check
        %p164 = pneg %p101
      $region22: #{bottleneck_forward.7} parent=11 // pred_check_branch
        %166 = sbr.rel (%p164) target = $region24
      $region23: #{bottleneck_forward.7} parent=11 // pred_region
        _
      $region24: #{bottleneck_forward.7} parent=11 // pred_fallthru
        _
    $region12: #{bottleneck_forward.7} parent=5 // pred_fallthru
      _
    %p167 = scmp.lt.s32.totalorder %s12, 2
    // Predicated region
    $region25: #{bottleneck_forward.7} parent=5 // pred_check
      %p168 = pneg %p167
    $region26: #{bottleneck_forward.7} parent=5 // pred_check_branch
      %170 = sbr.rel (%p168) target = $region28
    $region27: #{bottleneck_forward.7} parent=5 // pred_region
      // Predicated region
      $region29: #{bottleneck_forward.7} parent=27 // pred_check
        %p171 = pneg %p32
      $region30: #{bottleneck_forward.7} parent=27 // pred_check_branch
        %173 = sbr.rel (%p171) target = $region32
      $region31: #{bottleneck_forward.7} parent=27 // pred_region
        %s174 = smul.u32 32, %s12
        %p175 = scmp.lt.s32.totalorder %s174, 63
        %s176 = scalar_select %p175, %s174, 63
        %s177 = smul.addr %s176, 4
        %s178 = scalar_lea.vmem %s0, %s177
        %s179 = smul.u32 32, %s12
      $region32: #{bottleneck_forward.7} parent=27 // pred_fallthru
        _
    $region28: #{bottleneck_forward.7} parent=5 // pred_fallthru
      _
    %p180 = scmp.le.s32.totalorder 1, %s12
    %p181 = scmp.lt.s32.totalorder %s12, 3
    %p182 = pnand %p180, %p181
    %p183 = pneg %p182
    // Predicated region
    $region33: #{bottleneck_forward.7} parent=5 // pred_check
      _
    $region34: #{bottleneck_forward.7} parent=5 // pred_check_branch
      %185 = sbr.rel (%p182) target = $region36
    $region35: #{bottleneck_forward.7} parent=5 // pred_region
      %s186 = ssub.s32 %s12, 1
      %s187 = smul.u32 32, %s17
      %p188 = scmp.lt.s32.totalorder %s187, 63
      %s189 = scalar_select %p188, %s187, 63
      %s190 = smul.addr %s189, 4
      %s191 = scalar_lea.vmem %s0, %s190
      %p192 = pneg %p38
      %p193 = pneg %p35
      %p194 = pneg %p59
      %p195 = pneg %p56
      %p196 = pneg %p80
      %p197 = pneg %p77
      %p198 = pneg %p101
      %p199 = pneg %p98
      %p200 = pneg %p122
      %p201 = pneg %p119
      %p202 = pneg %p143
      %p203 = pneg %p140
      %s204 = smul.u32 32, %s17
      %p205 = scmp.lt.s32.totalorder %s204, 63
      %s206 = scalar_select %p205, %s204, 63
      %s207 = smul.addr %s206, 4
      %s208 = scalar_lea.vmem %s0, %s207
      %s209 = smul.u32 32, %s17
      %p211 = scmp.eq.s32.totalorder %s17, 0
      // Predicated region
      $region37: #{bottleneck_forward.7} parent=35 // pred_check
        %p212 = pneg %p211
      $region38: #{bottleneck_forward.7} parent=35 // pred_check_branch
        %214 = sbr.rel (%p212) target = $region40
      $region39: #{bottleneck_forward.7} parent=35 // pred_region
        %215 = vst [vmem:[#allocation2] sm:$0x1] 0.0
        %216 = vst [vmem:[#allocation3] sm:$0x1] 0.0
      $region40: #{bottleneck_forward.7} parent=35 // pred_fallthru
        _
      %v217 = vld [vmem:[%s208] sm:$0xf]
      %v218 = vld [vmem:[%s208 + $0x4] sm:$0xf]
      %v219 = vld [vmem:[%s208 + $0x8] sm:$0xf]
      %v220 = vld [vmem:[%s208 + $0xc] sm:$0xf]
      %v221 = vld [vmem:[%s208 + $0x10] sm:$0xf]
      %v222 = vld [vmem:[%s208 + $0x14] sm:$0xf]
      %v223 = vld [vmem:[%s208 + $0x18] sm:$0xf]
      %v224 = vld [vmem:[%s208 + $0x1c] sm:$0xf]
      %v225 = vld [vmem:[%s208 + $0x20] sm:$0xf]
      %v226 = vld [vmem:[%s208 + $0x24] sm:$0xf]
      %v227 = vld [vmem:[%s208 + $0x28] sm:$0xf]
      %v228 = vld [vmem:[%s208 + $0x2c] sm:$0xf]
      %v229 = vld [vmem:[%s208 + $0x30] sm:$0xf]
      %v230 = vld [vmem:[%s208 + $0x34] sm:$0xf]
      %v231 = vld [vmem:[%s208 + $0x38] sm:$0xf]
      %v232 = vld [vmem:[%s208 + $0x3c] sm:$0xf]
      %v233 = vld [vmem:[%s208 + $0x40] sm:$0xf]
      %v234 = vld [vmem:[%s208 + $0x44] sm:$0xf]
      %v235 = vld [vmem:[%s208 + $0x48] sm:$0xf]
      %v236 = vld [vmem:[%s208 + $0x4c] sm:$0xf]
      %v237 = vld [vmem:[%s208 + $0x50] sm:$0xf]
      %v238 = vld [vmem:[%s208 + $0x54] sm:$0xf]
      %v239 = vld [vmem:[%s208 + $0x58] sm:$0xf]
      %v240 = vld [vmem:[%s208 + $0x5c] sm:$0xf]
      %v241 = vld [vmem:[%s208 + $0x60] sm:$0xf]
      %v242 = vld [vmem:[%s208 + $0x64] sm:$0xf]
      %v243 = vld [vmem:[%s208 + $0x68] sm:$0xf]
      %v244 = vld [vmem:[%s208 + $0x6c] sm:$0xf]
      %v245 = vld [vmem:[%s208 + $0x70] sm:$0xf]
      %v246 = vld [vmem:[%s208 + $0x74] sm:$0xf]
      %v247 = vld [vmem:[%s208 + $0x78] sm:$0xf]
      %v248 = vld [vmem:[%s208 + $0x7c] sm:$0xf]
      %v249 = vld [vmem:[%s1] sm:$0xf]
      %v250 = vld [vmem:[%s1 + $0x4] sm:$0xf]
      %v251 = vld [vmem:[%s1 + $0x8] sm:$0xf]
      %v252 = vld [vmem:[%s1 + $0xc] sm:$0xf]
      %v253 = vld [vmem:[%s1 + $0x10] sm:$0xf]
      %v254 = vld [vmem:[%s1 + $0x14] sm:$0xf]
      %v255 = vld [vmem:[%s1 + $0x18] sm:$0xf]
      %v256 = vld [vmem:[%s1 + $0x1c] sm:$0xf]
      %v257 = vld [vmem:[%s1 + $0x20] sm:$0xf]
      %v258 = vld [vmem:[%s1 + $0x24] sm:$0xf]
      %v259 = vld [vmem:[%s1 + $0x28] sm:$0xf]
      %v260 = vld [vmem:[%s1 + $0x2c] sm:$0xf]
      %v261 = vld [vmem:[%s1 + $0x30] sm:$0xf]
      %v262 = vld [vmem:[%s1 + $0x34] sm:$0xf]
      %v263 = vld [vmem:[%s1 + $0x38] sm:$0xf]
      %v264 = vld [vmem:[%s1 + $0x3c] sm:$0xf]
      %v297 = vunpack.c.l.b16 %v217
      %v298 = vunpack.c.l.b16 %v218
      %v299 = vunpack.c.l.b16 %v219
      %v300 = vunpack.c.l.b16 %v220
      %v301 = vunpack.c.l.b16 %v221
      %v302 = vunpack.c.l.b16 %v222
      %v303 = vunpack.c.l.b16 %v223
      %v304 = vunpack.c.l.b16 %v224
      %v305 = vunpack.c.l.b16 %v225
      %v306 = vunpack.c.l.b16 %v226
      %v307 = vunpack.c.l.b16 %v227
      %v308 = vunpack.c.l.b16 %v228
      %v309 = vunpack.c.l.b16 %v229
      %v310 = vunpack.c.l.b16 %v230
      %v311 = vunpack.c.l.b16 %v231
      %v312 = vunpack.c.l.b16 %v232
      %v313 = vunpack.c.l.b16 %v233
      %v314 = vunpack.c.l.b16 %v234
      %v315 = vunpack.c.l.b16 %v235
      %v316 = vunpack.c.l.b16 %v236
      %v317 = vunpack.c.l.b16 %v237
      %v318 = vunpack.c.l.b16 %v238
      %v319 = vunpack.c.l.b16 %v239
      %v320 = vunpack.c.l.b16 %v240
      %v321 = vunpack.c.l.b16 %v241
      %v322 = vunpack.c.l.b16 %v242
      %v323 = vunpack.c.l.b16 %v243
      %v324 = vunpack.c.l.b16 %v244
      %v325 = vunpack.c.l.b16 %v245
      %v326 = vunpack.c.l.b16 %v246
      %v327 = vunpack.c.l.b16 %v247
      %v328 = vunpack.c.l.b16 %v248
      %v329 = vpack.c.b16 %v298, %v297
      %v330 = vpack.c.b16 %v300, %v299
      %v331 = vpack.c.b16 %v302, %v301
      %v332 = vpack.c.b16 %v304, %v303
      %v333 = vpack.c.b16 %v306, %v305
      %v334 = vpack.c.b16 %v308, %v307
      %v335 = vpack.c.b16 %v310, %v309
      %v336 = vpack.c.b16 %v312, %v311
      %v337 = vpack.c.b16 %v314, %v313
      %v338 = vpack.c.b16 %v316, %v315
      %v339 = vpack.c.b16 %v318, %v317
      %v340 = vpack.c.b16 %v320, %v319
      %v341 = vpack.c.b16 %v322, %v321
      %v342 = vpack.c.b16 %v324, %v323
      %v343 = vpack.c.b16 %v326, %v325
      %v344 = vpack.c.b16 %v328, %v327
      %v377 = vunpack.c.l.b16 %v249
      %v378 = vunpack.c.l.b16 %v250
      %v379 = vunpack.c.l.b16 %v251
      %v380 = vunpack.c.l.b16 %v252
      %v381 = vunpack.c.l.b16 %v253
      %v382 = vunpack.c.l.b16 %v254
      %v383 = vunpack.c.l.b16 %v255
      %v384 = vunpack.c.l.b16 %v256
      %v385 = vunpack.c.l.b16 %v257
      %v386 = vunpack.c.l.b16 %v258
      %v387 = vunpack.c.l.b16 %v259
      %v388 = vunpack.c.l.b16 %v260
      %v389 = vunpack.c.l.b16 %v261
      %v390 = vunpack.c.l.b16 %v262
      %v391 = vunpack.c.l.b16 %v263
      %v392 = vunpack.c.l.b16 %v264
      %v393 = vpack.c.b16 %v378, %v377
      %v394 = vpack.c.b16 %v380, %v379
      %v395 = vpack.c.b16 %v382, %v381
      %v396 = vpack.c.b16 %v384, %v383
      %v397 = vpack.c.b16 %v386, %v385
      %v398 = vpack.c.b16 %v388, %v387
      %v399 = vpack.c.b16 %v390, %v389
      %v400 = vpack.c.b16 %v392, %v391
      %409 = vmatprep.subr.bf16.mxu0 0
      %410 = vmatpush1.bf16.msra.mxu0 %v393
      %411 = vmatprep.subr.bf16.mxu0 0
      %412 = vmatpush1.bf16.msra.mxu0 %v394
      %413 = vmatprep.subr.bf16.mxu0 0
      %414 = vmatpush1.bf16.msra.mxu0 %v395
      %415 = vmatprep.subr.bf16.mxu0 0
      %416 = vmatpush1.bf16.msra.mxu0 %v396
      %417 = vmatprep.subr.bf16.mxu0 0
      %418 = vmatpush1.bf16.msra.mxu0 %v397
      %419 = vmatprep.subr.bf16.mxu0 0
      %420 = vmatpush1.bf16.msra.mxu0 %v398
      %421 = vmatprep.subr.bf16.mxu0 0
      %422 = vmatpush1.bf16.msra.mxu0 %v399
      %423 = vmatprep.subr.bf16.mxu0 0
      %424 = vmatpush1.bf16.msra.mxu0 %v400
      %425 = vmatprep.subr.bf16.mxu0 0
      %426 = vmatpush1.bf16.msra.mxu0 0
      %427 = vmatprep.subr.bf16.mxu0 0
      %428 = vmatpush1.bf16.msra.mxu0 0
      %429 = vmatprep.subr.bf16.mxu0 0
      %430 = vmatpush1.bf16.msra.mxu0 0
      %431 = vmatprep.subr.bf16.mxu0 0
      %432 = vmatpush1.bf16.msra.mxu0 0
      %433 = vmatprep.subr.bf16.mxu0 0
      %434 = vmatpush1.bf16.msra.mxu0 0
      %435 = vmatprep.subr.bf16.mxu0 0
      %436 = vmatpush1.bf16.msra.mxu0 0
      %437 = vmatprep.subr.bf16.mxu0 0
      %438 = vmatpush1.bf16.msra.mxu0 0
      %439 = vmatprep.subr.bf16.mxu0 0
      %440 = vmatpush1.bf16.msra.mxu0 0
      %441 = vmatprep.mubr.bf16.mxu0 0
      %442 = vmatmul.mubr.bf16.gmra.mrb[0].mxu0 %v329
      %v443 = vpop.f32.mrb[0].mxu0
      %v444 = vadd.f32 0.0, %v443
      %v445 = vpop.f32.mrb[0].mxu0
      %v446 = vpop.f32.mrb[0].mxu0
      %v447 = vadd.f32 0.0, %v446
      %v448 = vpop.f32.mrb[0].mxu0
      %449 = vmatprep.mubr.bf16.mxu0 0
      %450 = vmatmul.mubr.bf16.gmra.mrb[0].mxu0 %v330
      %v451 = vpop.f32.mrb[0].mxu0
      %v452 = vadd.f32 0.0, %v451
      %v453 = vpop.f32.mrb[0].mxu0
      %v454 = vpop.f32.mrb[0].mxu0
      %v455 = vadd.f32 0.0, %v454
      %v456 = vpop.f32.mrb[0].mxu0
      %457 = vmatprep.mubr.bf16.mxu0 0
      %458 = vmatmul.mubr.bf16.gmra.mrb[0].mxu0 %v331
      %v459 = vpop.f32.mrb[0].mxu0
      %v460 = vadd.f32 0.0, %v459
      %v461 = vpop.f32.mrb[0].mxu0
      %v462 = vpop.f32.mrb[0].mxu0
      %v463 = vadd.f32 0.0, %v462
      %v464 = vpop.f32.mrb[0].mxu0
      %465 = vmatprep.mubr.bf16.mxu0 0
      %466 = vmatmul.mubr.bf16.gmra.mrb[0].mxu0 %v332
      %v467 = vpop.f32.mrb[0].mxu0
      %v468 = vadd.f32 0.0, %v467
      %v469 = vpop.f32.mrb[0].mxu0
      %v470 = vpop.f32.mrb[0].mxu0
      %v471 = vadd.f32 0.0, %v470
      %v472 = vpop.f32.mrb[0].mxu0
      %473 = vmatprep.mubr.bf16.mxu0 0
      %474 = vmatmul.mubr.bf16.gmra.mrb[0].mxu0 %v333
      %v475 = vpop.f32.mrb[0].mxu0
      %v476 = vadd.f32 0.0, %v475
      %v477 = vpop.f32.mrb[0].mxu0
      %v478 = vpop.f32.mrb[0].mxu0
      %v479 = vadd.f32 0.0, %v478
      %v480 = vpop.f32.mrb[0].mxu0
      %481 = vmatprep.mubr.bf16.mxu0 0
      %482 = vmatmul.mubr.bf16.gmra.mrb[0].mxu0 %v334
      %v483 = vpop.f32.mrb[0].mxu0
      %v484 = vadd.f32 0.0, %v483
      %v485 = vpop.f32.mrb[0].mxu0
      %v486 = vpop.f32.mrb[0].mxu0
      %v487 = vadd.f32 0.0, %v486
      %v488 = vpop.f32.mrb[0].mxu0
      %489 = vmatprep.mubr.bf16.mxu0 0
      %490 = vmatmul.mubr.bf16.gmra.mrb[0].mxu0 %v335
      %v491 = vpop.f32.mrb[0].mxu0
      %v492 = vadd.f32 0.0, %v491
      %v493 = vpop.f32.mrb[0].mxu0
      %v494 = vpop.f32.mrb[0].mxu0
      %v495 = vadd.f32 0.0, %v494
      %v496 = vpop.f32.mrb[0].mxu0
      %497 = vmatprep.mubr.bf16.mxu0 0
      %498 = vmatmul.mubr.bf16.gmra.mrb[0].mxu0 %v336
      %v499 = vpop.f32.mrb[0].mxu0
      %v500 = vadd.f32 0.0, %v499
      %v501 = vpop.f32.mrb[0].mxu0
      %v502 = vpop.f32.mrb[0].mxu0
      %v503 = vadd.f32 0.0, %v502
      %v504 = vpop.f32.mrb[0].mxu0
      %505 = vmatprep.mubr.bf16.mxu0 0
      %506 = vmatmul.mubr.bf16.gmra.mrb[0].mxu0 %v337
      %v507 = vpop.f32.mrb[0].mxu0
      %v508 = vadd.f32 0.0, %v507
      %v509 = vpop.f32.mrb[0].mxu0
      %v510 = vpop.f32.mrb[0].mxu0
      %v511 = vadd.f32 0.0, %v510
      %v512 = vpop.f32.mrb[0].mxu0
      %513 = vmatprep.mubr.bf16.mxu0 0
      %514 = vmatmul.mubr.bf16.gmra.mrb[0].mxu0 %v338
      %v515 = vpop.f32.mrb[0].mxu0
      %v516 = vadd.f32 0.0, %v515
      %v517 = vpop.f32.mrb[0].mxu0
      %v518 = vpop.f32.mrb[0].mxu0
      %v519 = vadd.f32 0.0, %v518
      %v520 = vpop.f32.mrb[0].mxu0
      %521 = vmatprep.mubr.bf16.mxu0 0
      %522 = vmatmul.mubr.bf16.gmra.mrb[0].mxu0 %v339
      %v523 = vpop.f32.mrb[0].mxu0
      %v524 = vadd.f32 0.0, %v523
      %v525 = vpop.f32.mrb[0].mxu0
      %v526 = vpop.f32.mrb[0].mxu0
      %v527 = vadd.f32 0.0, %v526
      %v528 = vpop.f32.mrb[0].mxu0
      %529 = vmatprep.mubr.bf16.mxu0 0
      %530 = vmatmul.mubr.bf16.gmra.mrb[0].mxu0 %v340
      %v531 = vpop.f32.mrb[0].mxu0
      %v532 = vadd.f32 0.0, %v531
      %v533 = vpop.f32.mrb[0].mxu0
      %v534 = vpop.f32.mrb[0].mxu0
      %v535 = vadd.f32 0.0, %v534
      %v536 = vpop.f32.mrb[0].mxu0
      %537 = vmatprep.mubr.bf16.mxu0 0
      %538 = vmatmul.mubr.bf16.gmra.mrb[0].mxu0 %v341
      %v539 = vpop.f32.mrb[0].mxu0
      %v540 = vadd.f32 0.0, %v539
      %v541 = vpop.f32.mrb[0].mxu0
      %v542 = vpop.f32.mrb[0].mxu0
      %v543 = vadd.f32 0.0, %v542
      %v544 = vpop.f32.mrb[0].mxu0
      %545 = vmatprep.mubr.bf16.mxu0 0
      %546 = vmatmul.mubr.bf16.gmra.mrb[0].mxu0 %v342
      %v547 = vpop.f32.mrb[0].mxu0
      %v548 = vadd.f32 0.0, %v547
      %v549 = vpop.f32.mrb[0].mxu0
      %v550 = vpop.f32.mrb[0].mxu0
      %v551 = vadd.f32 0.0, %v550
      %v552 = vpop.f32.mrb[0].mxu0
      %553 = vmatprep.mubr.bf16.mxu0 0
      %554 = vmatmul.mubr.bf16.gmra.mrb[0].mxu0 %v343
      %v555 = vpop.f32.mrb[0].mxu0
      %v556 = vadd.f32 0.0, %v555
      %v557 = vpop.f32.mrb[0].mxu0
      %v558 = vpop.f32.mrb[0].mxu0
      %v559 = vadd.f32 0.0, %v558
      %v560 = vpop.f32.mrb[0].mxu0
      %561 = vmatprep.mubr.bf16.mxu0 0
      %562 = vmatmul.mubr.bf16.gmra.mrb[0].mxu0 %v344
      %v563 = vpop.f32.mrb[0].mxu0
      %v564 = vadd.f32 0.0, %v563
      %v565 = vpop.f32.mrb[0].mxu0
      %v566 = vpop.f32.mrb[0].mxu0
      %v567 = vadd.f32 0.0, %v566
      %v568 = vpop.f32.mrb[0].mxu0
      %569 = vdwg.mxu0
      %v570 = vld [vmem:[#allocation2] sm:$0x1]
      %v571 = vadd.f32 %v444, %v447
      %v572 = vadd.f32 %v571, %v452
      %v573 = vadd.f32 %v572, %v455
      %v574 = vadd.f32 %v573, %v460
      %v575 = vadd.f32 %v574, %v463
      %v576 = vadd.f32 %v575, %v468
      %v577 = vadd.f32 %v576, %v471
      %v578 = vadd.f32 %v577, %v476
      %v579 = vadd.f32 %v578, %v479
      %v580 = vadd.f32 %v579, %v484
      %v581 = vadd.f32 %v580, %v487
      %v582 = vadd.f32 %v581, %v492
      %v583 = vadd.f32 %v582, %v495
      %v584 = vadd.f32 %v583, %v500
      %v585 = vadd.f32 %v584, %v503
      %v586 = vadd.f32 %v585, %v508
      %v587 = vadd.f32 %v586, %v511
      %v588 = vadd.f32 %v587, %v516
      %v589 = vadd.f32 %v588, %v519
      %v590 = vadd.f32 %v589, %v524
      %v591 = vadd.f32 %v590, %v527
      %v592 = vadd.f32 %v591, %v532
      %v593 = vadd.f32 %v592, %v535
      %v594 = vadd.f32 %v593, %v540
      %v595 = vadd.f32 %v594, %v543
      %v596 = vadd.f32 %v595, %v548
      %v597 = vadd.f32 %v596, %v551
      %v598 = vadd.f32 %v597, %v556
      %v599 = vadd.f32 %v598, %v559
      %v600 = vadd.f32 %v599, %v564
      %v601 = vadd.f32 %v600, %v567
      %v602 = vrot.slane %v601, 4
      %v603 = vadd.f32 %v601, %v602
      %v604 = vrot.slane %v603, 2
      %v605 = vadd.f32 %v603, %v604
      %v606 = vrot.slane %v605, 1
      %v607 = vadd.f32 %v605, %v606
      %v608 = vadd.f32 %v570, %v607
      %609 = vst [vmem:[#allocation2] sm:$0x1] %v608
      %v610 = vld [vmem:[#allocation3] sm:$0x1]
      %v611 = vmul.f32 %v444, %v444
      %v612 = vmul.f32 %v447, %v447
      %v613 = vmul.f32 %v452, %v452
      %v614 = vmul.f32 %v455, %v455
      %v615 = vmul.f32 %v460, %v460
      %v616 = vmul.f32 %v463, %v463
      %v617 = vmul.f32 %v468, %v468
      %v618 = vmul.f32 %v471, %v471
      %v619 = vmul.f32 %v476, %v476
      %v620 = vmul.f32 %v479, %v479
      %v621 = vmul.f32 %v484, %v484
      %v622 = vmul.f32 %v487, %v487
      %v623 = vmul.f32 %v492, %v492
      %v624 = vmul.f32 %v495, %v495
      %v625 = vmul.f32 %v500, %v500
      %v626 = vmul.f32 %v503, %v503
      %v627 = vmul.f32 %v508, %v508
      %v628 = vmul.f32 %v511, %v511
      %v629 = vmul.f32 %v516, %v516
      %v630 = vmul.f32 %v519, %v519
      %v631 = vmul.f32 %v524, %v524
      %v632 = vmul.f32 %v527, %v527
      %v633 = vmul.f32 %v532, %v532
      %v634 = vmul.f32 %v535, %v535
      %v635 = vmul.f32 %v540, %v540
      %v636 = vmul.f32 %v543, %v543
      %v637 = vmul.f32 %v548, %v548
      %v638 = vmul.f32 %v551, %v551
      %v639 = vmul.f32 %v556, %v556
      %v640 = vmul.f32 %v559, %v559
      %v641 = vmul.f32 %v564, %v564
      %v642 = vmul.f32 %v567, %v567
      %v643 = vadd.f32 %v611, %v612
      %v644 = vadd.f32 %v643, %v613
      %v645 = vadd.f32 %v644, %v614
      %v646 = vadd.f32 %v645, %v615
      %v647 = vadd.f32 %v646, %v616
      %v648 = vadd.f32 %v647, %v617
      %v649 = vadd.f32 %v648, %v618
      %v650 = vadd.f32 %v649, %v619
      %v651 = vadd.f32 %v650, %v620
      %v652 = vadd.f32 %v651, %v621
      %v653 = vadd.f32 %v652, %v622
      %v654 = vadd.f32 %v653, %v623
      %v655 = vadd.f32 %v654, %v624
      %v656 = vadd.f32 %v655, %v625
      %v657 = vadd.f32 %v656, %v626
      %v658 = vadd.f32 %v657, %v627
      %v659 = vadd.f32 %v658, %v628
      %v660 = vadd.f32 %v659, %v629
      %v661 = vadd.f32 %v660, %v630
      %v662 = vadd.f32 %v661, %v631
      %v663 = vadd.f32 %v662, %v632
      %v664 = vadd.f32 %v663, %v633
      %v665 = vadd.f32 %v664, %v634
      %v666 = vadd.f32 %v665, %v635
      %v667 = vadd.f32 %v666, %v636
      %v668 = vadd.f32 %v667, %v637
      %v669 = vadd.f32 %v668, %v638
      %v670 = vadd.f32 %v669, %v639
      %v671 = vadd.f32 %v670, %v640
      %v672 = vadd.f32 %v671, %v641
      %v673 = vadd.f32 %v672, %v642
      %v674 = vrot.slane %v673, 4
      %v675 = vadd.f32 %v673, %v674
      %v676 = vrot.slane %v675, 2
      %v677 = vadd.f32 %v675, %v676
      %v678 = vrot.slane %v677, 1
      %v679 = vadd.f32 %v677, %v678
      %v680 = vadd.f32 %v610, %v679
      %681 = vst [vmem:[#allocation3] sm:$0x1] %v680
      %p682 = scmp.eq.s32.totalorder %s17, 1
      // Predicated region
      $region41: #{bottleneck_forward.7} parent=35 // pred_check
        %p683 = pneg %p682
      $region42: #{bottleneck_forward.7} parent=35 // pred_check_branch
        %685 = sbr.rel (%p683) target = $region44
      $region43: #{bottleneck_forward.7} parent=35 // pred_region
        %v686 = vld [vmem:[#allocation2] sm:$0x1]
        %v687 = vmul.f32 %v686, 0.001953125
        %v688 = vld [vmem:[#allocation3] sm:$0x1]
        %v689 = vmul.f32 %v688, 0.001953125
        %v690 = vmul.f32 %v687, %v687
        %v691 = vsub.f32 %v689, %v690
        %v692 = vld [vmem:[%s2] sm:$0x1]
        %v693 = vadd.f32 %v691, 1e-05
        %v694 = vrsqrt.pop %v693
        %v695 = vmul.f32 %v692, %v694
        %v696 = vld [vmem:[%s3] sm:$0x1]
        %v697 = vmul.f32 %v687, %v695
        %v698 = vsub.f32 %v696, %v697
        %699 = vst [vmem:[%s4] sm:$0x1] %v695
        %700 = vst [vmem:[%s5] sm:$0x1] %v698
      $region44: #{bottleneck_forward.7} parent=35 // pred_fallthru
        _
      // Predicated region
      $region45: #{bottleneck_forward.7} parent=35 // pred_check
        %p701 = pneg %p119
      $region46: #{bottleneck_forward.7} parent=35 // pred_check_branch
        %703 = sbr.rel (%p701) target = $region48
      $region47: #{bottleneck_forward.7} parent=35 // pred_region
        _
      $region48: #{bottleneck_forward.7} parent=35 // pred_fallthru
        _
      // Predicated region
      $region49: #{bottleneck_forward.7} parent=35 // pred_check
        %p704 = pneg %p140
      $region50: #{bottleneck_forward.7} parent=35 // pred_check_branch
        %706 = sbr.rel (%p704) target = $region52
      $region51: #{bottleneck_forward.7} parent=35 // pred_region
        _
      $region52: #{bottleneck_forward.7} parent=35 // pred_fallthru
        _
      // Predicated region
      $region53: #{bottleneck_forward.7} parent=35 // pred_check
        %p707 = pneg %p119
      $region54: #{bottleneck_forward.7} parent=35 // pred_check_branch
        %709 = sbr.rel (%p707) target = $region56
      $region55: #{bottleneck_forward.7} parent=35 // pred_region
        _
      $region56: #{bottleneck_forward.7} parent=35 // pred_fallthru
        _
      // Predicated region
      $region57: #{bottleneck_forward.7} parent=35 // pred_check
        %p710 = pneg %p140
      $region58: #{bottleneck_forward.7} parent=35 // pred_check_branch
        %712 = sbr.rel (%p710) target = $region60
      $region59: #{bottleneck_forward.7} parent=35 // pred_region
        _
      $region60: #{bottleneck_forward.7} parent=35 // pred_fallthru
        _
    $region36: #{bottleneck_forward.7} parent=5 // pred_fallthru
      _
    %p713 = scmp.le.s32.totalorder 2, %s12
    // Predicated region
    $region61: #{bottleneck_forward.7} parent=5 // pred_check
      %p714 = pneg %p713
    $region62: #{bottleneck_forward.7} parent=5 // pred_check_branch
      %716 = sbr.rel (%p714) target = $region64
    $region63: #{bottleneck_forward.7} parent=5 // pred_region
      %s717 = ssub.s32 %s12, 2
    $region64: #{bottleneck_forward.7} parent=5 // pred_fallthru
      _
  $region6: #{bottleneck_forward.7} parent=0 // loop_footer
    %s16 = sadd.s32 1, %s12
  $region7: #{bottleneck_forward.7} parent=0 // loop_footer_branch
    %11 = sbr.rel target = $region3
  $region8: #{bottleneck_forward.7} parent=0 // loop_exit
    _

// kernel: bottleneck_forward.12
$region0: #{bottleneck_forward.12}
  #allocation0 [shape = 'u32[]', space=smem, size = 0x4, offset = 0x4, fixed_abs, tag = 'smem constant byte address 0x4 - core index']
  #allocation1 [shape = 'u32[144,128]{1,0:T(1,128)}', space=vmem, size = 0x12000, scoped, tag = 'internal scratch']
  #allocation2 [shape = 'f32[1,128]{1,0:T(1,128)}', space=vmem, size = 0x200, scoped, tag = 'scratch operand']
  #allocation3 [shape = 'f32[1,128]{1,0:T(1,128)}', space=vmem, size = 0x200, scoped, tag = 'scratch operand']
  %s0 = inlined_call_operand.vmem [shape: bf16[128,128], index: 0, kind: input, shape index: {}]
  %s1 = inlined_call_operand.vmem [shape: bf16[128,128], index: 1, kind: input, shape index: {}]
  %s2 = inlined_call_operand.vmem [shape: f32[1,128], index: 2, kind: input, shape index: {}]
  %s3 = inlined_call_operand.vmem [shape: f32[1,128], index: 3, kind: input, shape index: {}]
  %s4 = inlined_call_operand.vmem [shape: f32[1,128], index: 4, kind: output, shape index: {0}]
  %s5 = inlined_call_operand.vmem [shape: f32[1,128], index: 5, kind: output, shape index: {1}]
  %6 = xla_tuple %s4, %s5
  %s7 = sld [smem:[#allocation0]]
  $region42: #{bottleneck_forward.12} parent=0
    _
  %s9 = ssub.s32 1, %s7
  %s10 = scalar_select 0, %s9, %s7
  // Predicated region
  $region2: #{bottleneck_forward.12} parent=0 // pred_check
    _
  $region3: #{bottleneck_forward.12} parent=0 // pred_check_branch
    %12 = sbr.rel (0) target = $region5
  $region4: #{bottleneck_forward.12} parent=0 // pred_region
    _
  $region5: #{bottleneck_forward.12} parent=0 // pred_fallthru
    _
  // Predicated region
  $region6: #{bottleneck_forward.12} parent=0 // pred_check
    _
  $region7: #{bottleneck_forward.12} parent=0 // pred_check_branch
    %14 = sbr.rel (0) target = $region9
  $region8: #{bottleneck_forward.12} parent=0 // pred_region
    _
  $region9: #{bottleneck_forward.12} parent=0 // pred_fallthru
    _
  // Predicated region
  $region10: #{bottleneck_forward.12} parent=0 // pred_check
    _
  $region11: #{bottleneck_forward.12} parent=0 // pred_check_branch
    %16 = sbr.rel (0) target = $region13
  $region12: #{bottleneck_forward.12} parent=0 // pred_region
    _
  $region13: #{bottleneck_forward.12} parent=0 // pred_fallthru
    _
  // Predicated region
  $region14: #{bottleneck_forward.12} parent=0 // pred_check
    _
  $region15: #{bottleneck_forward.12} parent=0 // pred_check_branch
    %18 = sbr.rel (0) target = $region17
  $region16: #{bottleneck_forward.12} parent=0 // pred_region
    _
  $region17: #{bottleneck_forward.12} parent=0 // pred_fallthru
    _
  %p20 = scmp.eq.s32.totalorder 0, 0
  // Predicated region
  $region18: #{bottleneck_forward.12} parent=0 // pred_check
    %p21 = pneg %p20
  $region19: #{bottleneck_forward.12} parent=0 // pred_check_branch
    %23 = sbr.rel (%p21) target = $region21
  $region20: #{bottleneck_forward.12} parent=0 // pred_region
    %24 = vst [vmem:[#allocation2] sm:$0x1] 0.0
    %25 = vst [vmem:[#allocation3] sm:$0x1] 0.0
  $region21: #{bottleneck_forward.12} parent=0 // pred_fallthru
    _
  %v26 = vld [vmem:[%s0] sm:$0xf]
  %v27 = vld [vmem:[%s0 + $0x4] sm:$0xf]
  %v28 = vld [vmem:[%s0 + $0x8] sm:$0xf]
  %v29 = vld [vmem:[%s0 + $0xc] sm:$0xf]
  %v30 = vld [vmem:[%s0 + $0x10] sm:$0xf]
  %v31 = vld [vmem:[%s0 + $0x14] sm:$0xf]
  %v32 = vld [vmem:[%s0 + $0x18] sm:$0xf]
  %v33 = vld [vmem:[%s0 + $0x1c] sm:$0xf]
  %v34 = vld [vmem:[%s0 + $0x20] sm:$0xf]
  %v35 = vld [vmem:[%s0 + $0x24] sm:$0xf]
  %v36 = vld [vmem:[%s0 + $0x28] sm:$0xf]
  %v37 = vld [vmem:[%s0 + $0x2c] sm:$0xf]
  %v38 = vld [vmem:[%s0 + $0x30] sm:$0xf]
  %v39 = vld [vmem:[%s0 + $0x34] sm:$0xf]
  %v40 = vld [vmem:[%s0 + $0x38] sm:$0xf]
  %v41 = vld [vmem:[%s0 + $0x3c] sm:$0xf]
  %v42 = vld [vmem:[%s1] sm:$0xf]
  %v43 = vld [vmem:[%s1 + $0x4] sm:$0xf]
  %v44 = vld [vmem:[%s1 + $0x8] sm:$0xf]
  %v45 = vld [vmem:[%s1 + $0xc] sm:$0xf]
  %v46 = vld [vmem:[%s1 + $0x10] sm:$0xf]
  %v47 = vld [vmem:[%s1 + $0x14] sm:$0xf]
  %v48 = vld [vmem:[%s1 + $0x18] sm:$0xf]
  %v49 = vld [vmem:[%s1 + $0x1c] sm:$0xf]
  %v50 = vld [vmem:[%s1 + $0x20] sm:$0xf]
  %v51 = vld [vmem:[%s1 + $0x24] sm:$0xf]
  %v52 = vld [vmem:[%s1 + $0x28] sm:$0xf]
  %v53 = vld [vmem:[%s1 + $0x2c] sm:$0xf]
  %v54 = vld [vmem:[%s1 + $0x30] sm:$0xf]
  %v55 = vld [vmem:[%s1 + $0x34] sm:$0xf]
  %v56 = vld [vmem:[%s1 + $0x38] sm:$0xf]
  %v57 = vld [vmem:[%s1 + $0x3c] sm:$0xf]
  %v74 = vunpack.c.l.b16 %v26
  %v75 = vunpack.c.l.b16 %v27
  %v76 = vunpack.c.l.b16 %v28
  %v77 = vunpack.c.l.b16 %v29
  %v78 = vunpack.c.l.b16 %v30
  %v79 = vunpack.c.l.b16 %v31
  %v80 = vunpack.c.l.b16 %v32
  %v81 = vunpack.c.l.b16 %v33
  %v82 = vunpack.c.l.b16 %v34
  %v83 = vunpack.c.l.b16 %v35
  %v84 = vunpack.c.l.b16 %v36
  %v85 = vunpack.c.l.b16 %v37
  %v86 = vunpack.c.l.b16 %v38
  %v87 = vunpack.c.l.b16 %v39
  %v88 = vunpack.c.l.b16 %v40
  %v89 = vunpack.c.l.b16 %v41
  %v90 = vpack.c.b16 %v75, %v74
  %v91 = vpack.c.b16 %v77, %v76
  %v92 = vpack.c.b16 %v79, %v78
  %v93 = vpack.c.b16 %v81, %v80
  %v94 = vpack.c.b16 %v83, %v82
  %v95 = vpack.c.b16 %v85, %v84
  %v96 = vpack.c.b16 %v87, %v86
  %v97 = vpack.c.b16 %v89, %v88
  %v122 = vunpack.c.l.b16 %v42
  %v123 = vunpack.c.l.b16 %v43
  %v124 = vunpack.c.l.b16 %v44
  %v125 = vunpack.c.l.b16 %v45
  %v126 = vunpack.c.l.b16 %v46
  %v127 = vunpack.c.l.b16 %v47
  %v128 = vunpack.c.l.b16 %v48
  %v129 = vunpack.c.l.b16 %v49
  %v130 = vunpack.c.l.b16 %v50
  %v131 = vunpack.c.l.b16 %v51
  %v132 = vunpack.c.l.b16 %v52
  %v133 = vunpack.c.l.b16 %v53
  %v134 = vunpack.c.l.b16 %v54
  %v135 = vunpack.c.l.b16 %v55
  %v136 = vunpack.c.l.b16 %v56
  %v137 = vunpack.c.l.b16 %v57
  %v138 = vpack.c.b16 %v123, %v122
  %v139 = vpack.c.b16 %v125, %v124
  %v140 = vpack.c.b16 %v127, %v126
  %v141 = vpack.c.b16 %v129, %v128
  %v142 = vpack.c.b16 %v131, %v130
  %v143 = vpack.c.b16 %v133, %v132
  %v144 = vpack.c.b16 %v135, %v134
  %v145 = vpack.c.b16 %v137, %v136
  %154 = vmatprep.subr.bf16.mxu0 0
  %155 = vmatpush1.bf16.msra.mxu0 %v138
  %156 = vmatprep.subr.bf16.mxu0 0
  %157 = vmatpush1.bf16.msra.mxu0 %v139
  %158 = vmatprep.subr.bf16.mxu0 0
  %159 = vmatpush1.bf16.msra.mxu0 %v140
  %160 = vmatprep.subr.bf16.mxu0 0
  %161 = vmatpush1.bf16.msra.mxu0 %v141
  %162 = vmatprep.subr.bf16.mxu0 0
  %163 = vmatpush1.bf16.msra.mxu0 %v142
  %164 = vmatprep.subr.bf16.mxu0 0
  %165 = vmatpush1.bf16.msra.mxu0 %v143
  %166 = vmatprep.subr.bf16.mxu0 0
  %167 = vmatpush1.bf16.msra.mxu0 %v144
  %168 = vmatprep.subr.bf16.mxu0 0
  %169 = vmatpush1.bf16.msra.mxu0 %v145
  %170 = vmatprep.subr.bf16.mxu0 0
  %171 = vmatpush1.bf16.msra.mxu0 0
  %172 = vmatprep.subr.bf16.mxu0 0
  %173 = vmatpush1.bf16.msra.mxu0 0
  %174 = vmatprep.subr.bf16.mxu0 0
  %175 = vmatpush1.bf16.msra.mxu0 0
  %176 = vmatprep.subr.bf16.mxu0 0
  %177 = vmatpush1.bf16.msra.mxu0 0
  %178 = vmatprep.subr.bf16.mxu0 0
  %179 = vmatpush1.bf16.msra.mxu0 0
  %180 = vmatprep.subr.bf16.mxu0 0
  %181 = vmatpush1.bf16.msra.mxu0 0
  %182 = vmatprep.subr.bf16.mxu0 0
  %183 = vmatpush1.bf16.msra.mxu0 0
  %184 = vmatprep.subr.bf16.mxu0 0
  %185 = vmatpush1.bf16.msra.mxu0 0
  %186 = vmatprep.mubr.bf16.mxu0 0
  %187 = vmatmul.mubr.bf16.gmra.mrb[0].mxu0 %v90
  %v188 = vpop.f32.mrb[0].mxu0
  %v189 = vadd.f32 0.0, %v188
  %v190 = vpop.f32.mrb[0].mxu0
  %v191 = vpop.f32.mrb[0].mxu0
  %v192 = vadd.f32 0.0, %v191
  %v193 = vpop.f32.mrb[0].mxu0
  %194 = vmatprep.mubr.bf16.mxu0 0
  %195 = vmatmul.mubr.bf16.gmra.mrb[0].mxu0 %v91
  %v196 = vpop.f32.mrb[0].mxu0
  %v197 = vadd.f32 0.0, %v196
  %v198 = vpop.f32.mrb[0].mxu0
  %v199 = vpop.f32.mrb[0].mxu0
  %v200 = vadd.f32 0.0, %v199
  %v201 = vpop.f32.mrb[0].mxu0
  %202 = vmatprep.mubr.bf16.mxu0 0
  %203 = vmatmul.mubr.bf16.gmra.mrb[0].mxu0 %v92
  %v204 = vpop.f32.mrb[0].mxu0
  %v205 = vadd.f32 0.0, %v204
  %v206 = vpop.f32.mrb[0].mxu0
  %v207 = vpop.f32.mrb[0].mxu0
  %v208 = vadd.f32 0.0, %v207
  %v209 = vpop.f32.mrb[0].mxu0
  %210 = vmatprep.mubr.bf16.mxu0 0
  %211 = vmatmul.mubr.bf16.gmra.mrb[0].mxu0 %v93
  %v212 = vpop.f32.mrb[0].mxu0
  %v213 = vadd.f32 0.0, %v212
  %v214 = vpop.f32.mrb[0].mxu0
  %v215 = vpop.f32.mrb[0].mxu0
  %v216 = vadd.f32 0.0, %v215
  %v217 = vpop.f32.mrb[0].mxu0
  %218 = vmatprep.mubr.bf16.mxu0 0
  %219 = vmatmul.mubr.bf16.gmra.mrb[0].mxu0 %v94
  %v220 = vpop.f32.mrb[0].mxu0
  %v221 = vadd.f32 0.0, %v220
  %v222 = vpop.f32.mrb[0].mxu0
  %v223 = vpop.f32.mrb[0].mxu0
  %v224 = vadd.f32 0.0, %v223
  %v225 = vpop.f32.mrb[0].mxu0
  %226 = vmatprep.mubr.bf16.mxu0 0
  %227 = vmatmul.mubr.bf16.gmra.mrb[0].mxu0 %v95
  %v228 = vpop.f32.mrb[0].mxu0
  %v229 = vadd.f32 0.0, %v228
  %v230 = vpop.f32.mrb[0].mxu0
  %v231 = vpop.f32.mrb[0].mxu0
  %v232 = vadd.f32 0.0, %v231
  %v233 = vpop.f32.mrb[0].mxu0
  %234 = vmatprep.mubr.bf16.mxu0 0
  %235 = vmatmul.mubr.bf16.gmra.mrb[0].mxu0 %v96
  %v236 = vpop.f32.mrb[0].mxu0
  %v237 = vadd.f32 0.0, %v236
  %v238 = vpop.f32.mrb[0].mxu0
  %v239 = vpop.f32.mrb[0].mxu0
  %v240 = vadd.f32 0.0, %v239
  %v241 = vpop.f32.mrb[0].mxu0
  %242 = vmatprep.mubr.bf16.mxu0 0
  %243 = vmatmul.mubr.bf16.gmra.mrb[0].mxu0 %v97
  %v244 = vpop.f32.mrb[0].mxu0
  %v245 = vadd.f32 0.0, %v244
  %v246 = vpop.f32.mrb[0].mxu0
  %v247 = vpop.f32.mrb[0].mxu0
  %v248 = vadd.f32 0.0, %v247
  %v249 = vpop.f32.mrb[0].mxu0
  %250 = vdwg.mxu0
  %v251 = vld [vmem:[#allocation2] sm:$0x1]
  %v252 = vadd.f32 %v189, %v192
  %v253 = vadd.f32 %v252, %v197
  %v254 = vadd.f32 %v253, %v200
  %v255 = vadd.f32 %v254, %v205
  %v256 = vadd.f32 %v255, %v208
  %v257 = vadd.f32 %v256, %v213
  %v258 = vadd.f32 %v257, %v216
  %v259 = vadd.f32 %v258, %v221
  %v260 = vadd.f32 %v259, %v224
  %v261 = vadd.f32 %v260, %v229
  %v262 = vadd.f32 %v261, %v232
  %v263 = vadd.f32 %v262, %v237
  %v264 = vadd.f32 %v263, %v240
  %v265 = vadd.f32 %v264, %v245
  %v266 = vadd.f32 %v265, %v248
  %v267 = vrot.slane %v266, 4
  %v268 = vadd.f32 %v266, %v267
  %v269 = vrot.slane %v268, 2
  %v270 = vadd.f32 %v268, %v269
  %v271 = vrot.slane %v270, 1
  %v272 = vadd.f32 %v270, %v271
  %v273 = vadd.f32 %v251, %v272
  %274 = vst [vmem:[#allocation2] sm:$0x1] %v273
  %v275 = vld [vmem:[#allocation3] sm:$0x1]
  %v276 = vmul.f32 %v189, %v189
  %v277 = vmul.f32 %v192, %v192
  %v278 = vmul.f32 %v197, %v197
  %v279 = vmul.f32 %v200, %v200
  %v280 = vmul.f32 %v205, %v205
  %v281 = vmul.f32 %v208, %v208
  %v282 = vmul.f32 %v213, %v213
  %v283 = vmul.f32 %v216, %v216
  %v284 = vmul.f32 %v221, %v221
  %v285 = vmul.f32 %v224, %v224
  %v286 = vmul.f32 %v229, %v229
  %v287 = vmul.f32 %v232, %v232
  %v288 = vmul.f32 %v237, %v237
  %v289 = vmul.f32 %v240, %v240
  %v290 = vmul.f32 %v245, %v245
  %v291 = vmul.f32 %v248, %v248
  %v292 = vadd.f32 %v276, %v277
  %v293 = vadd.f32 %v292, %v278
  %v294 = vadd.f32 %v293, %v279
  %v295 = vadd.f32 %v294, %v280
  %v296 = vadd.f32 %v295, %v281
  %v297 = vadd.f32 %v296, %v282
  %v298 = vadd.f32 %v297, %v283
  %v299 = vadd.f32 %v298, %v284
  %v300 = vadd.f32 %v299, %v285
  %v301 = vadd.f32 %v300, %v286
  %v302 = vadd.f32 %v301, %v287
  %v303 = vadd.f32 %v302, %v288
  %v304 = vadd.f32 %v303, %v289
  %v305 = vadd.f32 %v304, %v290
  %v306 = vadd.f32 %v305, %v291
  %v307 = vrot.slane %v306, 4
  %v308 = vadd.f32 %v306, %v307
  %v309 = vrot.slane %v308, 2
  %v310 = vadd.f32 %v308, %v309
  %v311 = vrot.slane %v310, 1
  %v312 = vadd.f32 %v310, %v311
  %v313 = vadd.f32 %v275, %v312
  %314 = vst [vmem:[#allocation3] sm:$0x1] %v313
  // Predicated region
  $region22: #{bottleneck_forward.12} parent=0 // pred_check
    %p315 = pneg %p20
  $region23: #{bottleneck_forward.12} parent=0 // pred_check_branch
    %317 = sbr.rel (%p315) target = $region25
  $region24: #{bottleneck_forward.12} parent=0 // pred_region
    %v318 = vld [vmem:[#allocation2] sm:$0x1]
    %v319 = vmul.f32 %v318, 0.0078125
    %v320 = vld [vmem:[#allocation3] sm:$0x1]
    %v321 = vmul.f32 %v320, 0.0078125
    %v322 = vmul.f32 %v319, %v319
    %v323 = vsub.f32 %v321, %v322
    %v324 = vld [vmem:[%s2] sm:$0x1]
    %v325 = vadd.f32 %v323, 1e-05
    %v326 = vrsqrt.pop %v325
    %v327 = vmul.f32 %v324, %v326
    %v328 = vld [vmem:[%s3] sm:$0x1]
    %v329 = vmul.f32 %v319, %v327
    %v330 = vsub.f32 %v328, %v329
    %331 = vst [vmem:[%s4] sm:$0x1] %v327
    %332 = vst [vmem:[%s5] sm:$0x1] %v330
  $region25: #{bottleneck_forward.12} parent=0 // pred_fallthru
    _
  // Predicated region
  $region26: #{bottleneck_forward.12} parent=0 // pred_check
    _
  $region27: #{bottleneck_forward.12} parent=0 // pred_check_branch
    %334 = sbr.rel (0) target = $region29
  $region28: #{bottleneck_forward.12} parent=0 // pred_region
    _
  $region29: #{bottleneck_forward.12} parent=0 // pred_fallthru
    _
  // Predicated region
  $region30: #{bottleneck_forward.12} parent=0 // pred_check
    _
  $region31: #{bottleneck_forward.12} parent=0 // pred_check_branch
    %336 = sbr.rel (0) target = $region33
  $region32: #{bottleneck_forward.12} parent=0 // pred_region
    _
  $region33: #{bottleneck_forward.12} parent=0 // pred_fallthru
    _
  // Predicated region
  $region34: #{bottleneck_forward.12} parent=0 // pred_check
    _
  $region35: #{bottleneck_forward.12} parent=0 // pred_check_branch
    %338 = sbr.rel (0) target = $region37
  $region36: #{bottleneck_forward.12} parent=0 // pred_region
    _
  $region37: #{bottleneck_forward.12} parent=0 // pred_fallthru
    _
  // Predicated region
  $region38: #{bottleneck_forward.12} parent=0 // pred_check
    _
  $region39: #{bottleneck_forward.12} parent=0 // pred_check_branch
    %340 = sbr.rel (0) target = $region41
  $region40: #{bottleneck_forward.12} parent=0 // pred_region
    _
  $region41: #{bottleneck_forward.12} parent=0 // pred_fallthru
    _

// kernel: bottleneck_forward.13
$region0: #{bottleneck_forward.13}
  #allocation0 [shape = 'u32[]', space=smem, size = 0x4, offset = 0x4, fixed_abs, tag = 'smem constant byte address 0x4 - core index']
  #allocation1 [shape = 'u32[144,128]{1,0:T(1,128)}', space=vmem, size = 0x12000, scoped, tag = 'internal scratch']
  %s0 = inlined_call_operand.vmem [shape: bf16[128,128], index: 0, kind: input, shape index: {}]
  %s1 = inlined_call_operand.vmem [shape: bf16[128,128], index: 1, kind: input, shape index: {}]
  %s2 = inlined_call_operand.vmem [shape: f32[1,128], index: 2, kind: input, shape index: {}]
  %s3 = inlined_call_operand.vmem [shape: f32[1,128], index: 3, kind: input, shape index: {}]
  %s4 = inlined_call_operand.vmem [shape: bf16[128,128], index: 4, kind: input, shape index: {}]
  %s5 = inlined_call_operand.vmem [shape: bf16[128,128], index: 5, kind: input, shape index: {}]
  %s6 = inlined_call_operand.vmem [shape: f32[1,128], index: 6, kind: input, shape index: {}]
  %s7 = inlined_call_operand.vmem [shape: f32[1,128], index: 7, kind: input, shape index: {}]
  %s8 = inlined_call_operand.hbm [shape: f32[128,128], index: 8, kind: output, shape index: {}]
  %s9 = sld [smem:[#allocation0]]
  $region42: #{bottleneck_forward.13} parent=0
    _
  %s11 = ssub.s32 1, %s9
  %s12 = scalar_select 0, %s11, %s9
  $region1: #{bottleneck_forward.13} parent=0
    #allocation2 [shape = 'u8[65536]{0}', space=vmem, size = 0x10000, scoped, tag = 'output window, operand 0, single buffered']
    #allocation3 [shape = 's32[1]{0}', space=sflag, size = 0x4, scoped, tag = 'scoped memory for bottleneck_forward.13']
    %13 = vsyncpa [#allocation3], 0
    // Predicated region
    $region2: #{bottleneck_forward.13} parent=1 // pred_check
      _
    $region3: #{bottleneck_forward.13} parent=1 // pred_check_branch
      %15 = sbr.rel (0) target = $region5
    $region4: #{bottleneck_forward.13} parent=1 // pred_region
      _
    $region5: #{bottleneck_forward.13} parent=1 // pred_fallthru
      _
    // Predicated region
    $region6: #{bottleneck_forward.13} parent=1 // pred_check
      _
    $region7: #{bottleneck_forward.13} parent=1 // pred_check_branch
      %17 = sbr.rel (0) target = $region9
    $region8: #{bottleneck_forward.13} parent=1 // pred_region
      _
    $region9: #{bottleneck_forward.13} parent=1 // pred_fallthru
      _
    // Predicated region
    $region10: #{bottleneck_forward.13} parent=1 // pred_check
      _
    $region11: #{bottleneck_forward.13} parent=1 // pred_check_branch
      %19 = sbr.rel (0) target = $region13
    $region12: #{bottleneck_forward.13} parent=1 // pred_region
      _
    $region13: #{bottleneck_forward.13} parent=1 // pred_fallthru
      _
    // Predicated region
    $region14: #{bottleneck_forward.13} parent=1 // pred_check
      _
    $region15: #{bottleneck_forward.13} parent=1 // pred_check_branch
      %21 = sbr.rel (0) target = $region17
    $region16: #{bottleneck_forward.13} parent=1 // pred_region
      _
    $region17: #{bottleneck_forward.13} parent=1 // pred_fallthru
      _
    // Predicated region
    $region18: #{bottleneck_forward.13} parent=1 // pred_check
      _
    $region19: #{bottleneck_forward.13} parent=1 // pred_check_branch
      %23 = sbr.rel (0) target = $region21
    $region20: #{bottleneck_forward.13} parent=1 // pred_region
      _
    $region21: #{bottleneck_forward.13} parent=1 // pred_fallthru
      _
    // Predicated region
    $region22: #{bottleneck_forward.13} parent=1 // pred_check
      _
    $region23: #{bottleneck_forward.13} parent=1 // pred_check_branch
      %25 = sbr.rel (0) target = $region25
    $region24: #{bottleneck_forward.13} parent=1 // pred_region
      _
    $region25: #{bottleneck_forward.13} parent=1 // pred_fallthru
      _
    // Predicated region
    $region26: #{bottleneck_forward.13} parent=1 // pred_check
      _
    $region27: #{bottleneck_forward.13} parent=1 // pred_check_branch
      %27 = sbr.rel (0) target = $region29
    $region28: #{bottleneck_forward.13} parent=1 // pred_region
      _
    $region29: #{bottleneck_forward.13} parent=1 // pred_fallthru
      _
    // Predicated region
    $region30: #{bottleneck_forward.13} parent=1 // pred_check
      _
    $region31: #{bottleneck_forward.13} parent=1 // pred_check_branch
      %29 = sbr.rel (0) target = $region33
    $region32: #{bottleneck_forward.13} parent=1 // pred_region
      _
    $region33: #{bottleneck_forward.13} parent=1 // pred_fallthru
      _
    %v31 = vld [vmem:[%s0] sm:$0xf]
    %v32 = vld [vmem:[%s0 + $0x4] sm:$0xf]
    %v33 = vld [vmem:[%s0 + $0x8] sm:$0xf]
    %v34 = vld [vmem:[%s0 + $0xc] sm:$0xf]
    %v35 = vld [vmem:[%s0 + $0x10] sm:$0xf]
    %v36 = vld [vmem:[%s0 + $0x14] sm:$0xf]
    %v37 = vld [vmem:[%s0 + $0x18] sm:$0xf]
    %v38 = vld [vmem:[%s0 + $0x1c] sm:$0xf]
    %v39 = vld [vmem:[%s0 + $0x20] sm:$0xf]
    %v40 = vld [vmem:[%s0 + $0x24] sm:$0xf]
    %v41 = vld [vmem:[%s0 + $0x28] sm:$0xf]
    %v42 = vld [vmem:[%s0 + $0x2c] sm:$0xf]
    %v43 = vld [vmem:[%s0 + $0x30] sm:$0xf]
    %v44 = vld [vmem:[%s0 + $0x34] sm:$0xf]
    %v45 = vld [vmem:[%s0 + $0x38] sm:$0xf]
    %v46 = vld [vmem:[%s0 + $0x3c] sm:$0xf]
    %v47 = vld [vmem:[%s1] sm:$0xf]
    %v48 = vld [vmem:[%s1 + $0x4] sm:$0xf]
    %v49 = vld [vmem:[%s1 + $0x8] sm:$0xf]
    %v50 = vld [vmem:[%s1 + $0xc] sm:$0xf]
    %v51 = vld [vmem:[%s1 + $0x10] sm:$0xf]
    %v52 = vld [vmem:[%s1 + $0x14] sm:$0xf]
    %v53 = vld [vmem:[%s1 + $0x18] sm:$0xf]
    %v54 = vld [vmem:[%s1 + $0x1c] sm:$0xf]
    %v55 = vld [vmem:[%s1 + $0x20] sm:$0xf]
    %v56 = vld [vmem:[%s1 + $0x24] sm:$0xf]
    %v57 = vld [vmem:[%s1 + $0x28] sm:$0xf]
    %v58 = vld [vmem:[%s1 + $0x2c] sm:$0xf]
    %v59 = vld [vmem:[%s1 + $0x30] sm:$0xf]
    %v60 = vld [vmem:[%s1 + $0x34] sm:$0xf]
    %v61 = vld [vmem:[%s1 + $0x38] sm:$0xf]
    %v62 = vld [vmem:[%s1 + $0x3c] sm:$0xf]
    %v79 = vunpack.c.l.b16 %v31
    %v80 = vunpack.c.l.b16 %v32
    %v81 = vunpack.c.l.b16 %v33
    %v82 = vunpack.c.l.b16 %v34
    %v83 = vunpack.c.l.b16 %v35
    %v84 = vunpack.c.l.b16 %v36
    %v85 = vunpack.c.l.b16 %v37
    %v86 = vunpack.c.l.b16 %v38
    %v87 = vunpack.c.l.b16 %v39
    %v88 = vunpack.c.l.b16 %v40
    %v89 = vunpack.c.l.b16 %v41
    %v90 = vunpack.c.l.b16 %v42
    %v91 = vunpack.c.l.b16 %v43
    %v92 = vunpack.c.l.b16 %v44
    %v93 = vunpack.c.l.b16 %v45
    %v94 = vunpack.c.l.b16 %v46
    %v95 = vpack.c.b16 %v80, %v79
    %v96 = vpack.c.b16 %v82, %v81
    %v97 = vpack.c.b16 %v84, %v83
    %v98 = vpack.c.b16 %v86, %v85
    %v99 = vpack.c.b16 %v88, %v87
    %v100 = vpack.c.b16 %v90, %v89
    %v101 = vpack.c.b16 %v92, %v91
    %v102 = vpack.c.b16 %v94, %v93
    %v127 = vunpack.c.l.b16 %v47
    %v128 = vunpack.c.l.b16 %v48
    %v129 = vunpack.c.l.b16 %v49
    %v130 = vunpack.c.l.b16 %v50
    %v131 = vunpack.c.l.b16 %v51
    %v132 = vunpack.c.l.b16 %v52
    %v133 = vunpack.c.l.b16 %v53
    %v134 = vunpack.c.l.b16 %v54
    %v135 = vunpack.c.l.b16 %v55
    %v136 = vunpack.c.l.b16 %v56
    %v137 = vunpack.c.l.b16 %v57
    %v138 = vunpack.c.l.b16 %v58
    %v139 = vunpack.c.l.b16 %v59
    %v140 = vunpack.c.l.b16 %v60
    %v141 = vunpack.c.l.b16 %v61
    %v142 = vunpack.c.l.b16 %v62
    %v143 = vpack.c.b16 %v128, %v127
    %v144 = vpack.c.b16 %v130, %v129
    %v145 = vpack.c.b16 %v132, %v131
    %v146 = vpack.c.b16 %v134, %v133
    %v147 = vpack.c.b16 %v136, %v135
    %v148 = vpack.c.b16 %v138, %v137
    %v149 = vpack.c.b16 %v140, %v139
    %v150 = vpack.c.b16 %v142, %v141
    %159 = vmatprep.subr.bf16.mxu0 0
    %160 = vmatpush1.bf16.msra.mxu0 %v143
    %161 = vmatprep.subr.bf16.mxu0 0
    %162 = vmatpush1.bf16.msra.mxu0 %v144
    %163 = vmatprep.subr.bf16.mxu0 0
    %164 = vmatpush1.bf16.msra.mxu0 %v145
    %165 = vmatprep.subr.bf16.mxu0 0
    %166 = vmatpush1.bf16.msra.mxu0 %v146
    %167 = vmatprep.subr.bf16.mxu0 0
    %168 = vmatpush1.bf16.msra.mxu0 %v147
    %169 = vmatprep.subr.bf16.mxu0 0
    %170 = vmatpush1.bf16.msra.mxu0 %v148
    %171 = vmatprep.subr.bf16.mxu0 0
    %172 = vmatpush1.bf16.msra.mxu0 %v149
    %173 = vmatprep.subr.bf16.mxu0 0
    %174 = vmatpush1.bf16.msra.mxu0 %v150
    %175 = vmatprep.subr.bf16.mxu0 0
    %176 = vmatpush1.bf16.msra.mxu0 0
    %177 = vmatprep.subr.bf16.mxu0 0
    %178 = vmatpush1.bf16.msra.mxu0 0
    %179 = vmatprep.subr.bf16.mxu0 0
    %180 = vmatpush1.bf16.msra.mxu0 0
    %181 = vmatprep.subr.bf16.mxu0 0
    %182 = vmatpush1.bf16.msra.mxu0 0
    %183 = vmatprep.subr.bf16.mxu0 0
    %184 = vmatpush1.bf16.msra.mxu0 0
    %185 = vmatprep.subr.bf16.mxu0 0
    %186 = vmatpush1.bf16.msra.mxu0 0
    %187 = vmatprep.subr.bf16.mxu0 0
    %188 = vmatpush1.bf16.msra.mxu0 0
    %189 = vmatprep.subr.bf16.mxu0 0
    %190 = vmatpush1.bf16.msra.mxu0 0
    %191 = vmatprep.mubr.bf16.mxu0 0
    %192 = vmatmul.mubr.bf16.gmra.mrb[0].mxu0 %v95
    %v193 = vpop.f32.mrb[0].mxu0
    %v194 = vadd.f32 0.0, %v193
    %v195 = vpop.f32.mrb[0].mxu0
    %v196 = vpop.f32.mrb[0].mxu0
    %v197 = vadd.f32 0.0, %v196
    %v198 = vpop.f32.mrb[0].mxu0
    %199 = vmatprep.mubr.bf16.mxu0 0
    %200 = vmatmul.mubr.bf16.gmra.mrb[0].mxu0 %v96
    %v201 = vpop.f32.mrb[0].mxu0
    %v202 = vadd.f32 0.0, %v201
    %v203 = vpop.f32.mrb[0].mxu0
    %v204 = vpop.f32.mrb[0].mxu0
    %v205 = vadd.f32 0.0, %v204
    %v206 = vpop.f32.mrb[0].mxu0
    %207 = vmatprep.mubr.bf16.mxu0 0
    %208 = vmatmul.mubr.bf16.gmra.mrb[0].mxu0 %v97
    %v209 = vpop.f32.mrb[0].mxu0
    %v210 = vadd.f32 0.0, %v209
    %v211 = vpop.f32.mrb[0].mxu0
    %v212 = vpop.f32.mrb[0].mxu0
    %v213 = vadd.f32 0.0, %v212
    %v214 = vpop.f32.mrb[0].mxu0
    %215 = vmatprep.mubr.bf16.mxu0 0
    %216 = vmatmul.mubr.bf16.gmra.mrb[0].mxu0 %v98
    %v217 = vpop.f32.mrb[0].mxu0
    %v218 = vadd.f32 0.0, %v217
    %v219 = vpop.f32.mrb[0].mxu0
    %v220 = vpop.f32.mrb[0].mxu0
    %v221 = vadd.f32 0.0, %v220
    %v222 = vpop.f32.mrb[0].mxu0
    %223 = vmatprep.mubr.bf16.mxu0 0
    %224 = vmatmul.mubr.bf16.gmra.mrb[0].mxu0 %v99
    %v225 = vpop.f32.mrb[0].mxu0
    %v226 = vadd.f32 0.0, %v225
    %v227 = vpop.f32.mrb[0].mxu0
    %v228 = vpop.f32.mrb[0].mxu0
    %v229 = vadd.f32 0.0, %v228
    %v230 = vpop.f32.mrb[0].mxu0
    %231 = vmatprep.mubr.bf16.mxu0 0
    %232 = vmatmul.mubr.bf16.gmra.mrb[0].mxu0 %v100
    %v233 = vpop.f32.mrb[0].mxu0
    %v234 = vadd.f32 0.0, %v233
    %v235 = vpop.f32.mrb[0].mxu0
    %v236 = vpop.f32.mrb[0].mxu0
    %v237 = vadd.f32 0.0, %v236
    %v238 = vpop.f32.mrb[0].mxu0
    %239 = vmatprep.mubr.bf16.mxu0 0
    %240 = vmatmul.mubr.bf16.gmra.mrb[0].mxu0 %v101
    %v241 = vpop.f32.mrb[0].mxu0
    %v242 = vadd.f32 0.0, %v241
    %v243 = vpop.f32.mrb[0].mxu0
    %v244 = vpop.f32.mrb[0].mxu0
    %v245 = vadd.f32 0.0, %v244
    %v246 = vpop.f32.mrb[0].mxu0
    %247 = vmatprep.mubr.bf16.mxu0 0
    %248 = vmatmul.mubr.bf16.gmra.mrb[0].mxu0 %v102
    %v249 = vpop.f32.mrb[0].mxu0
    %v250 = vadd.f32 0.0, %v249
    %v251 = vpop.f32.mrb[0].mxu0
    %v252 = vpop.f32.mrb[0].mxu0
    %v253 = vadd.f32 0.0, %v252
    %v254 = vpop.f32.mrb[0].mxu0
    %255 = vdwg.mxu0
    %v256 = vld [vmem:[%s4] sm:$0xf]
    %v257 = vld [vmem:[%s4 + $0x4] sm:$0xf]
    %v258 = vld [vmem:[%s4 + $0x8] sm:$0xf]
    %v259 = vld [vmem:[%s4 + $0xc] sm:$0xf]
    %v260 = vld [vmem:[%s4 + $0x10] sm:$0xf]
    %v261 = vld [vmem:[%s4 + $0x14] sm:$0xf]
    %v262 = vld [vmem:[%s4 + $0x18] sm:$0xf]
    %v263 = vld [vmem:[%s4 + $0x1c] sm:$0xf]
    %v264 = vld [vmem:[%s4 + $0x20] sm:$0xf]
    %v265 = vld [vmem:[%s4 + $0x24] sm:$0xf]
    %v266 = vld [vmem:[%s4 + $0x28] sm:$0xf]
    %v267 = vld [vmem:[%s4 + $0x2c] sm:$0xf]
    %v268 = vld [vmem:[%s4 + $0x30] sm:$0xf]
    %v269 = vld [vmem:[%s4 + $0x34] sm:$0xf]
    %v270 = vld [vmem:[%s4 + $0x38] sm:$0xf]
    %v271 = vld [vmem:[%s4 + $0x3c] sm:$0xf]
    %v272 = vld [vmem:[%s5] sm:$0xf]
    %v273 = vld [vmem:[%s5 + $0x4] sm:$0xf]
    %v274 = vld [vmem:[%s5 + $0x8] sm:$0xf]
    %v275 = vld [vmem:[%s5 + $0xc] sm:$0xf]
    %v276 = vld [vmem:[%s5 + $0x10] sm:$0xf]
    %v277 = vld [vmem:[%s5 + $0x14] sm:$0xf]
    %v278 = vld [vmem:[%s5 + $0x18] sm:$0xf]
    %v279 = vld [vmem:[%s5 + $0x1c] sm:$0xf]
    %v280 = vld [vmem:[%s5 + $0x20] sm:$0xf]
    %v281 = vld [vmem:[%s5 + $0x24] sm:$0xf]
    %v282 = vld [vmem:[%s5 + $0x28] sm:$0xf]
    %v283 = vld [vmem:[%s5 + $0x2c] sm:$0xf]
    %v284 = vld [vmem:[%s5 + $0x30] sm:$0xf]
    %v285 = vld [vmem:[%s5 + $0x34] sm:$0xf]
    %v286 = vld [vmem:[%s5 + $0x38] sm:$0xf]
    %v287 = vld [vmem:[%s5 + $0x3c] sm:$0xf]
    %v304 = vunpack.c.l.b16 %v256
    %v305 = vunpack.c.l.b16 %v257
    %v306 = vunpack.c.l.b16 %v258
    %v307 = vunpack.c.l.b16 %v259
    %v308 = vunpack.c.l.b16 %v260
    %v309 = vunpack.c.l.b16 %v261
    %v310 = vunpack.c.l.b16 %v262
    %v311 = vunpack.c.l.b16 %v263
    %v312 = vunpack.c.l.b16 %v264
    %v313 = vunpack.c.l.b16 %v265
    %v314 = vunpack.c.l.b16 %v266
    %v315 = vunpack.c.l.b16 %v267
    %v316 = vunpack.c.l.b16 %v268
    %v317 = vunpack.c.l.b16 %v269
    %v318 = vunpack.c.l.b16 %v270
    %v319 = vunpack.c.l.b16 %v271
    %v320 = vpack.c.b16 %v305, %v304
    %v321 = vpack.c.b16 %v307, %v306
    %v322 = vpack.c.b16 %v309, %v308
    %v323 = vpack.c.b16 %v311, %v310
    %v324 = vpack.c.b16 %v313, %v312
    %v325 = vpack.c.b16 %v315, %v314
    %v326 = vpack.c.b16 %v317, %v316
    %v327 = vpack.c.b16 %v319, %v318
    %v352 = vunpack.c.l.b16 %v272
    %v353 = vunpack.c.l.b16 %v273
    %v354 = vunpack.c.l.b16 %v274
    %v355 = vunpack.c.l.b16 %v275
    %v356 = vunpack.c.l.b16 %v276
    %v357 = vunpack.c.l.b16 %v277
    %v358 = vunpack.c.l.b16 %v278
    %v359 = vunpack.c.l.b16 %v279
    %v360 = vunpack.c.l.b16 %v280
    %v361 = vunpack.c.l.b16 %v281
    %v362 = vunpack.c.l.b16 %v282
    %v363 = vunpack.c.l.b16 %v283
    %v364 = vunpack.c.l.b16 %v284
    %v365 = vunpack.c.l.b16 %v285
    %v366 = vunpack.c.l.b16 %v286
    %v367 = vunpack.c.l.b16 %v287
    %v368 = vpack.c.b16 %v353, %v352
    %v369 = vpack.c.b16 %v355, %v354
    %v370 = vpack.c.b16 %v357, %v356
    %v371 = vpack.c.b16 %v359, %v358
    %v372 = vpack.c.b16 %v361, %v360
    %v373 = vpack.c.b16 %v363, %v362
    %v374 = vpack.c.b16 %v365, %v364
    %v375 = vpack.c.b16 %v367, %v366
    %384 = vmatprep.subr.bf16.mxu0 0
    %385 = vmatpush1.bf16.msra.mxu0 %v368
    %386 = vmatprep.subr.bf16.mxu0 0
    %387 = vmatpush1.bf16.msra.mxu0 %v369
    %388 = vmatprep.subr.bf16.mxu0 0
    %389 = vmatpush1.bf16.msra.mxu0 %v370
    %390 = vmatprep.subr.bf16.mxu0 0
    %391 = vmatpush1.bf16.msra.mxu0 %v371
    %392 = vmatprep.subr.bf16.mxu0 0
    %393 = vmatpush1.bf16.msra.mxu0 %v372
    %394 = vmatprep.subr.bf16.mxu0 0
    %395 = vmatpush1.bf16.msra.mxu0 %v373
    %396 = vmatprep.subr.bf16.mxu0 0
    %397 = vmatpush1.bf16.msra.mxu0 %v374
    %398 = vmatprep.subr.bf16.mxu0 0
    %399 = vmatpush1.bf16.msra.mxu0 %v375
    %400 = vmatprep.subr.bf16.mxu0 0
    %401 = vmatpush1.bf16.msra.mxu0 0
    %402 = vmatprep.subr.bf16.mxu0 0
    %403 = vmatpush1.bf16.msra.mxu0 0
    %404 = vmatprep.subr.bf16.mxu0 0
    %405 = vmatpush1.bf16.msra.mxu0 0
    %406 = vmatprep.subr.bf16.mxu0 0
    %407 = vmatpush1.bf16.msra.mxu0 0
    %408 = vmatprep.subr.bf16.mxu0 0
    %409 = vmatpush1.bf16.msra.mxu0 0
    %410 = vmatprep.subr.bf16.mxu0 0
    %411 = vmatpush1.bf16.msra.mxu0 0
    %412 = vmatprep.subr.bf16.mxu0 0
    %413 = vmatpush1.bf16.msra.mxu0 0
    %414 = vmatprep.subr.bf16.mxu0 0
    %415 = vmatpush1.bf16.msra.mxu0 0
    %416 = vmatprep.mubr.bf16.mxu0 0
    %417 = vmatmul.mubr.bf16.gmra.mrb[0].mxu0 %v320
    %v418 = vpop.f32.mrb[0].mxu0
    %v419 = vadd.f32 0.0, %v418
    %v420 = vpop.f32.mrb[0].mxu0
    %v421 = vpop.f32.mrb[0].mxu0
    %v422 = vadd.f32 0.0, %v421
    %v423 = vpop.f32.mrb[0].mxu0
    %424 = vmatprep.mubr.bf16.mxu0 0
    %425 = vmatmul.mubr.bf16.gmra.mrb[0].mxu0 %v321
    %v426 = vpop.f32.mrb[0].mxu0
    %v427 = vadd.f32 0.0, %v426
    %v428 = vpop.f32.mrb[0].mxu0
    %v429 = vpop.f32.mrb[0].mxu0
    %v430 = vadd.f32 0.0, %v429
    %v431 = vpop.f32.mrb[0].mxu0
    %432 = vmatprep.mubr.bf16.mxu0 0
    %433 = vmatmul.mubr.bf16.gmra.mrb[0].mxu0 %v322
    %v434 = vpop.f32.mrb[0].mxu0
    %v435 = vadd.f32 0.0, %v434
    %v436 = vpop.f32.mrb[0].mxu0
    %v437 = vpop.f32.mrb[0].mxu0
    %v438 = vadd.f32 0.0, %v437
    %v439 = vpop.f32.mrb[0].mxu0
    %440 = vmatprep.mubr.bf16.mxu0 0
    %441 = vmatmul.mubr.bf16.gmra.mrb[0].mxu0 %v323
    %v442 = vpop.f32.mrb[0].mxu0
    %v443 = vadd.f32 0.0, %v442
    %v444 = vpop.f32.mrb[0].mxu0
    %v445 = vpop.f32.mrb[0].mxu0
    %v446 = vadd.f32 0.0, %v445
    %v447 = vpop.f32.mrb[0].mxu0
    %448 = vmatprep.mubr.bf16.mxu0 0
    %449 = vmatmul.mubr.bf16.gmra.mrb[0].mxu0 %v324
    %v450 = vpop.f32.mrb[0].mxu0
    %v451 = vadd.f32 0.0, %v450
    %v452 = vpop.f32.mrb[0].mxu0
    %v453 = vpop.f32.mrb[0].mxu0
    %v454 = vadd.f32 0.0, %v453
    %v455 = vpop.f32.mrb[0].mxu0
    %456 = vmatprep.mubr.bf16.mxu0 0
    %457 = vmatmul.mubr.bf16.gmra.mrb[0].mxu0 %v325
    %v458 = vpop.f32.mrb[0].mxu0
    %v459 = vadd.f32 0.0, %v458
    %v460 = vpop.f32.mrb[0].mxu0
    %v461 = vpop.f32.mrb[0].mxu0
    %v462 = vadd.f32 0.0, %v461
    %v463 = vpop.f32.mrb[0].mxu0
    %464 = vmatprep.mubr.bf16.mxu0 0
    %465 = vmatmul.mubr.bf16.gmra.mrb[0].mxu0 %v326
    %v466 = vpop.f32.mrb[0].mxu0
    %v467 = vadd.f32 0.0, %v466
    %v468 = vpop.f32.mrb[0].mxu0
    %v469 = vpop.f32.mrb[0].mxu0
    %v470 = vadd.f32 0.0, %v469
    %v471 = vpop.f32.mrb[0].mxu0
    %472 = vmatprep.mubr.bf16.mxu0 0
    %473 = vmatmul.mubr.bf16.gmra.mrb[0].mxu0 %v327
    %v474 = vpop.f32.mrb[0].mxu0
    %v475 = vadd.f32 0.0, %v474
    %v476 = vpop.f32.mrb[0].mxu0
    %v477 = vpop.f32.mrb[0].mxu0
    %v478 = vadd.f32 0.0, %v477
    %v479 = vpop.f32.mrb[0].mxu0
    %480 = vdwg.mxu0
    %v481 = vld [vmem:[%s2] sm:$0x1]
    %v483 = vlaneseq
    %v484 = vshrl.u32 %v483, 7
    %v485 = vsub.s32 0, %v484
    %v486 = vrot.slane %v481, %v485
    %v488 = vmul.f32 %v194, %v486
    %v489 = vmul.f32 %v197, %v486
    %v490 = vmul.f32 %v202, %v486
    %v491 = vmul.f32 %v205, %v486
    %v492 = vmul.f32 %v210, %v486
    %v493 = vmul.f32 %v213, %v486
    %v494 = vmul.f32 %v218, %v486
    %v495 = vmul.f32 %v221, %v486
    %v496 = vmul.f32 %v226, %v486
    %v497 = vmul.f32 %v229, %v486
    %v498 = vmul.f32 %v234, %v486
    %v499 = vmul.f32 %v237, %v486
    %v500 = vmul.f32 %v242, %v486
    %v501 = vmul.f32 %v245, %v486
    %v502 = vmul.f32 %v250, %v486
    %v503 = vmul.f32 %v253, %v486
    %v504 = vld [vmem:[%s3] sm:$0x1]
    %v506 = vlaneseq
    %v507 = vshrl.u32 %v506, 7
    %v508 = vsub.s32 0, %v507
    %v509 = vrot.slane %v504, %v508
    %v511 = vadd.f32 %v488, %v509
    %v512 = vadd.f32 %v489, %v509
    %v513 = vadd.f32 %v490, %v509
    %v514 = vadd.f32 %v491, %v509
    %v515 = vadd.f32 %v492, %v509
    %v516 = vadd.f32 %v493, %v509
    %v517 = vadd.f32 %v494, %v509
    %v518 = vadd.f32 %v495, %v509
    %v519 = vadd.f32 %v496, %v509
    %v520 = vadd.f32 %v497, %v509
    %v521 = vadd.f32 %v498, %v509
    %v522 = vadd.f32 %v499, %v509
    %v523 = vadd.f32 %v500, %v509
    %v524 = vadd.f32 %v501, %v509
    %v525 = vadd.f32 %v502, %v509
    %v526 = vadd.f32 %v503, %v509
    %v527 = vld [vmem:[%s6] sm:$0x1]
    %v529 = vlaneseq
    %v530 = vshrl.u32 %v529, 7
    %v531 = vsub.s32 0, %v530
    %v532 = vrot.slane %v527, %v531
    %v534 = vmul.f32 %v419, %v532
    %v535 = vmul.f32 %v422, %v532
    %v536 = vmul.f32 %v427, %v532
    %v537 = vmul.f32 %v430, %v532
    %v538 = vmul.f32 %v435, %v532
    %v539 = vmul.f32 %v438, %v532
    %v540 = vmul.f32 %v443, %v532
    %v541 = vmul.f32 %v446, %v532
    %v542 = vmul.f32 %v451, %v532
    %v543 = vmul.f32 %v454, %v532
    %v544 = vmul.f32 %v459, %v532
    %v545 = vmul.f32 %v462, %v532
    %v546 = vmul.f32 %v467, %v532
    %v547 = vmul.f32 %v470, %v532
    %v548 = vmul.f32 %v475, %v532
    %v549 = vmul.f32 %v478, %v532
    %v550 = vadd.f32 %v511, %v534
    %v551 = vadd.f32 %v512, %v535
    %v552 = vadd.f32 %v513, %v536
    %v553 = vadd.f32 %v514, %v537
    %v554 = vadd.f32 %v515, %v538
    %v555 = vadd.f32 %v516, %v539
    %v556 = vadd.f32 %v517, %v540
    %v557 = vadd.f32 %v518, %v541
    %v558 = vadd.f32 %v519, %v542
    %v559 = vadd.f32 %v520, %v543
    %v560 = vadd.f32 %v521, %v544
    %v561 = vadd.f32 %v522, %v545
    %v562 = vadd.f32 %v523, %v546
    %v563 = vadd.f32 %v524, %v547
    %v564 = vadd.f32 %v525, %v548
    %v565 = vadd.f32 %v526, %v549
    %v566 = vld [vmem:[%s7] sm:$0x1]
    %v568 = vlaneseq
    %v569 = vshrl.u32 %v568, 7
    %v570 = vsub.s32 0, %v569
    %v571 = vrot.slane %v566, %v570
    %v573 = vadd.f32 %v550, %v571
    %v574 = vadd.f32 %v551, %v571
    %v575 = vadd.f32 %v552, %v571
    %v576 = vadd.f32 %v553, %v571
    %v577 = vadd.f32 %v554, %v571
    %v578 = vadd.f32 %v555, %v571
    %v579 = vadd.f32 %v556, %v571
    %v580 = vadd.f32 %v557, %v571
    %v581 = vadd.f32 %v558, %v571
    %v582 = vadd.f32 %v559, %v571
    %v583 = vadd.f32 %v560, %v571
    %v584 = vadd.f32 %v561, %v571
    %v585 = vadd.f32 %v562, %v571
    %v586 = vadd.f32 %v563, %v571
    %v587 = vadd.f32 %v564, %v571
    %v588 = vadd.f32 %v565, %v571
    %v589 = vmax.f32 %v573, 0.0
    %v590 = vmax.f32 %v574, 0.0
    %v591 = vmax.f32 %v575, 0.0
    %v592 = vmax.f32 %v576, 0.0
    %v593 = vmax.f32 %v577, 0.0
    %v594 = vmax.f32 %v578, 0.0
    %v595 = vmax.f32 %v579, 0.0
    %v596 = vmax.f32 %v580, 0.0
    %v597 = vmax.f32 %v581, 0.0
    %v598 = vmax.f32 %v582, 0.0
    %v599 = vmax.f32 %v583, 0.0
    %v600 = vmax.f32 %v584, 0.0
    %v601 = vmax.f32 %v585, 0.0
    %v602 = vmax.f32 %v586, 0.0
    %v603 = vmax.f32 %v587, 0.0
    %v604 = vmax.f32 %v588, 0.0
    %605 = vst [vmem:[#allocation2] sm:$0xff] %v589
    %606 = vst [vmem:[#allocation2 + $0x8] sm:$0xff] %v590
    %607 = vst [vmem:[#allocation2 + $0x10] sm:$0xff] %v591
    %608 = vst [vmem:[#allocation2 + $0x18] sm:$0xff] %v592
    %609 = vst [vmem:[#allocation2 + $0x20] sm:$0xff] %v593
    %610 = vst [vmem:[#allocation2 + $0x28] sm:$0xff] %v594
    %611 = vst [vmem:[#allocation2 + $0x30] sm:$0xff] %v595
    %612 = vst [vmem:[#allocation2 + $0x38] sm:$0xff] %v596
    %613 = vst [vmem:[#allocation2 + $0x40] sm:$0xff] %v597
    %614 = vst [vmem:[#allocation2 + $0x48] sm:$0xff] %v598
    %615 = vst [vmem:[#allocation2 + $0x50] sm:$0xff] %v599
    %616 = vst [vmem:[#allocation2 + $0x58] sm:$0xff] %v600
    %617 = vst [vmem:[#allocation2 + $0x60] sm:$0xff] %v601
    %618 = vst [vmem:[#allocation2 + $0x68] sm:$0xff] %v602
    %619 = vst [vmem:[#allocation2 + $0x70] sm:$0xff] %v603
    %620 = vst [vmem:[#allocation2 + $0x78] sm:$0xff] %v604
    // Predicated region
    $region34: #{bottleneck_forward.13} parent=1 // pred_check
      _
    $region35: #{bottleneck_forward.13} parent=1 // pred_check_branch
      %622 = sbr.rel (0) target = $region37
    $region36: #{bottleneck_forward.13} parent=1 // pred_region
      %s624 = ssub.s32 2048, 2048
      %625 = vsyncadd [#allocation3], %s624
      %s626 = sshll.u32 [#allocation2], 4
      %s627 = int_to_ptr.vmem [resolvable:$true] %s626
      %632 = dma.vmem_to_hbm [thread:$0]  %s627, 2048, %s8, [#allocation3], 128, 128, 8
    $region37: #{bottleneck_forward.13} parent=1 // pred_fallthru
      _
    // Predicated region
    $region38: #{bottleneck_forward.13} parent=1 // pred_check
      _
    $region39: #{bottleneck_forward.13} parent=1 // pred_check_branch
      %634 = sbr.rel (0) target = $region41
    $region40: #{bottleneck_forward.13} parent=1 // pred_region
      %635 = dma.done [#allocation3], 2048
    $region41: #{bottleneck_forward.13} parent=1 // pred_fallthru
      _
    %636 = vsyncpa [#allocation3], 1

// kernel: bottleneck_forward.9
$region0: #{bottleneck_forward.9}
  #allocation0 [shape = 'u32[]', space=smem, size = 0x4, offset = 0x4, fixed_abs, tag = 'smem constant byte address 0x4 - core index']
  #allocation1 [shape = 'u32[144,128]{1,0:T(1,128)}', space=vmem, size = 0x12000, scoped, tag = 'internal scratch']
  #allocation2 [shape = 'f32[1,128]{1,0:T(1,128)}', space=vmem, size = 0x200, scoped, tag = 'scratch operand']
  #allocation3 [shape = 'f32[1,128]{1,0:T(1,128)}', space=vmem, size = 0x200, scoped, tag = 'scratch operand']
  %s0 = inlined_call_operand.vmem [shape: bf16[8,9,9,128], index: 0, kind: input, shape index: {}]
  %s1 = inlined_call_operand.vmem [shape: bf16[9,128,128], index: 1, kind: input, shape index: {}]
  %s2 = inlined_call_operand.vmem [shape: f32[1,128], index: 2, kind: input, shape index: {}]
  %s3 = inlined_call_operand.vmem [shape: f32[1,128], index: 3, kind: input, shape index: {}]
  %s4 = inlined_call_operand.vmem [shape: f32[1,128], index: 4, kind: output, shape index: {0}]
  %s5 = inlined_call_operand.vmem [shape: f32[1,128], index: 5, kind: output, shape index: {1}]
  %6 = xla_tuple %s4, %s5
  %s7 = sld [smem:[#allocation0]]
  $region65: #{bottleneck_forward.9} parent=0
    _
  %s9 = ssub.s32 1, %s7
  %s10 = scalar_select 0, %s9, %s7
  loop: start=0, step=1, limit=4
  $region2: #{bottleneck_forward.9} parent=0 // loop_pre_header
    _
  $region3: #{bottleneck_forward.9} parent=0 // loop_header
    %s12 = sphi 0, %s16
    %p13 = scmp.ge.s32.totalorder %s12, 4
    %s22 = sphi 0, %s24
    %s25 = sphi 0, %s22
    %s26 = sphi 0, %s25
    %s42 = sphi 0, %s26
    %s46 = sphi 0, %s46
    %s48 = sphi 0, %s46
    %s49 = sphi 0, %s48
    %s63 = sphi 0, %s49
    %s67 = sphi 0, %s67
    %s69 = sphi 0, %s67
    %s70 = sphi 0, %s69
    %s84 = sphi 0, %s70
    %s88 = sphi 0, %s88
    %s90 = sphi 0, %s88
    %s91 = sphi 0, %s90
    %s105 = sphi 0, %s91
    %s109 = sphi 0, %s109
    %s111 = sphi 0, %s109
    %s112 = sphi 0, %s111
    %s126 = sphi 0, %s112
    %s130 = sphi 0, %s130
    %s132 = sphi 0, %s130
    %s133 = sphi 0, %s132
    %s147 = sphi 0, %s133
  $region4: #{bottleneck_forward.9} parent=0 // loop_header_branch
    %15 = sbr.rel (%p13) target = $region8
  $region5: #{bottleneck_forward.9} parent=0 // loop_body
    %s17 = ssub.s32 %s12, 1
    %s18 = ssub.s32 %s12, 2
    %s19 = sadd.s32 %s12, 1
    %s20 = ssub.s32 %s12, %s19
    %p21 = scmp.eq.s32.totalorder %s20, 0
    %s23 = sadd.s32 %s22, 1
    %s24 = scalar_select %p21, %s22, %s23
    %p27 = pneg %p21
    %p28 = scmp.eq.s32.totalorder %s12, 1
    %p29 = por %p27, %p28
    %p30 = scmp.ne.s32.totalorder %s22, %s25
    %p31 = scmp.eq.s32.totalorder %s12, 0
    %p32 = por %p30, %p31
    %p33 = scmp.ne.s32.totalorder %s22, %s25
    %p34 = scmp.eq.s32.totalorder %s17, 1
    %p35 = por %p33, %p34
    %p36 = scmp.ne.s32.totalorder %s25, %s26
    %p37 = scmp.eq.s32.totalorder %s17, 0
    %p38 = por %p36, %p37
    %p39 = scmp.ne.s32.totalorder %s25, %s26
    %p40 = scmp.eq.s32.totalorder %s18, 1
    %p41 = por %p39, %p40
    %p43 = scmp.ne.s32.totalorder %s26, %s42
    %p44 = scmp.eq.s32.totalorder %s18, 0
    %p45 = por %p43, %p44
    %s47 = sadd.s32 %s46, 1
    %p50 = scmp.eq.s32.totalorder %s12, 1
    %p51 = scmp.ne.s32.totalorder %s46, %s48
    %p52 = scmp.eq.s32.totalorder %s12, 0
    %p53 = por %p51, %p52
    %p54 = scmp.ne.s32.totalorder %s46, %s48
    %p55 = scmp.eq.s32.totalorder %s17, 1
    %p56 = por %p54, %p55
    %p57 = scmp.ne.s32.totalorder %s48, %s49
    %p58 = scmp.eq.s32.totalorder %s17, 0
    %p59 = por %p57, %p58
    %p60 = scmp.ne.s32.totalorder %s48, %s49
    %p61 = scmp.eq.s32.totalorder %s18, 1
    %p62 = por %p60, %p61
    %p64 = scmp.ne.s32.totalorder %s49, %s63
    %p65 = scmp.eq.s32.totalorder %s18, 0
    %p66 = por %p64, %p65
    %s68 = sadd.s32 %s67, 1
    %p71 = scmp.eq.s32.totalorder %s12, 1
    %p72 = scmp.ne.s32.totalorder %s67, %s69
    %p73 = scmp.eq.s32.totalorder %s12, 0
    %p74 = por %p72, %p73
    %p75 = scmp.ne.s32.totalorder %s67, %s69
    %p76 = scmp.eq.s32.totalorder %s17, 1
    %p77 = por %p75, %p76
    %p78 = scmp.ne.s32.totalorder %s69, %s70
    %p79 = scmp.eq.s32.totalorder %s17, 0
    %p80 = por %p78, %p79
    %p81 = scmp.ne.s32.totalorder %s69, %s70
    %p82 = scmp.eq.s32.totalorder %s18, 1
    %p83 = por %p81, %p82
    %p85 = scmp.ne.s32.totalorder %s70, %s84
    %p86 = scmp.eq.s32.totalorder %s18, 0
    %p87 = por %p85, %p86
    %s89 = sadd.s32 %s88, 1
    %p92 = scmp.eq.s32.totalorder %s12, 1
    %p93 = scmp.ne.s32.totalorder %s88, %s90
    %p94 = scmp.eq.s32.totalorder %s12, 0
    %p95 = por %p93, %p94
    %p96 = scmp.ne.s32.totalorder %s88, %s90
    %p97 = scmp.eq.s32.totalorder %s17, 1
    %p98 = por %p96, %p97
    %p99 = scmp.ne.s32.totalorder %s90, %s91
    %p100 = scmp.eq.s32.totalorder %s17, 0
    %p101 = por %p99, %p100
    %p102 = scmp.ne.s32.totalorder %s90, %s91
    %p103 = scmp.eq.s32.totalorder %s18, 1
    %p104 = por %p102, %p103
    %p106 = scmp.ne.s32.totalorder %s91, %s105
    %p107 = scmp.eq.s32.totalorder %s18, 0
    %p108 = por %p106, %p107
    %s110 = sadd.s32 %s109, 1
    %p113 = scmp.eq.s32.totalorder %s12, 1
    %p114 = scmp.ne.s32.totalorder %s109, %s111
    %p115 = scmp.eq.s32.totalorder %s12, 0
    %p116 = por %p114, %p115
    %p117 = scmp.ne.s32.totalorder %s109, %s111
    %p118 = scmp.eq.s32.totalorder %s17, 1
    %p119 = por %p117, %p118
    %p120 = scmp.ne.s32.totalorder %s111, %s112
    %p121 = scmp.eq.s32.totalorder %s17, 0
    %p122 = por %p120, %p121
    %p123 = scmp.ne.s32.totalorder %s111, %s112
    %p124 = scmp.eq.s32.totalorder %s18, 1
    %p125 = por %p123, %p124
    %p127 = scmp.ne.s32.totalorder %s112, %s126
    %p128 = scmp.eq.s32.totalorder %s18, 0
    %p129 = por %p127, %p128
    %s131 = sadd.s32 %s130, 1
    %p134 = scmp.eq.s32.totalorder %s12, 1
    %p135 = scmp.ne.s32.totalorder %s130, %s132
    %p136 = scmp.eq.s32.totalorder %s12, 0
    %p137 = por %p135, %p136
    %p138 = scmp.ne.s32.totalorder %s130, %s132
    %p139 = scmp.eq.s32.totalorder %s17, 1
    %p140 = por %p138, %p139
    %p141 = scmp.ne.s32.totalorder %s132, %s133
    %p142 = scmp.eq.s32.totalorder %s17, 0
    %p143 = por %p141, %p142
    %p144 = scmp.ne.s32.totalorder %s132, %s133
    %p145 = scmp.eq.s32.totalorder %s18, 1
    %p146 = por %p144, %p145
    %p148 = scmp.ne.s32.totalorder %s133, %s147
    %p149 = scmp.eq.s32.totalorder %s18, 0
    %p150 = por %p148, %p149
    %p151 = scmp.le.s32.totalorder 1, %s12
    %p152 = scmp.lt.s32.totalorder %s12, 3
    %p153 = pnand %p151, %p152
    %p154 = pneg %p153
    // Predicated region
    $region9: #{bottleneck_forward.9} parent=5 // pred_check
      _
    $region10: #{bottleneck_forward.9} parent=5 // pred_check_branch
      %156 = sbr.rel (%p153) target = $region12
    $region11: #{bottleneck_forward.9} parent=5 // pred_region
      %s157 = ssub.s32 %s12, 1
      // Predicated region
      $region13: #{bottleneck_forward.9} parent=11 // pred_check
        %p158 = pneg %p59
      $region14: #{bottleneck_forward.9} parent=11 // pred_check_branch
        %160 = sbr.rel (%p158) target = $region16
      $region15: #{bottleneck_forward.9} parent=11 // pred_region
        _
      $region16: #{bottleneck_forward.9} parent=11 // pred_fallthru
        _
      // Predicated region
      $region17: #{bottleneck_forward.9} parent=11 // pred_check
        %p161 = pneg %p80
      $region18: #{bottleneck_forward.9} parent=11 // pred_check_branch
        %163 = sbr.rel (%p161) target = $region20
      $region19: #{bottleneck_forward.9} parent=11 // pred_region
        _
      $region20: #{bottleneck_forward.9} parent=11 // pred_fallthru
        _
      // Predicated region
      $region21: #{bottleneck_forward.9} parent=11 // pred_check
        %p164 = pneg %p101
      $region22: #{bottleneck_forward.9} parent=11 // pred_check_branch
        %166 = sbr.rel (%p164) target = $region24
      $region23: #{bottleneck_forward.9} parent=11 // pred_region
        _
      $region24: #{bottleneck_forward.9} parent=11 // pred_fallthru
        _
    $region12: #{bottleneck_forward.9} parent=5 // pred_fallthru
      _
    %p167 = scmp.lt.s32.totalorder %s12, 2
    // Predicated region
    $region25: #{bottleneck_forward.9} parent=5 // pred_check
      %p168 = pneg %p167
    $region26: #{bottleneck_forward.9} parent=5 // pred_check_branch
      %170 = sbr.rel (%p168) target = $region28
    $region27: #{bottleneck_forward.9} parent=5 // pred_region
      // Predicated region
      $region29: #{bottleneck_forward.9} parent=27 // pred_check
        %p171 = pneg %p32
      $region30: #{bottleneck_forward.9} parent=27 // pred_check_branch
        %173 = sbr.rel (%p171) target = $region32
      $region31: #{bottleneck_forward.9} parent=27 // pred_region
        %s174 = smul.u32 4, %s12
        %p175 = scmp.lt.s32.totalorder %s174, 7
        %s176 = scalar_select %p175, %s174, 7
        %s177 = smul.addr %s176, 18
        %s178 = smul.addr %s177, 4
        %s179 = scalar_lea.vmem %s0, %s178
        %s180 = smul.u32 4, %s12
      $region32: #{bottleneck_forward.9} parent=27 // pred_fallthru
        _
    $region28: #{bottleneck_forward.9} parent=5 // pred_fallthru
      _
    %p181 = scmp.le.s32.totalorder 1, %s12
    %p182 = scmp.lt.s32.totalorder %s12, 3
    %p183 = pnand %p181, %p182
    %p184 = pneg %p183
    // Predicated region
    $region33: #{bottleneck_forward.9} parent=5 // pred_check
      _
    $region34: #{bottleneck_forward.9} parent=5 // pred_check_branch
      %186 = sbr.rel (%p183) target = $region36
    $region35: #{bottleneck_forward.9} parent=5 // pred_region
      %s187 = ssub.s32 %s12, 1
      %s188 = smul.u32 4, %s17
      %p189 = scmp.lt.s32.totalorder %s188, 7
      %s190 = scalar_select %p189, %s188, 7
      %s191 = smul.addr %s190, 18
      %s192 = smul.addr %s191, 4
      %s193 = scalar_lea.vmem %s0, %s192
      %p194 = pneg %p38
      %p195 = pneg %p35
      %p196 = pneg %p59
      %p197 = pneg %p56
      %p198 = pneg %p80
      %p199 = pneg %p77
      %p200 = pneg %p101
      %p201 = pneg %p98
      %p202 = pneg %p122
      %p203 = pneg %p119
      %p204 = pneg %p143
      %p205 = pneg %p140
      %s206 = smul.u32 4, %s17
      %p207 = scmp.lt.s32.totalorder %s206, 7
      %s208 = scalar_select %p207, %s206, 7
      %s209 = smul.addr %s208, 18
      %s210 = smul.addr %s209, 4
      %s211 = scalar_lea.vmem %s0, %s210
      %s212 = smul.u32 4, %s17
      %p214 = scmp.eq.s32.totalorder %s17, 0
      // Predicated region
      $region37: #{bottleneck_forward.9} parent=35 // pred_check
        %p215 = pneg %p214
      $region38: #{bottleneck_forward.9} parent=35 // pred_check_branch
        %217 = sbr.rel (%p215) target = $region40
      $region39: #{bottleneck_forward.9} parent=35 // pred_region
        %218 = vst [vmem:[#allocation2] sm:$0x1] 0.0
        %219 = vst [vmem:[#allocation3] sm:$0x1] 0.0
      $region40: #{bottleneck_forward.9} parent=35 // pred_fallthru
        _
      %v220 = vld [vmem:[%s211] sm:$0xf]
      %v221 = vld [vmem:[%s211 + $0x8] sm:$0xf]
      %v222 = vld [vmem:[%s211 + $0x10] sm:$0xf]
      %v223 = vld [vmem:[%s211 + $0x18] sm:$0xf]
      %v224 = vld [vmem:[%s211 + $0x20] sm:$0xf]
      %v225 = vld [vmem:[%s211 + $0x28] sm:$0xf]
      %v226 = vld [vmem:[%s211 + $0x30] sm:$0xf]
      %v227 = vld [vmem:[%s211 + $0x38] sm:$0xf]
      %v228 = vld [vmem:[%s1] sm:$0xf]
      %v229 = vld [vmem:[%s1 + $0x4] sm:$0xf]
      %v230 = vld [vmem:[%s1 + $0x8] sm:$0xf]
      %v231 = vld [vmem:[%s1 + $0xc] sm:$0xf]
      %v232 = vld [vmem:[%s1 + $0x10] sm:$0xf]
      %v233 = vld [vmem:[%s1 + $0x14] sm:$0xf]
      %v234 = vld [vmem:[%s1 + $0x18] sm:$0xf]
      %v235 = vld [vmem:[%s1 + $0x1c] sm:$0xf]
      %v236 = vld [vmem:[%s1 + $0x20] sm:$0xf]
      %v237 = vld [vmem:[%s1 + $0x24] sm:$0xf]
      %v238 = vld [vmem:[%s1 + $0x28] sm:$0xf]
      %v239 = vld [vmem:[%s1 + $0x2c] sm:$0xf]
      %v240 = vld [vmem:[%s1 + $0x30] sm:$0xf]
      %v241 = vld [vmem:[%s1 + $0x34] sm:$0xf]
      %v242 = vld [vmem:[%s1 + $0x38] sm:$0xf]
      %v243 = vld [vmem:[%s1 + $0x3c] sm:$0xf]
      %s244 = scalar_lea.vmem %s211, 72
      %v245 = vld [vmem:[%s244] sm:$0xf]
      %v246 = vld [vmem:[%s244 + $0x8] sm:$0xf]
      %v247 = vld [vmem:[%s244 + $0x10] sm:$0xf]
      %v248 = vld [vmem:[%s244 + $0x18] sm:$0xf]
      %v249 = vld [vmem:[%s244 + $0x20] sm:$0xf]
      %v250 = vld [vmem:[%s244 + $0x28] sm:$0xf]
      %v251 = vld [vmem:[%s244 + $0x30] sm:$0xf]
      %v252 = vld [vmem:[%s244 + $0x38] sm:$0xf]
      %s253 = scalar_lea.vmem %s1, 64
      %v254 = vld [vmem:[%s253] sm:$0xf]
      %v255 = vld [vmem:[%s253 + $0x4] sm:$0xf]
      %v256 = vld [vmem:[%s253 + $0x8] sm:$0xf]
      %v257 = vld [vmem:[%s253 + $0xc] sm:$0xf]
      %v258 = vld [vmem:[%s253 + $0x10] sm:$0xf]
      %v259 = vld [vmem:[%s253 + $0x14] sm:$0xf]
      %v260 = vld [vmem:[%s253 + $0x18] sm:$0xf]
      %v261 = vld [vmem:[%s253 + $0x1c] sm:$0xf]
      %v262 = vld [vmem:[%s253 + $0x20] sm:$0xf]
      %v263 = vld [vmem:[%s253 + $0x24] sm:$0xf]
      %v264 = vld [vmem:[%s253 + $0x28] sm:$0xf]
      %v265 = vld [vmem:[%s253 + $0x2c] sm:$0xf]
      %v266 = vld [vmem:[%s253 + $0x30] sm:$0xf]
      %v267 = vld [vmem:[%s253 + $0x34] sm:$0xf]
      %v268 = vld [vmem:[%s253 + $0x38] sm:$0xf]
      %v269 = vld [vmem:[%s253 + $0x3c] sm:$0xf]
      %v278 = vunpack.c.l.b16 %v245
      %v279 = vunpack.c.l.b16 %v246
      %v280 = vunpack.c.l.b16 %v247
      %v281 = vunpack.c.l.b16 %v248
      %v282 = vunpack.c.l.b16 %v249
      %v283 = vunpack.c.l.b16 %v250
      %v284 = vunpack.c.l.b16 %v251
      %v285 = vunpack.c.l.b16 %v252
      %v286 = vpack.c.b16 %v279, %v278
      %v287 = vpack.c.b16 %v281, %v280
      %v288 = vpack.c.b16 %v283, %v282
      %v289 = vpack.c.b16 %v285, %v284
      %v310 = vunpack.c.l.b16 %v254
      %v311 = vunpack.c.l.b16 %v255
      %v312 = vunpack.c.l.b16 %v256
      %v313 = vunpack.c.l.b16 %v257
      %v314 = vunpack.c.l.b16 %v258
      %v315 = vunpack.c.l.b16 %v259
      %v316 = vunpack.c.l.b16 %v260
      %v317 = vunpack.c.l.b16 %v261
      %v318 = vunpack.c.l.b16 %v262
      %v319 = vunpack.c.l.b16 %v263
      %v320 = vunpack.c.l.b16 %v264
      %v321 = vunpack.c.l.b16 %v265
      %v322 = vunpack.c.l.b16 %v266
      %v323 = vunpack.c.l.b16 %v267
      %v324 = vunpack.c.l.b16 %v268
      %v325 = vunpack.c.l.b16 %v269
      %v326 = vpack.c.b16 %v311, %v310
      %v327 = vpack.c.b16 %v313, %v312
      %v328 = vpack.c.b16 %v315, %v314
      %v329 = vpack.c.b16 %v317, %v316
      %v330 = vpack.c.b16 %v319, %v318
      %v331 = vpack.c.b16 %v321, %v320
      %v332 = vpack.c.b16 %v323, %v322
      %v333 = vpack.c.b16 %v325, %v324
      %342 = vmatprep.subr.bf16.mxu0 0
      %343 = vmatpush1.bf16.msra.mxu0 %v326
      %344 = vmatprep.subr.bf16.mxu0 0
      %345 = vmatpush1.bf16.msra.mxu0 %v327
      %346 = vmatprep.subr.bf16.mxu0 0
      %347 = vmatpush1.bf16.msra.mxu0 %v328
      %348 = vmatprep.subr.bf16.mxu0 0
      %349 = vmatpush1.bf16.msra.mxu0 %v329
      %350 = vmatprep.subr.bf16.mxu0 0
      %351 = vmatpush1.bf16.msra.mxu0 %v330
      %352 = vmatprep.subr.bf16.mxu0 0
      %353 = vmatpush1.bf16.msra.mxu0 %v331
      %354 = vmatprep.subr.bf16.mxu0 0
      %355 = vmatpush1.bf16.msra.mxu0 %v332
      %356 = vmatprep.subr.bf16.mxu0 0
      %357 = vmatpush1.bf16.msra.mxu0 %v333
      %358 = vmatprep.subr.bf16.mxu0 0
      %359 = vmatpush1.bf16.msra.mxu0 0
      %360 = vmatprep.subr.bf16.mxu0 0
      %361 = vmatpush1.bf16.msra.mxu0 0
      %362 = vmatprep.subr.bf16.mxu0 0
      %363 = vmatpush1.bf16.msra.mxu0 0
      %364 = vmatprep.subr.bf16.mxu0 0
      %365 = vmatpush1.bf16.msra.mxu0 0
      %366 = vmatprep.subr.bf16.mxu0 0
      %367 = vmatpush1.bf16.msra.mxu0 0
      %368 = vmatprep.subr.bf16.mxu0 0
      %369 = vmatpush1.bf16.msra.mxu0 0
      %370 = vmatprep.subr.bf16.mxu0 0
      %371 = vmatpush1.bf16.msra.mxu0 0
      %372 = vmatprep.subr.bf16.mxu0 0
      %373 = vmatpush1.bf16.msra.mxu0 0
      %374 = vmatprep.mubr.bf16.mxu0 0
      %375 = vmatmul.mubr.bf16.gmra.mrb[0].mxu0 %v286
      %v376 = vpop.f32.mrb[0].mxu0
      %v377 = vadd.f32 0.0, %v376
      %v378 = vpop.f32.mrb[0].mxu0
      %v379 = vpop.f32.mrb[0].mxu0
      %v380 = vadd.f32 0.0, %v379
      %v381 = vpop.f32.mrb[0].mxu0
      %382 = vmatprep.mubr.bf16.mxu0 0
      %383 = vmatmul.mubr.bf16.gmra.mrb[0].mxu0 %v287
      %v384 = vpop.f32.mrb[0].mxu0
      %v385 = vadd.f32 0.0, %v384
      %v386 = vpop.f32.mrb[0].mxu0
      %v387 = vpop.f32.mrb[0].mxu0
      %v388 = vadd.f32 0.0, %v387
      %v389 = vpop.f32.mrb[0].mxu0
      %390 = vmatprep.mubr.bf16.mxu0 0
      %391 = vmatmul.mubr.bf16.gmra.mrb[0].mxu0 %v288
      %v392 = vpop.f32.mrb[0].mxu0
      %v393 = vadd.f32 0.0, %v392
      %v394 = vpop.f32.mrb[0].mxu0
      %v395 = vpop.f32.mrb[0].mxu0
      %v396 = vadd.f32 0.0, %v395
      %v397 = vpop.f32.mrb[0].mxu0
      %398 = vmatprep.mubr.bf16.mxu0 0
      %399 = vmatmul.mubr.bf16.gmra.mrb[0].mxu0 %v289
      %v400 = vpop.f32.mrb[0].mxu0
      %v401 = vadd.f32 0.0, %v400
      %v402 = vpop.f32.mrb[0].mxu0
      %v403 = vpop.f32.mrb[0].mxu0
      %v404 = vadd.f32 0.0, %v403
      %v405 = vpop.f32.mrb[0].mxu0
      %406 = vdwg.mxu0
      %v415 = vunpack.c.l.b16 %v220
      %v416 = vunpack.c.l.b16 %v221
      %v417 = vunpack.c.l.b16 %v222
      %v418 = vunpack.c.l.b16 %v223
      %v419 = vunpack.c.l.b16 %v224
      %v420 = vunpack.c.l.b16 %v225
      %v421 = vunpack.c.l.b16 %v226
      %v422 = vunpack.c.l.b16 %v227
      %v423 = vpack.c.b16 %v416, %v415
      %v424 = vpack.c.b16 %v418, %v417
      %v425 = vpack.c.b16 %v420, %v419
      %v426 = vpack.c.b16 %v422, %v421
      %v447 = vunpack.c.l.b16 %v228
      %v448 = vunpack.c.l.b16 %v229
      %v449 = vunpack.c.l.b16 %v230
      %v450 = vunpack.c.l.b16 %v231
      %v451 = vunpack.c.l.b16 %v232
      %v452 = vunpack.c.l.b16 %v233
      %v453 = vunpack.c.l.b16 %v234
      %v454 = vunpack.c.l.b16 %v235
      %v455 = vunpack.c.l.b16 %v236
      %v456 = vunpack.c.l.b16 %v237
      %v457 = vunpack.c.l.b16 %v238
      %v458 = vunpack.c.l.b16 %v239
      %v459 = vunpack.c.l.b16 %v240
      %v460 = vunpack.c.l.b16 %v241
      %v461 = vunpack.c.l.b16 %v242
      %v462 = vunpack.c.l.b16 %v243
      %v463 = vpack.c.b16 %v448, %v447
      %v464 = vpack.c.b16 %v450, %v449
      %v465 = vpack.c.b16 %v452, %v451
      %v466 = vpack.c.b16 %v454, %v453
      %v467 = vpack.c.b16 %v456, %v455
      %v468 = vpack.c.b16 %v458, %v457
      %v469 = vpack.c.b16 %v460, %v459
      %v470 = vpack.c.b16 %v462, %v461
      %479 = vmatprep.subr.bf16.mxu0 0
      %480 = vmatpush1.bf16.msra.mxu0 %v463
      %481 = vmatprep.subr.bf16.mxu0 0
      %482 = vmatpush1.bf16.msra.mxu0 %v464
      %483 = vmatprep.subr.bf16.mxu0 0
      %484 = vmatpush1.bf16.msra.mxu0 %v465
      %485 = vmatprep.subr.bf16.mxu0 0
      %486 = vmatpush1.bf16.msra.mxu0 %v466
      %487 = vmatprep.subr.bf16.mxu0 0
      %488 = vmatpush1.bf16.msra.mxu0 %v467
      %489 = vmatprep.subr.bf16.mxu0 0
      %490 = vmatpush1.bf16.msra.mxu0 %v468
      %491 = vmatprep.subr.bf16.mxu0 0
      %492 = vmatpush1.bf16.msra.mxu0 %v469
      %493 = vmatprep.subr.bf16.mxu0 0
      %494 = vmatpush1.bf16.msra.mxu0 %v470
      %495 = vmatprep.subr.bf16.mxu0 0
      %496 = vmatpush1.bf16.msra.mxu0 0
      %497 = vmatprep.subr.bf16.mxu0 0
      %498 = vmatpush1.bf16.msra.mxu0 0
      %499 = vmatprep.subr.bf16.mxu0 0
      %500 = vmatpush1.bf16.msra.mxu0 0
      %501 = vmatprep.subr.bf16.mxu0 0
      %502 = vmatpush1.bf16.msra.mxu0 0
      %503 = vmatprep.subr.bf16.mxu0 0
      %504 = vmatpush1.bf16.msra.mxu0 0
      %505 = vmatprep.subr.bf16.mxu0 0
      %506 = vmatpush1.bf16.msra.mxu0 0
      %507 = vmatprep.subr.bf16.mxu0 0
      %508 = vmatpush1.bf16.msra.mxu0 0
      %509 = vmatprep.subr.bf16.mxu0 0
      %510 = vmatpush1.bf16.msra.mxu0 0
      %511 = vmatprep.mubr.bf16.mxu0 0
      %512 = vmatmul.mubr.bf16.gmra.mrb[0].mxu0 %v423
      %v513 = vpop.f32.mrb[0].mxu0
      %v514 = vadd.f32 %v377, %v513
      %v515 = vpop.f32.mrb[0].mxu0
      %v516 = vpop.f32.mrb[0].mxu0
      %v517 = vadd.f32 %v380, %v516
      %v518 = vpop.f32.mrb[0].mxu0
      %519 = vmatprep.mubr.bf16.mxu0 0
      %520 = vmatmul.mubr.bf16.gmra.mrb[0].mxu0 %v424
      %v521 = vpop.f32.mrb[0].mxu0
      %v522 = vadd.f32 %v385, %v521
      %v523 = vpop.f32.mrb[0].mxu0
      %v524 = vpop.f32.mrb[0].mxu0
      %v525 = vadd.f32 %v388, %v524
      %v526 = vpop.f32.mrb[0].mxu0
      %527 = vmatprep.mubr.bf16.mxu0 0
      %528 = vmatmul.mubr.bf16.gmra.mrb[0].mxu0 %v425
      %v529 = vpop.f32.mrb[0].mxu0
      %v530 = vadd.f32 %v393, %v529
      %v531 = vpop.f32.mrb[0].mxu0
      %v532 = vpop.f32.mrb[0].mxu0
      %v533 = vadd.f32 %v396, %v532
      %v534 = vpop.f32.mrb[0].mxu0
      %535 = vmatprep.mubr.bf16.mxu0 0
      %536 = vmatmul.mubr.bf16.gmra.mrb[0].mxu0 %v426
      %v537 = vpop.f32.mrb[0].mxu0
      %v538 = vadd.f32 %v401, %v537
      %v539 = vpop.f32.mrb[0].mxu0
      %v540 = vpop.f32.mrb[0].mxu0
      %v541 = vadd.f32 %v404, %v540
      %v542 = vpop.f32.mrb[0].mxu0
      %543 = vdwg.mxu0
      %v544 = vld [vmem:[%s211] sm:$0xf]
      %v545 = vld [vmem:[%s211 + $0x4] sm:$0x1]
      %v546 = vld [vmem:[%s211 + $0x8] sm:$0xf]
      %v547 = vld [vmem:[%s211 + $0xc] sm:$0x1]
      %v548 = vld [vmem:[%s211 + $0x10] sm:$0xf]
      %v549 = vld [vmem:[%s211 + $0x14] sm:$0x1]
      %v550 = vld [vmem:[%s211 + $0x18] sm:$0xf]
      %v551 = vld [vmem:[%s211 + $0x1c] sm:$0x1]
      %v552 = vld [vmem:[%s211 + $0x20] sm:$0xf]
      %v553 = vld [vmem:[%s211 + $0x24] sm:$0x1]
      %v554 = vld [vmem:[%s211 + $0x28] sm:$0xf]
      %v555 = vld [vmem:[%s211 + $0x2c] sm:$0x1]
      %v556 = vld [vmem:[%s211 + $0x30] sm:$0xf]
      %v557 = vld [vmem:[%s211 + $0x34] sm:$0x1]
      %v558 = vld [vmem:[%s211 + $0x38] sm:$0xf]
      %v559 = vld [vmem:[%s211 + $0x3c] sm:$0x1]
      %vm560 = vsmask.f32 3328
      %vm561 = vsmask.f32 7440
      %vm562 = vmor %vm560, %vm561
      %v564 = vshrl.u32 %v544, 16
      %v566 = vrot.slane %v564, 4
      %v567 = vshll.u32 %v544, 16
      %v569 = vrot.slane %v567, 5
      %v570 = vor.u32 %v566, %v569
      %v571 = vrot.slane %v570, 4
      %v573 = vshll.u32 %v545, 16
      %v575 = vrot.slane %v573, 5
      %v576 = vsel %vm562, %v571, %v575
      %v578 = vshrl.u32 %v546, 16
      %v580 = vrot.slane %v578, 4
      %v581 = vshll.u32 %v546, 16
      %v583 = vrot.slane %v581, 5
      %v584 = vor.u32 %v580, %v583
      %v585 = vrot.slane %v584, 4
      %v587 = vshll.u32 %v547, 16
      %v589 = vrot.slane %v587, 5
      %v590 = vsel %vm562, %v585, %v589
      %v592 = vshrl.u32 %v548, 16
      %v594 = vrot.slane %v592, 4
      %v595 = vshll.u32 %v548, 16
      %v597 = vrot.slane %v595, 5
      %v598 = vor.u32 %v594, %v597
      %v599 = vrot.slane %v598, 4
      %v601 = vshll.u32 %v549, 16
      %v603 = vrot.slane %v601, 5
      %v604 = vsel %vm562, %v599, %v603
      %v606 = vshrl.u32 %v550, 16
      %v608 = vrot.slane %v606, 4
      %v609 = vshll.u32 %v550, 16
      %v611 = vrot.slane %v609, 5
      %v612 = vor.u32 %v608, %v611
      %v613 = vrot.slane %v612, 4
      %v615 = vshll.u32 %v551, 16
      %v617 = vrot.slane %v615, 5
      %v618 = vsel %vm562, %v613, %v617
      %v620 = vshrl.u32 %v552, 16
      %v622 = vrot.slane %v620, 4
      %v623 = vshll.u32 %v552, 16
      %v625 = vrot.slane %v623, 5
      %v626 = vor.u32 %v622, %v625
      %v627 = vrot.slane %v626, 4
      %v629 = vshll.u32 %v553, 16
      %v631 = vrot.slane %v629, 5
      %v632 = vsel %vm562, %v627, %v631
      %v634 = vshrl.u32 %v554, 16
      %v636 = vrot.slane %v634, 4
      %v637 = vshll.u32 %v554, 16
      %v639 = vrot.slane %v637, 5
      %v640 = vor.u32 %v636, %v639
      %v641 = vrot.slane %v640, 4
      %v643 = vshll.u32 %v555, 16
      %v645 = vrot.slane %v643, 5
      %v646 = vsel %vm562, %v641, %v645
      %v648 = vshrl.u32 %v556, 16
      %v650 = vrot.slane %v648, 4
      %v651 = vshll.u32 %v556, 16
      %v653 = vrot.slane %v651, 5
      %v654 = vor.u32 %v650, %v653
      %v655 = vrot.slane %v654, 4
      %v657 = vshll.u32 %v557, 16
      %v659 = vrot.slane %v657, 5
      %v660 = vsel %vm562, %v655, %v659
      %v662 = vshrl.u32 %v558, 16
      %v664 = vrot.slane %v662, 4
      %v665 = vshll.u32 %v558, 16
      %v667 = vrot.slane %v665, 5
      %v668 = vor.u32 %v664, %v667
      %v669 = vrot.slane %v668, 4
      %v671 = vshll.u32 %v559, 16
      %v673 = vrot.slane %v671, 5
      %v674 = vsel %vm562, %v669, %v673
      %s675 = scalar_lea.vmem %s1, 128
      %v676 = vld [vmem:[%s675] sm:$0xf]
      %v677 = vld [vmem:[%s675 + $0x4] sm:$0xf]
      %v678 = vld [vmem:[%s675 + $0x8] sm:$0xf]
      %v679 = vld [vmem:[%s675 + $0xc] sm:$0xf]
      %v680 = vld [vmem:[%s675 + $0x10] sm:$0xf]
      %v681 = vld [vmem:[%s675 + $0x14] sm:$0xf]
      %v682 = vld [vmem:[%s675 + $0x18] sm:$0xf]
      %v683 = vld [vmem:[%s675 + $0x1c] sm:$0xf]
      %v684 = vld [vmem:[%s675 + $0x20] sm:$0xf]
      %v685 = vld [vmem:[%s675 + $0x24] sm:$0xf]
      %v686 = vld [vmem:[%s675 + $0x28] sm:$0xf]
      %v687 = vld [vmem:[%s675 + $0x2c] sm:$0xf]
      %v688 = vld [vmem:[%s675 + $0x30] sm:$0xf]
      %v689 = vld [vmem:[%s675 + $0x34] sm:$0xf]
      %v690 = vld [vmem:[%s675 + $0x38] sm:$0xf]
      %v691 = vld [vmem:[%s675 + $0x3c] sm:$0xf]
      %v692 = vunpack.c.l.b16 %v576
      %v693 = vunpack.c.l.b16 %v590
      %v694 = vunpack.c.l.b16 %v604
      %v695 = vunpack.c.l.b16 %v618
      %v696 = vunpack.c.l.b16 %v632
      %v697 = vunpack.c.l.b16 %v646
      %v698 = vunpack.c.l.b16 %v660
      %v699 = vunpack.c.l.b16 %v674
      %v700 = vpack.c.b16 %v693, %v692
      %v701 = vpack.c.b16 %v695, %v694
      %v702 = vpack.c.b16 %v697, %v696
      %v703 = vpack.c.b16 %v699, %v698
      %v724 = vunpack.c.l.b16 %v676
      %v725 = vunpack.c.l.b16 %v677
      %v726 = vunpack.c.l.b16 %v678
      %v727 = vunpack.c.l.b16 %v679
      %v728 = vunpack.c.l.b16 %v680
      %v729 = vunpack.c.l.b16 %v681
      %v730 = vunpack.c.l.b16 %v682
      %v731 = vunpack.c.l.b16 %v683
      %v732 = vunpack.c.l.b16 %v684
      %v733 = vunpack.c.l.b16 %v685
      %v734 = vunpack.c.l.b16 %v686
      %v735 = vunpack.c.l.b16 %v687
      %v736 = vunpack.c.l.b16 %v688
      %v737 = vunpack.c.l.b16 %v689
      %v738 = vunpack.c.l.b16 %v690
      %v739 = vunpack.c.l.b16 %v691
      %v740 = vpack.c.b16 %v725, %v724
      %v741 = vpack.c.b16 %v727, %v726
      %v742 = vpack.c.b16 %v729, %v728
      %v743 = vpack.c.b16 %v731, %v730
      %v744 = vpack.c.b16 %v733, %v732
      %v745 = vpack.c.b16 %v735, %v734
      %v746 = vpack.c.b16 %v737, %v736
      %v747 = vpack.c.b16 %v739, %v738
      %756 = vmatprep.subr.bf16.mxu0 0
      %757 = vmatpush1.bf16.msra.mxu0 %v740
      %758 = vmatprep.subr.bf16.mxu0 0
      %759 = vmatpush1.bf16.msra.mxu0 %v741
      %760 = vmatprep.subr.bf16.mxu0 0
      %761 = vmatpush1.bf16.msra.mxu0 %v742
      %762 = vmatprep.subr.bf16.mxu0 0
      %763 = vmatpush1.bf16.msra.mxu0 %v743
      %764 = vmatprep.subr.bf16.mxu0 0
      %765 = vmatpush1.bf16.msra.mxu0 %v744
      %766 = vmatprep.subr.bf16.mxu0 0
      %767 = vmatpush1.bf16.msra.mxu0 %v745
      %768 = vmatprep.subr.bf16.mxu0 0
      %769 = vmatpush1.bf16.msra.mxu0 %v746
      %770 = vmatprep.subr.bf16.mxu0 0
      %771 = vmatpush1.bf16.msra.mxu0 %v747
      %772 = vmatprep.subr.bf16.mxu0 0
      %773 = vmatpush1.bf16.msra.mxu0 0
      %774 = vmatprep.subr.bf16.mxu0 0
      %775 = vmatpush1.bf16.msra.mxu0 0
      %776 = vmatprep.subr.bf16.mxu0 0
      %777 = vmatpush1.bf16.msra.mxu0 0
      %778 = vmatprep.subr.bf16.mxu0 0
      %779 = vmatpush1.bf16.msra.mxu0 0
      %780 = vmatprep.subr.bf16.mxu0 0
      %781 = vmatpush1.bf16.msra.mxu0 0
      %782 = vmatprep.subr.bf16.mxu0 0
      %783 = vmatpush1.bf16.msra.mxu0 0
      %784 = vmatprep.subr.bf16.mxu0 0
      %785 = vmatpush1.bf16.msra.mxu0 0
      %786 = vmatprep.subr.bf16.mxu0 0
      %787 = vmatpush1.bf16.msra.mxu0 0
      %788 = vmatprep.mubr.bf16.mxu0 0
      %789 = vmatmul.mubr.bf16.gmra.mrb[0].mxu0 %v700
      %v790 = vpop.f32.mrb[0].mxu0
      %v791 = vadd.f32 0.0, %v790
      %v792 = vpop.f32.mrb[0].mxu0
      %v793 = vpop.f32.mrb[0].mxu0
      %v794 = vadd.f32 0.0, %v793
      %v795 = vpop.f32.mrb[0].mxu0
      %796 = vmatprep.mubr.bf16.mxu0 0
      %797 = vmatmul.mubr.bf16.gmra.mrb[0].mxu0 %v701
      %v798 = vpop.f32.mrb[0].mxu0
      %v799 = vadd.f32 0.0, %v798
      %v800 = vpop.f32.mrb[0].mxu0
      %v801 = vpop.f32.mrb[0].mxu0
      %v802 = vadd.f32 0.0, %v801
      %v803 = vpop.f32.mrb[0].mxu0
      %804 = vmatprep.mubr.bf16.mxu0 0
      %805 = vmatmul.mubr.bf16.gmra.mrb[0].mxu0 %v702
      %v806 = vpop.f32.mrb[0].mxu0
      %v807 = vadd.f32 0.0, %v806
      %v808 = vpop.f32.mrb[0].mxu0
      %v809 = vpop.f32.mrb[0].mxu0
      %v810 = vadd.f32 0.0, %v809
      %v811 = vpop.f32.mrb[0].mxu0
      %812 = vmatprep.mubr.bf16.mxu0 0
      %813 = vmatmul.mubr.bf16.gmra.mrb[0].mxu0 %v703
      %v814 = vpop.f32.mrb[0].mxu0
      %v815 = vadd.f32 0.0, %v814
      %v816 = vpop.f32.mrb[0].mxu0
      %v817 = vpop.f32.mrb[0].mxu0
      %v818 = vadd.f32 0.0, %v817
      %v819 = vpop.f32.mrb[0].mxu0
      %820 = vdwg.mxu0
      %v821 = vadd.f32 %v514, %v791
      %v822 = vadd.f32 %v517, %v794
      %v823 = vadd.f32 %v522, %v799
      %v824 = vadd.f32 %v525, %v802
      %v825 = vadd.f32 %v530, %v807
      %v826 = vadd.f32 %v533, %v810
      %v827 = vadd.f32 %v538, %v815
      %v828 = vadd.f32 %v541, %v818
      %s829 = scalar_lea.vmem %s211, 144
      %v830 = vld [vmem:[%s829] sm:$0xf]
      %v831 = vld [vmem:[%s829 + $0x8] sm:$0xf]
      %v832 = vld [vmem:[%s829 + $0x10] sm:$0xf]
      %v833 = vld [vmem:[%s829 + $0x18] sm:$0xf]
      %v834 = vld [vmem:[%s829 + $0x20] sm:$0xf]
      %v835 = vld [vmem:[%s829 + $0x28] sm:$0xf]
      %v836 = vld [vmem:[%s829 + $0x30] sm:$0xf]
      %v837 = vld [vmem:[%s829 + $0x38] sm:$0xf]
      %s838 = scalar_lea.vmem %s1, 192
      %v839 = vld [vmem:[%s838] sm:$0xf]
      %v840 = vld [vmem:[%s838 + $0x4] sm:$0xf]
      %v841 = vld [vmem:[%s838 + $0x8] sm:$0xf]
      %v842 = vld [vmem:[%s838 + $0xc] sm:$0xf]
      %v843 = vld [vmem:[%s838 + $0x10] sm:$0xf]
      %v844 = vld [vmem:[%s838 + $0x14] sm:$0xf]
      %v845 = vld [vmem:[%s838 + $0x18] sm:$0xf]
      %v846 = vld [vmem:[%s838 + $0x1c] sm:$0xf]
      %v847 = vld [vmem:[%s838 + $0x20] sm:$0xf]
      %v848 = vld [vmem:[%s838 + $0x24] sm:$0xf]
      %v849 = vld [vmem:[%s838 + $0x28] sm:$0xf]
      %v850 = vld [vmem:[%s838 + $0x2c] sm:$0xf]
      %v851 = vld [vmem:[%s838 + $0x30] sm:$0xf]
      %v852 = vld [vmem:[%s838 + $0x34] sm:$0xf]
      %v853 = vld [vmem:[%s838 + $0x38] sm:$0xf]
      %v854 = vld [vmem:[%s838 + $0x3c] sm:$0xf]
      %v863 = vunpack.c.l.b16 %v830
      %v864 = vunpack.c.l.b16 %v831
      %v865 = vunpack.c.l.b16 %v832
      %v866 = vunpack.c.l.b16 %v833
      %v867 = vunpack.c.l.b16 %v834
      %v868 = vunpack.c.l.b16 %v835
      %v869 = vunpack.c.l.b16 %v836
      %v870 = vunpack.c.l.b16 %v837
      %v871 = vpack.c.b16 %v864, %v863
      %v872 = vpack.c.b16 %v866, %v865
      %v873 = vpack.c.b16 %v868, %v867
      %v874 = vpack.c.b16 %v870, %v869
      %v895 = vunpack.c.l.b16 %v839
      %v896 = vunpack.c.l.b16 %v840
      %v897 = vunpack.c.l.b16 %v841
      %v898 = vunpack.c.l.b16 %v842
      %v899 = vunpack.c.l.b16 %v843
      %v900 = vunpack.c.l.b16 %v844
      %v901 = vunpack.c.l.b16 %v845
      %v902 = vunpack.c.l.b16 %v846
      %v903 = vunpack.c.l.b16 %v847
      %v904 = vunpack.c.l.b16 %v848
      %v905 = vunpack.c.l.b16 %v849
      %v906 = vunpack.c.l.b16 %v850
      %v907 = vunpack.c.l.b16 %v851
      %v908 = vunpack.c.l.b16 %v852
      %v909 = vunpack.c.l.b16 %v853
      %v910 = vunpack.c.l.b16 %v854
      %v911 = vpack.c.b16 %v896, %v895
      %v912 = vpack.c.b16 %v898, %v897
      %v913 = vpack.c.b16 %v900, %v899
      %v914 = vpack.c.b16 %v902, %v901
      %v915 = vpack.c.b16 %v904, %v903
      %v916 = vpack.c.b16 %v906, %v905
      %v917 = vpack.c.b16 %v908, %v907
      %v918 = vpack.c.b16 %v910, %v909
      %927 = vmatprep.subr.bf16.mxu0 0
      %928 = vmatpush1.bf16.msra.mxu0 %v911
      %929 = vmatprep.subr.bf16.mxu0 0
      %930 = vmatpush1.bf16.msra.mxu0 %v912
      %931 = vmatprep.subr.bf16.mxu0 0
      %932 = vmatpush1.bf16.msra.mxu0 %v913
      %933 = vmatprep.subr.bf16.mxu0 0
      %934 = vmatpush1.bf16.msra.mxu0 %v914
      %935 = vmatprep.subr.bf16.mxu0 0
      %936 = vmatpush1.bf16.msra.mxu0 %v915
      %937 = vmatprep.subr.bf16.mxu0 0
      %938 = vmatpush1.bf16.msra.mxu0 %v916
      %939 = vmatprep.subr.bf16.mxu0 0
      %940 = vmatpush1.bf16.msra.mxu0 %v917
      %941 = vmatprep.subr.bf16.mxu0 0
      %942 = vmatpush1.bf16.msra.mxu0 %v918
      %943 = vmatprep.subr.bf16.mxu0 0
      %944 = vmatpush1.bf16.msra.mxu0 0
      %945 = vmatprep.subr.bf16.mxu0 0
      %946 = vmatpush1.bf16.msra.mxu0 0
      %947 = vmatprep.subr.bf16.mxu0 0
      %948 = vmatpush1.bf16.msra.mxu0 0
      %949 = vmatprep.subr.bf16.mxu0 0
      %950 = vmatpush1.bf16.msra.mxu0 0
      %951 = vmatprep.subr.bf16.mxu0 0
      %952 = vmatpush1.bf16.msra.mxu0 0
      %953 = vmatprep.subr.bf16.mxu0 0
      %954 = vmatpush1.bf16.msra.mxu0 0
      %955 = vmatprep.subr.bf16.mxu0 0
      %956 = vmatpush1.bf16.msra.mxu0 0
      %957 = vmatprep.subr.bf16.mxu0 0
      %958 = vmatpush1.bf16.msra.mxu0 0
      %959 = vmatprep.mubr.bf16.mxu0 0
      %960 = vmatmul.mubr.bf16.gmra.mrb[0].mxu0 %v871
      %v961 = vpop.f32.mrb[0].mxu0
      %v962 = vadd.f32 0.0, %v961
      %v963 = vpop.f32.mrb[0].mxu0
      %v964 = vpop.f32.mrb[0].mxu0
      %v965 = vadd.f32 0.0, %v964
      %v966 = vpop.f32.mrb[0].mxu0
      %967 = vmatprep.mubr.bf16.mxu0 0
      %968 = vmatmul.mubr.bf16.gmra.mrb[0].mxu0 %v872
      %v969 = vpop.f32.mrb[0].mxu0
      %v970 = vadd.f32 0.0, %v969
      %v971 = vpop.f32.mrb[0].mxu0
      %v972 = vpop.f32.mrb[0].mxu0
      %v973 = vadd.f32 0.0, %v972
      %v974 = vpop.f32.mrb[0].mxu0
      %975 = vmatprep.mubr.bf16.mxu0 0
      %976 = vmatmul.mubr.bf16.gmra.mrb[0].mxu0 %v873
      %v977 = vpop.f32.mrb[0].mxu0
      %v978 = vadd.f32 0.0, %v977
      %v979 = vpop.f32.mrb[0].mxu0
      %v980 = vpop.f32.mrb[0].mxu0
      %v981 = vadd.f32 0.0, %v980
      %v982 = vpop.f32.mrb[0].mxu0
      %983 = vmatprep.mubr.bf16.mxu0 0
      %984 = vmatmul.mubr.bf16.gmra.mrb[0].mxu0 %v874
      %v985 = vpop.f32.mrb[0].mxu0
      %v986 = vadd.f32 0.0, %v985
      %v987 = vpop.f32.mrb[0].mxu0
      %v988 = vpop.f32.mrb[0].mxu0
      %v989 = vadd.f32 0.0, %v988
      %v990 = vpop.f32.mrb[0].mxu0
      %991 = vdwg.mxu0
      %v992 = vadd.f32 %v821, %v962
      %v993 = vadd.f32 %v822, %v965
      %v994 = vadd.f32 %v823, %v970
      %v995 = vadd.f32 %v824, %v973
      %v996 = vadd.f32 %v825, %v978
      %v997 = vadd.f32 %v826, %v981
      %v998 = vadd.f32 %v827, %v986
      %v999 = vadd.f32 %v828, %v989
      %s1000 = scalar_lea.vmem %s211, 216
      %v1001 = vld [vmem:[%s1000] sm:$0xf]
      %v1002 = vld [vmem:[%s1000 + $0x8] sm:$0xf]
      %v1003 = vld [vmem:[%s1000 + $0x10] sm:$0xf]
      %v1004 = vld [vmem:[%s1000 + $0x18] sm:$0xf]
      %v1005 = vld [vmem:[%s1000 + $0x20] sm:$0xf]
      %v1006 = vld [vmem:[%s1000 + $0x28] sm:$0xf]
      %v1007 = vld [vmem:[%s1000 + $0x30] sm:$0xf]
      %v1008 = vld [vmem:[%s1000 + $0x38] sm:$0xf]
      %s1009 = scalar_lea.vmem %s1, 256
      %v1010 = vld [vmem:[%s1009] sm:$0xf]
      %v1011 = vld [vmem:[%s1009 + $0x4] sm:$0xf]
      %v1012 = vld [vmem:[%s1009 + $0x8] sm:$0xf]
      %v1013 = vld [vmem:[%s1009 + $0xc] sm:$0xf]
      %v1014 = vld [vmem:[%s1009 + $0x10] sm:$0xf]
      %v1015 = vld [vmem:[%s1009 + $0x14] sm:$0xf]
      %v1016 = vld [vmem:[%s1009 + $0x18] sm:$0xf]
      %v1017 = vld [vmem:[%s1009 + $0x1c] sm:$0xf]
      %v1018 = vld [vmem:[%s1009 + $0x20] sm:$0xf]
      %v1019 = vld [vmem:[%s1009 + $0x24] sm:$0xf]
      %v1020 = vld [vmem:[%s1009 + $0x28] sm:$0xf]
      %v1021 = vld [vmem:[%s1009 + $0x2c] sm:$0xf]
      %v1022 = vld [vmem:[%s1009 + $0x30] sm:$0xf]
      %v1023 = vld [vmem:[%s1009 + $0x34] sm:$0xf]
      %v1024 = vld [vmem:[%s1009 + $0x38] sm:$0xf]
      %v1025 = vld [vmem:[%s1009 + $0x3c] sm:$0xf]
      %v1034 = vunpack.c.l.b16 %v1001
      %v1035 = vunpack.c.l.b16 %v1002
      %v1036 = vunpack.c.l.b16 %v1003
      %v1037 = vunpack.c.l.b16 %v1004
      %v1038 = vunpack.c.l.b16 %v1005
      %v1039 = vunpack.c.l.b16 %v1006
      %v1040 = vunpack.c.l.b16 %v1007
      %v1041 = vunpack.c.l.b16 %v1008
      %v1042 = vpack.c.b16 %v1035, %v1034
      %v1043 = vpack.c.b16 %v1037, %v1036
      %v1044 = vpack.c.b16 %v1039, %v1038
      %v1045 = vpack.c.b16 %v1041, %v1040
      %v1066 = vunpack.c.l.b16 %v1010
      %v1067 = vunpack.c.l.b16 %v1011
      %v1068 = vunpack.c.l.b16 %v1012
      %v1069 = vunpack.c.l.b16 %v1013
      %v1070 = vunpack.c.l.b16 %v1014
      %v1071 = vunpack.c.l.b16 %v1015
      %v1072 = vunpack.c.l.b16 %v1016
      %v1073 = vunpack.c.l.b16 %v1017
      %v1074 = vunpack.c.l.b16 %v1018
      %v1075 = vunpack.c.l.b16 %v1019
      %v1076 = vunpack.c.l.b16 %v1020
      %v1077 = vunpack.c.l.b16 %v1021
      %v1078 = vunpack.c.l.b16 %v1022
      %v1079 = vunpack.c.l.b16 %v1023
      %v1080 = vunpack.c.l.b16 %v1024
      %v1081 = vunpack.c.l.b16 %v1025
      %v1082 = vpack.c.b16 %v1067, %v1066
      %v1083 = vpack.c.b16 %v1069, %v1068
      %v1084 = vpack.c.b16 %v1071, %v1070
      %v1085 = vpack.c.b16 %v1073, %v1072
      %v1086 = vpack.c.b16 %v1075, %v1074
      %v1087 = vpack.c.b16 %v1077, %v1076
      %v1088 = vpack.c.b16 %v1079, %v1078
      %v1089 = vpack.c.b16 %v1081, %v1080
      %1098 = vmatprep.subr.bf16.mxu0 0
      %1099 = vmatpush1.bf16.msra.mxu0 %v1082
      %1100 = vmatprep.subr.bf16.mxu0 0
      %1101 = vmatpush1.bf16.msra.mxu0 %v1083
      %1102 = vmatprep.subr.bf16.mxu0 0
      %1103 = vmatpush1.bf16.msra.mxu0 %v1084
      %1104 = vmatprep.subr.bf16.mxu0 0
      %1105 = vmatpush1.bf16.msra.mxu0 %v1085
      %1106 = vmatprep.subr.bf16.mxu0 0
      %1107 = vmatpush1.bf16.msra.mxu0 %v1086
      %1108 = vmatprep.subr.bf16.mxu0 0
      %1109 = vmatpush1.bf16.msra.mxu0 %v1087
      %1110 = vmatprep.subr.bf16.mxu0 0
      %1111 = vmatpush1.bf16.msra.mxu0 %v1088
      %1112 = vmatprep.subr.bf16.mxu0 0
      %1113 = vmatpush1.bf16.msra.mxu0 %v1089
      %1114 = vmatprep.subr.bf16.mxu0 0
      %1115 = vmatpush1.bf16.msra.mxu0 0
      %1116 = vmatprep.subr.bf16.mxu0 0
      %1117 = vmatpush1.bf16.msra.mxu0 0
      %1118 = vmatprep.subr.bf16.mxu0 0
      %1119 = vmatpush1.bf16.msra.mxu0 0
      %1120 = vmatprep.subr.bf16.mxu0 0
      %1121 = vmatpush1.bf16.msra.mxu0 0
      %1122 = vmatprep.subr.bf16.mxu0 0
      %1123 = vmatpush1.bf16.msra.mxu0 0
      %1124 = vmatprep.subr.bf16.mxu0 0
      %1125 = vmatpush1.bf16.msra.mxu0 0
      %1126 = vmatprep.subr.bf16.mxu0 0
      %1127 = vmatpush1.bf16.msra.mxu0 0
      %1128 = vmatprep.subr.bf16.mxu0 0
      %1129 = vmatpush1.bf16.msra.mxu0 0
      %1130 = vmatprep.mubr.bf16.mxu0 0
      %1131 = vmatmul.mubr.bf16.gmra.mrb[0].mxu0 %v1042
      %v1132 = vpop.f32.mrb[0].mxu0
      %v1133 = vadd.f32 0.0, %v1132
      %v1134 = vpop.f32.mrb[0].mxu0
      %v1135 = vpop.f32.mrb[0].mxu0
      %v1136 = vadd.f32 0.0, %v1135
      %v1137 = vpop.f32.mrb[0].mxu0
      %1138 = vmatprep.mubr.bf16.mxu0 0
      %1139 = vmatmul.mubr.bf16.gmra.mrb[0].mxu0 %v1043
      %v1140 = vpop.f32.mrb[0].mxu0
      %v1141 = vadd.f32 0.0, %v1140
      %v1142 = vpop.f32.mrb[0].mxu0
      %v1143 = vpop.f32.mrb[0].mxu0
      %v1144 = vadd.f32 0.0, %v1143
      %v1145 = vpop.f32.mrb[0].mxu0
      %1146 = vmatprep.mubr.bf16.mxu0 0
      %1147 = vmatmul.mubr.bf16.gmra.mrb[0].mxu0 %v1044
      %v1148 = vpop.f32.mrb[0].mxu0
      %v1149 = vadd.f32 0.0, %v1148
      %v1150 = vpop.f32.mrb[0].mxu0
      %v1151 = vpop.f32.mrb[0].mxu0
      %v1152 = vadd.f32 0.0, %v1151
      %v1153 = vpop.f32.mrb[0].mxu0
      %1154 = vmatprep.mubr.bf16.mxu0 0
      %1155 = vmatmul.mubr.bf16.gmra.mrb[0].mxu0 %v1045
      %v1156 = vpop.f32.mrb[0].mxu0
      %v1157 = vadd.f32 0.0, %v1156
      %v1158 = vpop.f32.mrb[0].mxu0
      %v1159 = vpop.f32.mrb[0].mxu0
      %v1160 = vadd.f32 0.0, %v1159
      %v1161 = vpop.f32.mrb[0].mxu0
      %1162 = vdwg.mxu0
      %v1163 = vadd.f32 %v992, %v1133
      %v1164 = vadd.f32 %v993, %v1136
      %v1165 = vadd.f32 %v994, %v1141
      %v1166 = vadd.f32 %v995, %v1144
      %v1167 = vadd.f32 %v996, %v1149
      %v1168 = vadd.f32 %v997, %v1152
      %v1169 = vadd.f32 %v998, %v1157
      %v1170 = vadd.f32 %v999, %v1160
      %v1171 = vld [vmem:[%s829] sm:$0xf]
      %v1172 = vld [vmem:[%s829 + $0x4] sm:$0x1]
      %v1173 = vld [vmem:[%s829 + $0x8] sm:$0xf]
      %v1174 = vld [vmem:[%s829 + $0xc] sm:$0x1]
      %v1175 = vld [vmem:[%s829 + $0x10] sm:$0xf]
      %v1176 = vld [vmem:[%s829 + $0x14] sm:$0x1]
      %v1177 = vld [vmem:[%s829 + $0x18] sm:$0xf]
      %v1178 = vld [vmem:[%s829 + $0x1c] sm:$0x1]
      %v1179 = vld [vmem:[%s829 + $0x20] sm:$0xf]
      %v1180 = vld [vmem:[%s829 + $0x24] sm:$0x1]
      %v1181 = vld [vmem:[%s829 + $0x28] sm:$0xf]
      %v1182 = vld [vmem:[%s829 + $0x2c] sm:$0x1]
      %v1183 = vld [vmem:[%s829 + $0x30] sm:$0xf]
      %v1184 = vld [vmem:[%s829 + $0x34] sm:$0x1]
      %v1185 = vld [vmem:[%s829 + $0x38] sm:$0xf]
      %v1186 = vld [vmem:[%s829 + $0x3c] sm:$0x1]
      %v1188 = vshrl.u32 %v1171, 16
      %v1190 = vrot.slane %v1188, 4
      %v1191 = vshll.u32 %v1171, 16
      %v1193 = vrot.slane %v1191, 5
      %v1194 = vor.u32 %v1190, %v1193
      %v1195 = vrot.slane %v1194, 4
      %v1197 = vshll.u32 %v1172, 16
      %v1199 = vrot.slane %v1197, 5
      %v1200 = vsel %vm562, %v1195, %v1199
      %v1202 = vshrl.u32 %v1173, 16
      %v1204 = vrot.slane %v1202, 4
      %v1205 = vshll.u32 %v1173, 16
      %v1207 = vrot.slane %v1205, 5
      %v1208 = vor.u32 %v1204, %v1207
      %v1209 = vrot.slane %v1208, 4
      %v1211 = vshll.u32 %v1174, 16
      %v1213 = vrot.slane %v1211, 5
      %v1214 = vsel %vm562, %v1209, %v1213
      %v1216 = vshrl.u32 %v1175, 16
      %v1218 = vrot.slane %v1216, 4
      %v1219 = vshll.u32 %v1175, 16
      %v1221 = vrot.slane %v1219, 5
      %v1222 = vor.u32 %v1218, %v1221
      %v1223 = vrot.slane %v1222, 4
      %v1225 = vshll.u32 %v1176, 16
      %v1227 = vrot.slane %v1225, 5
      %v1228 = vsel %vm562, %v1223, %v1227
      %v1230 = vshrl.u32 %v1177, 16
      %v1232 = vrot.slane %v1230, 4
      %v1233 = vshll.u32 %v1177, 16
      %v1235 = vrot.slane %v1233, 5
      %v1236 = vor.u32 %v1232, %v1235
      %v1237 = vrot.slane %v1236, 4
      %v1239 = vshll.u32 %v1178, 16
      %v1241 = vrot.slane %v1239, 5
      %v1242 = vsel %vm562, %v1237, %v1241
      %v1244 = vshrl.u32 %v1179, 16
      %v1246 = vrot.slane %v1244, 4
      %v1247 = vshll.u32 %v1179, 16
      %v1249 = vrot.slane %v1247, 5
      %v1250 = vor.u32 %v1246, %v1249
      %v1251 = vrot.slane %v1250, 4
      %v1253 = vshll.u32 %v1180, 16
      %v1255 = vrot.slane %v1253, 5
      %v1256 = vsel %vm562, %v1251, %v1255
      %v1258 = vshrl.u32 %v1181, 16
      %v1260 = vrot.slane %v1258, 4
      %v1261 = vshll.u32 %v1181, 16
      %v1263 = vrot.slane %v1261, 5
      %v1264 = vor.u32 %v1260, %v1263
      %v1265 = vrot.slane %v1264, 4
      %v1267 = vshll.u32 %v1182, 16
      %v1269 = vrot.slane %v1267, 5
      %v1270 = vsel %vm562, %v1265, %v1269
      %v1272 = vshrl.u32 %v1183, 16
      %v1274 = vrot.slane %v1272, 4
      %v1275 = vshll.u32 %v1183, 16
      %v1277 = vrot.slane %v1275, 5
      %v1278 = vor.u32 %v1274, %v1277
      %v1279 = vrot.slane %v1278, 4
      %v1281 = vshll.u32 %v1184, 16
      %v1283 = vrot.slane %v1281, 5
      %v1284 = vsel %vm562, %v1279, %v1283
      %v1286 = vshrl.u32 %v1185, 16
      %v1288 = vrot.slane %v1286, 4
      %v1289 = vshll.u32 %v1185, 16
      %v1291 = vrot.slane %v1289, 5
      %v1292 = vor.u32 %v1288, %v1291
      %v1293 = vrot.slane %v1292, 4
      %v1295 = vshll.u32 %v1186, 16
      %v1297 = vrot.slane %v1295, 5
      %v1298 = vsel %vm562, %v1293, %v1297
      %s1299 = scalar_lea.vmem %s1, 320
      %v1300 = vld [vmem:[%s1299] sm:$0xf]
      %v1301 = vld [vmem:[%s1299 + $0x4] sm:$0xf]
      %v1302 = vld [vmem:[%s1299 + $0x8] sm:$0xf]
      %v1303 = vld [vmem:[%s1299 + $0xc] sm:$0xf]
      %v1304 = vld [vmem:[%s1299 + $0x10] sm:$0xf]
      %v1305 = vld [vmem:[%s1299 + $0x14] sm:$0xf]
      %v1306 = vld [vmem:[%s1299 + $0x18] sm:$0xf]
      %v1307 = vld [vmem:[%s1299 + $0x1c] sm:$0xf]
      %v1308 = vld [vmem:[%s1299 + $0x20] sm:$0xf]
      %v1309 = vld [vmem:[%s1299 + $0x24] sm:$0xf]
      %v1310 = vld [vmem:[%s1299 + $0x28] sm:$0xf]
      %v1311 = vld [vmem:[%s1299 + $0x2c] sm:$0xf]
      %v1312 = vld [vmem:[%s1299 + $0x30] sm:$0xf]
      %v1313 = vld [vmem:[%s1299 + $0x34] sm:$0xf]
      %v1314 = vld [vmem:[%s1299 + $0x38] sm:$0xf]
      %v1315 = vld [vmem:[%s1299 + $0x3c] sm:$0xf]
      %v1316 = vunpack.c.l.b16 %v1200
      %v1317 = vunpack.c.l.b16 %v1214
      %v1318 = vunpack.c.l.b16 %v1228
      %v1319 = vunpack.c.l.b16 %v1242
      %v1320 = vunpack.c.l.b16 %v1256
      %v1321 = vunpack.c.l.b16 %v1270
      %v1322 = vunpack.c.l.b16 %v1284
      %v1323 = vunpack.c.l.b16 %v1298
      %v1324 = vpack.c.b16 %v1317, %v1316
      %v1325 = vpack.c.b16 %v1319, %v1318
      %v1326 = vpack.c.b16 %v1321, %v1320
      %v1327 = vpack.c.b16 %v1323, %v1322
      %v1348 = vunpack.c.l.b16 %v1300
      %v1349 = vunpack.c.l.b16 %v1301
      %v1350 = vunpack.c.l.b16 %v1302
      %v1351 = vunpack.c.l.b16 %v1303
      %v1352 = vunpack.c.l.b16 %v1304
      %v1353 = vunpack.c.l.b16 %v1305
      %v1354 = vunpack.c.l.b16 %v1306
      %v1355 = vunpack.c.l.b16 %v1307
      %v1356 = vunpack.c.l.b16 %v1308
      %v1357 = vunpack.c.l.b16 %v1309
      %v1358 = vunpack.c.l.b16 %v1310
      %v1359 = vunpack.c.l.b16 %v1311
      %v1360 = vunpack.c.l.b16 %v1312
      %v1361 = vunpack.c.l.b16 %v1313
      %v1362 = vunpack.c.l.b16 %v1314
      %v1363 = vunpack.c.l.b16 %v1315
      %v1364 = vpack.c.b16 %v1349, %v1348
      %v1365 = vpack.c.b16 %v1351, %v1350
      %v1366 = vpack.c.b16 %v1353, %v1352
      %v1367 = vpack.c.b16 %v1355, %v1354
      %v1368 = vpack.c.b16 %v1357, %v1356
      %v1369 = vpack.c.b16 %v1359, %v1358
      %v1370 = vpack.c.b16 %v1361, %v1360
      %v1371 = vpack.c.b16 %v1363, %v1362
      %1380 = vmatprep.subr.bf16.mxu0 0
      %1381 = vmatpush1.bf16.msra.mxu0 %v1364
      %1382 = vmatprep.subr.bf16.mxu0 0
      %1383 = vmatpush1.bf16.msra.mxu0 %v1365
      %1384 = vmatprep.subr.bf16.mxu0 0
      %1385 = vmatpush1.bf16.msra.mxu0 %v1366
      %1386 = vmatprep.subr.bf16.mxu0 0
      %1387 = vmatpush1.bf16.msra.mxu0 %v1367
      %1388 = vmatprep.subr.bf16.mxu0 0
      %1389 = vmatpush1.bf16.msra.mxu0 %v1368
      %1390 = vmatprep.subr.bf16.mxu0 0
      %1391 = vmatpush1.bf16.msra.mxu0 %v1369
      %1392 = vmatprep.subr.bf16.mxu0 0
      %1393 = vmatpush1.bf16.msra.mxu0 %v1370
      %1394 = vmatprep.subr.bf16.mxu0 0
      %1395 = vmatpush1.bf16.msra.mxu0 %v1371
      %1396 = vmatprep.subr.bf16.mxu0 0
      %1397 = vmatpush1.bf16.msra.mxu0 0
      %1398 = vmatprep.subr.bf16.mxu0 0
      %1399 = vmatpush1.bf16.msra.mxu0 0
      %1400 = vmatprep.subr.bf16.mxu0 0
      %1401 = vmatpush1.bf16.msra.mxu0 0
      %1402 = vmatprep.subr.bf16.mxu0 0
      %1403 = vmatpush1.bf16.msra.mxu0 0
      %1404 = vmatprep.subr.bf16.mxu0 0
      %1405 = vmatpush1.bf16.msra.mxu0 0
      %1406 = vmatprep.subr.bf16.mxu0 0
      %1407 = vmatpush1.bf16.msra.mxu0 0
      %1408 = vmatprep.subr.bf16.mxu0 0
      %1409 = vmatpush1.bf16.msra.mxu0 0
      %1410 = vmatprep.subr.bf16.mxu0 0
      %1411 = vmatpush1.bf16.msra.mxu0 0
      %1412 = vmatprep.mubr.bf16.mxu0 0
      %1413 = vmatmul.mubr.bf16.gmra.mrb[0].mxu0 %v1324
      %v1414 = vpop.f32.mrb[0].mxu0
      %v1415 = vadd.f32 0.0, %v1414
      %v1416 = vpop.f32.mrb[0].mxu0
      %v1417 = vpop.f32.mrb[0].mxu0
      %v1418 = vadd.f32 0.0, %v1417
      %v1419 = vpop.f32.mrb[0].mxu0
      %1420 = vmatprep.mubr.bf16.mxu0 0
      %1421 = vmatmul.mubr.bf16.gmra.mrb[0].mxu0 %v1325
      %v1422 = vpop.f32.mrb[0].mxu0
      %v1423 = vadd.f32 0.0, %v1422
      %v1424 = vpop.f32.mrb[0].mxu0
      %v1425 = vpop.f32.mrb[0].mxu0
      %v1426 = vadd.f32 0.0, %v1425
      %v1427 = vpop.f32.mrb[0].mxu0
      %1428 = vmatprep.mubr.bf16.mxu0 0
      %1429 = vmatmul.mubr.bf16.gmra.mrb[0].mxu0 %v1326
      %v1430 = vpop.f32.mrb[0].mxu0
      %v1431 = vadd.f32 0.0, %v1430
      %v1432 = vpop.f32.mrb[0].mxu0
      %v1433 = vpop.f32.mrb[0].mxu0
      %v1434 = vadd.f32 0.0, %v1433
      %v1435 = vpop.f32.mrb[0].mxu0
      %1436 = vmatprep.mubr.bf16.mxu0 0
      %1437 = vmatmul.mubr.bf16.gmra.mrb[0].mxu0 %v1327
      %v1438 = vpop.f32.mrb[0].mxu0
      %v1439 = vadd.f32 0.0, %v1438
      %v1440 = vpop.f32.mrb[0].mxu0
      %v1441 = vpop.f32.mrb[0].mxu0
      %v1442 = vadd.f32 0.0, %v1441
      %v1443 = vpop.f32.mrb[0].mxu0
      %1444 = vdwg.mxu0
      %v1445 = vadd.f32 %v1163, %v1415
      %v1446 = vadd.f32 %v1164, %v1418
      %v1447 = vadd.f32 %v1165, %v1423
      %v1448 = vadd.f32 %v1166, %v1426
      %v1449 = vadd.f32 %v1167, %v1431
      %v1450 = vadd.f32 %v1168, %v1434
      %v1451 = vadd.f32 %v1169, %v1439
      %v1452 = vadd.f32 %v1170, %v1442
      %s1453 = scalar_lea.vmem %s211, 8
      %v1454 = vld [vmem:[%s1453] sm:$0xf]
      %v1455 = vld [vmem:[%s1453 + $0x8] sm:$0xf]
      %v1456 = vld [vmem:[%s1453 + $0x10] sm:$0xf]
      %v1457 = vld [vmem:[%s1453 + $0x18] sm:$0xf]
      %v1458 = vld [vmem:[%s1453 + $0x20] sm:$0xf]
      %v1459 = vld [vmem:[%s1453 + $0x28] sm:$0xf]
      %v1460 = vld [vmem:[%s1453 + $0x30] sm:$0xf]
      %v1461 = vld [vmem:[%s1453 + $0x38] sm:$0xf]
      %s1462 = scalar_lea.vmem %s1, 384
      %v1463 = vld [vmem:[%s1462] sm:$0xf]
      %v1464 = vld [vmem:[%s1462 + $0x4] sm:$0xf]
      %v1465 = vld [vmem:[%s1462 + $0x8] sm:$0xf]
      %v1466 = vld [vmem:[%s1462 + $0xc] sm:$0xf]
      %v1467 = vld [vmem:[%s1462 + $0x10] sm:$0xf]
      %v1468 = vld [vmem:[%s1462 + $0x14] sm:$0xf]
      %v1469 = vld [vmem:[%s1462 + $0x18] sm:$0xf]
      %v1470 = vld [vmem:[%s1462 + $0x1c] sm:$0xf]
      %v1471 = vld [vmem:[%s1462 + $0x20] sm:$0xf]
      %v1472 = vld [vmem:[%s1462 + $0x24] sm:$0xf]
      %v1473 = vld [vmem:[%s1462 + $0x28] sm:$0xf]
      %v1474 = vld [vmem:[%s1462 + $0x2c] sm:$0xf]
      %v1475 = vld [vmem:[%s1462 + $0x30] sm:$0xf]
      %v1476 = vld [vmem:[%s1462 + $0x34] sm:$0xf]
      %v1477 = vld [vmem:[%s1462 + $0x38] sm:$0xf]
      %v1478 = vld [vmem:[%s1462 + $0x3c] sm:$0xf]
      %v1487 = vunpack.c.l.b16 %v1454
      %v1488 = vunpack.c.l.b16 %v1455
      %v1489 = vunpack.c.l.b16 %v1456
      %v1490 = vunpack.c.l.b16 %v1457
      %v1491 = vunpack.c.l.b16 %v1458
      %v1492 = vunpack.c.l.b16 %v1459
      %v1493 = vunpack.c.l.b16 %v1460
      %v1494 = vunpack.c.l.b16 %v1461
      %v1495 = vpack.c.b16 %v1488, %v1487
      %v1496 = vpack.c.b16 %v1490, %v1489
      %v1497 = vpack.c.b16 %v1492, %v1491
      %v1498 = vpack.c.b16 %v1494, %v1493
      %v1519 = vunpack.c.l.b16 %v1463
      %v1520 = vunpack.c.l.b16 %v1464
      %v1521 = vunpack.c.l.b16 %v1465
      %v1522 = vunpack.c.l.b16 %v1466
      %v1523 = vunpack.c.l.b16 %v1467
      %v1524 = vunpack.c.l.b16 %v1468
      %v1525 = vunpack.c.l.b16 %v1469
      %v1526 = vunpack.c.l.b16 %v1470
      %v1527 = vunpack.c.l.b16 %v1471
      %v1528 = vunpack.c.l.b16 %v1472
      %v1529 = vunpack.c.l.b16 %v1473
      %v1530 = vunpack.c.l.b16 %v1474
      %v1531 = vunpack.c.l.b16 %v1475
      %v1532 = vunpack.c.l.b16 %v1476
      %v1533 = vunpack.c.l.b16 %v1477
      %v1534 = vunpack.c.l.b16 %v1478
      %v1535 = vpack.c.b16 %v1520, %v1519
      %v1536 = vpack.c.b16 %v1522, %v1521
      %v1537 = vpack.c.b16 %v1524, %v1523
      %v1538 = vpack.c.b16 %v1526, %v1525
      %v1539 = vpack.c.b16 %v1528, %v1527
      %v1540 = vpack.c.b16 %v1530, %v1529
      %v1541 = vpack.c.b16 %v1532, %v1531
      %v1542 = vpack.c.b16 %v1534, %v1533
      %1551 = vmatprep.subr.bf16.mxu0 0
      %1552 = vmatpush1.bf16.msra.mxu0 %v1535
      %1553 = vmatprep.subr.bf16.mxu0 0
      %1554 = vmatpush1.bf16.msra.mxu0 %v1536
      %1555 = vmatprep.subr.bf16.mxu0 0
      %1556 = vmatpush1.bf16.msra.mxu0 %v1537
      %1557 = vmatprep.subr.bf16.mxu0 0
      %1558 = vmatpush1.bf16.msra.mxu0 %v1538
      %1559 = vmatprep.subr.bf16.mxu0 0
      %1560 = vmatpush1.bf16.msra.mxu0 %v1539
      %1561 = vmatprep.subr.bf16.mxu0 0
      %1562 = vmatpush1.bf16.msra.mxu0 %v1540
      %1563 = vmatprep.subr.bf16.mxu0 0
      %1564 = vmatpush1.bf16.msra.mxu0 %v1541
      %1565 = vmatprep.subr.bf16.mxu0 0
      %1566 = vmatpush1.bf16.msra.mxu0 %v1542
      %1567 = vmatprep.subr.bf16.mxu0 0
      %1568 = vmatpush1.bf16.msra.mxu0 0
      %1569 = vmatprep.subr.bf16.mxu0 0
      %1570 = vmatpush1.bf16.msra.mxu0 0
      %1571 = vmatprep.subr.bf16.mxu0 0
      %1572 = vmatpush1.bf16.msra.mxu0 0
      %1573 = vmatprep.subr.bf16.mxu0 0
      %1574 = vmatpush1.bf16.msra.mxu0 0
      %1575 = vmatprep.subr.bf16.mxu0 0
      %1576 = vmatpush1.bf16.msra.mxu0 0
      %1577 = vmatprep.subr.bf16.mxu0 0
      %1578 = vmatpush1.bf16.msra.mxu0 0
      %1579 = vmatprep.subr.bf16.mxu0 0
      %1580 = vmatpush1.bf16.msra.mxu0 0
      %1581 = vmatprep.subr.bf16.mxu0 0
      %1582 = vmatpush1.bf16.msra.mxu0 0
      %1583 = vmatprep.mubr.bf16.mxu0 0
      %1584 = vmatmul.mubr.bf16.gmra.mrb[0].mxu0 %v1495
      %v1585 = vpop.f32.mrb[0].mxu0
      %v1586 = vadd.f32 0.0, %v1585
      %v1587 = vpop.f32.mrb[0].mxu0
      %v1588 = vpop.f32.mrb[0].mxu0
      %v1589 = vadd.f32 0.0, %v1588
      %v1590 = vpop.f32.mrb[0].mxu0
      %1591 = vmatprep.mubr.bf16.mxu0 0
      %1592 = vmatmul.mubr.bf16.gmra.mrb[0].mxu0 %v1496
      %v1593 = vpop.f32.mrb[0].mxu0
      %v1594 = vadd.f32 0.0, %v1593
      %v1595 = vpop.f32.mrb[0].mxu0
      %v1596 = vpop.f32.mrb[0].mxu0
      %v1597 = vadd.f32 0.0, %v1596
      %v1598 = vpop.f32.mrb[0].mxu0
      %1599 = vmatprep.mubr.bf16.mxu0 0
      %1600 = vmatmul.mubr.bf16.gmra.mrb[0].mxu0 %v1497
      %v1601 = vpop.f32.mrb[0].mxu0
      %v1602 = vadd.f32 0.0, %v1601
      %v1603 = vpop.f32.mrb[0].mxu0
      %v1604 = vpop.f32.mrb[0].mxu0
      %v1605 = vadd.f32 0.0, %v1604
      %v1606 = vpop.f32.mrb[0].mxu0
      %1607 = vmatprep.mubr.bf16.mxu0 0
      %1608 = vmatmul.mubr.bf16.gmra.mrb[0].mxu0 %v1498
      %v1609 = vpop.f32.mrb[0].mxu0
      %v1610 = vadd.f32 0.0, %v1609
      %v1611 = vpop.f32.mrb[0].mxu0
      %v1612 = vpop.f32.mrb[0].mxu0
      %v1613 = vadd.f32 0.0, %v1612
      %v1614 = vpop.f32.mrb[0].mxu0
      %1615 = vdwg.mxu0
      %v1616 = vadd.f32 %v1445, %v1586
      %v1617 = vadd.f32 %v1446, %v1589
      %v1618 = vadd.f32 %v1447, %v1594
      %v1619 = vadd.f32 %v1448, %v1597
      %v1620 = vadd.f32 %v1449, %v1602
      %v1621 = vadd.f32 %v1450, %v1605
      %v1622 = vadd.f32 %v1451, %v1610
      %v1623 = vadd.f32 %v1452, %v1613
      %s1624 = scalar_lea.vmem %s211, 80
      %v1625 = vld [vmem:[%s1624] sm:$0xf]
      %v1626 = vld [vmem:[%s1624 + $0x8] sm:$0xf]
      %v1627 = vld [vmem:[%s1624 + $0x10] sm:$0xf]
      %v1628 = vld [vmem:[%s1624 + $0x18] sm:$0xf]
      %v1629 = vld [vmem:[%s1624 + $0x20] sm:$0xf]
      %v1630 = vld [vmem:[%s1624 + $0x28] sm:$0xf]
      %v1631 = vld [vmem:[%s1624 + $0x30] sm:$0xf]
      %v1632 = vld [vmem:[%s1624 + $0x38] sm:$0xf]
      %s1633 = scalar_lea.vmem %s1, 448
      %v1634 = vld [vmem:[%s1633] sm:$0xf]
      %v1635 = vld [vmem:[%s1633 + $0x4] sm:$0xf]
      %v1636 = vld [vmem:[%s1633 + $0x8] sm:$0xf]
      %v1637 = vld [vmem:[%s1633 + $0xc] sm:$0xf]
      %v1638 = vld [vmem:[%s1633 + $0x10] sm:$0xf]
      %v1639 = vld [vmem:[%s1633 + $0x14] sm:$0xf]
      %v1640 = vld [vmem:[%s1633 + $0x18] sm:$0xf]
      %v1641 = vld [vmem:[%s1633 + $0x1c] sm:$0xf]
      %v1642 = vld [vmem:[%s1633 + $0x20] sm:$0xf]
      %v1643 = vld [vmem:[%s1633 + $0x24] sm:$0xf]
      %v1644 = vld [vmem:[%s1633 + $0x28] sm:$0xf]
      %v1645 = vld [vmem:[%s1633 + $0x2c] sm:$0xf]
      %v1646 = vld [vmem:[%s1633 + $0x30] sm:$0xf]
      %v1647 = vld [vmem:[%s1633 + $0x34] sm:$0xf]
      %v1648 = vld [vmem:[%s1633 + $0x38] sm:$0xf]
      %v1649 = vld [vmem:[%s1633 + $0x3c] sm:$0xf]
      %v1658 = vunpack.c.l.b16 %v1625
      %v1659 = vunpack.c.l.b16 %v1626
      %v1660 = vunpack.c.l.b16 %v1627
      %v1661 = vunpack.c.l.b16 %v1628
      %v1662 = vunpack.c.l.b16 %v1629
      %v1663 = vunpack.c.l.b16 %v1630
      %v1664 = vunpack.c.l.b16 %v1631
      %v1665 = vunpack.c.l.b16 %v1632
      %v1666 = vpack.c.b16 %v1659, %v1658
      %v1667 = vpack.c.b16 %v1661, %v1660
      %v1668 = vpack.c.b16 %v1663, %v1662
      %v1669 = vpack.c.b16 %v1665, %v1664
      %v1690 = vunpack.c.l.b16 %v1634
      %v1691 = vunpack.c.l.b16 %v1635
      %v1692 = vunpack.c.l.b16 %v1636
      %v1693 = vunpack.c.l.b16 %v1637
      %v1694 = vunpack.c.l.b16 %v1638
      %v1695 = vunpack.c.l.b16 %v1639
      %v1696 = vunpack.c.l.b16 %v1640
      %v1697 = vunpack.c.l.b16 %v1641
      %v1698 = vunpack.c.l.b16 %v1642
      %v1699 = vunpack.c.l.b16 %v1643
      %v1700 = vunpack.c.l.b16 %v1644
      %v1701 = vunpack.c.l.b16 %v1645
      %v1702 = vunpack.c.l.b16 %v1646
      %v1703 = vunpack.c.l.b16 %v1647
      %v1704 = vunpack.c.l.b16 %v1648
      %v1705 = vunpack.c.l.b16 %v1649
      %v1706 = vpack.c.b16 %v1691, %v1690
      %v1707 = vpack.c.b16 %v1693, %v1692
      %v1708 = vpack.c.b16 %v1695, %v1694
      %v1709 = vpack.c.b16 %v1697, %v1696
      %v1710 = vpack.c.b16 %v1699, %v1698
      %v1711 = vpack.c.b16 %v1701, %v1700
      %v1712 = vpack.c.b16 %v1703, %v1702
      %v1713 = vpack.c.b16 %v1705, %v1704
      %1722 = vmatprep.subr.bf16.mxu0 0
      %1723 = vmatpush1.bf16.msra.mxu0 %v1706
      %1724 = vmatprep.subr.bf16.mxu0 0
      %1725 = vmatpush1.bf16.msra.mxu0 %v1707
      %1726 = vmatprep.subr.bf16.mxu0 0
      %1727 = vmatpush1.bf16.msra.mxu0 %v1708
      %1728 = vmatprep.subr.bf16.mxu0 0
      %1729 = vmatpush1.bf16.msra.mxu0 %v1709
      %1730 = vmatprep.subr.bf16.mxu0 0
      %1731 = vmatpush1.bf16.msra.mxu0 %v1710
      %1732 = vmatprep.subr.bf16.mxu0 0
      %1733 = vmatpush1.bf16.msra.mxu0 %v1711
      %1734 = vmatprep.subr.bf16.mxu0 0
      %1735 = vmatpush1.bf16.msra.mxu0 %v1712
      %1736 = vmatprep.subr.bf16.mxu0 0
      %1737 = vmatpush1.bf16.msra.mxu0 %v1713
      %1738 = vmatprep.subr.bf16.mxu0 0
      %1739 = vmatpush1.bf16.msra.mxu0 0
      %1740 = vmatprep.subr.bf16.mxu0 0
      %1741 = vmatpush1.bf16.msra.mxu0 0
      %1742 = vmatprep.subr.bf16.mxu0 0
      %1743 = vmatpush1.bf16.msra.mxu0 0
      %1744 = vmatprep.subr.bf16.mxu0 0
      %1745 = vmatpush1.bf16.msra.mxu0 0
      %1746 = vmatprep.subr.bf16.mxu0 0
      %1747 = vmatpush1.bf16.msra.mxu0 0
      %1748 = vmatprep.subr.bf16.mxu0 0
      %1749 = vmatpush1.bf16.msra.mxu0 0
      %1750 = vmatprep.subr.bf16.mxu0 0
      %1751 = vmatpush1.bf16.msra.mxu0 0
      %1752 = vmatprep.subr.bf16.mxu0 0
      %1753 = vmatpush1.bf16.msra.mxu0 0
      %1754 = vmatprep.mubr.bf16.mxu0 0
      %1755 = vmatmul.mubr.bf16.gmra.mrb[0].mxu0 %v1666
      %v1756 = vpop.f32.mrb[0].mxu0
      %v1757 = vadd.f32 0.0, %v1756
      %v1758 = vpop.f32.mrb[0].mxu0
      %v1759 = vpop.f32.mrb[0].mxu0
      %v1760 = vadd.f32 0.0, %v1759
      %v1761 = vpop.f32.mrb[0].mxu0
      %1762 = vmatprep.mubr.bf16.mxu0 0
      %1763 = vmatmul.mubr.bf16.gmra.mrb[0].mxu0 %v1667
      %v1764 = vpop.f32.mrb[0].mxu0
      %v1765 = vadd.f32 0.0, %v1764
      %v1766 = vpop.f32.mrb[0].mxu0
      %v1767 = vpop.f32.mrb[0].mxu0
      %v1768 = vadd.f32 0.0, %v1767
      %v1769 = vpop.f32.mrb[0].mxu0
      %1770 = vmatprep.mubr.bf16.mxu0 0
      %1771 = vmatmul.mubr.bf16.gmra.mrb[0].mxu0 %v1668
      %v1772 = vpop.f32.mrb[0].mxu0
      %v1773 = vadd.f32 0.0, %v1772
      %v1774 = vpop.f32.mrb[0].mxu0
      %v1775 = vpop.f32.mrb[0].mxu0
      %v1776 = vadd.f32 0.0, %v1775
      %v1777 = vpop.f32.mrb[0].mxu0
      %1778 = vmatprep.mubr.bf16.mxu0 0
      %1779 = vmatmul.mubr.bf16.gmra.mrb[0].mxu0 %v1669
      %v1780 = vpop.f32.mrb[0].mxu0
      %v1781 = vadd.f32 0.0, %v1780
      %v1782 = vpop.f32.mrb[0].mxu0
      %v1783 = vpop.f32.mrb[0].mxu0
      %v1784 = vadd.f32 0.0, %v1783
      %v1785 = vpop.f32.mrb[0].mxu0
      %1786 = vdwg.mxu0
      %v1787 = vadd.f32 %v1616, %v1757
      %v1788 = vadd.f32 %v1617, %v1760
      %v1789 = vadd.f32 %v1618, %v1765
      %v1790 = vadd.f32 %v1619, %v1768
      %v1791 = vadd.f32 %v1620, %v1773
      %v1792 = vadd.f32 %v1621, %v1776
      %v1793 = vadd.f32 %v1622, %v1781
      %v1794 = vadd.f32 %v1623, %v1784
      %v1795 = vld [vmem:[%s1453] sm:$0xf]
      %v1796 = vld [vmem:[%s1453 + $0x4] sm:$0x1]
      %v1797 = vld [vmem:[%s1453 + $0x8] sm:$0xf]
      %v1798 = vld [vmem:[%s1453 + $0xc] sm:$0x1]
      %v1799 = vld [vmem:[%s1453 + $0x10] sm:$0xf]
      %v1800 = vld [vmem:[%s1453 + $0x14] sm:$0x1]
      %v1801 = vld [vmem:[%s1453 + $0x18] sm:$0xf]
      %v1802 = vld [vmem:[%s1453 + $0x1c] sm:$0x1]
      %v1803 = vld [vmem:[%s1453 + $0x20] sm:$0xf]
      %v1804 = vld [vmem:[%s1453 + $0x24] sm:$0x1]
      %v1805 = vld [vmem:[%s1453 + $0x28] sm:$0xf]
      %v1806 = vld [vmem:[%s1453 + $0x2c] sm:$0x1]
      %v1807 = vld [vmem:[%s1453 + $0x30] sm:$0xf]
      %v1808 = vld [vmem:[%s1453 + $0x34] sm:$0x1]
      %v1809 = vld [vmem:[%s1453 + $0x38] sm:$0xf]
      %v1810 = vld [vmem:[%s1453 + $0x3c] sm:$0x1]
      %v1812 = vshrl.u32 %v1795, 16
      %v1814 = vrot.slane %v1812, 4
      %v1815 = vshll.u32 %v1795, 16
      %v1817 = vrot.slane %v1815, 5
      %v1818 = vor.u32 %v1814, %v1817
      %v1819 = vrot.slane %v1818, 4
      %v1821 = vshll.u32 %v1796, 16
      %v1823 = vrot.slane %v1821, 5
      %v1824 = vsel %vm562, %v1819, %v1823
      %v1826 = vshrl.u32 %v1797, 16
      %v1828 = vrot.slane %v1826, 4
      %v1829 = vshll.u32 %v1797, 16
      %v1831 = vrot.slane %v1829, 5
      %v1832 = vor.u32 %v1828, %v1831
      %v1833 = vrot.slane %v1832, 4
      %v1835 = vshll.u32 %v1798, 16
      %v1837 = vrot.slane %v1835, 5
      %v1838 = vsel %vm562, %v1833, %v1837
      %v1840 = vshrl.u32 %v1799, 16
      %v1842 = vrot.slane %v1840, 4
      %v1843 = vshll.u32 %v1799, 16
      %v1845 = vrot.slane %v1843, 5
      %v1846 = vor.u32 %v1842, %v1845
      %v1847 = vrot.slane %v1846, 4
      %v1849 = vshll.u32 %v1800, 16
      %v1851 = vrot.slane %v1849, 5
      %v1852 = vsel %vm562, %v1847, %v1851
      %v1854 = vshrl.u32 %v1801, 16
      %v1856 = vrot.slane %v1854, 4
      %v1857 = vshll.u32 %v1801, 16
      %v1859 = vrot.slane %v1857, 5
      %v1860 = vor.u32 %v1856, %v1859
      %v1861 = vrot.slane %v1860, 4
      %v1863 = vshll.u32 %v1802, 16
      %v1865 = vrot.slane %v1863, 5
      %v1866 = vsel %vm562, %v1861, %v1865
      %v1868 = vshrl.u32 %v1803, 16
      %v1870 = vrot.slane %v1868, 4
      %v1871 = vshll.u32 %v1803, 16
      %v1873 = vrot.slane %v1871, 5
      %v1874 = vor.u32 %v1870, %v1873
      %v1875 = vrot.slane %v1874, 4
      %v1877 = vshll.u32 %v1804, 16
      %v1879 = vrot.slane %v1877, 5
      %v1880 = vsel %vm562, %v1875, %v1879
      %v1882 = vshrl.u32 %v1805, 16
      %v1884 = vrot.slane %v1882, 4
      %v1885 = vshll.u32 %v1805, 16
      %v1887 = vrot.slane %v1885, 5
      %v1888 = vor.u32 %v1884, %v1887
      %v1889 = vrot.slane %v1888, 4
      %v1891 = vshll.u32 %v1806, 16
      %v1893 = vrot.slane %v1891, 5
      %v1894 = vsel %vm562, %v1889, %v1893
      %v1896 = vshrl.u32 %v1807, 16
      %v1898 = vrot.slane %v1896, 4
      %v1899 = vshll.u32 %v1807, 16
      %v1901 = vrot.slane %v1899, 5
      %v1902 = vor.u32 %v1898, %v1901
      %v1903 = vrot.slane %v1902, 4
      %v1905 = vshll.u32 %v1808, 16
      %v1907 = vrot.slane %v1905, 5
      %v1908 = vsel %vm562, %v1903, %v1907
      %v1910 = vshrl.u32 %v1809, 16
      %v1912 = vrot.slane %v1910, 4
      %v1913 = vshll.u32 %v1809, 16
      %v1915 = vrot.slane %v1913, 5
      %v1916 = vor.u32 %v1912, %v1915
      %v1917 = vrot.slane %v1916, 4
      %v1919 = vshll.u32 %v1810, 16
      %v1921 = vrot.slane %v1919, 5
      %v1922 = vsel %vm562, %v1917, %v1921
      %s1923 = scalar_lea.vmem %s1, 512
      %v1924 = vld [vmem:[%s1923] sm:$0xf]
      %v1925 = vld [vmem:[%s1923 + $0x4] sm:$0xf]
      %v1926 = vld [vmem:[%s1923 + $0x8] sm:$0xf]
      %v1927 = vld [vmem:[%s1923 + $0xc] sm:$0xf]
      %v1928 = vld [vmem:[%s1923 + $0x10] sm:$0xf]
      %v1929 = vld [vmem:[%s1923 + $0x14] sm:$0xf]
      %v1930 = vld [vmem:[%s1923 + $0x18] sm:$0xf]
      %v1931 = vld [vmem:[%s1923 + $0x1c] sm:$0xf]
      %v1932 = vld [vmem:[%s1923 + $0x20] sm:$0xf]
      %v1933 = vld [vmem:[%s1923 + $0x24] sm:$0xf]
      %v1934 = vld [vmem:[%s1923 + $0x28] sm:$0xf]
      %v1935 = vld [vmem:[%s1923 + $0x2c] sm:$0xf]
      %v1936 = vld [vmem:[%s1923 + $0x30] sm:$0xf]
      %v1937 = vld [vmem:[%s1923 + $0x34] sm:$0xf]
      %v1938 = vld [vmem:[%s1923 + $0x38] sm:$0xf]
      %v1939 = vld [vmem:[%s1923 + $0x3c] sm:$0xf]
      %v1940 = vunpack.c.l.b16 %v1824
      %v1941 = vunpack.c.l.b16 %v1838
      %v1942 = vunpack.c.l.b16 %v1852
      %v1943 = vunpack.c.l.b16 %v1866
      %v1944 = vunpack.c.l.b16 %v1880
      %v1945 = vunpack.c.l.b16 %v1894
      %v1946 = vunpack.c.l.b16 %v1908
      %v1947 = vunpack.c.l.b16 %v1922
      %v1948 = vpack.c.b16 %v1941, %v1940
      %v1949 = vpack.c.b16 %v1943, %v1942
      %v1950 = vpack.c.b16 %v1945, %v1944
      %v1951 = vpack.c.b16 %v1947, %v1946
      %v1972 = vunpack.c.l.b16 %v1924
      %v1973 = vunpack.c.l.b16 %v1925
      %v1974 = vunpack.c.l.b16 %v1926
      %v1975 = vunpack.c.l.b16 %v1927
      %v1976 = vunpack.c.l.b16 %v1928
      %v1977 = vunpack.c.l.b16 %v1929
      %v1978 = vunpack.c.l.b16 %v1930
      %v1979 = vunpack.c.l.b16 %v1931
      %v1980 = vunpack.c.l.b16 %v1932
      %v1981 = vunpack.c.l.b16 %v1933
      %v1982 = vunpack.c.l.b16 %v1934
      %v1983 = vunpack.c.l.b16 %v1935
      %v1984 = vunpack.c.l.b16 %v1936
      %v1985 = vunpack.c.l.b16 %v1937
      %v1986 = vunpack.c.l.b16 %v1938
      %v1987 = vunpack.c.l.b16 %v1939
      %v1988 = vpack.c.b16 %v1973, %v1972
      %v1989 = vpack.c.b16 %v1975, %v1974
      %v1990 = vpack.c.b16 %v1977, %v1976
      %v1991 = vpack.c.b16 %v1979, %v1978
      %v1992 = vpack.c.b16 %v1981, %v1980
      %v1993 = vpack.c.b16 %v1983, %v1982
      %v1994 = vpack.c.b16 %v1985, %v1984
      %v1995 = vpack.c.b16 %v1987, %v1986
      %2004 = vmatprep.subr.bf16.mxu0 0
      %2005 = vmatpush1.bf16.msra.mxu0 %v1988
      %2006 = vmatprep.subr.bf16.mxu0 0
      %2007 = vmatpush1.bf16.msra.mxu0 %v1989
      %2008 = vmatprep.subr.bf16.mxu0 0
      %2009 = vmatpush1.bf16.msra.mxu0 %v1990
      %2010 = vmatprep.subr.bf16.mxu0 0
      %2011 = vmatpush1.bf16.msra.mxu0 %v1991
      %2012 = vmatprep.subr.bf16.mxu0 0
      %2013 = vmatpush1.bf16.msra.mxu0 %v1992
      %2014 = vmatprep.subr.bf16.mxu0 0
      %2015 = vmatpush1.bf16.msra.mxu0 %v1993
      %2016 = vmatprep.subr.bf16.mxu0 0
      %2017 = vmatpush1.bf16.msra.mxu0 %v1994
      %2018 = vmatprep.subr.bf16.mxu0 0
      %2019 = vmatpush1.bf16.msra.mxu0 %v1995
      %2020 = vmatprep.subr.bf16.mxu0 0
      %2021 = vmatpush1.bf16.msra.mxu0 0
      %2022 = vmatprep.subr.bf16.mxu0 0
      %2023 = vmatpush1.bf16.msra.mxu0 0
      %2024 = vmatprep.subr.bf16.mxu0 0
      %2025 = vmatpush1.bf16.msra.mxu0 0
      %2026 = vmatprep.subr.bf16.mxu0 0
      %2027 = vmatpush1.bf16.msra.mxu0 0
      %2028 = vmatprep.subr.bf16.mxu0 0
      %2029 = vmatpush1.bf16.msra.mxu0 0
      %2030 = vmatprep.subr.bf16.mxu0 0
      %2031 = vmatpush1.bf16.msra.mxu0 0
      %2032 = vmatprep.subr.bf16.mxu0 0
      %2033 = vmatpush1.bf16.msra.mxu0 0
      %2034 = vmatprep.subr.bf16.mxu0 0
      %2035 = vmatpush1.bf16.msra.mxu0 0
      %2036 = vmatprep.mubr.bf16.mxu0 0
      %2037 = vmatmul.mubr.bf16.gmra.mrb[0].mxu0 %v1948
      %v2038 = vpop.f32.mrb[0].mxu0
      %v2039 = vadd.f32 0.0, %v2038
      %v2040 = vpop.f32.mrb[0].mxu0
      %v2041 = vpop.f32.mrb[0].mxu0
      %v2042 = vadd.f32 0.0, %v2041
      %v2043 = vpop.f32.mrb[0].mxu0
      %2044 = vmatprep.mubr.bf16.mxu0 0
      %2045 = vmatmul.mubr.bf16.gmra.mrb[0].mxu0 %v1949
      %v2046 = vpop.f32.mrb[0].mxu0
      %v2047 = vadd.f32 0.0, %v2046
      %v2048 = vpop.f32.mrb[0].mxu0
      %v2049 = vpop.f32.mrb[0].mxu0
      %v2050 = vadd.f32 0.0, %v2049
      %v2051 = vpop.f32.mrb[0].mxu0
      %2052 = vmatprep.mubr.bf16.mxu0 0
      %2053 = vmatmul.mubr.bf16.gmra.mrb[0].mxu0 %v1950
      %v2054 = vpop.f32.mrb[0].mxu0
      %v2055 = vadd.f32 0.0, %v2054
      %v2056 = vpop.f32.mrb[0].mxu0
      %v2057 = vpop.f32.mrb[0].mxu0
      %v2058 = vadd.f32 0.0, %v2057
      %v2059 = vpop.f32.mrb[0].mxu0
      %2060 = vmatprep.mubr.bf16.mxu0 0
      %2061 = vmatmul.mubr.bf16.gmra.mrb[0].mxu0 %v1951
      %v2062 = vpop.f32.mrb[0].mxu0
      %v2063 = vadd.f32 0.0, %v2062
      %v2064 = vpop.f32.mrb[0].mxu0
      %v2065 = vpop.f32.mrb[0].mxu0
      %v2066 = vadd.f32 0.0, %v2065
      %v2067 = vpop.f32.mrb[0].mxu0
      %2068 = vdwg.mxu0
      %v2069 = vadd.f32 %v1787, %v2039
      %v2070 = vadd.f32 %v1788, %v2042
      %v2071 = vadd.f32 %v1789, %v2047
      %v2072 = vadd.f32 %v1790, %v2050
      %v2073 = vadd.f32 %v1791, %v2055
      %v2074 = vadd.f32 %v1792, %v2058
      %v2075 = vadd.f32 %v1793, %v2063
      %v2076 = vadd.f32 %v1794, %v2066
      %v2077 = vld [vmem:[#allocation2] sm:$0x1]
      %v2078 = vadd.f32 %v2069, %v2070
      %v2079 = vadd.f32 %v2078, %v2071
      %v2080 = vadd.f32 %v2079, %v2072
      %v2081 = vadd.f32 %v2080, %v2073
      %v2082 = vadd.f32 %v2081, %v2074
      %v2083 = vadd.f32 %v2082, %v2075
      %v2084 = vadd.f32 %v2083, %v2076
      %v2085 = vrot.slane %v2084, 4
      %v2086 = vadd.f32 %v2084, %v2085
      %v2087 = vrot.slane %v2086, 2
      %v2088 = vadd.f32 %v2086, %v2087
      %v2089 = vrot.slane %v2088, 1
      %v2090 = vadd.f32 %v2088, %v2089
      %v2091 = vadd.f32 %v2077, %v2090
      %2092 = vst [vmem:[#allocation2] sm:$0x1] %v2091
      %v2093 = vld [vmem:[#allocation3] sm:$0x1]
      %v2094 = vmul.f32 %v2069, %v2069
      %v2095 = vmul.f32 %v2070, %v2070
      %v2096 = vmul.f32 %v2071, %v2071
      %v2097 = vmul.f32 %v2072, %v2072
      %v2098 = vmul.f32 %v2073, %v2073
      %v2099 = vmul.f32 %v2074, %v2074
      %v2100 = vmul.f32 %v2075, %v2075
      %v2101 = vmul.f32 %v2076, %v2076
      %v2102 = vadd.f32 %v2094, %v2095
      %v2103 = vadd.f32 %v2102, %v2096
      %v2104 = vadd.f32 %v2103, %v2097
      %v2105 = vadd.f32 %v2104, %v2098
      %v2106 = vadd.f32 %v2105, %v2099
      %v2107 = vadd.f32 %v2106, %v2100
      %v2108 = vadd.f32 %v2107, %v2101
      %v2109 = vrot.slane %v2108, 4
      %v2110 = vadd.f32 %v2108, %v2109
      %v2111 = vrot.slane %v2110, 2
      %v2112 = vadd.f32 %v2110, %v2111
      %v2113 = vrot.slane %v2112, 1
      %v2114 = vadd.f32 %v2112, %v2113
      %v2115 = vadd.f32 %v2093, %v2114
      %2116 = vst [vmem:[#allocation3] sm:$0x1] %v2115
      %p2117 = scmp.eq.s32.totalorder %s17, 1
      // Predicated region
      $region41: #{bottleneck_forward.9} parent=35 // pred_check
        %p2118 = pneg %p2117
      $region42: #{bottleneck_forward.9} parent=35 // pred_check_branch
        %2120 = sbr.rel (%p2118) target = $region44
      $region43: #{bottleneck_forward.9} parent=35 // pred_region
        %v2121 = vld [vmem:[#allocation2] sm:$0x1]
        %v2122 = vmul.f32 %v2121, 0.0078125
        %v2123 = vld [vmem:[#allocation3] sm:$0x1]
        %v2124 = vmul.f32 %v2123, 0.0078125
        %v2125 = vmul.f32 %v2122, %v2122
        %v2126 = vsub.f32 %v2124, %v2125
        %v2127 = vld [vmem:[%s2] sm:$0x1]
        %v2128 = vadd.f32 %v2126, 1e-05
        %v2129 = vrsqrt.pop %v2128
        %v2130 = vmul.f32 %v2127, %v2129
        %v2131 = vld [vmem:[%s3] sm:$0x1]
        %v2132 = vmul.f32 %v2122, %v2130
        %v2133 = vsub.f32 %v2131, %v2132
        %2134 = vst [vmem:[%s4] sm:$0x1] %v2130
        %2135 = vst [vmem:[%s5] sm:$0x1] %v2133
      $region44: #{bottleneck_forward.9} parent=35 // pred_fallthru
        _
      // Predicated region
      $region45: #{bottleneck_forward.9} parent=35 // pred_check
        %p2136 = pneg %p119
      $region46: #{bottleneck_forward.9} parent=35 // pred_check_branch
        %2138 = sbr.rel (%p2136) target = $region48
      $region47: #{bottleneck_forward.9} parent=35 // pred_region
        _
      $region48: #{bottleneck_forward.9} parent=35 // pred_fallthru
        _
      // Predicated region
      $region49: #{bottleneck_forward.9} parent=35 // pred_check
        %p2139 = pneg %p140
      $region50: #{bottleneck_forward.9} parent=35 // pred_check_branch
        %2141 = sbr.rel (%p2139) target = $region52
      $region51: #{bottleneck_forward.9} parent=35 // pred_region
        _
      $region52: #{bottleneck_forward.9} parent=35 // pred_fallthru
        _
      // Predicated region
      $region53: #{bottleneck_forward.9} parent=35 // pred_check
        %p2142 = pneg %p119
      $region54: #{bottleneck_forward.9} parent=35 // pred_check_branch
        %2144 = sbr.rel (%p2142) target = $region56
      $region55: #{bottleneck_forward.9} parent=35 // pred_region
        _
      $region56: #{bottleneck_forward.9} parent=35 // pred_fallthru
        _
      // Predicated region
      $region57: #{bottleneck_forward.9} parent=35 // pred_check
        %p2145 = pneg %p140
      $region58: #{bottleneck_forward.9} parent=35 // pred_check_branch
        %2147 = sbr.rel (%p2145) target = $region60
      $region59: #{bottleneck_forward.9} parent=35 // pred_region
        _
      $region60: #{bottleneck_forward.9} parent=35 // pred_fallthru
        _
    $region36: #{bottleneck_forward.9} parent=5 // pred_fallthru
      _
    %p2148 = scmp.le.s32.totalorder 2, %s12
    // Predicated region
    $region61: #{bottleneck_forward.9} parent=5 // pred_check
      %p2149 = pneg %p2148
    $region62: #{bottleneck_forward.9} parent=5 // pred_check_branch
      %2151 = sbr.rel (%p2149) target = $region64
    $region63: #{bottleneck_forward.9} parent=5 // pred_region
      %s2152 = ssub.s32 %s12, 2
    $region64: #{bottleneck_forward.9} parent=5 // pred_fallthru
      _
  $region6: #{bottleneck_forward.9} parent=0 // loop_footer
    %s16 = sadd.s32 1, %s12
  $region7: #{bottleneck_forward.9} parent=0 // loop_footer_branch
    %11 = sbr.rel target = $region3
  $region8: #{bottleneck_forward.9} parent=0 // loop_exit
    _

// kernel: bottleneck_forward.10
$region0: #{bottleneck_forward.10}
  #allocation0 [shape = 'u32[]', space=smem, size = 0x4, offset = 0x4, fixed_abs, tag = 'smem constant byte address 0x4 - core index']
  #allocation1 [shape = 'u32[144,128]{1,0:T(1,128)}', space=vmem, size = 0x12000, scoped, tag = 'internal scratch']
  %s0 = inlined_call_operand.vmem [shape: bf16[8,9,9,128], index: 0, kind: input, shape index: {}]
  %s1 = inlined_call_operand.vmem [shape: bf16[9,128,128], index: 1, kind: input, shape index: {}]
  %s2 = inlined_call_operand.vmem [shape: f32[1,128], index: 2, kind: input, shape index: {}]
  %s3 = inlined_call_operand.vmem [shape: f32[1,128], index: 3, kind: input, shape index: {}]
  %s4 = inlined_call_operand.vmem [shape: bf16[2,64,128], index: 4, kind: output, shape index: {}]
  %s5 = sld [smem:[#allocation0]]
  $region49: #{bottleneck_forward.10} parent=0
    _
  %s7 = ssub.s32 1, %s5
  %s8 = scalar_select 0, %s7, %s5
  loop: start=0, step=1, limit=4
  $region2: #{bottleneck_forward.10} parent=0 // loop_pre_header
    _
  $region3: #{bottleneck_forward.10} parent=0 // loop_header
    %s10 = sphi 0, %s14
    %p11 = scmp.ge.s32.totalorder %s10, 4
    %s20 = sphi 0, %s22
    %s23 = sphi 0, %s20
    %s24 = sphi 0, %s23
    %s40 = sphi 0, %s24
    %s44 = sphi 0, %s44
    %s46 = sphi 0, %s44
    %s47 = sphi 0, %s46
    %s61 = sphi 0, %s47
    %s65 = sphi 0, %s65
    %s67 = sphi 0, %s65
    %s68 = sphi 0, %s67
    %s82 = sphi 0, %s68
    %s86 = sphi 0, %s86
    %s88 = sphi 0, %s86
    %s89 = sphi 0, %s88
    %s103 = sphi 0, %s89
    %s109 = sphi 0, %s111
    %s112 = sphi 0, %s109
    %s113 = sphi 0, %s112
    %s129 = sphi 0, %s113
  $region4: #{bottleneck_forward.10} parent=0 // loop_header_branch
    %13 = sbr.rel (%p11) target = $region8
  $region5: #{bottleneck_forward.10} parent=0 // loop_body
    %s15 = ssub.s32 %s10, 1
    %s16 = ssub.s32 %s10, 2
    %s17 = sadd.s32 %s10, 1
    %s18 = ssub.s32 %s10, %s17
    %p19 = scmp.eq.s32.totalorder %s18, 0
    %s21 = sadd.s32 %s20, 1
    %s22 = scalar_select %p19, %s20, %s21
    %p25 = pneg %p19
    %p26 = scmp.eq.s32.totalorder %s10, 1
    %p27 = por %p25, %p26
    %p28 = scmp.ne.s32.totalorder %s20, %s23
    %p29 = scmp.eq.s32.totalorder %s10, 0
    %p30 = por %p28, %p29
    %p31 = scmp.ne.s32.totalorder %s20, %s23
    %p32 = scmp.eq.s32.totalorder %s15, 1
    %p33 = por %p31, %p32
    %p34 = scmp.ne.s32.totalorder %s23, %s24
    %p35 = scmp.eq.s32.totalorder %s15, 0
    %p36 = por %p34, %p35
    %p37 = scmp.ne.s32.totalorder %s23, %s24
    %p38 = scmp.eq.s32.totalorder %s16, 1
    %p39 = por %p37, %p38
    %p41 = scmp.ne.s32.totalorder %s24, %s40
    %p42 = scmp.eq.s32.totalorder %s16, 0
    %p43 = por %p41, %p42
    %s45 = sadd.s32 %s44, 1
    %p48 = scmp.eq.s32.totalorder %s10, 1
    %p49 = scmp.ne.s32.totalorder %s44, %s46
    %p50 = scmp.eq.s32.totalorder %s10, 0
    %p51 = por %p49, %p50
    %p52 = scmp.ne.s32.totalorder %s44, %s46
    %p53 = scmp.eq.s32.totalorder %s15, 1
    %p54 = por %p52, %p53
    %p55 = scmp.ne.s32.totalorder %s46, %s47
    %p56 = scmp.eq.s32.totalorder %s15, 0
    %p57 = por %p55, %p56
    %p58 = scmp.ne.s32.totalorder %s46, %s47
    %p59 = scmp.eq.s32.totalorder %s16, 1
    %p60 = por %p58, %p59
    %p62 = scmp.ne.s32.totalorder %s47, %s61
    %p63 = scmp.eq.s32.totalorder %s16, 0
    %p64 = por %p62, %p63
    %s66 = sadd.s32 %s65, 1
    %p69 = scmp.eq.s32.totalorder %s10, 1
    %p70 = scmp.ne.s32.totalorder %s65, %s67
    %p71 = scmp.eq.s32.totalorder %s10, 0
    %p72 = por %p70, %p71
    %p73 = scmp.ne.s32.totalorder %s65, %s67
    %p74 = scmp.eq.s32.totalorder %s15, 1
    %p75 = por %p73, %p74
    %p76 = scmp.ne.s32.totalorder %s67, %s68
    %p77 = scmp.eq.s32.totalorder %s15, 0
    %p78 = por %p76, %p77
    %p79 = scmp.ne.s32.totalorder %s67, %s68
    %p80 = scmp.eq.s32.totalorder %s16, 1
    %p81 = por %p79, %p80
    %p83 = scmp.ne.s32.totalorder %s68, %s82
    %p84 = scmp.eq.s32.totalorder %s16, 0
    %p85 = por %p83, %p84
    %s87 = sadd.s32 %s86, 1
    %p90 = scmp.eq.s32.totalorder %s10, 1
    %p91 = scmp.ne.s32.totalorder %s86, %s88
    %p92 = scmp.eq.s32.totalorder %s10, 0
    %p93 = por %p91, %p92
    %p94 = scmp.ne.s32.totalorder %s86, %s88
    %p95 = scmp.eq.s32.totalorder %s15, 1
    %p96 = por %p94, %p95
    %p97 = scmp.ne.s32.totalorder %s88, %s89
    %p98 = scmp.eq.s32.totalorder %s15, 0
    %p99 = por %p97, %p98
    %p100 = scmp.ne.s32.totalorder %s88, %s89
    %p101 = scmp.eq.s32.totalorder %s16, 1
    %p102 = por %p100, %p101
    %p104 = scmp.ne.s32.totalorder %s89, %s103
    %p105 = scmp.eq.s32.totalorder %s16, 0
    %p106 = por %p104, %p105
    %s107 = ssub.s32 %s10, %s17
    %p108 = scmp.eq.s32.totalorder %s107, 0
    %s110 = sadd.s32 %s109, 1
    %s111 = scalar_select %p108, %s109, %s110
    %p114 = pneg %p108
    %p115 = scmp.eq.s32.totalorder %s10, 1
    %p116 = por %p114, %p115
    %p117 = scmp.ne.s32.totalorder %s109, %s112
    %p118 = scmp.eq.s32.totalorder %s10, 0
    %p119 = por %p117, %p118
    %p120 = scmp.ne.s32.totalorder %s109, %s112
    %p121 = scmp.eq.s32.totalorder %s15, 1
    %p122 = por %p120, %p121
    %p123 = scmp.ne.s32.totalorder %s112, %s113
    %p124 = scmp.eq.s32.totalorder %s15, 0
    %p125 = por %p123, %p124
    %p126 = scmp.ne.s32.totalorder %s112, %s113
    %p127 = scmp.eq.s32.totalorder %s16, 1
    %p128 = por %p126, %p127
    %p130 = scmp.ne.s32.totalorder %s113, %s129
    %p131 = scmp.eq.s32.totalorder %s16, 0
    %p132 = por %p130, %p131
    %p133 = scmp.le.s32.totalorder 1, %s10
    %p134 = scmp.lt.s32.totalorder %s10, 3
    %p135 = pnand %p133, %p134
    %p136 = pneg %p135
    // Predicated region
    $region9: #{bottleneck_forward.10} parent=5 // pred_check
      _
    $region10: #{bottleneck_forward.10} parent=5 // pred_check_branch
      %138 = sbr.rel (%p135) target = $region12
    $region11: #{bottleneck_forward.10} parent=5 // pred_region
      %s139 = ssub.s32 %s10, 1
      // Predicated region
      $region13: #{bottleneck_forward.10} parent=11 // pred_check
        %p140 = pneg %p57
      $region14: #{bottleneck_forward.10} parent=11 // pred_check_branch
        %142 = sbr.rel (%p140) target = $region16
      $region15: #{bottleneck_forward.10} parent=11 // pred_region
        _
      $region16: #{bottleneck_forward.10} parent=11 // pred_fallthru
        _
      // Predicated region
      $region17: #{bottleneck_forward.10} parent=11 // pred_check
        %p143 = pneg %p78
      $region18: #{bottleneck_forward.10} parent=11 // pred_check_branch
        %145 = sbr.rel (%p143) target = $region20
      $region19: #{bottleneck_forward.10} parent=11 // pred_region
        _
      $region20: #{bottleneck_forward.10} parent=11 // pred_fallthru
        _
      // Predicated region
      $region21: #{bottleneck_forward.10} parent=11 // pred_check
        %p146 = pneg %p99
      $region22: #{bottleneck_forward.10} parent=11 // pred_check_branch
        %148 = sbr.rel (%p146) target = $region24
      $region23: #{bottleneck_forward.10} parent=11 // pred_region
        _
      $region24: #{bottleneck_forward.10} parent=11 // pred_fallthru
        _
    $region12: #{bottleneck_forward.10} parent=5 // pred_fallthru
      _
    %p149 = scmp.lt.s32.totalorder %s10, 2
    // Predicated region
    $region25: #{bottleneck_forward.10} parent=5 // pred_check
      %p150 = pneg %p149
    $region26: #{bottleneck_forward.10} parent=5 // pred_check_branch
      %152 = sbr.rel (%p150) target = $region28
    $region27: #{bottleneck_forward.10} parent=5 // pred_region
      // Predicated region
      $region29: #{bottleneck_forward.10} parent=27 // pred_check
        %p153 = pneg %p30
      $region30: #{bottleneck_forward.10} parent=27 // pred_check_branch
        %155 = sbr.rel (%p153) target = $region32
      $region31: #{bottleneck_forward.10} parent=27 // pred_region
        %s156 = smul.u32 4, %s10
        %p157 = scmp.lt.s32.totalorder %s156, 7
        %s158 = scalar_select %p157, %s156, 7
        %s159 = smul.addr %s158, 18
        %s160 = smul.addr %s159, 4
        %s161 = scalar_lea.vmem %s0, %s160
        %s162 = smul.u32 4, %s10
      $region32: #{bottleneck_forward.10} parent=27 // pred_fallthru
        _
    $region28: #{bottleneck_forward.10} parent=5 // pred_fallthru
      _
    %p163 = scmp.le.s32.totalorder 1, %s10
    %p164 = scmp.lt.s32.totalorder %s10, 3
    %p165 = pnand %p163, %p164
    %p166 = pneg %p165
    // Predicated region
    $region33: #{bottleneck_forward.10} parent=5 // pred_check
      _
    $region34: #{bottleneck_forward.10} parent=5 // pred_check_branch
      %168 = sbr.rel (%p165) target = $region36
    $region35: #{bottleneck_forward.10} parent=5 // pred_region
      %s169 = ssub.s32 %s10, 1
      %s170 = smul.u32 4, %s15
      %p171 = scmp.lt.s32.totalorder %s170, 7
      %s172 = scalar_select %p171, %s170, 7
      %s173 = smul.addr %s172, 18
      %s174 = smul.addr %s173, 4
      %s175 = scalar_lea.vmem %s0, %s174
      %p176 = pneg %p36
      %p177 = pneg %p33
      %p178 = pneg %p57
      %p179 = pneg %p54
      %p180 = pneg %p78
      %p181 = pneg %p75
      %p182 = pneg %p99
      %p183 = pneg %p96
      %p184 = pneg %p125
      %p185 = pneg %p122
      %p186 = scmp.lt.s32.totalorder %s15, 1
      %s187 = scalar_select %p186, %s15, 1
      %s188 = smul.addr %s187, 8
      %s189 = smul.addr %s188, 4
      %s190 = scalar_lea.vmem %s4, %s189
      %s191 = smul.u32 4, %s15
      %p192 = scmp.lt.s32.totalorder %s191, 7
      %s193 = scalar_select %p192, %s191, 7
      %s194 = smul.addr %s193, 18
      %s195 = smul.addr %s194, 4
      %s196 = scalar_lea.vmem %s0, %s195
      %s197 = smul.u32 4, %s15
      %p198 = scmp.lt.s32.totalorder %s15, 1
      %s199 = scalar_select %p198, %s15, 1
      %s200 = smul.addr %s199, 8
      %s201 = smul.addr %s200, 4
      %s202 = scalar_lea.vmem %s4, %s201
      %v204 = vld [vmem:[%s196] sm:$0xf]
      %v205 = vld [vmem:[%s196 + $0x8] sm:$0xf]
      %v206 = vld [vmem:[%s196 + $0x10] sm:$0xf]
      %v207 = vld [vmem:[%s196 + $0x18] sm:$0xf]
      %v208 = vld [vmem:[%s196 + $0x20] sm:$0xf]
      %v209 = vld [vmem:[%s196 + $0x28] sm:$0xf]
      %v210 = vld [vmem:[%s196 + $0x30] sm:$0xf]
      %v211 = vld [vmem:[%s196 + $0x38] sm:$0xf]
      %v212 = vld [vmem:[%s1] sm:$0xf]
      %v213 = vld [vmem:[%s1 + $0x4] sm:$0xf]
      %v214 = vld [vmem:[%s1 + $0x8] sm:$0xf]
      %v215 = vld [vmem:[%s1 + $0xc] sm:$0xf]
      %v216 = vld [vmem:[%s1 + $0x10] sm:$0xf]
      %v217 = vld [vmem:[%s1 + $0x14] sm:$0xf]
      %v218 = vld [vmem:[%s1 + $0x18] sm:$0xf]
      %v219 = vld [vmem:[%s1 + $0x1c] sm:$0xf]
      %v220 = vld [vmem:[%s1 + $0x20] sm:$0xf]
      %v221 = vld [vmem:[%s1 + $0x24] sm:$0xf]
      %v222 = vld [vmem:[%s1 + $0x28] sm:$0xf]
      %v223 = vld [vmem:[%s1 + $0x2c] sm:$0xf]
      %v224 = vld [vmem:[%s1 + $0x30] sm:$0xf]
      %v225 = vld [vmem:[%s1 + $0x34] sm:$0xf]
      %v226 = vld [vmem:[%s1 + $0x38] sm:$0xf]
      %v227 = vld [vmem:[%s1 + $0x3c] sm:$0xf]
      %s228 = scalar_lea.vmem %s196, 72
      %v229 = vld [vmem:[%s228] sm:$0xf]
      %v230 = vld [vmem:[%s228 + $0x8] sm:$0xf]
      %v231 = vld [vmem:[%s228 + $0x10] sm:$0xf]
      %v232 = vld [vmem:[%s228 + $0x18] sm:$0xf]
      %v233 = vld [vmem:[%s228 + $0x20] sm:$0xf]
      %v234 = vld [vmem:[%s228 + $0x28] sm:$0xf]
      %v235 = vld [vmem:[%s228 + $0x30] sm:$0xf]
      %v236 = vld [vmem:[%s228 + $0x38] sm:$0xf]
      %s237 = scalar_lea.vmem %s1, 64
      %v238 = vld [vmem:[%s237] sm:$0xf]
      %v239 = vld [vmem:[%s237 + $0x4] sm:$0xf]
      %v240 = vld [vmem:[%s237 + $0x8] sm:$0xf]
      %v241 = vld [vmem:[%s237 + $0xc] sm:$0xf]
      %v242 = vld [vmem:[%s237 + $0x10] sm:$0xf]
      %v243 = vld [vmem:[%s237 + $0x14] sm:$0xf]
      %v244 = vld [vmem:[%s237 + $0x18] sm:$0xf]
      %v245 = vld [vmem:[%s237 + $0x1c] sm:$0xf]
      %v246 = vld [vmem:[%s237 + $0x20] sm:$0xf]
      %v247 = vld [vmem:[%s237 + $0x24] sm:$0xf]
      %v248 = vld [vmem:[%s237 + $0x28] sm:$0xf]
      %v249 = vld [vmem:[%s237 + $0x2c] sm:$0xf]
      %v250 = vld [vmem:[%s237 + $0x30] sm:$0xf]
      %v251 = vld [vmem:[%s237 + $0x34] sm:$0xf]
      %v252 = vld [vmem:[%s237 + $0x38] sm:$0xf]
      %v253 = vld [vmem:[%s237 + $0x3c] sm:$0xf]
      %v262 = vunpack.c.l.b16 %v229
      %v263 = vunpack.c.l.b16 %v230
      %v264 = vunpack.c.l.b16 %v231
      %v265 = vunpack.c.l.b16 %v232
      %v266 = vunpack.c.l.b16 %v233
      %v267 = vunpack.c.l.b16 %v234
      %v268 = vunpack.c.l.b16 %v235
      %v269 = vunpack.c.l.b16 %v236
      %v270 = vpack.c.b16 %v263, %v262
      %v271 = vpack.c.b16 %v265, %v264
      %v272 = vpack.c.b16 %v267, %v266
      %v273 = vpack.c.b16 %v269, %v268
      %v294 = vunpack.c.l.b16 %v238
      %v295 = vunpack.c.l.b16 %v239
      %v296 = vunpack.c.l.b16 %v240
      %v297 = vunpack.c.l.b16 %v241
      %v298 = vunpack.c.l.b16 %v242
      %v299 = vunpack.c.l.b16 %v243
      %v300 = vunpack.c.l.b16 %v244
      %v301 = vunpack.c.l.b16 %v245
      %v302 = vunpack.c.l.b16 %v246
      %v303 = vunpack.c.l.b16 %v247
      %v304 = vunpack.c.l.b16 %v248
      %v305 = vunpack.c.l.b16 %v249
      %v306 = vunpack.c.l.b16 %v250
      %v307 = vunpack.c.l.b16 %v251
      %v308 = vunpack.c.l.b16 %v252
      %v309 = vunpack.c.l.b16 %v253
      %v310 = vpack.c.b16 %v295, %v294
      %v311 = vpack.c.b16 %v297, %v296
      %v312 = vpack.c.b16 %v299, %v298
      %v313 = vpack.c.b16 %v301, %v300
      %v314 = vpack.c.b16 %v303, %v302
      %v315 = vpack.c.b16 %v305, %v304
      %v316 = vpack.c.b16 %v307, %v306
      %v317 = vpack.c.b16 %v309, %v308
      %326 = vmatprep.subr.bf16.mxu0 0
      %327 = vmatpush1.bf16.msra.mxu0 %v310
      %328 = vmatprep.subr.bf16.mxu0 0
      %329 = vmatpush1.bf16.msra.mxu0 %v311
      %330 = vmatprep.subr.bf16.mxu0 0
      %331 = vmatpush1.bf16.msra.mxu0 %v312
      %332 = vmatprep.subr.bf16.mxu0 0
      %333 = vmatpush1.bf16.msra.mxu0 %v313
      %334 = vmatprep.subr.bf16.mxu0 0
      %335 = vmatpush1.bf16.msra.mxu0 %v314
      %336 = vmatprep.subr.bf16.mxu0 0
      %337 = vmatpush1.bf16.msra.mxu0 %v315
      %338 = vmatprep.subr.bf16.mxu0 0
      %339 = vmatpush1.bf16.msra.mxu0 %v316
      %340 = vmatprep.subr.bf16.mxu0 0
      %341 = vmatpush1.bf16.msra.mxu0 %v317
      %342 = vmatprep.subr.bf16.mxu0 0
      %343 = vmatpush1.bf16.msra.mxu0 0
      %344 = vmatprep.subr.bf16.mxu0 0
      %345 = vmatpush1.bf16.msra.mxu0 0
      %346 = vmatprep.subr.bf16.mxu0 0
      %347 = vmatpush1.bf16.msra.mxu0 0
      %348 = vmatprep.subr.bf16.mxu0 0
      %349 = vmatpush1.bf16.msra.mxu0 0
      %350 = vmatprep.subr.bf16.mxu0 0
      %351 = vmatpush1.bf16.msra.mxu0 0
      %352 = vmatprep.subr.bf16.mxu0 0
      %353 = vmatpush1.bf16.msra.mxu0 0
      %354 = vmatprep.subr.bf16.mxu0 0
      %355 = vmatpush1.bf16.msra.mxu0 0
      %356 = vmatprep.subr.bf16.mxu0 0
      %357 = vmatpush1.bf16.msra.mxu0 0
      %358 = vmatprep.mubr.bf16.mxu0 0
      %359 = vmatmul.mubr.bf16.gmra.mrb[0].mxu0 %v270
      %v360 = vpop.f32.mrb[0].mxu0
      %v361 = vadd.f32 0.0, %v360
      %v362 = vpop.f32.mrb[0].mxu0
      %v363 = vpop.f32.mrb[0].mxu0
      %v364 = vadd.f32 0.0, %v363
      %v365 = vpop.f32.mrb[0].mxu0
      %366 = vmatprep.mubr.bf16.mxu0 0
      %367 = vmatmul.mubr.bf16.gmra.mrb[0].mxu0 %v271
      %v368 = vpop.f32.mrb[0].mxu0
      %v369 = vadd.f32 0.0, %v368
      %v370 = vpop.f32.mrb[0].mxu0
      %v371 = vpop.f32.mrb[0].mxu0
      %v372 = vadd.f32 0.0, %v371
      %v373 = vpop.f32.mrb[0].mxu0
      %374 = vmatprep.mubr.bf16.mxu0 0
      %375 = vmatmul.mubr.bf16.gmra.mrb[0].mxu0 %v272
      %v376 = vpop.f32.mrb[0].mxu0
      %v377 = vadd.f32 0.0, %v376
      %v378 = vpop.f32.mrb[0].mxu0
      %v379 = vpop.f32.mrb[0].mxu0
      %v380 = vadd.f32 0.0, %v379
      %v381 = vpop.f32.mrb[0].mxu0
      %382 = vmatprep.mubr.bf16.mxu0 0
      %383 = vmatmul.mubr.bf16.gmra.mrb[0].mxu0 %v273
      %v384 = vpop.f32.mrb[0].mxu0
      %v385 = vadd.f32 0.0, %v384
      %v386 = vpop.f32.mrb[0].mxu0
      %v387 = vpop.f32.mrb[0].mxu0
      %v388 = vadd.f32 0.0, %v387
      %v389 = vpop.f32.mrb[0].mxu0
      %390 = vdwg.mxu0
      %v399 = vunpack.c.l.b16 %v204
      %v400 = vunpack.c.l.b16 %v205
      %v401 = vunpack.c.l.b16 %v206
      %v402 = vunpack.c.l.b16 %v207
      %v403 = vunpack.c.l.b16 %v208
      %v404 = vunpack.c.l.b16 %v209
      %v405 = vunpack.c.l.b16 %v210
      %v406 = vunpack.c.l.b16 %v211
      %v407 = vpack.c.b16 %v400, %v399
      %v408 = vpack.c.b16 %v402, %v401
      %v409 = vpack.c.b16 %v404, %v403
      %v410 = vpack.c.b16 %v406, %v405
      %v431 = vunpack.c.l.b16 %v212
      %v432 = vunpack.c.l.b16 %v213
      %v433 = vunpack.c.l.b16 %v214
      %v434 = vunpack.c.l.b16 %v215
      %v435 = vunpack.c.l.b16 %v216
      %v436 = vunpack.c.l.b16 %v217
      %v437 = vunpack.c.l.b16 %v218
      %v438 = vunpack.c.l.b16 %v219
      %v439 = vunpack.c.l.b16 %v220
      %v440 = vunpack.c.l.b16 %v221
      %v441 = vunpack.c.l.b16 %v222
      %v442 = vunpack.c.l.b16 %v223
      %v443 = vunpack.c.l.b16 %v224
      %v444 = vunpack.c.l.b16 %v225
      %v445 = vunpack.c.l.b16 %v226
      %v446 = vunpack.c.l.b16 %v227
      %v447 = vpack.c.b16 %v432, %v431
      %v448 = vpack.c.b16 %v434, %v433
      %v449 = vpack.c.b16 %v436, %v435
      %v450 = vpack.c.b16 %v438, %v437
      %v451 = vpack.c.b16 %v440, %v439
      %v452 = vpack.c.b16 %v442, %v441
      %v453 = vpack.c.b16 %v444, %v443
      %v454 = vpack.c.b16 %v446, %v445
      %463 = vmatprep.subr.bf16.mxu0 0
      %464 = vmatpush1.bf16.msra.mxu0 %v447
      %465 = vmatprep.subr.bf16.mxu0 0
      %466 = vmatpush1.bf16.msra.mxu0 %v448
      %467 = vmatprep.subr.bf16.mxu0 0
      %468 = vmatpush1.bf16.msra.mxu0 %v449
      %469 = vmatprep.subr.bf16.mxu0 0
      %470 = vmatpush1.bf16.msra.mxu0 %v450
      %471 = vmatprep.subr.bf16.mxu0 0
      %472 = vmatpush1.bf16.msra.mxu0 %v451
      %473 = vmatprep.subr.bf16.mxu0 0
      %474 = vmatpush1.bf16.msra.mxu0 %v452
      %475 = vmatprep.subr.bf16.mxu0 0
      %476 = vmatpush1.bf16.msra.mxu0 %v453
      %477 = vmatprep.subr.bf16.mxu0 0
      %478 = vmatpush1.bf16.msra.mxu0 %v454
      %479 = vmatprep.subr.bf16.mxu0 0
      %480 = vmatpush1.bf16.msra.mxu0 0
      %481 = vmatprep.subr.bf16.mxu0 0
      %482 = vmatpush1.bf16.msra.mxu0 0
      %483 = vmatprep.subr.bf16.mxu0 0
      %484 = vmatpush1.bf16.msra.mxu0 0
      %485 = vmatprep.subr.bf16.mxu0 0
      %486 = vmatpush1.bf16.msra.mxu0 0
      %487 = vmatprep.subr.bf16.mxu0 0
      %488 = vmatpush1.bf16.msra.mxu0 0
      %489 = vmatprep.subr.bf16.mxu0 0
      %490 = vmatpush1.bf16.msra.mxu0 0
      %491 = vmatprep.subr.bf16.mxu0 0
      %492 = vmatpush1.bf16.msra.mxu0 0
      %493 = vmatprep.subr.bf16.mxu0 0
      %494 = vmatpush1.bf16.msra.mxu0 0
      %495 = vmatprep.mubr.bf16.mxu0 0
      %496 = vmatmul.mubr.bf16.gmra.mrb[0].mxu0 %v407
      %v497 = vpop.f32.mrb[0].mxu0
      %v498 = vadd.f32 %v361, %v497
      %v499 = vpop.f32.mrb[0].mxu0
      %v500 = vpop.f32.mrb[0].mxu0
      %v501 = vadd.f32 %v364, %v500
      %v502 = vpop.f32.mrb[0].mxu0
      %503 = vmatprep.mubr.bf16.mxu0 0
      %504 = vmatmul.mubr.bf16.gmra.mrb[0].mxu0 %v408
      %v505 = vpop.f32.mrb[0].mxu0
      %v506 = vadd.f32 %v369, %v505
      %v507 = vpop.f32.mrb[0].mxu0
      %v508 = vpop.f32.mrb[0].mxu0
      %v509 = vadd.f32 %v372, %v508
      %v510 = vpop.f32.mrb[0].mxu0
      %511 = vmatprep.mubr.bf16.mxu0 0
      %512 = vmatmul.mubr.bf16.gmra.mrb[0].mxu0 %v409
      %v513 = vpop.f32.mrb[0].mxu0
      %v514 = vadd.f32 %v377, %v513
      %v515 = vpop.f32.mrb[0].mxu0
      %v516 = vpop.f32.mrb[0].mxu0
      %v517 = vadd.f32 %v380, %v516
      %v518 = vpop.f32.mrb[0].mxu0
      %519 = vmatprep.mubr.bf16.mxu0 0
      %520 = vmatmul.mubr.bf16.gmra.mrb[0].mxu0 %v410
      %v521 = vpop.f32.mrb[0].mxu0
      %v522 = vadd.f32 %v385, %v521
      %v523 = vpop.f32.mrb[0].mxu0
      %v524 = vpop.f32.mrb[0].mxu0
      %v525 = vadd.f32 %v388, %v524
      %v526 = vpop.f32.mrb[0].mxu0
      %527 = vdwg.mxu0
      %v528 = vld [vmem:[%s196] sm:$0xf]
      %v529 = vld [vmem:[%s196 + $0x4] sm:$0x1]
      %v530 = vld [vmem:[%s196 + $0x8] sm:$0xf]
      %v531 = vld [vmem:[%s196 + $0xc] sm:$0x1]
      %v532 = vld [vmem:[%s196 + $0x10] sm:$0xf]
      %v533 = vld [vmem:[%s196 + $0x14] sm:$0x1]
      %v534 = vld [vmem:[%s196 + $0x18] sm:$0xf]
      %v535 = vld [vmem:[%s196 + $0x1c] sm:$0x1]
      %v536 = vld [vmem:[%s196 + $0x20] sm:$0xf]
      %v537 = vld [vmem:[%s196 + $0x24] sm:$0x1]
      %v538 = vld [vmem:[%s196 + $0x28] sm:$0xf]
      %v539 = vld [vmem:[%s196 + $0x2c] sm:$0x1]
      %v540 = vld [vmem:[%s196 + $0x30] sm:$0xf]
      %v541 = vld [vmem:[%s196 + $0x34] sm:$0x1]
      %v542 = vld [vmem:[%s196 + $0x38] sm:$0xf]
      %v543 = vld [vmem:[%s196 + $0x3c] sm:$0x1]
      %vm544 = vsmask.f32 3328
      %vm545 = vsmask.f32 7440
      %vm546 = vmor %vm544, %vm545
      %v548 = vshrl.u32 %v528, 16
      %v550 = vrot.slane %v548, 4
      %v551 = vshll.u32 %v528, 16
      %v553 = vrot.slane %v551, 5
      %v554 = vor.u32 %v550, %v553
      %v555 = vrot.slane %v554, 4
      %v557 = vshll.u32 %v529, 16
      %v559 = vrot.slane %v557, 5
      %v560 = vsel %vm546, %v555, %v559
      %v562 = vshrl.u32 %v530, 16
      %v564 = vrot.slane %v562, 4
      %v565 = vshll.u32 %v530, 16
      %v567 = vrot.slane %v565, 5
      %v568 = vor.u32 %v564, %v567
      %v569 = vrot.slane %v568, 4
      %v571 = vshll.u32 %v531, 16
      %v573 = vrot.slane %v571, 5
      %v574 = vsel %vm546, %v569, %v573
      %v576 = vshrl.u32 %v532, 16
      %v578 = vrot.slane %v576, 4
      %v579 = vshll.u32 %v532, 16
      %v581 = vrot.slane %v579, 5
      %v582 = vor.u32 %v578, %v581
      %v583 = vrot.slane %v582, 4
      %v585 = vshll.u32 %v533, 16
      %v587 = vrot.slane %v585, 5
      %v588 = vsel %vm546, %v583, %v587
      %v590 = vshrl.u32 %v534, 16
      %v592 = vrot.slane %v590, 4
      %v593 = vshll.u32 %v534, 16
      %v595 = vrot.slane %v593, 5
      %v596 = vor.u32 %v592, %v595
      %v597 = vrot.slane %v596, 4
      %v599 = vshll.u32 %v535, 16
      %v601 = vrot.slane %v599, 5
      %v602 = vsel %vm546, %v597, %v601
      %v604 = vshrl.u32 %v536, 16
      %v606 = vrot.slane %v604, 4
      %v607 = vshll.u32 %v536, 16
      %v609 = vrot.slane %v607, 5
      %v610 = vor.u32 %v606, %v609
      %v611 = vrot.slane %v610, 4
      %v613 = vshll.u32 %v537, 16
      %v615 = vrot.slane %v613, 5
      %v616 = vsel %vm546, %v611, %v615
      %v618 = vshrl.u32 %v538, 16
      %v620 = vrot.slane %v618, 4
      %v621 = vshll.u32 %v538, 16
      %v623 = vrot.slane %v621, 5
      %v624 = vor.u32 %v620, %v623
      %v625 = vrot.slane %v624, 4
      %v627 = vshll.u32 %v539, 16
      %v629 = vrot.slane %v627, 5
      %v630 = vsel %vm546, %v625, %v629
      %v632 = vshrl.u32 %v540, 16
      %v634 = vrot.slane %v632, 4
      %v635 = vshll.u32 %v540, 16
      %v637 = vrot.slane %v635, 5
      %v638 = vor.u32 %v634, %v637
      %v639 = vrot.slane %v638, 4
      %v641 = vshll.u32 %v541, 16
      %v643 = vrot.slane %v641, 5
      %v644 = vsel %vm546, %v639, %v643
      %v646 = vshrl.u32 %v542, 16
      %v648 = vrot.slane %v646, 4
      %v649 = vshll.u32 %v542, 16
      %v651 = vrot.slane %v649, 5
      %v652 = vor.u32 %v648, %v651
      %v653 = vrot.slane %v652, 4
      %v655 = vshll.u32 %v543, 16
      %v657 = vrot.slane %v655, 5
      %v658 = vsel %vm546, %v653, %v657
      %s659 = scalar_lea.vmem %s1, 128
      %v660 = vld [vmem:[%s659] sm:$0xf]
      %v661 = vld [vmem:[%s659 + $0x4] sm:$0xf]
      %v662 = vld [vmem:[%s659 + $0x8] sm:$0xf]
      %v663 = vld [vmem:[%s659 + $0xc] sm:$0xf]
      %v664 = vld [vmem:[%s659 + $0x10] sm:$0xf]
      %v665 = vld [vmem:[%s659 + $0x14] sm:$0xf]
      %v666 = vld [vmem:[%s659 + $0x18] sm:$0xf]
      %v667 = vld [vmem:[%s659 + $0x1c] sm:$0xf]
      %v668 = vld [vmem:[%s659 + $0x20] sm:$0xf]
      %v669 = vld [vmem:[%s659 + $0x24] sm:$0xf]
      %v670 = vld [vmem:[%s659 + $0x28] sm:$0xf]
      %v671 = vld [vmem:[%s659 + $0x2c] sm:$0xf]
      %v672 = vld [vmem:[%s659 + $0x30] sm:$0xf]
      %v673 = vld [vmem:[%s659 + $0x34] sm:$0xf]
      %v674 = vld [vmem:[%s659 + $0x38] sm:$0xf]
      %v675 = vld [vmem:[%s659 + $0x3c] sm:$0xf]
      %v676 = vunpack.c.l.b16 %v560
      %v677 = vunpack.c.l.b16 %v574
      %v678 = vunpack.c.l.b16 %v588
      %v679 = vunpack.c.l.b16 %v602
      %v680 = vunpack.c.l.b16 %v616
      %v681 = vunpack.c.l.b16 %v630
      %v682 = vunpack.c.l.b16 %v644
      %v683 = vunpack.c.l.b16 %v658
      %v684 = vpack.c.b16 %v677, %v676
      %v685 = vpack.c.b16 %v679, %v678
      %v686 = vpack.c.b16 %v681, %v680
      %v687 = vpack.c.b16 %v683, %v682
      %v708 = vunpack.c.l.b16 %v660
      %v709 = vunpack.c.l.b16 %v661
      %v710 = vunpack.c.l.b16 %v662
      %v711 = vunpack.c.l.b16 %v663
      %v712 = vunpack.c.l.b16 %v664
      %v713 = vunpack.c.l.b16 %v665
      %v714 = vunpack.c.l.b16 %v666
      %v715 = vunpack.c.l.b16 %v667
      %v716 = vunpack.c.l.b16 %v668
      %v717 = vunpack.c.l.b16 %v669
      %v718 = vunpack.c.l.b16 %v670
      %v719 = vunpack.c.l.b16 %v671
      %v720 = vunpack.c.l.b16 %v672
      %v721 = vunpack.c.l.b16 %v673
      %v722 = vunpack.c.l.b16 %v674
      %v723 = vunpack.c.l.b16 %v675
      %v724 = vpack.c.b16 %v709, %v708
      %v725 = vpack.c.b16 %v711, %v710
      %v726 = vpack.c.b16 %v713, %v712
      %v727 = vpack.c.b16 %v715, %v714
      %v728 = vpack.c.b16 %v717, %v716
      %v729 = vpack.c.b16 %v719, %v718
      %v730 = vpack.c.b16 %v721, %v720
      %v731 = vpack.c.b16 %v723, %v722
      %740 = vmatprep.subr.bf16.mxu0 0
      %741 = vmatpush1.bf16.msra.mxu0 %v724
      %742 = vmatprep.subr.bf16.mxu0 0
      %743 = vmatpush1.bf16.msra.mxu0 %v725
      %744 = vmatprep.subr.bf16.mxu0 0
      %745 = vmatpush1.bf16.msra.mxu0 %v726
      %746 = vmatprep.subr.bf16.mxu0 0
      %747 = vmatpush1.bf16.msra.mxu0 %v727
      %748 = vmatprep.subr.bf16.mxu0 0
      %749 = vmatpush1.bf16.msra.mxu0 %v728
      %750 = vmatprep.subr.bf16.mxu0 0
      %751 = vmatpush1.bf16.msra.mxu0 %v729
      %752 = vmatprep.subr.bf16.mxu0 0
      %753 = vmatpush1.bf16.msra.mxu0 %v730
      %754 = vmatprep.subr.bf16.mxu0 0
      %755 = vmatpush1.bf16.msra.mxu0 %v731
      %756 = vmatprep.subr.bf16.mxu0 0
      %757 = vmatpush1.bf16.msra.mxu0 0
      %758 = vmatprep.subr.bf16.mxu0 0
      %759 = vmatpush1.bf16.msra.mxu0 0
      %760 = vmatprep.subr.bf16.mxu0 0
      %761 = vmatpush1.bf16.msra.mxu0 0
      %762 = vmatprep.subr.bf16.mxu0 0
      %763 = vmatpush1.bf16.msra.mxu0 0
      %764 = vmatprep.subr.bf16.mxu0 0
      %765 = vmatpush1.bf16.msra.mxu0 0
      %766 = vmatprep.subr.bf16.mxu0 0
      %767 = vmatpush1.bf16.msra.mxu0 0
      %768 = vmatprep.subr.bf16.mxu0 0
      %769 = vmatpush1.bf16.msra.mxu0 0
      %770 = vmatprep.subr.bf16.mxu0 0
      %771 = vmatpush1.bf16.msra.mxu0 0
      %772 = vmatprep.mubr.bf16.mxu0 0
      %773 = vmatmul.mubr.bf16.gmra.mrb[0].mxu0 %v684
      %v774 = vpop.f32.mrb[0].mxu0
      %v775 = vadd.f32 0.0, %v774
      %v776 = vpop.f32.mrb[0].mxu0
      %v777 = vpop.f32.mrb[0].mxu0
      %v778 = vadd.f32 0.0, %v777
      %v779 = vpop.f32.mrb[0].mxu0
      %780 = vmatprep.mubr.bf16.mxu0 0
      %781 = vmatmul.mubr.bf16.gmra.mrb[0].mxu0 %v685
      %v782 = vpop.f32.mrb[0].mxu0
      %v783 = vadd.f32 0.0, %v782
      %v784 = vpop.f32.mrb[0].mxu0
      %v785 = vpop.f32.mrb[0].mxu0
      %v786 = vadd.f32 0.0, %v785
      %v787 = vpop.f32.mrb[0].mxu0
      %788 = vmatprep.mubr.bf16.mxu0 0
      %789 = vmatmul.mubr.bf16.gmra.mrb[0].mxu0 %v686
      %v790 = vpop.f32.mrb[0].mxu0
      %v791 = vadd.f32 0.0, %v790
      %v792 = vpop.f32.mrb[0].mxu0
      %v793 = vpop.f32.mrb[0].mxu0
      %v794 = vadd.f32 0.0, %v793
      %v795 = vpop.f32.mrb[0].mxu0
      %796 = vmatprep.mubr.bf16.mxu0 0
      %797 = vmatmul.mubr.bf16.gmra.mrb[0].mxu0 %v687
      %v798 = vpop.f32.mrb[0].mxu0
      %v799 = vadd.f32 0.0, %v798
      %v800 = vpop.f32.mrb[0].mxu0
      %v801 = vpop.f32.mrb[0].mxu0
      %v802 = vadd.f32 0.0, %v801
      %v803 = vpop.f32.mrb[0].mxu0
      %804 = vdwg.mxu0
      %v805 = vadd.f32 %v498, %v775
      %v806 = vadd.f32 %v501, %v778
      %v807 = vadd.f32 %v506, %v783
      %v808 = vadd.f32 %v509, %v786
      %v809 = vadd.f32 %v514, %v791
      %v810 = vadd.f32 %v517, %v794
      %v811 = vadd.f32 %v522, %v799
      %v812 = vadd.f32 %v525, %v802
      %s813 = scalar_lea.vmem %s196, 144
      %v814 = vld [vmem:[%s813] sm:$0xf]
      %v815 = vld [vmem:[%s813 + $0x8] sm:$0xf]
      %v816 = vld [vmem:[%s813 + $0x10] sm:$0xf]
      %v817 = vld [vmem:[%s813 + $0x18] sm:$0xf]
      %v818 = vld [vmem:[%s813 + $0x20] sm:$0xf]
      %v819 = vld [vmem:[%s813 + $0x28] sm:$0xf]
      %v820 = vld [vmem:[%s813 + $0x30] sm:$0xf]
      %v821 = vld [vmem:[%s813 + $0x38] sm:$0xf]
      %s822 = scalar_lea.vmem %s1, 192
      %v823 = vld [vmem:[%s822] sm:$0xf]
      %v824 = vld [vmem:[%s822 + $0x4] sm:$0xf]
      %v825 = vld [vmem:[%s822 + $0x8] sm:$0xf]
      %v826 = vld [vmem:[%s822 + $0xc] sm:$0xf]
      %v827 = vld [vmem:[%s822 + $0x10] sm:$0xf]
      %v828 = vld [vmem:[%s822 + $0x14] sm:$0xf]
      %v829 = vld [vmem:[%s822 + $0x18] sm:$0xf]
      %v830 = vld [vmem:[%s822 + $0x1c] sm:$0xf]
      %v831 = vld [vmem:[%s822 + $0x20] sm:$0xf]
      %v832 = vld [vmem:[%s822 + $0x24] sm:$0xf]
      %v833 = vld [vmem:[%s822 + $0x28] sm:$0xf]
      %v834 = vld [vmem:[%s822 + $0x2c] sm:$0xf]
      %v835 = vld [vmem:[%s822 + $0x30] sm:$0xf]
      %v836 = vld [vmem:[%s822 + $0x34] sm:$0xf]
      %v837 = vld [vmem:[%s822 + $0x38] sm:$0xf]
      %v838 = vld [vmem:[%s822 + $0x3c] sm:$0xf]
      %v847 = vunpack.c.l.b16 %v814
      %v848 = vunpack.c.l.b16 %v815
      %v849 = vunpack.c.l.b16 %v816
      %v850 = vunpack.c.l.b16 %v817
      %v851 = vunpack.c.l.b16 %v818
      %v852 = vunpack.c.l.b16 %v819
      %v853 = vunpack.c.l.b16 %v820
      %v854 = vunpack.c.l.b16 %v821
      %v855 = vpack.c.b16 %v848, %v847
      %v856 = vpack.c.b16 %v850, %v849
      %v857 = vpack.c.b16 %v852, %v851
      %v858 = vpack.c.b16 %v854, %v853
      %v879 = vunpack.c.l.b16 %v823
      %v880 = vunpack.c.l.b16 %v824
      %v881 = vunpack.c.l.b16 %v825
      %v882 = vunpack.c.l.b16 %v826
      %v883 = vunpack.c.l.b16 %v827
      %v884 = vunpack.c.l.b16 %v828
      %v885 = vunpack.c.l.b16 %v829
      %v886 = vunpack.c.l.b16 %v830
      %v887 = vunpack.c.l.b16 %v831
      %v888 = vunpack.c.l.b16 %v832
      %v889 = vunpack.c.l.b16 %v833
      %v890 = vunpack.c.l.b16 %v834
      %v891 = vunpack.c.l.b16 %v835
      %v892 = vunpack.c.l.b16 %v836
      %v893 = vunpack.c.l.b16 %v837
      %v894 = vunpack.c.l.b16 %v838
      %v895 = vpack.c.b16 %v880, %v879
      %v896 = vpack.c.b16 %v882, %v881
      %v897 = vpack.c.b16 %v884, %v883
      %v898 = vpack.c.b16 %v886, %v885
      %v899 = vpack.c.b16 %v888, %v887
      %v900 = vpack.c.b16 %v890, %v889
      %v901 = vpack.c.b16 %v892, %v891
      %v902 = vpack.c.b16 %v894, %v893
      %911 = vmatprep.subr.bf16.mxu0 0
      %912 = vmatpush1.bf16.msra.mxu0 %v895
      %913 = vmatprep.subr.bf16.mxu0 0
      %914 = vmatpush1.bf16.msra.mxu0 %v896
      %915 = vmatprep.subr.bf16.mxu0 0
      %916 = vmatpush1.bf16.msra.mxu0 %v897
      %917 = vmatprep.subr.bf16.mxu0 0
      %918 = vmatpush1.bf16.msra.mxu0 %v898
      %919 = vmatprep.subr.bf16.mxu0 0
      %920 = vmatpush1.bf16.msra.mxu0 %v899
      %921 = vmatprep.subr.bf16.mxu0 0
      %922 = vmatpush1.bf16.msra.mxu0 %v900
      %923 = vmatprep.subr.bf16.mxu0 0
      %924 = vmatpush1.bf16.msra.mxu0 %v901
      %925 = vmatprep.subr.bf16.mxu0 0
      %926 = vmatpush1.bf16.msra.mxu0 %v902
      %927 = vmatprep.subr.bf16.mxu0 0
      %928 = vmatpush1.bf16.msra.mxu0 0
      %929 = vmatprep.subr.bf16.mxu0 0
      %930 = vmatpush1.bf16.msra.mxu0 0
      %931 = vmatprep.subr.bf16.mxu0 0
      %932 = vmatpush1.bf16.msra.mxu0 0
      %933 = vmatprep.subr.bf16.mxu0 0
      %934 = vmatpush1.bf16.msra.mxu0 0
      %935 = vmatprep.subr.bf16.mxu0 0
      %936 = vmatpush1.bf16.msra.mxu0 0
      %937 = vmatprep.subr.bf16.mxu0 0
      %938 = vmatpush1.bf16.msra.mxu0 0
      %939 = vmatprep.subr.bf16.mxu0 0
      %940 = vmatpush1.bf16.msra.mxu0 0
      %941 = vmatprep.subr.bf16.mxu0 0
      %942 = vmatpush1.bf16.msra.mxu0 0
      %943 = vmatprep.mubr.bf16.mxu0 0
      %944 = vmatmul.mubr.bf16.gmra.mrb[0].mxu0 %v855
      %v945 = vpop.f32.mrb[0].mxu0
      %v946 = vadd.f32 0.0, %v945
      %v947 = vpop.f32.mrb[0].mxu0
      %v948 = vpop.f32.mrb[0].mxu0
      %v949 = vadd.f32 0.0, %v948
      %v950 = vpop.f32.mrb[0].mxu0
      %951 = vmatprep.mubr.bf16.mxu0 0
      %952 = vmatmul.mubr.bf16.gmra.mrb[0].mxu0 %v856
      %v953 = vpop.f32.mrb[0].mxu0
      %v954 = vadd.f32 0.0, %v953
      %v955 = vpop.f32.mrb[0].mxu0
      %v956 = vpop.f32.mrb[0].mxu0
      %v957 = vadd.f32 0.0, %v956
      %v958 = vpop.f32.mrb[0].mxu0
      %959 = vmatprep.mubr.bf16.mxu0 0
      %960 = vmatmul.mubr.bf16.gmra.mrb[0].mxu0 %v857
      %v961 = vpop.f32.mrb[0].mxu0
      %v962 = vadd.f32 0.0, %v961
      %v963 = vpop.f32.mrb[0].mxu0
      %v964 = vpop.f32.mrb[0].mxu0
      %v965 = vadd.f32 0.0, %v964
      %v966 = vpop.f32.mrb[0].mxu0
      %967 = vmatprep.mubr.bf16.mxu0 0
      %968 = vmatmul.mubr.bf16.gmra.mrb[0].mxu0 %v858
      %v969 = vpop.f32.mrb[0].mxu0
      %v970 = vadd.f32 0.0, %v969
      %v971 = vpop.f32.mrb[0].mxu0
      %v972 = vpop.f32.mrb[0].mxu0
      %v973 = vadd.f32 0.0, %v972
      %v974 = vpop.f32.mrb[0].mxu0
      %975 = vdwg.mxu0
      %v976 = vadd.f32 %v805, %v946
      %v977 = vadd.f32 %v806, %v949
      %v978 = vadd.f32 %v807, %v954
      %v979 = vadd.f32 %v808, %v957
      %v980 = vadd.f32 %v809, %v962
      %v981 = vadd.f32 %v810, %v965
      %v982 = vadd.f32 %v811, %v970
      %v983 = vadd.f32 %v812, %v973
      %s984 = scalar_lea.vmem %s196, 216
      %v985 = vld [vmem:[%s984] sm:$0xf]
      %v986 = vld [vmem:[%s984 + $0x8] sm:$0xf]
      %v987 = vld [vmem:[%s984 + $0x10] sm:$0xf]
      %v988 = vld [vmem:[%s984 + $0x18] sm:$0xf]
      %v989 = vld [vmem:[%s984 + $0x20] sm:$0xf]
      %v990 = vld [vmem:[%s984 + $0x28] sm:$0xf]
      %v991 = vld [vmem:[%s984 + $0x30] sm:$0xf]
      %v992 = vld [vmem:[%s984 + $0x38] sm:$0xf]
      %s993 = scalar_lea.vmem %s1, 256
      %v994 = vld [vmem:[%s993] sm:$0xf]
      %v995 = vld [vmem:[%s993 + $0x4] sm:$0xf]
      %v996 = vld [vmem:[%s993 + $0x8] sm:$0xf]
      %v997 = vld [vmem:[%s993 + $0xc] sm:$0xf]
      %v998 = vld [vmem:[%s993 + $0x10] sm:$0xf]
      %v999 = vld [vmem:[%s993 + $0x14] sm:$0xf]
      %v1000 = vld [vmem:[%s993 + $0x18] sm:$0xf]
      %v1001 = vld [vmem:[%s993 + $0x1c] sm:$0xf]
      %v1002 = vld [vmem:[%s993 + $0x20] sm:$0xf]
      %v1003 = vld [vmem:[%s993 + $0x24] sm:$0xf]
      %v1004 = vld [vmem:[%s993 + $0x28] sm:$0xf]
      %v1005 = vld [vmem:[%s993 + $0x2c] sm:$0xf]
      %v1006 = vld [vmem:[%s993 + $0x30] sm:$0xf]
      %v1007 = vld [vmem:[%s993 + $0x34] sm:$0xf]
      %v1008 = vld [vmem:[%s993 + $0x38] sm:$0xf]
      %v1009 = vld [vmem:[%s993 + $0x3c] sm:$0xf]
      %v1018 = vunpack.c.l.b16 %v985
      %v1019 = vunpack.c.l.b16 %v986
      %v1020 = vunpack.c.l.b16 %v987
      %v1021 = vunpack.c.l.b16 %v988
      %v1022 = vunpack.c.l.b16 %v989
      %v1023 = vunpack.c.l.b16 %v990
      %v1024 = vunpack.c.l.b16 %v991
      %v1025 = vunpack.c.l.b16 %v992
      %v1026 = vpack.c.b16 %v1019, %v1018
      %v1027 = vpack.c.b16 %v1021, %v1020
      %v1028 = vpack.c.b16 %v1023, %v1022
      %v1029 = vpack.c.b16 %v1025, %v1024
      %v1050 = vunpack.c.l.b16 %v994
      %v1051 = vunpack.c.l.b16 %v995
      %v1052 = vunpack.c.l.b16 %v996
      %v1053 = vunpack.c.l.b16 %v997
      %v1054 = vunpack.c.l.b16 %v998
      %v1055 = vunpack.c.l.b16 %v999
      %v1056 = vunpack.c.l.b16 %v1000
      %v1057 = vunpack.c.l.b16 %v1001
      %v1058 = vunpack.c.l.b16 %v1002
      %v1059 = vunpack.c.l.b16 %v1003
      %v1060 = vunpack.c.l.b16 %v1004
      %v1061 = vunpack.c.l.b16 %v1005
      %v1062 = vunpack.c.l.b16 %v1006
      %v1063 = vunpack.c.l.b16 %v1007
      %v1064 = vunpack.c.l.b16 %v1008
      %v1065 = vunpack.c.l.b16 %v1009
      %v1066 = vpack.c.b16 %v1051, %v1050
      %v1067 = vpack.c.b16 %v1053, %v1052
      %v1068 = vpack.c.b16 %v1055, %v1054
      %v1069 = vpack.c.b16 %v1057, %v1056
      %v1070 = vpack.c.b16 %v1059, %v1058
      %v1071 = vpack.c.b16 %v1061, %v1060
      %v1072 = vpack.c.b16 %v1063, %v1062
      %v1073 = vpack.c.b16 %v1065, %v1064
      %1082 = vmatprep.subr.bf16.mxu0 0
      %1083 = vmatpush1.bf16.msra.mxu0 %v1066
      %1084 = vmatprep.subr.bf16.mxu0 0
      %1085 = vmatpush1.bf16.msra.mxu0 %v1067
      %1086 = vmatprep.subr.bf16.mxu0 0
      %1087 = vmatpush1.bf16.msra.mxu0 %v1068
      %1088 = vmatprep.subr.bf16.mxu0 0
      %1089 = vmatpush1.bf16.msra.mxu0 %v1069
      %1090 = vmatprep.subr.bf16.mxu0 0
      %1091 = vmatpush1.bf16.msra.mxu0 %v1070
      %1092 = vmatprep.subr.bf16.mxu0 0
      %1093 = vmatpush1.bf16.msra.mxu0 %v1071
      %1094 = vmatprep.subr.bf16.mxu0 0
      %1095 = vmatpush1.bf16.msra.mxu0 %v1072
      %1096 = vmatprep.subr.bf16.mxu0 0
      %1097 = vmatpush1.bf16.msra.mxu0 %v1073
      %1098 = vmatprep.subr.bf16.mxu0 0
      %1099 = vmatpush1.bf16.msra.mxu0 0
      %1100 = vmatprep.subr.bf16.mxu0 0
      %1101 = vmatpush1.bf16.msra.mxu0 0
      %1102 = vmatprep.subr.bf16.mxu0 0
      %1103 = vmatpush1.bf16.msra.mxu0 0
      %1104 = vmatprep.subr.bf16.mxu0 0
      %1105 = vmatpush1.bf16.msra.mxu0 0
      %1106 = vmatprep.subr.bf16.mxu0 0
      %1107 = vmatpush1.bf16.msra.mxu0 0
      %1108 = vmatprep.subr.bf16.mxu0 0
      %1109 = vmatpush1.bf16.msra.mxu0 0
      %1110 = vmatprep.subr.bf16.mxu0 0
      %1111 = vmatpush1.bf16.msra.mxu0 0
      %1112 = vmatprep.subr.bf16.mxu0 0
      %1113 = vmatpush1.bf16.msra.mxu0 0
      %1114 = vmatprep.mubr.bf16.mxu0 0
      %1115 = vmatmul.mubr.bf16.gmra.mrb[0].mxu0 %v1026
      %v1116 = vpop.f32.mrb[0].mxu0
      %v1117 = vadd.f32 0.0, %v1116
      %v1118 = vpop.f32.mrb[0].mxu0
      %v1119 = vpop.f32.mrb[0].mxu0
      %v1120 = vadd.f32 0.0, %v1119
      %v1121 = vpop.f32.mrb[0].mxu0
      %1122 = vmatprep.mubr.bf16.mxu0 0
      %1123 = vmatmul.mubr.bf16.gmra.mrb[0].mxu0 %v1027
      %v1124 = vpop.f32.mrb[0].mxu0
      %v1125 = vadd.f32 0.0, %v1124
      %v1126 = vpop.f32.mrb[0].mxu0
      %v1127 = vpop.f32.mrb[0].mxu0
      %v1128 = vadd.f32 0.0, %v1127
      %v1129 = vpop.f32.mrb[0].mxu0
      %1130 = vmatprep.mubr.bf16.mxu0 0
      %1131 = vmatmul.mubr.bf16.gmra.mrb[0].mxu0 %v1028
      %v1132 = vpop.f32.mrb[0].mxu0
      %v1133 = vadd.f32 0.0, %v1132
      %v1134 = vpop.f32.mrb[0].mxu0
      %v1135 = vpop.f32.mrb[0].mxu0
      %v1136 = vadd.f32 0.0, %v1135
      %v1137 = vpop.f32.mrb[0].mxu0
      %1138 = vmatprep.mubr.bf16.mxu0 0
      %1139 = vmatmul.mubr.bf16.gmra.mrb[0].mxu0 %v1029
      %v1140 = vpop.f32.mrb[0].mxu0
      %v1141 = vadd.f32 0.0, %v1140
      %v1142 = vpop.f32.mrb[0].mxu0
      %v1143 = vpop.f32.mrb[0].mxu0
      %v1144 = vadd.f32 0.0, %v1143
      %v1145 = vpop.f32.mrb[0].mxu0
      %1146 = vdwg.mxu0
      %v1147 = vadd.f32 %v976, %v1117
      %v1148 = vadd.f32 %v977, %v1120
      %v1149 = vadd.f32 %v978, %v1125
      %v1150 = vadd.f32 %v979, %v1128
      %v1151 = vadd.f32 %v980, %v1133
      %v1152 = vadd.f32 %v981, %v1136
      %v1153 = vadd.f32 %v982, %v1141
      %v1154 = vadd.f32 %v983, %v1144
      %v1155 = vld [vmem:[%s813] sm:$0xf]
      %v1156 = vld [vmem:[%s813 + $0x4] sm:$0x1]
      %v1157 = vld [vmem:[%s813 + $0x8] sm:$0xf]
      %v1158 = vld [vmem:[%s813 + $0xc] sm:$0x1]
      %v1159 = vld [vmem:[%s813 + $0x10] sm:$0xf]
      %v1160 = vld [vmem:[%s813 + $0x14] sm:$0x1]
      %v1161 = vld [vmem:[%s813 + $0x18] sm:$0xf]
      %v1162 = vld [vmem:[%s813 + $0x1c] sm:$0x1]
      %v1163 = vld [vmem:[%s813 + $0x20] sm:$0xf]
      %v1164 = vld [vmem:[%s813 + $0x24] sm:$0x1]
      %v1165 = vld [vmem:[%s813 + $0x28] sm:$0xf]
      %v1166 = vld [vmem:[%s813 + $0x2c] sm:$0x1]
      %v1167 = vld [vmem:[%s813 + $0x30] sm:$0xf]
      %v1168 = vld [vmem:[%s813 + $0x34] sm:$0x1]
      %v1169 = vld [vmem:[%s813 + $0x38] sm:$0xf]
      %v1170 = vld [vmem:[%s813 + $0x3c] sm:$0x1]
      %v1172 = vshrl.u32 %v1155, 16
      %v1174 = vrot.slane %v1172, 4
      %v1175 = vshll.u32 %v1155, 16
      %v1177 = vrot.slane %v1175, 5
      %v1178 = vor.u32 %v1174, %v1177
      %v1179 = vrot.slane %v1178, 4
      %v1181 = vshll.u32 %v1156, 16
      %v1183 = vrot.slane %v1181, 5
      %v1184 = vsel %vm546, %v1179, %v1183
      %v1186 = vshrl.u32 %v1157, 16
      %v1188 = vrot.slane %v1186, 4
      %v1189 = vshll.u32 %v1157, 16
      %v1191 = vrot.slane %v1189, 5
      %v1192 = vor.u32 %v1188, %v1191
      %v1193 = vrot.slane %v1192, 4
      %v1195 = vshll.u32 %v1158, 16
      %v1197 = vrot.slane %v1195, 5
      %v1198 = vsel %vm546, %v1193, %v1197
      %v1200 = vshrl.u32 %v1159, 16
      %v1202 = vrot.slane %v1200, 4
      %v1203 = vshll.u32 %v1159, 16
      %v1205 = vrot.slane %v1203, 5
      %v1206 = vor.u32 %v1202, %v1205
      %v1207 = vrot.slane %v1206, 4
      %v1209 = vshll.u32 %v1160, 16
      %v1211 = vrot.slane %v1209, 5
      %v1212 = vsel %vm546, %v1207, %v1211
      %v1214 = vshrl.u32 %v1161, 16
      %v1216 = vrot.slane %v1214, 4
      %v1217 = vshll.u32 %v1161, 16
      %v1219 = vrot.slane %v1217, 5
      %v1220 = vor.u32 %v1216, %v1219
      %v1221 = vrot.slane %v1220, 4
      %v1223 = vshll.u32 %v1162, 16
      %v1225 = vrot.slane %v1223, 5
      %v1226 = vsel %vm546, %v1221, %v1225
      %v1228 = vshrl.u32 %v1163, 16
      %v1230 = vrot.slane %v1228, 4
      %v1231 = vshll.u32 %v1163, 16
      %v1233 = vrot.slane %v1231, 5
      %v1234 = vor.u32 %v1230, %v1233
      %v1235 = vrot.slane %v1234, 4
      %v1237 = vshll.u32 %v1164, 16
      %v1239 = vrot.slane %v1237, 5
      %v1240 = vsel %vm546, %v1235, %v1239
      %v1242 = vshrl.u32 %v1165, 16
      %v1244 = vrot.slane %v1242, 4
      %v1245 = vshll.u32 %v1165, 16
      %v1247 = vrot.slane %v1245, 5
      %v1248 = vor.u32 %v1244, %v1247
      %v1249 = vrot.slane %v1248, 4
      %v1251 = vshll.u32 %v1166, 16
      %v1253 = vrot.slane %v1251, 5
      %v1254 = vsel %vm546, %v1249, %v1253
      %v1256 = vshrl.u32 %v1167, 16
      %v1258 = vrot.slane %v1256, 4
      %v1259 = vshll.u32 %v1167, 16
      %v1261 = vrot.slane %v1259, 5
      %v1262 = vor.u32 %v1258, %v1261
      %v1263 = vrot.slane %v1262, 4
      %v1265 = vshll.u32 %v1168, 16
      %v1267 = vrot.slane %v1265, 5
      %v1268 = vsel %vm546, %v1263, %v1267
      %v1270 = vshrl.u32 %v1169, 16
      %v1272 = vrot.slane %v1270, 4
      %v1273 = vshll.u32 %v1169, 16
      %v1275 = vrot.slane %v1273, 5
      %v1276 = vor.u32 %v1272, %v1275
      %v1277 = vrot.slane %v1276, 4
      %v1279 = vshll.u32 %v1170, 16
      %v1281 = vrot.slane %v1279, 5
      %v1282 = vsel %vm546, %v1277, %v1281
      %s1283 = scalar_lea.vmem %s1, 320
      %v1284 = vld [vmem:[%s1283] sm:$0xf]
      %v1285 = vld [vmem:[%s1283 + $0x4] sm:$0xf]
      %v1286 = vld [vmem:[%s1283 + $0x8] sm:$0xf]
      %v1287 = vld [vmem:[%s1283 + $0xc] sm:$0xf]
      %v1288 = vld [vmem:[%s1283 + $0x10] sm:$0xf]
      %v1289 = vld [vmem:[%s1283 + $0x14] sm:$0xf]
      %v1290 = vld [vmem:[%s1283 + $0x18] sm:$0xf]
      %v1291 = vld [vmem:[%s1283 + $0x1c] sm:$0xf]
      %v1292 = vld [vmem:[%s1283 + $0x20] sm:$0xf]
      %v1293 = vld [vmem:[%s1283 + $0x24] sm:$0xf]
      %v1294 = vld [vmem:[%s1283 + $0x28] sm:$0xf]
      %v1295 = vld [vmem:[%s1283 + $0x2c] sm:$0xf]
      %v1296 = vld [vmem:[%s1283 + $0x30] sm:$0xf]
      %v1297 = vld [vmem:[%s1283 + $0x34] sm:$0xf]
      %v1298 = vld [vmem:[%s1283 + $0x38] sm:$0xf]
      %v1299 = vld [vmem:[%s1283 + $0x3c] sm:$0xf]
      %v1300 = vunpack.c.l.b16 %v1184
      %v1301 = vunpack.c.l.b16 %v1198
      %v1302 = vunpack.c.l.b16 %v1212
      %v1303 = vunpack.c.l.b16 %v1226
      %v1304 = vunpack.c.l.b16 %v1240
      %v1305 = vunpack.c.l.b16 %v1254
      %v1306 = vunpack.c.l.b16 %v1268
      %v1307 = vunpack.c.l.b16 %v1282
      %v1308 = vpack.c.b16 %v1301, %v1300
      %v1309 = vpack.c.b16 %v1303, %v1302
      %v1310 = vpack.c.b16 %v1305, %v1304
      %v1311 = vpack.c.b16 %v1307, %v1306
      %v1332 = vunpack.c.l.b16 %v1284
      %v1333 = vunpack.c.l.b16 %v1285
      %v1334 = vunpack.c.l.b16 %v1286
      %v1335 = vunpack.c.l.b16 %v1287
      %v1336 = vunpack.c.l.b16 %v1288
      %v1337 = vunpack.c.l.b16 %v1289
      %v1338 = vunpack.c.l.b16 %v1290
      %v1339 = vunpack.c.l.b16 %v1291
      %v1340 = vunpack.c.l.b16 %v1292
      %v1341 = vunpack.c.l.b16 %v1293
      %v1342 = vunpack.c.l.b16 %v1294
      %v1343 = vunpack.c.l.b16 %v1295
      %v1344 = vunpack.c.l.b16 %v1296
      %v1345 = vunpack.c.l.b16 %v1297
      %v1346 = vunpack.c.l.b16 %v1298
      %v1347 = vunpack.c.l.b16 %v1299
      %v1348 = vpack.c.b16 %v1333, %v1332
      %v1349 = vpack.c.b16 %v1335, %v1334
      %v1350 = vpack.c.b16 %v1337, %v1336
      %v1351 = vpack.c.b16 %v1339, %v1338
      %v1352 = vpack.c.b16 %v1341, %v1340
      %v1353 = vpack.c.b16 %v1343, %v1342
      %v1354 = vpack.c.b16 %v1345, %v1344
      %v1355 = vpack.c.b16 %v1347, %v1346
      %1364 = vmatprep.subr.bf16.mxu0 0
      %1365 = vmatpush1.bf16.msra.mxu0 %v1348
      %1366 = vmatprep.subr.bf16.mxu0 0
      %1367 = vmatpush1.bf16.msra.mxu0 %v1349
      %1368 = vmatprep.subr.bf16.mxu0 0
      %1369 = vmatpush1.bf16.msra.mxu0 %v1350
      %1370 = vmatprep.subr.bf16.mxu0 0
      %1371 = vmatpush1.bf16.msra.mxu0 %v1351
      %1372 = vmatprep.subr.bf16.mxu0 0
      %1373 = vmatpush1.bf16.msra.mxu0 %v1352
      %1374 = vmatprep.subr.bf16.mxu0 0
      %1375 = vmatpush1.bf16.msra.mxu0 %v1353
      %1376 = vmatprep.subr.bf16.mxu0 0
      %1377 = vmatpush1.bf16.msra.mxu0 %v1354
      %1378 = vmatprep.subr.bf16.mxu0 0
      %1379 = vmatpush1.bf16.msra.mxu0 %v1355
      %1380 = vmatprep.subr.bf16.mxu0 0
      %1381 = vmatpush1.bf16.msra.mxu0 0
      %1382 = vmatprep.subr.bf16.mxu0 0
      %1383 = vmatpush1.bf16.msra.mxu0 0
      %1384 = vmatprep.subr.bf16.mxu0 0
      %1385 = vmatpush1.bf16.msra.mxu0 0
      %1386 = vmatprep.subr.bf16.mxu0 0
      %1387 = vmatpush1.bf16.msra.mxu0 0
      %1388 = vmatprep.subr.bf16.mxu0 0
      %1389 = vmatpush1.bf16.msra.mxu0 0
      %1390 = vmatprep.subr.bf16.mxu0 0
      %1391 = vmatpush1.bf16.msra.mxu0 0
      %1392 = vmatprep.subr.bf16.mxu0 0
      %1393 = vmatpush1.bf16.msra.mxu0 0
      %1394 = vmatprep.subr.bf16.mxu0 0
      %1395 = vmatpush1.bf16.msra.mxu0 0
      %1396 = vmatprep.mubr.bf16.mxu0 0
      %1397 = vmatmul.mubr.bf16.gmra.mrb[0].mxu0 %v1308
      %v1398 = vpop.f32.mrb[0].mxu0
      %v1399 = vadd.f32 0.0, %v1398
      %v1400 = vpop.f32.mrb[0].mxu0
      %v1401 = vpop.f32.mrb[0].mxu0
      %v1402 = vadd.f32 0.0, %v1401
      %v1403 = vpop.f32.mrb[0].mxu0
      %1404 = vmatprep.mubr.bf16.mxu0 0
      %1405 = vmatmul.mubr.bf16.gmra.mrb[0].mxu0 %v1309
      %v1406 = vpop.f32.mrb[0].mxu0
      %v1407 = vadd.f32 0.0, %v1406
      %v1408 = vpop.f32.mrb[0].mxu0
      %v1409 = vpop.f32.mrb[0].mxu0
      %v1410 = vadd.f32 0.0, %v1409
      %v1411 = vpop.f32.mrb[0].mxu0
      %1412 = vmatprep.mubr.bf16.mxu0 0
      %1413 = vmatmul.mubr.bf16.gmra.mrb[0].mxu0 %v1310
      %v1414 = vpop.f32.mrb[0].mxu0
      %v1415 = vadd.f32 0.0, %v1414
      %v1416 = vpop.f32.mrb[0].mxu0
      %v1417 = vpop.f32.mrb[0].mxu0
      %v1418 = vadd.f32 0.0, %v1417
      %v1419 = vpop.f32.mrb[0].mxu0
      %1420 = vmatprep.mubr.bf16.mxu0 0
      %1421 = vmatmul.mubr.bf16.gmra.mrb[0].mxu0 %v1311
      %v1422 = vpop.f32.mrb[0].mxu0
      %v1423 = vadd.f32 0.0, %v1422
      %v1424 = vpop.f32.mrb[0].mxu0
      %v1425 = vpop.f32.mrb[0].mxu0
      %v1426 = vadd.f32 0.0, %v1425
      %v1427 = vpop.f32.mrb[0].mxu0
      %1428 = vdwg.mxu0
      %v1429 = vadd.f32 %v1147, %v1399
      %v1430 = vadd.f32 %v1148, %v1402
      %v1431 = vadd.f32 %v1149, %v1407
      %v1432 = vadd.f32 %v1150, %v1410
      %v1433 = vadd.f32 %v1151, %v1415
      %v1434 = vadd.f32 %v1152, %v1418
      %v1435 = vadd.f32 %v1153, %v1423
      %v1436 = vadd.f32 %v1154, %v1426
      %s1437 = scalar_lea.vmem %s196, 8
      %v1438 = vld [vmem:[%s1437] sm:$0xf]
      %v1439 = vld [vmem:[%s1437 + $0x8] sm:$0xf]
      %v1440 = vld [vmem:[%s1437 + $0x10] sm:$0xf]
      %v1441 = vld [vmem:[%s1437 + $0x18] sm:$0xf]
      %v1442 = vld [vmem:[%s1437 + $0x20] sm:$0xf]
      %v1443 = vld [vmem:[%s1437 + $0x28] sm:$0xf]
      %v1444 = vld [vmem:[%s1437 + $0x30] sm:$0xf]
      %v1445 = vld [vmem:[%s1437 + $0x38] sm:$0xf]
      %s1446 = scalar_lea.vmem %s1, 384
      %v1447 = vld [vmem:[%s1446] sm:$0xf]
      %v1448 = vld [vmem:[%s1446 + $0x4] sm:$0xf]
      %v1449 = vld [vmem:[%s1446 + $0x8] sm:$0xf]
      %v1450 = vld [vmem:[%s1446 + $0xc] sm:$0xf]
      %v1451 = vld [vmem:[%s1446 + $0x10] sm:$0xf]
      %v1452 = vld [vmem:[%s1446 + $0x14] sm:$0xf]
      %v1453 = vld [vmem:[%s1446 + $0x18] sm:$0xf]
      %v1454 = vld [vmem:[%s1446 + $0x1c] sm:$0xf]
      %v1455 = vld [vmem:[%s1446 + $0x20] sm:$0xf]
      %v1456 = vld [vmem:[%s1446 + $0x24] sm:$0xf]
      %v1457 = vld [vmem:[%s1446 + $0x28] sm:$0xf]
      %v1458 = vld [vmem:[%s1446 + $0x2c] sm:$0xf]
      %v1459 = vld [vmem:[%s1446 + $0x30] sm:$0xf]
      %v1460 = vld [vmem:[%s1446 + $0x34] sm:$0xf]
      %v1461 = vld [vmem:[%s1446 + $0x38] sm:$0xf]
      %v1462 = vld [vmem:[%s1446 + $0x3c] sm:$0xf]
      %v1471 = vunpack.c.l.b16 %v1438
      %v1472 = vunpack.c.l.b16 %v1439
      %v1473 = vunpack.c.l.b16 %v1440
      %v1474 = vunpack.c.l.b16 %v1441
      %v1475 = vunpack.c.l.b16 %v1442
      %v1476 = vunpack.c.l.b16 %v1443
      %v1477 = vunpack.c.l.b16 %v1444
      %v1478 = vunpack.c.l.b16 %v1445
      %v1479 = vpack.c.b16 %v1472, %v1471
      %v1480 = vpack.c.b16 %v1474, %v1473
      %v1481 = vpack.c.b16 %v1476, %v1475
      %v1482 = vpack.c.b16 %v1478, %v1477
      %v1503 = vunpack.c.l.b16 %v1447
      %v1504 = vunpack.c.l.b16 %v1448
      %v1505 = vunpack.c.l.b16 %v1449
      %v1506 = vunpack.c.l.b16 %v1450
      %v1507 = vunpack.c.l.b16 %v1451
      %v1508 = vunpack.c.l.b16 %v1452
      %v1509 = vunpack.c.l.b16 %v1453
      %v1510 = vunpack.c.l.b16 %v1454
      %v1511 = vunpack.c.l.b16 %v1455
      %v1512 = vunpack.c.l.b16 %v1456
      %v1513 = vunpack.c.l.b16 %v1457
      %v1514 = vunpack.c.l.b16 %v1458
      %v1515 = vunpack.c.l.b16 %v1459
      %v1516 = vunpack.c.l.b16 %v1460
      %v1517 = vunpack.c.l.b16 %v1461
      %v1518 = vunpack.c.l.b16 %v1462
      %v1519 = vpack.c.b16 %v1504, %v1503
      %v1520 = vpack.c.b16 %v1506, %v1505
      %v1521 = vpack.c.b16 %v1508, %v1507
      %v1522 = vpack.c.b16 %v1510, %v1509
      %v1523 = vpack.c.b16 %v1512, %v1511
      %v1524 = vpack.c.b16 %v1514, %v1513
      %v1525 = vpack.c.b16 %v1516, %v1515
      %v1526 = vpack.c.b16 %v1518, %v1517
      %1535 = vmatprep.subr.bf16.mxu0 0
      %1536 = vmatpush1.bf16.msra.mxu0 %v1519
      %1537 = vmatprep.subr.bf16.mxu0 0
      %1538 = vmatpush1.bf16.msra.mxu0 %v1520
      %1539 = vmatprep.subr.bf16.mxu0 0
      %1540 = vmatpush1.bf16.msra.mxu0 %v1521
      %1541 = vmatprep.subr.bf16.mxu0 0
      %1542 = vmatpush1.bf16.msra.mxu0 %v1522
      %1543 = vmatprep.subr.bf16.mxu0 0
      %1544 = vmatpush1.bf16.msra.mxu0 %v1523
      %1545 = vmatprep.subr.bf16.mxu0 0
      %1546 = vmatpush1.bf16.msra.mxu0 %v1524
      %1547 = vmatprep.subr.bf16.mxu0 0
      %1548 = vmatpush1.bf16.msra.mxu0 %v1525
      %1549 = vmatprep.subr.bf16.mxu0 0
      %1550 = vmatpush1.bf16.msra.mxu0 %v1526
      %1551 = vmatprep.subr.bf16.mxu0 0
      %1552 = vmatpush1.bf16.msra.mxu0 0
      %1553 = vmatprep.subr.bf16.mxu0 0
      %1554 = vmatpush1.bf16.msra.mxu0 0
      %1555 = vmatprep.subr.bf16.mxu0 0
      %1556 = vmatpush1.bf16.msra.mxu0 0
      %1557 = vmatprep.subr.bf16.mxu0 0
      %1558 = vmatpush1.bf16.msra.mxu0 0
      %1559 = vmatprep.subr.bf16.mxu0 0
      %1560 = vmatpush1.bf16.msra.mxu0 0
      %1561 = vmatprep.subr.bf16.mxu0 0
      %1562 = vmatpush1.bf16.msra.mxu0 0
      %1563 = vmatprep.subr.bf16.mxu0 0
      %1564 = vmatpush1.bf16.msra.mxu0 0
      %1565 = vmatprep.subr.bf16.mxu0 0
      %1566 = vmatpush1.bf16.msra.mxu0 0
      %1567 = vmatprep.mubr.bf16.mxu0 0
      %1568 = vmatmul.mubr.bf16.gmra.mrb[0].mxu0 %v1479
      %v1569 = vpop.f32.mrb[0].mxu0
      %v1570 = vadd.f32 0.0, %v1569
      %v1571 = vpop.f32.mrb[0].mxu0
      %v1572 = vpop.f32.mrb[0].mxu0
      %v1573 = vadd.f32 0.0, %v1572
      %v1574 = vpop.f32.mrb[0].mxu0
      %1575 = vmatprep.mubr.bf16.mxu0 0
      %1576 = vmatmul.mubr.bf16.gmra.mrb[0].mxu0 %v1480
      %v1577 = vpop.f32.mrb[0].mxu0
      %v1578 = vadd.f32 0.0, %v1577
      %v1579 = vpop.f32.mrb[0].mxu0
      %v1580 = vpop.f32.mrb[0].mxu0
      %v1581 = vadd.f32 0.0, %v1580
      %v1582 = vpop.f32.mrb[0].mxu0
      %1583 = vmatprep.mubr.bf16.mxu0 0
      %1584 = vmatmul.mubr.bf16.gmra.mrb[0].mxu0 %v1481
      %v1585 = vpop.f32.mrb[0].mxu0
      %v1586 = vadd.f32 0.0, %v1585
      %v1587 = vpop.f32.mrb[0].mxu0
      %v1588 = vpop.f32.mrb[0].mxu0
      %v1589 = vadd.f32 0.0, %v1588
      %v1590 = vpop.f32.mrb[0].mxu0
      %1591 = vmatprep.mubr.bf16.mxu0 0
      %1592 = vmatmul.mubr.bf16.gmra.mrb[0].mxu0 %v1482
      %v1593 = vpop.f32.mrb[0].mxu0
      %v1594 = vadd.f32 0.0, %v1593
      %v1595 = vpop.f32.mrb[0].mxu0
      %v1596 = vpop.f32.mrb[0].mxu0
      %v1597 = vadd.f32 0.0, %v1596
      %v1598 = vpop.f32.mrb[0].mxu0
      %1599 = vdwg.mxu0
      %v1600 = vadd.f32 %v1429, %v1570
      %v1601 = vadd.f32 %v1430, %v1573
      %v1602 = vadd.f32 %v1431, %v1578
      %v1603 = vadd.f32 %v1432, %v1581
      %v1604 = vadd.f32 %v1433, %v1586
      %v1605 = vadd.f32 %v1434, %v1589
      %v1606 = vadd.f32 %v1435, %v1594
      %v1607 = vadd.f32 %v1436, %v1597
      %s1608 = scalar_lea.vmem %s196, 80
      %v1609 = vld [vmem:[%s1608] sm:$0xf]
      %v1610 = vld [vmem:[%s1608 + $0x8] sm:$0xf]
      %v1611 = vld [vmem:[%s1608 + $0x10] sm:$0xf]
      %v1612 = vld [vmem:[%s1608 + $0x18] sm:$0xf]
      %v1613 = vld [vmem:[%s1608 + $0x20] sm:$0xf]
      %v1614 = vld [vmem:[%s1608 + $0x28] sm:$0xf]
      %v1615 = vld [vmem:[%s1608 + $0x30] sm:$0xf]
      %v1616 = vld [vmem:[%s1608 + $0x38] sm:$0xf]
      %s1617 = scalar_lea.vmem %s1, 448
      %v1618 = vld [vmem:[%s1617] sm:$0xf]
      %v1619 = vld [vmem:[%s1617 + $0x4] sm:$0xf]
      %v1620 = vld [vmem:[%s1617 + $0x8] sm:$0xf]
      %v1621 = vld [vmem:[%s1617 + $0xc] sm:$0xf]
      %v1622 = vld [vmem:[%s1617 + $0x10] sm:$0xf]
      %v1623 = vld [vmem:[%s1617 + $0x14] sm:$0xf]
      %v1624 = vld [vmem:[%s1617 + $0x18] sm:$0xf]
      %v1625 = vld [vmem:[%s1617 + $0x1c] sm:$0xf]
      %v1626 = vld [vmem:[%s1617 + $0x20] sm:$0xf]
      %v1627 = vld [vmem:[%s1617 + $0x24] sm:$0xf]
      %v1628 = vld [vmem:[%s1617 + $0x28] sm:$0xf]
      %v1629 = vld [vmem:[%s1617 + $0x2c] sm:$0xf]
      %v1630 = vld [vmem:[%s1617 + $0x30] sm:$0xf]
      %v1631 = vld [vmem:[%s1617 + $0x34] sm:$0xf]
      %v1632 = vld [vmem:[%s1617 + $0x38] sm:$0xf]
      %v1633 = vld [vmem:[%s1617 + $0x3c] sm:$0xf]
      %v1642 = vunpack.c.l.b16 %v1609
      %v1643 = vunpack.c.l.b16 %v1610
      %v1644 = vunpack.c.l.b16 %v1611
      %v1645 = vunpack.c.l.b16 %v1612
      %v1646 = vunpack.c.l.b16 %v1613
      %v1647 = vunpack.c.l.b16 %v1614
      %v1648 = vunpack.c.l.b16 %v1615
      %v1649 = vunpack.c.l.b16 %v1616
      %v1650 = vpack.c.b16 %v1643, %v1642
      %v1651 = vpack.c.b16 %v1645, %v1644
      %v1652 = vpack.c.b16 %v1647, %v1646
      %v1653 = vpack.c.b16 %v1649, %v1648
      %v1674 = vunpack.c.l.b16 %v1618
      %v1675 = vunpack.c.l.b16 %v1619
      %v1676 = vunpack.c.l.b16 %v1620
      %v1677 = vunpack.c.l.b16 %v1621
      %v1678 = vunpack.c.l.b16 %v1622
      %v1679 = vunpack.c.l.b16 %v1623
      %v1680 = vunpack.c.l.b16 %v1624
      %v1681 = vunpack.c.l.b16 %v1625
      %v1682 = vunpack.c.l.b16 %v1626
      %v1683 = vunpack.c.l.b16 %v1627
      %v1684 = vunpack.c.l.b16 %v1628
      %v1685 = vunpack.c.l.b16 %v1629
      %v1686 = vunpack.c.l.b16 %v1630
      %v1687 = vunpack.c.l.b16 %v1631
      %v1688 = vunpack.c.l.b16 %v1632
      %v1689 = vunpack.c.l.b16 %v1633
      %v1690 = vpack.c.b16 %v1675, %v1674
      %v1691 = vpack.c.b16 %v1677, %v1676
      %v1692 = vpack.c.b16 %v1679, %v1678
      %v1693 = vpack.c.b16 %v1681, %v1680
      %v1694 = vpack.c.b16 %v1683, %v1682
      %v1695 = vpack.c.b16 %v1685, %v1684
      %v1696 = vpack.c.b16 %v1687, %v1686
      %v1697 = vpack.c.b16 %v1689, %v1688
      %1706 = vmatprep.subr.bf16.mxu0 0
      %1707 = vmatpush1.bf16.msra.mxu0 %v1690
      %1708 = vmatprep.subr.bf16.mxu0 0
      %1709 = vmatpush1.bf16.msra.mxu0 %v1691
      %1710 = vmatprep.subr.bf16.mxu0 0
      %1711 = vmatpush1.bf16.msra.mxu0 %v1692
      %1712 = vmatprep.subr.bf16.mxu0 0
      %1713 = vmatpush1.bf16.msra.mxu0 %v1693
      %1714 = vmatprep.subr.bf16.mxu0 0
      %1715 = vmatpush1.bf16.msra.mxu0 %v1694
      %1716 = vmatprep.subr.bf16.mxu0 0
      %1717 = vmatpush1.bf16.msra.mxu0 %v1695
      %1718 = vmatprep.subr.bf16.mxu0 0
      %1719 = vmatpush1.bf16.msra.mxu0 %v1696
      %1720 = vmatprep.subr.bf16.mxu0 0
      %1721 = vmatpush1.bf16.msra.mxu0 %v1697
      %1722 = vmatprep.subr.bf16.mxu0 0
      %1723 = vmatpush1.bf16.msra.mxu0 0
      %1724 = vmatprep.subr.bf16.mxu0 0
      %1725 = vmatpush1.bf16.msra.mxu0 0
      %1726 = vmatprep.subr.bf16.mxu0 0
      %1727 = vmatpush1.bf16.msra.mxu0 0
      %1728 = vmatprep.subr.bf16.mxu0 0
      %1729 = vmatpush1.bf16.msra.mxu0 0
      %1730 = vmatprep.subr.bf16.mxu0 0
      %1731 = vmatpush1.bf16.msra.mxu0 0
      %1732 = vmatprep.subr.bf16.mxu0 0
      %1733 = vmatpush1.bf16.msra.mxu0 0
      %1734 = vmatprep.subr.bf16.mxu0 0
      %1735 = vmatpush1.bf16.msra.mxu0 0
      %1736 = vmatprep.subr.bf16.mxu0 0
      %1737 = vmatpush1.bf16.msra.mxu0 0
      %1738 = vmatprep.mubr.bf16.mxu0 0
      %1739 = vmatmul.mubr.bf16.gmra.mrb[0].mxu0 %v1650
      %v1740 = vpop.f32.mrb[0].mxu0
      %v1741 = vadd.f32 0.0, %v1740
      %v1742 = vpop.f32.mrb[0].mxu0
      %v1743 = vpop.f32.mrb[0].mxu0
      %v1744 = vadd.f32 0.0, %v1743
      %v1745 = vpop.f32.mrb[0].mxu0
      %1746 = vmatprep.mubr.bf16.mxu0 0
      %1747 = vmatmul.mubr.bf16.gmra.mrb[0].mxu0 %v1651
      %v1748 = vpop.f32.mrb[0].mxu0
      %v1749 = vadd.f32 0.0, %v1748
      %v1750 = vpop.f32.mrb[0].mxu0
      %v1751 = vpop.f32.mrb[0].mxu0
      %v1752 = vadd.f32 0.0, %v1751
      %v1753 = vpop.f32.mrb[0].mxu0
      %1754 = vmatprep.mubr.bf16.mxu0 0
      %1755 = vmatmul.mubr.bf16.gmra.mrb[0].mxu0 %v1652
      %v1756 = vpop.f32.mrb[0].mxu0
      %v1757 = vadd.f32 0.0, %v1756
      %v1758 = vpop.f32.mrb[0].mxu0
      %v1759 = vpop.f32.mrb[0].mxu0
      %v1760 = vadd.f32 0.0, %v1759
      %v1761 = vpop.f32.mrb[0].mxu0
      %1762 = vmatprep.mubr.bf16.mxu0 0
      %1763 = vmatmul.mubr.bf16.gmra.mrb[0].mxu0 %v1653
      %v1764 = vpop.f32.mrb[0].mxu0
      %v1765 = vadd.f32 0.0, %v1764
      %v1766 = vpop.f32.mrb[0].mxu0
      %v1767 = vpop.f32.mrb[0].mxu0
      %v1768 = vadd.f32 0.0, %v1767
      %v1769 = vpop.f32.mrb[0].mxu0
      %1770 = vdwg.mxu0
      %v1771 = vadd.f32 %v1600, %v1741
      %v1772 = vadd.f32 %v1601, %v1744
      %v1773 = vadd.f32 %v1602, %v1749
      %v1774 = vadd.f32 %v1603, %v1752
      %v1775 = vadd.f32 %v1604, %v1757
      %v1776 = vadd.f32 %v1605, %v1760
      %v1777 = vadd.f32 %v1606, %v1765
      %v1778 = vadd.f32 %v1607, %v1768
      %v1779 = vld [vmem:[%s1437] sm:$0xf]
      %v1780 = vld [vmem:[%s1437 + $0x4] sm:$0x1]
      %v1781 = vld [vmem:[%s1437 + $0x8] sm:$0xf]
      %v1782 = vld [vmem:[%s1437 + $0xc] sm:$0x1]
      %v1783 = vld [vmem:[%s1437 + $0x10] sm:$0xf]
      %v1784 = vld [vmem:[%s1437 + $0x14] sm:$0x1]
      %v1785 = vld [vmem:[%s1437 + $0x18] sm:$0xf]
      %v1786 = vld [vmem:[%s1437 + $0x1c] sm:$0x1]
      %v1787 = vld [vmem:[%s1437 + $0x20] sm:$0xf]
      %v1788 = vld [vmem:[%s1437 + $0x24] sm:$0x1]
      %v1789 = vld [vmem:[%s1437 + $0x28] sm:$0xf]
      %v1790 = vld [vmem:[%s1437 + $0x2c] sm:$0x1]
      %v1791 = vld [vmem:[%s1437 + $0x30] sm:$0xf]
      %v1792 = vld [vmem:[%s1437 + $0x34] sm:$0x1]
      %v1793 = vld [vmem:[%s1437 + $0x38] sm:$0xf]
      %v1794 = vld [vmem:[%s1437 + $0x3c] sm:$0x1]
      %v1796 = vshrl.u32 %v1779, 16
      %v1798 = vrot.slane %v1796, 4
      %v1799 = vshll.u32 %v1779, 16
      %v1801 = vrot.slane %v1799, 5
      %v1802 = vor.u32 %v1798, %v1801
      %v1803 = vrot.slane %v1802, 4
      %v1805 = vshll.u32 %v1780, 16
      %v1807 = vrot.slane %v1805, 5
      %v1808 = vsel %vm546, %v1803, %v1807
      %v1810 = vshrl.u32 %v1781, 16
      %v1812 = vrot.slane %v1810, 4
      %v1813 = vshll.u32 %v1781, 16
      %v1815 = vrot.slane %v1813, 5
      %v1816 = vor.u32 %v1812, %v1815
      %v1817 = vrot.slane %v1816, 4
      %v1819 = vshll.u32 %v1782, 16
      %v1821 = vrot.slane %v1819, 5
      %v1822 = vsel %vm546, %v1817, %v1821
      %v1824 = vshrl.u32 %v1783, 16
      %v1826 = vrot.slane %v1824, 4
      %v1827 = vshll.u32 %v1783, 16
      %v1829 = vrot.slane %v1827, 5
      %v1830 = vor.u32 %v1826, %v1829
      %v1831 = vrot.slane %v1830, 4
      %v1833 = vshll.u32 %v1784, 16
      %v1835 = vrot.slane %v1833, 5
      %v1836 = vsel %vm546, %v1831, %v1835
      %v1838 = vshrl.u32 %v1785, 16
      %v1840 = vrot.slane %v1838, 4
      %v1841 = vshll.u32 %v1785, 16
      %v1843 = vrot.slane %v1841, 5
      %v1844 = vor.u32 %v1840, %v1843
      %v1845 = vrot.slane %v1844, 4
      %v1847 = vshll.u32 %v1786, 16
      %v1849 = vrot.slane %v1847, 5
      %v1850 = vsel %vm546, %v1845, %v1849
      %v1852 = vshrl.u32 %v1787, 16
      %v1854 = vrot.slane %v1852, 4
      %v1855 = vshll.u32 %v1787, 16
      %v1857 = vrot.slane %v1855, 5
      %v1858 = vor.u32 %v1854, %v1857
      %v1859 = vrot.slane %v1858, 4
      %v1861 = vshll.u32 %v1788, 16
      %v1863 = vrot.slane %v1861, 5
      %v1864 = vsel %vm546, %v1859, %v1863
      %v1866 = vshrl.u32 %v1789, 16
      %v1868 = vrot.slane %v1866, 4
      %v1869 = vshll.u32 %v1789, 16
      %v1871 = vrot.slane %v1869, 5
      %v1872 = vor.u32 %v1868, %v1871
      %v1873 = vrot.slane %v1872, 4
      %v1875 = vshll.u32 %v1790, 16
      %v1877 = vrot.slane %v1875, 5
      %v1878 = vsel %vm546, %v1873, %v1877
      %v1880 = vshrl.u32 %v1791, 16
      %v1882 = vrot.slane %v1880, 4
      %v1883 = vshll.u32 %v1791, 16
      %v1885 = vrot.slane %v1883, 5
      %v1886 = vor.u32 %v1882, %v1885
      %v1887 = vrot.slane %v1886, 4
      %v1889 = vshll.u32 %v1792, 16
      %v1891 = vrot.slane %v1889, 5
      %v1892 = vsel %vm546, %v1887, %v1891
      %v1894 = vshrl.u32 %v1793, 16
      %v1896 = vrot.slane %v1894, 4
      %v1897 = vshll.u32 %v1793, 16
      %v1899 = vrot.slane %v1897, 5
      %v1900 = vor.u32 %v1896, %v1899
      %v1901 = vrot.slane %v1900, 4
      %v1903 = vshll.u32 %v1794, 16
      %v1905 = vrot.slane %v1903, 5
      %v1906 = vsel %vm546, %v1901, %v1905
      %s1907 = scalar_lea.vmem %s1, 512
      %v1908 = vld [vmem:[%s1907] sm:$0xf]
      %v1909 = vld [vmem:[%s1907 + $0x4] sm:$0xf]
      %v1910 = vld [vmem:[%s1907 + $0x8] sm:$0xf]
      %v1911 = vld [vmem:[%s1907 + $0xc] sm:$0xf]
      %v1912 = vld [vmem:[%s1907 + $0x10] sm:$0xf]
      %v1913 = vld [vmem:[%s1907 + $0x14] sm:$0xf]
      %v1914 = vld [vmem:[%s1907 + $0x18] sm:$0xf]
      %v1915 = vld [vmem:[%s1907 + $0x1c] sm:$0xf]
      %v1916 = vld [vmem:[%s1907 + $0x20] sm:$0xf]
      %v1917 = vld [vmem:[%s1907 + $0x24] sm:$0xf]
      %v1918 = vld [vmem:[%s1907 + $0x28] sm:$0xf]
      %v1919 = vld [vmem:[%s1907 + $0x2c] sm:$0xf]
      %v1920 = vld [vmem:[%s1907 + $0x30] sm:$0xf]
      %v1921 = vld [vmem:[%s1907 + $0x34] sm:$0xf]
      %v1922 = vld [vmem:[%s1907 + $0x38] sm:$0xf]
      %v1923 = vld [vmem:[%s1907 + $0x3c] sm:$0xf]
      %v1924 = vunpack.c.l.b16 %v1808
      %v1925 = vunpack.c.l.b16 %v1822
      %v1926 = vunpack.c.l.b16 %v1836
      %v1927 = vunpack.c.l.b16 %v1850
      %v1928 = vunpack.c.l.b16 %v1864
      %v1929 = vunpack.c.l.b16 %v1878
      %v1930 = vunpack.c.l.b16 %v1892
      %v1931 = vunpack.c.l.b16 %v1906
      %v1932 = vpack.c.b16 %v1925, %v1924
      %v1933 = vpack.c.b16 %v1927, %v1926
      %v1934 = vpack.c.b16 %v1929, %v1928
      %v1935 = vpack.c.b16 %v1931, %v1930
      %v1956 = vunpack.c.l.b16 %v1908
      %v1957 = vunpack.c.l.b16 %v1909
      %v1958 = vunpack.c.l.b16 %v1910
      %v1959 = vunpack.c.l.b16 %v1911
      %v1960 = vunpack.c.l.b16 %v1912
      %v1961 = vunpack.c.l.b16 %v1913
      %v1962 = vunpack.c.l.b16 %v1914
      %v1963 = vunpack.c.l.b16 %v1915
      %v1964 = vunpack.c.l.b16 %v1916
      %v1965 = vunpack.c.l.b16 %v1917
      %v1966 = vunpack.c.l.b16 %v1918
      %v1967 = vunpack.c.l.b16 %v1919
      %v1968 = vunpack.c.l.b16 %v1920
      %v1969 = vunpack.c.l.b16 %v1921
      %v1970 = vunpack.c.l.b16 %v1922
      %v1971 = vunpack.c.l.b16 %v1923
      %v1972 = vpack.c.b16 %v1957, %v1956
      %v1973 = vpack.c.b16 %v1959, %v1958
      %v1974 = vpack.c.b16 %v1961, %v1960
      %v1975 = vpack.c.b16 %v1963, %v1962
      %v1976 = vpack.c.b16 %v1965, %v1964
      %v1977 = vpack.c.b16 %v1967, %v1966
      %v1978 = vpack.c.b16 %v1969, %v1968
      %v1979 = vpack.c.b16 %v1971, %v1970
      %1988 = vmatprep.subr.bf16.mxu0 0
      %1989 = vmatpush1.bf16.msra.mxu0 %v1972
      %1990 = vmatprep.subr.bf16.mxu0 0
      %1991 = vmatpush1.bf16.msra.mxu0 %v1973
      %1992 = vmatprep.subr.bf16.mxu0 0
      %1993 = vmatpush1.bf16.msra.mxu0 %v1974
      %1994 = vmatprep.subr.bf16.mxu0 0
      %1995 = vmatpush1.bf16.msra.mxu0 %v1975
      %1996 = vmatprep.subr.bf16.mxu0 0
      %1997 = vmatpush1.bf16.msra.mxu0 %v1976
      %1998 = vmatprep.subr.bf16.mxu0 0
      %1999 = vmatpush1.bf16.msra.mxu0 %v1977
      %2000 = vmatprep.subr.bf16.mxu0 0
      %2001 = vmatpush1.bf16.msra.mxu0 %v1978
      %2002 = vmatprep.subr.bf16.mxu0 0
      %2003 = vmatpush1.bf16.msra.mxu0 %v1979
      %2004 = vmatprep.subr.bf16.mxu0 0
      %2005 = vmatpush1.bf16.msra.mxu0 0
      %2006 = vmatprep.subr.bf16.mxu0 0
      %2007 = vmatpush1.bf16.msra.mxu0 0
      %2008 = vmatprep.subr.bf16.mxu0 0
      %2009 = vmatpush1.bf16.msra.mxu0 0
      %2010 = vmatprep.subr.bf16.mxu0 0
      %2011 = vmatpush1.bf16.msra.mxu0 0
      %2012 = vmatprep.subr.bf16.mxu0 0
      %2013 = vmatpush1.bf16.msra.mxu0 0
      %2014 = vmatprep.subr.bf16.mxu0 0
      %2015 = vmatpush1.bf16.msra.mxu0 0
      %2016 = vmatprep.subr.bf16.mxu0 0
      %2017 = vmatpush1.bf16.msra.mxu0 0
      %2018 = vmatprep.subr.bf16.mxu0 0
      %2019 = vmatpush1.bf16.msra.mxu0 0
      %2020 = vmatprep.mubr.bf16.mxu0 0
      %2021 = vmatmul.mubr.bf16.gmra.mrb[0].mxu0 %v1932
      %v2022 = vpop.f32.mrb[0].mxu0
      %v2023 = vadd.f32 0.0, %v2022
      %v2024 = vpop.f32.mrb[0].mxu0
      %v2025 = vpop.f32.mrb[0].mxu0
      %v2026 = vadd.f32 0.0, %v2025
      %v2027 = vpop.f32.mrb[0].mxu0
      %2028 = vmatprep.mubr.bf16.mxu0 0
      %2029 = vmatmul.mubr.bf16.gmra.mrb[0].mxu0 %v1933
      %v2030 = vpop.f32.mrb[0].mxu0
      %v2031 = vadd.f32 0.0, %v2030
      %v2032 = vpop.f32.mrb[0].mxu0
      %v2033 = vpop.f32.mrb[0].mxu0
      %v2034 = vadd.f32 0.0, %v2033
      %v2035 = vpop.f32.mrb[0].mxu0
      %2036 = vmatprep.mubr.bf16.mxu0 0
      %2037 = vmatmul.mubr.bf16.gmra.mrb[0].mxu0 %v1934
      %v2038 = vpop.f32.mrb[0].mxu0
      %v2039 = vadd.f32 0.0, %v2038
      %v2040 = vpop.f32.mrb[0].mxu0
      %v2041 = vpop.f32.mrb[0].mxu0
      %v2042 = vadd.f32 0.0, %v2041
      %v2043 = vpop.f32.mrb[0].mxu0
      %2044 = vmatprep.mubr.bf16.mxu0 0
      %2045 = vmatmul.mubr.bf16.gmra.mrb[0].mxu0 %v1935
      %v2046 = vpop.f32.mrb[0].mxu0
      %v2047 = vadd.f32 0.0, %v2046
      %v2048 = vpop.f32.mrb[0].mxu0
      %v2049 = vpop.f32.mrb[0].mxu0
      %v2050 = vadd.f32 0.0, %v2049
      %v2051 = vpop.f32.mrb[0].mxu0
      %2052 = vdwg.mxu0
      %v2053 = vadd.f32 %v1771, %v2023
      %v2054 = vadd.f32 %v1772, %v2026
      %v2055 = vadd.f32 %v1773, %v2031
      %v2056 = vadd.f32 %v1774, %v2034
      %v2057 = vadd.f32 %v1775, %v2039
      %v2058 = vadd.f32 %v1776, %v2042
      %v2059 = vadd.f32 %v1777, %v2047
      %v2060 = vadd.f32 %v1778, %v2050
      %v2061 = vld [vmem:[%s2] sm:$0x1]
      %v2063 = vlaneseq
      %v2064 = vshrl.u32 %v2063, 7
      %v2065 = vsub.s32 0, %v2064
      %v2066 = vrot.slane %v2061, %v2065
      %v2068 = vmul.f32 %v2053, %v2066
      %v2069 = vmul.f32 %v2054, %v2066
      %v2070 = vmul.f32 %v2055, %v2066
      %v2071 = vmul.f32 %v2056, %v2066
      %v2072 = vmul.f32 %v2057, %v2066
      %v2073 = vmul.f32 %v2058, %v2066
      %v2074 = vmul.f32 %v2059, %v2066
      %v2075 = vmul.f32 %v2060, %v2066
      %v2076 = vld [vmem:[%s3] sm:$0x1]
      %v2078 = vlaneseq
      %v2079 = vshrl.u32 %v2078, 7
      %v2080 = vsub.s32 0, %v2079
      %v2081 = vrot.slane %v2076, %v2080
      %v2083 = vadd.f32 %v2068, %v2081
      %v2084 = vadd.f32 %v2069, %v2081
      %v2085 = vadd.f32 %v2070, %v2081
      %v2086 = vadd.f32 %v2071, %v2081
      %v2087 = vadd.f32 %v2072, %v2081
      %v2088 = vadd.f32 %v2073, %v2081
      %v2089 = vadd.f32 %v2074, %v2081
      %v2090 = vadd.f32 %v2075, %v2081
      %v2091 = vmax.f32 %v2083, 0.0
      %v2092 = vmax.f32 %v2084, 0.0
      %v2093 = vmax.f32 %v2085, 0.0
      %v2094 = vmax.f32 %v2086, 0.0
      %v2095 = vmax.f32 %v2087, 0.0
      %v2096 = vmax.f32 %v2088, 0.0
      %v2097 = vmax.f32 %v2089, 0.0
      %v2098 = vmax.f32 %v2090, 0.0
      %v2099 = vpack.c.bf16 %v2092, %v2091
      %v2100 = vpack.c.bf16 %v2094, %v2093
      %v2101 = vpack.c.bf16 %v2096, %v2095
      %v2102 = vpack.c.bf16 %v2098, %v2097
      %v2107 = vunpack.c.l.b16 %v2099
      %v2108 = vunpack.c.h.b16 %v2099
      %v2109 = vunpack.c.l.b16 %v2100
      %v2110 = vunpack.c.h.b16 %v2100
      %v2111 = vunpack.c.l.b16 %v2101
      %v2112 = vunpack.c.h.b16 %v2101
      %v2113 = vunpack.c.l.b16 %v2102
      %v2114 = vunpack.c.h.b16 %v2102
      %v2115 = vpack.c.b16 %v2107, %v2107
      %v2116 = vpack.c.b16 %v2108, %v2108
      %v2117 = vpack.c.b16 %v2109, %v2109
      %v2118 = vpack.c.b16 %v2110, %v2110
      %v2119 = vpack.c.b16 %v2111, %v2111
      %v2120 = vpack.c.b16 %v2112, %v2112
      %v2121 = vpack.c.b16 %v2113, %v2113
      %v2122 = vpack.c.b16 %v2114, %v2114
      %2131 = vst [vmem:[%s202] sm:$0xf] %v2115
      %2132 = vst [vmem:[%s202 + $0x4] sm:$0xf] %v2116
      %2133 = vst [vmem:[%s202 + $0x8] sm:$0xf] %v2117
      %2134 = vst [vmem:[%s202 + $0xc] sm:$0xf] %v2118
      %2135 = vst [vmem:[%s202 + $0x10] sm:$0xf] %v2119
      %2136 = vst [vmem:[%s202 + $0x14] sm:$0xf] %v2120
      %2137 = vst [vmem:[%s202 + $0x18] sm:$0xf] %v2121
      %2138 = vst [vmem:[%s202 + $0x1c] sm:$0xf] %v2122
      %p2139 = scmp.lt.s32.totalorder %s15, 1
      %s2140 = scalar_select %p2139, %s15, 1
      %s2141 = smul.addr %s2140, 8
      %s2142 = smul.addr %s2141, 4
      %s2143 = scalar_lea.vmem %s4, %s2142
      // Predicated region
      $region37: #{bottleneck_forward.10} parent=35 // pred_check
        %p2144 = pneg %p122
      $region38: #{bottleneck_forward.10} parent=35 // pred_check_branch
        %2146 = sbr.rel (%p2144) target = $region40
      $region39: #{bottleneck_forward.10} parent=35 // pred_region
        _
      $region40: #{bottleneck_forward.10} parent=35 // pred_fallthru
        _
    $region36: #{bottleneck_forward.10} parent=5 // pred_fallthru
      _
    %p2147 = scmp.le.s32.totalorder 2, %s10
    // Predicated region
    $region41: #{bottleneck_forward.10} parent=5 // pred_check
      %p2148 = pneg %p2147
    $region42: #{bottleneck_forward.10} parent=5 // pred_check_branch
      %2150 = sbr.rel (%p2148) target = $region44
    $region43: #{bottleneck_forward.10} parent=5 // pred_region
      %s2151 = ssub.s32 %s10, 2
      // Predicated region
      $region45: #{bottleneck_forward.10} parent=43 // pred_check
        %p2152 = pneg %p128
      $region46: #{bottleneck_forward.10} parent=43 // pred_check_branch
        %2154 = sbr.rel (%p2152) target = $region48
      $region47: #{bottleneck_forward.10} parent=43 // pred_region
        %p2155 = scmp.lt.s32.totalorder %s16, 1
        %s2156 = scalar_select %p2155, %s16, 1
        %s2157 = smul.addr %s2156, 8
        %s2158 = smul.addr %s2157, 4
        %s2159 = scalar_lea.vmem %s4, %s2158
      $region48: #{bottleneck_forward.10} parent=43 // pred_fallthru
        _
    $region44: #{bottleneck_forward.10} parent=5 // pred_fallthru
      _
  $region6: #{bottleneck_forward.10} parent=0 // loop_footer
    %s14 = sadd.s32 1, %s10
  $region7: #{bottleneck_forward.10} parent=0 // loop_footer_branch
    %9 = sbr.rel target = $region3
  $region8: #{bottleneck_forward.10} parent=0 // loop_exit
    _

</llo_original>
